<compile_context>
chip_gen: v7x
topology: tpu7x:2x2x1
jax: 0.10.0
libtpu: 0.0.40
codegen_flags: <defaults>
</compile_context>

<pallas_src>
import math

import jax
import jax.numpy as jnp
from jax import lax
from jax.experimental import pallas as pl
from jax.experimental.pallas import tpu as pltpu

INPUT_DIM = 128
LSTM_HIDDEN = 64
LSTM_LAYERS = 2
NHEAD = 4
DIM_FF = 128
NUM_ENC_LAYERS = 6
NUM_CLASSES = 5
LN_EPS = 1e-5


def _layernorm(x, gamma, beta):
    mu = jnp.mean(x, axis=-1, keepdims=True)
    var = jnp.mean((x - mu) ** 2, axis=-1, keepdims=True)
    return (x - mu) * lax.rsqrt(var + LN_EPS) * gamma + beta


# ----------------------------------------------------------------------------
# Fused kernel: BiLSTM (grid step 0) + one encoder layer per grid step + head.
# ----------------------------------------------------------------------------
def _make_fused_kernel(T, BP, B):
    H = LSTM_HIDDEN
    HH = 2 * H                    # 128 : [h_fwd | h_bwd] lane layout
    E = INPUT_DIM
    dh = E // NHEAD
    scale = 1.0 / math.sqrt(dh)
    bf16 = jnp.bfloat16
    f32 = jnp.float32

    def rev_time(a):
        # Time-reverse a time-major (T*BP, C) slab.  BP is a multiple of 8 so
        # every piece is a full sublane tile; runs once, off the serial chain.
        return jnp.concatenate(
            [a[(T - 1 - t) * BP:(T - t) * BP] for t in range(T)], axis=0)

    def lstm_layer(xin, xin_rev, wa, wb, whh, b):
        # Hoisted + pre-summed input projection: gsum[t] already contains the
        # fwd(t) and bwd(T-1-t) input terms plus both biases, so the serial
        # per-step body is a single (BP,128)x(128,512) recurrent matmul.
        gsum = (jnp.dot(xin.astype(bf16), wa, preferred_element_type=f32)
                + jnp.dot(xin_rev.astype(bf16), wb, preferred_element_type=f32)
                + b)
        h = jnp.zeros((BP, HH), f32)
        c = jnp.zeros((BP, HH), f32)
        hs = []
        for t in range(T):                       # fully unrolled, T static
            gates = gsum[t * BP:(t + 1) * BP] + jnp.dot(
                h.astype(bf16), whh, preferred_element_type=f32)
            # gate columns: [i_f|i_b | f_f|f_b | o_f|o_b | g_f|g_b]
            sig = jax.nn.sigmoid(gates[:, 0:3 * HH])     # one 384-lane EUP pass
            g = jnp.tanh(gates[:, 3 * HH:4 * HH])
            c = sig[:, HH:2 * HH] * c + sig[:, 0:HH] * g
            h = sig[:, 2 * HH:3 * HH] * jnp.tanh(c)
            hs.append(h)          # raw loop state: [h_fwd(t) | h_bwd(T-1-t)]
        return hs

    def kernel(x_ref, lwa_ref, lwb_ref, lwhh_ref, lb_ref,
               embw_ref, embb_ref,
               wqkv_ref, bqkv_ref, wo_ref, bo_ref,
               w1_ref, b1_ref, w2_ref, b2_ref,
               g1_ref, be1_ref, g2_ref, be2_ref,
               mg_ref, mbe_ref, mw1_ref, mb1_ref, mw2_ref, mb2_ref,
               out_ref, x_scr):
        l = pl.program_id(0)

        # ---- grid step 0: fused 2-layer bidirectional LSTM + embedding -----
        @pl.when(l == 0)
        def _():
            xin = x_ref[...]
            xin_rev = rev_time(xin)
            hs = None
            for layer in range(LSTM_LAYERS):
                hs = lstm_layer(xin, xin_rev, lwa_ref[layer], lwb_ref[layer],
                                lwhh_ref[layer], lb_ref[layer])
                if layer + 1 < LSTM_LAYERS:
                    # layer-1 weights are pre-remixed at init so the RAW
                    # loop-state stack (and its block-reversal) feed it exactly.
                    xin = jnp.concatenate(hs, axis=0)
                    xin_rev = jnp.concatenate(hs[::-1], axis=0)
            # output[:, -1, :] = [h_fwd(T-1) | h_bwd(T-1)] via a lane select
            # (no 64-lane stores anywhere).
            lane = lax.broadcasted_iota(jnp.int32, (BP, HH), 1)
            last = jnp.where(lane < H, hs[T - 1], hs[0])[:B]
            # embedding Linear(2H -> E)
            x_scr[...] = (jnp.dot(last.astype(bf16), embw_ref[...],
                                  preferred_element_type=f32) + embb_ref[...])

        # ---- every grid step: one TransformerEncoderLayer (post-norm, ReLU) -
        x = x_scr[...]                                   # (S, E), S = batch
        # fused QKV projection: single (S,128)x(128,384) full-width MXU pass
        qkv = (jnp.dot(x.astype(bf16), wqkv_ref[0], preferred_element_type=f32)
               + bqkv_ref[0])
        ctx_parts = []
        for hh in range(NHEAD):          # tiny per-head score/context (S small)
            qh = qkv[:, hh * dh:(hh + 1) * dh] * scale
            kh = qkv[:, E + hh * dh:E + (hh + 1) * dh]
            vh = qkv[:, 2 * E + hh * dh:2 * E + (hh + 1) * dh]
            sc = lax.dot_general(qh.astype(bf16), kh.astype(bf16),
                                 (((1,), (1,)), ((), ())),
                                 preferred_element_type=f32)       # (S, S)
            p = jax.nn.softmax(sc, axis=-1)
            ctx_parts.append(jnp.dot(p.astype(bf16), vh.astype(bf16),
                                     preferred_element_type=f32))  # (S, dh)
        ctx = jnp.concatenate(ctx_parts, axis=1)         # (S, E), head-major
        attn = (jnp.dot(ctx.astype(bf16), wo_ref[0], preferred_element_type=f32)
                + bo_ref[0])
        x = _layernorm(x + attn, g1_ref[0], be1_ref[0])  # dropout = identity
        ff = jnp.maximum(jnp.dot(x.astype(bf16), w1_ref[0],
                                 preferred_element_type=f32) + b1_ref[0], 0.0)
        ff = jnp.dot(ff.astype(bf16), w2_ref[0],
                     preferred_element_type=f32) + b2_ref[0]
        x = _layernorm(x + ff, g2_ref[0], be2_ref[0])
        x_scr[...] = x

        # ---- last grid step: MLP head (LayerNorm -> Linear -> Linear -> ReLU)
        @pl.when(l == NUM_ENC_LAYERS - 1)
        def _():
            y = _layernorm(x, mg_ref[...], mbe_ref[...])
            y = jnp.dot(y.astype(bf16), mw1_ref[...],
                        preferred_element_type=f32) + mb1_ref[...]
            y = jnp.dot(y.astype(bf16), mw2_ref[...],
                        preferred_element_type=f32) + mb2_ref[...]
            out_ref[...] = jnp.maximum(y, 0.0)   # lane-dense (B,128) padded logits

    return kernel


# ----------------------------------------------------------------------------
# Parameters (deterministic, synthetic), pre-packed into kernel layouts.
# ----------------------------------------------------------------------------
def init_params(key):
    keys = iter(jax.random.split(key, 512))

    def u(shape, fan_in):
        s = 1.0 / math.sqrt(fan_in)
        return jax.random.uniform(next(keys), shape, jnp.float32, -s, s)

    H, HH, E, F = LSTM_HIDDEN, 2 * LSTM_HIDDEN, INPUT_DIM, DIM_FF
    GG = 4 * HH
    bf16 = jnp.bfloat16
    GATE_SRC = (0, 1, 3, 2)   # kernel gate order [i|f|o|g] <- PyTorch [i|f|g|o]

    def scatter_gates(w_t, direction):
        # w_t: (rows, 4H) in PyTorch gate order; emit (rows, 512) in the
        # interleaved [i_f|i_b | f_f|f_b | o_f|o_b | g_f|g_b] column layout.
        out = jnp.zeros((w_t.shape[0], GG), jnp.float32)
        for dst_g, src_g in enumerate(GATE_SRC):
            dst = dst_g * HH + direction * H
            out = out.at[:, dst:dst + H].set(w_t[:, src_g * H:(src_g + 1) * H])
        return out

    wa_l, wb_l, whh_l, b_l = [], [], [], []
    for layer in range(LSTM_LAYERS):
        din = INPUT_DIM if layer == 0 else HH        # both 128
        wih_f = u((4 * H, din), H); whh_f = u((4 * H, H), H)
        bih_f = u((4 * H,), H);     bhh_f = u((4 * H,), H)
        wih_b = u((4 * H, din), H); whh_b = u((4 * H, H), H)
        bih_b = u((4 * H,), H);     bhh_b = u((4 * H,), H)
        Wf = scatter_gates(wih_f.T, 0)   # (din, 512): input -> fwd gate cols
        Wb = scatter_gates(wih_b.T, 1)   # (din, 512): input -> bwd gate cols
        if layer == 0:
            wa, wb = Wf, Wb
        else:
            # layer-1 input at loop step t is the RAW loop state
            # [h_f(t) | h_b(T-1-t)]; remix the input halves so
            # gsum = Hraw @ wa + rev_time(Hraw) @ wb is exact.
            wa = jnp.concatenate([Wf[:H], Wb[H:]], axis=0)
            wb = jnp.concatenate([Wb[:H], Wf[H:]], axis=0)
        whh = jnp.concatenate([scatter_gates(whh_f.T, 0),
                               scatter_gates(whh_b.T, 1)], axis=0)   # (128,512)
        wa_l.append(wa); wb_l.append(wb); whh_l.append(whh)
        b_l.append(scatter_gates((bih_f + bhh_f)[None, :], 0)
                   + scatter_gates((bih_b + bhh_b)[None, :], 1))      # (1,512)

    params = dict(
        lstm_wa=jnp.stack(wa_l).astype(bf16),     # (2, 128, 512)
        lstm_wb=jnp.stack(wb_l).astype(bf16),     # (2, 128, 512)
        lstm_whh=jnp.stack(whh_l).astype(bf16),   # (2, 128, 512)
        lstm_b=jnp.stack(b_l),                    # (2, 1, 512) f32
    )

    params["emb_w"] = u((E, HH), HH).T.astype(bf16)      # (128, 128)
    params["emb_b"] = u((E,), HH)[None, :]

    wqkv, bqkv, wo, bo, w1, b1, w2, b2 = [], [], [], [], [], [], [], []
    g1, be1, g2, be2 = [], [], [], []
    for _ in range(NUM_ENC_LAYERS):
        in_w = u((3 * E, E), E); in_b = u((3 * E,), E)
        wqkv.append(in_w.T)                        # (128, 384): x @ wqkv = [q|k|v]
        bqkv.append(in_b[None, :])
        wo.append(u((E, E), E).T); bo.append(u((E,), E)[None, :])
        w1.append(u((F, E), E).T); b1.append(u((F,), E)[None, :])
        w2.append(u((E, F), F).T); b2.append(u((E,), F)[None, :])
        g1.append(jnp.ones((1, E), jnp.float32)); be1.append(jnp.zeros((1, E), jnp.float32))
        g2.append(jnp.ones((1, E), jnp.float32)); be2.append(jnp.zeros((1, E), jnp.float32))
    params["enc"] = dict(
        wqkv=jnp.stack(wqkv).astype(bf16), bqkv=jnp.stack(bqkv),
        wo=jnp.stack(wo).astype(bf16), bo=jnp.stack(bo),
        w1=jnp.stack(w1).astype(bf16), b1=jnp.stack(b1),
        w2=jnp.stack(w2).astype(bf16), b2=jnp.stack(b2),
        g1=jnp.stack(g1), be1=jnp.stack(be1), g2=jnp.stack(g2), be2=jnp.stack(be2),
    )

    mw2 = u((NUM_CLASSES, E), E).T                       # (E, 5)
    mw2_pad = jnp.zeros((E, E), jnp.float32).at[:, :NUM_CLASSES].set(mw2)
    mb2_pad = jnp.zeros((1, E), jnp.float32).at[0, :NUM_CLASSES].set(u((NUM_CLASSES,), E))
    params["mlp"] = dict(
        g=jnp.ones((1, E), jnp.float32), be=jnp.zeros((1, E), jnp.float32),
        w1=u((E, E), E).T.astype(bf16), b1=u((E,), E)[None, :],
        w2=mw2_pad.astype(bf16), b2=mb2_pad,
    )
    return params


# ----------------------------------------------------------------------------
# Forward pass: ONE pallas_call.
# ----------------------------------------------------------------------------
def bilstm_transformer_forward(x, params):
    # x: (B, T, INPUT_DIM), float32
    B, T, D = x.shape
    E = INPUT_DIM
    BP = ((B + 7) // 8) * 8      # pad batch to a full sublane tile for the LSTM

    # Time-major padded rows (row = t*BP + b).  Tiny (<=32 KB) host-side
    # rearrangement; backward-direction time reversal happens in-kernel.
    xp = jnp.zeros((BP, T, D), x.dtype).at[:B, :, :].set(x)
    xt = jnp.transpose(xp, (1, 0, 2)).reshape(T * BP, D)

    enc, mlp = params["enc"], params["mlp"]

    def const_spec(a):           # layer-invariant: whole array, resident
        n = a.ndim
        return pl.BlockSpec(a.shape, lambda l, n=n: (0,) * n)

    def layer_spec(a):           # (L, ...) stack: stream one layer per grid step
        n = a.ndim
        return pl.BlockSpec((1,) + a.shape[1:], lambda l, n=n: (l,) + (0,) * (n - 1))

    tagged = [
        (xt, "c"),
        (params["lstm_wa"], "c"), (params["lstm_wb"], "c"),
        (params["lstm_whh"], "c"), (params["lstm_b"], "c"),
        (params["emb_w"], "c"), (params["emb_b"], "c"),
        (enc["wqkv"], "l"), (enc["bqkv"], "l"), (enc["wo"], "l"), (enc["bo"], "l"),
        (enc["w1"], "l"), (enc["b1"], "l"), (enc["w2"], "l"), (enc["b2"], "l"),
        (enc["g1"], "l"), (enc["be1"], "l"), (enc["g2"], "l"), (enc["be2"], "l"),
        (mlp["g"], "c"), (mlp["be"], "c"),
        (mlp["w1"], "c"), (mlp["b1"], "c"), (mlp["w2"], "c"), (mlp["b2"], "c"),
    ]
    arrays = [a for a, _ in tagged]
    in_specs = [const_spec(a) if k == "c" else layer_spec(a) for a, k in tagged]

    logits_pad = pl.pallas_call(
        _make_fused_kernel(T, BP, B),
        out_shape=jax.ShapeDtypeStruct((B, E), jnp.float32),
        grid=(NUM_ENC_LAYERS,),
        in_specs=in_specs,
        out_specs=pl.BlockSpec((B, E), lambda l: (0, 0)),
        scratch_shapes=[pltpu.VMEM((B, E), jnp.float32)],   # x carried across layers
        compiler_params=pltpu.CompilerParams(
            dimension_semantics=("arbitrary",)),             # loop-carried state
    )(*arrays)
    return logits_pad[:, :NUM_CLASSES]


if __name__ == "__main__":
    key = jax.random.PRNGKey(0)
    kx, kp = jax.random.split(key)
    B, T = 2, 8
    x = jax.random.normal(kx, (B, T, INPUT_DIM), jnp.float32)
    params = init_params(kp)

    fwd = jax.jit(bilstm_transformer_forward)
    y = fwd(x, params)
    jax.block_until_ready(y)
    assert y.shape == (B, NUM_CLASSES)
    assert bool(jnp.all(jnp.isfinite(y)))
    print("KERNEL_OK")
</pallas_src>

<mosaic_0001>
module attributes {stable_mosaic.version = 11 : i64} {
  func.func @kernel(%arg0: i32, %arg1: memref<64x128xf32, #tpu.memory_space<vmem>>, %arg2: memref<2x128x512xbf16, #tpu.memory_space<vmem>>, %arg3: memref<2x128x512xbf16, #tpu.memory_space<vmem>>, %arg4: memref<2x128x512xbf16, #tpu.memory_space<vmem>>, %arg5: memref<2x1x512xf32, #tpu.memory_space<vmem>>, %arg6: memref<128x128xbf16, #tpu.memory_space<vmem>>, %arg7: memref<1x128xf32, #tpu.memory_space<vmem>>, %arg8: memref<1x128x384xbf16, #tpu.memory_space<vmem>>, %arg9: memref<1x1x384xf32, #tpu.memory_space<vmem>>, %arg10: memref<1x128x128xbf16, #tpu.memory_space<vmem>>, %arg11: memref<1x1x128xf32, #tpu.memory_space<vmem>>, %arg12: memref<1x128x128xbf16, #tpu.memory_space<vmem>>, %arg13: memref<1x1x128xf32, #tpu.memory_space<vmem>>, %arg14: memref<1x128x128xbf16, #tpu.memory_space<vmem>>, %arg15: memref<1x1x128xf32, #tpu.memory_space<vmem>>, %arg16: memref<1x1x128xf32, #tpu.memory_space<vmem>>, %arg17: memref<1x1x128xf32, #tpu.memory_space<vmem>>, %arg18: memref<1x1x128xf32, #tpu.memory_space<vmem>>, %arg19: memref<1x1x128xf32, #tpu.memory_space<vmem>>, %arg20: memref<1x128xf32, #tpu.memory_space<vmem>>, %arg21: memref<1x128xf32, #tpu.memory_space<vmem>>, %arg22: memref<128x128xbf16, #tpu.memory_space<vmem>>, %arg23: memref<1x128xf32, #tpu.memory_space<vmem>>, %arg24: memref<128x128xbf16, #tpu.memory_space<vmem>>, %arg25: memref<1x128xf32, #tpu.memory_space<vmem>>, %arg26: memref<2x128xf32, #tpu.memory_space<vmem>>, %arg27: memref<2x128xf32, #tpu.memory_space<vmem>>) attributes {dimension_semantics = [#tpu.dimension_semantics<arbitrary>], iteration_bounds = array<i64: 6>, scalar_prefetch = 0 : i64, scratch_operands = 1 : i64, tpu.core_type = #tpu.core_type<tc>, window_params = [{pipeline_mode = #tpu.pipeline_mode<synchronous>, transform_indices = @transform_0, window_bounds = array<i64: 64, 128>}, {pipeline_mode = #tpu.pipeline_mode<synchronous>, transform_indices = @transform_1, window_bounds = array<i64: 2, 128, 512>}, {pipeline_mode = #tpu.pipeline_mode<synchronous>, transform_indices = @transform_2, window_bounds = array<i64: 2, 128, 512>}, {pipeline_mode = #tpu.pipeline_mode<synchronous>, transform_indices = @transform_3, window_bounds = array<i64: 2, 128, 512>}, {pipeline_mode = #tpu.pipeline_mode<synchronous>, transform_indices = @transform_4, window_bounds = array<i64: 2, 1, 512>}, {pipeline_mode = #tpu.pipeline_mode<synchronous>, transform_indices = @transform_5, window_bounds = array<i64: 128, 128>}, {pipeline_mode = #tpu.pipeline_mode<synchronous>, transform_indices = @transform_6, window_bounds = array<i64: 1, 128>}, {transform_indices = @transform_7, window_bounds = array<i64: 1, 128, 384>}, {transform_indices = @transform_8, window_bounds = array<i64: 1, 1, 384>}, {transform_indices = @transform_9, window_bounds = array<i64: 1, 128, 128>}, {transform_indices = @transform_10, window_bounds = array<i64: 1, 1, 128>}, {transform_indices = @transform_11, window_bounds = array<i64: 1, 128, 128>}, {transform_indices = @transform_12, window_bounds = array<i64: 1, 1, 128>}, {transform_indices = @transform_13, window_bounds = array<i64: 1, 128, 128>}, {transform_indices = @transform_14, window_bounds = array<i64: 1, 1, 128>}, {transform_indices = @transform_15, window_bounds = array<i64: 1, 1, 128>}, {transform_indices = @transform_16, window_bounds = array<i64: 1, 1, 128>}, {transform_indices = @transform_17, window_bounds = array<i64: 1, 1, 128>}, {transform_indices = @transform_18, window_bounds = array<i64: 1, 1, 128>}, {pipeline_mode = #tpu.pipeline_mode<synchronous>, transform_indices = @transform_19, window_bounds = array<i64: 1, 128>}, {pipeline_mode = #tpu.pipeline_mode<synchronous>, transform_indices = @transform_20, window_bounds = array<i64: 1, 128>}, {pipeline_mode = #tpu.pipeline_mode<synchronous>, transform_indices = @transform_21, window_bounds = array<i64: 128, 128>}, {pipeline_mode = #tpu.pipeline_mode<synchronous>, transform_indices = @transform_22, window_bounds = array<i64: 1, 128>}, {pipeline_mode = #tpu.pipeline_mode<synchronous>, transform_indices = @transform_23, window_bounds = array<i64: 128, 128>}, {pipeline_mode = #tpu.pipeline_mode<synchronous>, transform_indices = @transform_24, window_bounds = array<i64: 1, 128>}, {pipeline_mode = #tpu.pipeline_mode<synchronous>, transform_indices = @transform_25, window_bounds = array<i64: 2, 128>}]} {
    %c0_i32 = arith.constant 0 : i32
    %0 = arith.cmpi eq, %arg0, %c0_i32 : i32
    %1 = arith.extui %0 : i1 to i32
    %c0_i32_0 = arith.constant 0 : i32
    %2 = arith.cmpi ne, %1, %c0_i32_0 : i32
    scf.if %2 {
      %c0_79 = arith.constant 0 : index
      %c0_80 = arith.constant 0 : index
      %185 = vector.load %arg1[%c0_79, %c0_80] : memref<64x128xf32, #tpu.memory_space<vmem>>, vector<64x128xf32>
      %186 = vector.extract_strided_slice %185 {offsets = [56, 0], sizes = [8, 128], strides = [1, 1]} : vector<64x128xf32> to vector<8x128xf32>
      %187 = vector.extract_strided_slice %185 {offsets = [48, 0], sizes = [8, 128], strides = [1, 1]} : vector<64x128xf32> to vector<8x128xf32>
      %188 = vector.extract_strided_slice %185 {offsets = [40, 0], sizes = [8, 128], strides = [1, 1]} : vector<64x128xf32> to vector<8x128xf32>
      %189 = vector.extract_strided_slice %185 {offsets = [32, 0], sizes = [8, 128], strides = [1, 1]} : vector<64x128xf32> to vector<8x128xf32>
      %190 = vector.extract_strided_slice %185 {offsets = [24, 0], sizes = [8, 128], strides = [1, 1]} : vector<64x128xf32> to vector<8x128xf32>
      %191 = vector.extract_strided_slice %185 {offsets = [16, 0], sizes = [8, 128], strides = [1, 1]} : vector<64x128xf32> to vector<8x128xf32>
      %192 = vector.extract_strided_slice %185 {offsets = [8, 0], sizes = [8, 128], strides = [1, 1]} : vector<64x128xf32> to vector<8x128xf32>
      %193 = vector.extract_strided_slice %185 {offsets = [0, 0], sizes = [8, 128], strides = [1, 1]} : vector<64x128xf32> to vector<8x128xf32>
      %194 = tpu.concatenate %186, %187, %188, %189, %190, %191, %192, %193 in 0 : vector<8x128xf32>, vector<8x128xf32>, vector<8x128xf32>, vector<8x128xf32>, vector<8x128xf32>, vector<8x128xf32>, vector<8x128xf32>, vector<8x128xf32> -> vector<64x128xf32>
      %c0_81 = arith.constant 0 : index
      %c0_82 = arith.constant 0 : index
      %c0_83 = arith.constant 0 : index
      %195 = vector.load %arg2[%c0_81, %c0_82, %c0_83] : memref<2x128x512xbf16, #tpu.memory_space<vmem>>, vector<1x128x512xbf16>
      %196 = vector.shape_cast %195 : vector<1x128x512xbf16> to vector<128x512xbf16>
      %c0_84 = arith.constant 0 : index
      %c0_85 = arith.constant 0 : index
      %c0_86 = arith.constant 0 : index
      %197 = vector.load %arg3[%c0_84, %c0_85, %c0_86] : memref<2x128x512xbf16, #tpu.memory_space<vmem>>, vector<1x128x512xbf16>
      %198 = vector.shape_cast %197 : vector<1x128x512xbf16> to vector<128x512xbf16>
      %c0_87 = arith.constant 0 : index
      %c0_88 = arith.constant 0 : index
      %c0_89 = arith.constant 0 : index
      %199 = vector.load %arg4[%c0_87, %c0_88, %c0_89] : memref<2x128x512xbf16, #tpu.memory_space<vmem>>, vector<1x128x512xbf16>
      %200 = vector.shape_cast %199 : vector<1x128x512xbf16> to vector<128x512xbf16>
      %c0_90 = arith.constant 0 : index
      %c0_91 = arith.constant 0 : index
      %c0_92 = arith.constant 0 : index
      %201 = vector.load %arg5[%c0_90, %c0_91, %c0_92] : memref<2x1x512xf32, #tpu.memory_space<vmem>>, vector<1x1x512xf32>
      %202 = vector.shape_cast %201 : vector<1x1x512xf32> to vector<1x512xf32>
      %203 = arith.truncf %185 : vector<64x128xf32> to vector<64x128xbf16>
      %cst_93 = arith.constant dense<0.000000e+00> : vector<64x512xf32>
      %204 = tpu.matmul %203, %196, %cst_93 {dimension_numbers = #tpu.dot_dimension_numbers<[1], [0], [0], [1], [0, 0, 1, 1], [], []>} : vector<64x128xbf16>, vector<128x512xbf16>, vector<64x512xf32> -> vector<64x512xf32>
      %205 = arith.truncf %194 : vector<64x128xf32> to vector<64x128xbf16>
      %cst_94 = arith.constant dense<0.000000e+00> : vector<64x512xf32>
      %206 = tpu.matmul %205, %198, %cst_94 {dimension_numbers = #tpu.dot_dimension_numbers<[1], [0], [0], [1], [0, 0, 1, 1], [], []>} : vector<64x128xbf16>, vector<128x512xbf16>, vector<64x512xf32> -> vector<64x512xf32>
      %207 = arith.addf %204, %206 : vector<64x512xf32>
      %208 = vector.broadcast %202 : vector<1x512xf32> to vector<64x512xf32>
      %209 = arith.addf %207, %208 : vector<64x512xf32>
      %cst_95 = arith.constant 0.000000e+00 : f32
      %210 = vector.broadcast %cst_95 : f32 to vector<8x128xf32>
      %cst_96 = arith.constant 0.000000e+00 : f32
      %211 = vector.broadcast %cst_96 : f32 to vector<8x128xf32>
      %212 = vector.extract_strided_slice %209 {offsets = [0, 0], sizes = [8, 512], strides = [1, 1]} : vector<64x512xf32> to vector<8x512xf32>
      %213 = arith.truncf %210 : vector<8x128xf32> to vector<8x128xbf16>
      %cst_97 = arith.constant dense<0.000000e+00> : vector<8x512xf32>
      %214 = tpu.matmul %213, %200, %cst_97 {dimension_numbers = #tpu.dot_dimension_numbers<[1], [0], [0], [1], [0, 0, 1, 1], [], []>} : vector<8x128xbf16>, vector<128x512xbf16>, vector<8x512xf32> -> vector<8x512xf32>
      %215 = arith.addf %212, %214 : vector<8x512xf32>
      %216 = vector.extract_strided_slice %215 {offsets = [0, 0], sizes = [8, 384], strides = [1, 1]} : vector<8x512xf32> to vector<8x384xf32>
      %217 = arith.negf %216 : vector<8x384xf32>
      %218 = math.exp %217 : vector<8x384xf32>
      %cst_98 = arith.constant 1.000000e+00 : f32
      %219 = vector.broadcast %cst_98 : f32 to vector<8x384xf32>
      %220 = arith.addf %219, %218 : vector<8x384xf32>
      %221 = arith.divf %219, %220 : vector<8x384xf32>
      %222 = vector.extract_strided_slice %215 {offsets = [0, 384], sizes = [8, 128], strides = [1, 1]} : vector<8x512xf32> to vector<8x128xf32>
      %223 = math.tanh %222 : vector<8x128xf32>
      %224 = vector.extract_strided_slice %221 {offsets = [0, 128], sizes = [8, 128], strides = [1, 1]} : vector<8x384xf32> to vector<8x128xf32>
      %225 = arith.mulf %224, %211 : vector<8x128xf32>
      %226 = vector.extract_strided_slice %221 {offsets = [0, 0], sizes = [8, 128], strides = [1, 1]} : vector<8x384xf32> to vector<8x128xf32>
      %227 = arith.mulf %226, %223 : vector<8x128xf32>
      %228 = arith.addf %225, %227 : vector<8x128xf32>
      %229 = vector.extract_strided_slice %221 {offsets = [0, 256], sizes = [8, 128], strides = [1, 1]} : vector<8x384xf32> to vector<8x128xf32>
      %230 = math.tanh %228 : vector<8x128xf32>
      %231 = arith.mulf %229, %230 : vector<8x128xf32>
      %232 = vector.extract_strided_slice %209 {offsets = [8, 0], sizes = [8, 512], strides = [1, 1]} : vector<64x512xf32> to vector<8x512xf32>
      %233 = arith.truncf %231 : vector<8x128xf32> to vector<8x128xbf16>
      %cst_99 = arith.constant dense<0.000000e+00> : vector<8x512xf32>
      %234 = tpu.matmul %233, %200, %cst_99 {dimension_numbers = #tpu.dot_dimension_numbers<[1], [0], [0], [1], [0, 0, 1, 1], [], []>} : vector<8x128xbf16>, vector<128x512xbf16>, vector<8x512xf32> -> vector<8x512xf32>
      %235 = arith.addf %232, %234 : vector<8x512xf32>
      %236 = vector.extract_strided_slice %235 {offsets = [0, 0], sizes = [8, 384], strides = [1, 1]} : vector<8x512xf32> to vector<8x384xf32>
      %237 = arith.negf %236 : vector<8x384xf32>
      %238 = math.exp %237 : vector<8x384xf32>
      %cst_100 = arith.constant 1.000000e+00 : f32
      %239 = vector.broadcast %cst_100 : f32 to vector<8x384xf32>
      %240 = arith.addf %239, %238 : vector<8x384xf32>
      %241 = arith.divf %239, %240 : vector<8x384xf32>
      %242 = vector.extract_strided_slice %235 {offsets = [0, 384], sizes = [8, 128], strides = [1, 1]} : vector<8x512xf32> to vector<8x128xf32>
      %243 = math.tanh %242 : vector<8x128xf32>
      %244 = vector.extract_strided_slice %241 {offsets = [0, 128], sizes = [8, 128], strides = [1, 1]} : vector<8x384xf32> to vector<8x128xf32>
      %245 = arith.mulf %244, %228 : vector<8x128xf32>
      %246 = vector.extract_strided_slice %241 {offsets = [0, 0], sizes = [8, 128], strides = [1, 1]} : vector<8x384xf32> to vector<8x128xf32>
      %247 = arith.mulf %246, %243 : vector<8x128xf32>
      %248 = arith.addf %245, %247 : vector<8x128xf32>
      %249 = vector.extract_strided_slice %241 {offsets = [0, 256], sizes = [8, 128], strides = [1, 1]} : vector<8x384xf32> to vector<8x128xf32>
      %250 = math.tanh %248 : vector<8x128xf32>
      %251 = arith.mulf %249, %250 : vector<8x128xf32>
      %252 = vector.extract_strided_slice %209 {offsets = [16, 0], sizes = [8, 512], strides = [1, 1]} : vector<64x512xf32> to vector<8x512xf32>
      %253 = arith.truncf %251 : vector<8x128xf32> to vector<8x128xbf16>
      %cst_101 = arith.constant dense<0.000000e+00> : vector<8x512xf32>
      %254 = tpu.matmul %253, %200, %cst_101 {dimension_numbers = #tpu.dot_dimension_numbers<[1], [0], [0], [1], [0, 0, 1, 1], [], []>} : vector<8x128xbf16>, vector<128x512xbf16>, vector<8x512xf32> -> vector<8x512xf32>
      %255 = arith.addf %252, %254 : vector<8x512xf32>
      %256 = vector.extract_strided_slice %255 {offsets = [0, 0], sizes = [8, 384], strides = [1, 1]} : vector<8x512xf32> to vector<8x384xf32>
      %257 = arith.negf %256 : vector<8x384xf32>
      %258 = math.exp %257 : vector<8x384xf32>
      %cst_102 = arith.constant 1.000000e+00 : f32
      %259 = vector.broadcast %cst_102 : f32 to vector<8x384xf32>
      %260 = arith.addf %259, %258 : vector<8x384xf32>
      %261 = arith.divf %259, %260 : vector<8x384xf32>
      %262 = vector.extract_strided_slice %255 {offsets = [0, 384], sizes = [8, 128], strides = [1, 1]} : vector<8x512xf32> to vector<8x128xf32>
      %263 = math.tanh %262 : vector<8x128xf32>
      %264 = vector.extract_strided_slice %261 {offsets = [0, 128], sizes = [8, 128], strides = [1, 1]} : vector<8x384xf32> to vector<8x128xf32>
      %265 = arith.mulf %264, %248 : vector<8x128xf32>
      %266 = vector.extract_strided_slice %261 {offsets = [0, 0], sizes = [8, 128], strides = [1, 1]} : vector<8x384xf32> to vector<8x128xf32>
      %267 = arith.mulf %266, %263 : vector<8x128xf32>
      %268 = arith.addf %265, %267 : vector<8x128xf32>
      %269 = vector.extract_strided_slice %261 {offsets = [0, 256], sizes = [8, 128], strides = [1, 1]} : vector<8x384xf32> to vector<8x128xf32>
      %270 = math.tanh %268 : vector<8x128xf32>
      %271 = arith.mulf %269, %270 : vector<8x128xf32>
      %272 = vector.extract_strided_slice %209 {offsets = [24, 0], sizes = [8, 512], strides = [1, 1]} : vector<64x512xf32> to vector<8x512xf32>
      %273 = arith.truncf %271 : vector<8x128xf32> to vector<8x128xbf16>
      %cst_103 = arith.constant dense<0.000000e+00> : vector<8x512xf32>
      %274 = tpu.matmul %273, %200, %cst_103 {dimension_numbers = #tpu.dot_dimension_numbers<[1], [0], [0], [1], [0, 0, 1, 1], [], []>} : vector<8x128xbf16>, vector<128x512xbf16>, vector<8x512xf32> -> vector<8x512xf32>
      %275 = arith.addf %272, %274 : vector<8x512xf32>
      %276 = vector.extract_strided_slice %275 {offsets = [0, 0], sizes = [8, 384], strides = [1, 1]} : vector<8x512xf32> to vector<8x384xf32>
      %277 = arith.negf %276 : vector<8x384xf32>
      %278 = math.exp %277 : vector<8x384xf32>
      %cst_104 = arith.constant 1.000000e+00 : f32
      %279 = vector.broadcast %cst_104 : f32 to vector<8x384xf32>
      %280 = arith.addf %279, %278 : vector<8x384xf32>
      %281 = arith.divf %279, %280 : vector<8x384xf32>
      %282 = vector.extract_strided_slice %275 {offsets = [0, 384], sizes = [8, 128], strides = [1, 1]} : vector<8x512xf32> to vector<8x128xf32>
      %283 = math.tanh %282 : vector<8x128xf32>
      %284 = vector.extract_strided_slice %281 {offsets = [0, 128], sizes = [8, 128], strides = [1, 1]} : vector<8x384xf32> to vector<8x128xf32>
      %285 = arith.mulf %284, %268 : vector<8x128xf32>
      %286 = vector.extract_strided_slice %281 {offsets = [0, 0], sizes = [8, 128], strides = [1, 1]} : vector<8x384xf32> to vector<8x128xf32>
      %287 = arith.mulf %286, %283 : vector<8x128xf32>
      %288 = arith.addf %285, %287 : vector<8x128xf32>
      %289 = vector.extract_strided_slice %281 {offsets = [0, 256], sizes = [8, 128], strides = [1, 1]} : vector<8x384xf32> to vector<8x128xf32>
      %290 = math.tanh %288 : vector<8x128xf32>
      %291 = arith.mulf %289, %290 : vector<8x128xf32>
      %292 = vector.extract_strided_slice %209 {offsets = [32, 0], sizes = [8, 512], strides = [1, 1]} : vector<64x512xf32> to vector<8x512xf32>
      %293 = arith.truncf %291 : vector<8x128xf32> to vector<8x128xbf16>
      %cst_105 = arith.constant dense<0.000000e+00> : vector<8x512xf32>
      %294 = tpu.matmul %293, %200, %cst_105 {dimension_numbers = #tpu.dot_dimension_numbers<[1], [0], [0], [1], [0, 0, 1, 1], [], []>} : vector<8x128xbf16>, vector<128x512xbf16>, vector<8x512xf32> -> vector<8x512xf32>
      %295 = arith.addf %292, %294 : vector<8x512xf32>
      %296 = vector.extract_strided_slice %295 {offsets = [0, 0], sizes = [8, 384], strides = [1, 1]} : vector<8x512xf32> to vector<8x384xf32>
      %297 = arith.negf %296 : vector<8x384xf32>
      %298 = math.exp %297 : vector<8x384xf32>
      %cst_106 = arith.constant 1.000000e+00 : f32
      %299 = vector.broadcast %cst_106 : f32 to vector<8x384xf32>
      %300 = arith.addf %299, %298 : vector<8x384xf32>
      %301 = arith.divf %299, %300 : vector<8x384xf32>
      %302 = vector.extract_strided_slice %295 {offsets = [0, 384], sizes = [8, 128], strides = [1, 1]} : vector<8x512xf32> to vector<8x128xf32>
      %303 = math.tanh %302 : vector<8x128xf32>
      %304 = vector.extract_strided_slice %301 {offsets = [0, 128], sizes = [8, 128], strides = [1, 1]} : vector<8x384xf32> to vector<8x128xf32>
      %305 = arith.mulf %304, %288 : vector<8x128xf32>
      %306 = vector.extract_strided_slice %301 {offsets = [0, 0], sizes = [8, 128], strides = [1, 1]} : vector<8x384xf32> to vector<8x128xf32>
      %307 = arith.mulf %306, %303 : vector<8x128xf32>
      %308 = arith.addf %305, %307 : vector<8x128xf32>
      %309 = vector.extract_strided_slice %301 {offsets = [0, 256], sizes = [8, 128], strides = [1, 1]} : vector<8x384xf32> to vector<8x128xf32>
      %310 = math.tanh %308 : vector<8x128xf32>
      %311 = arith.mulf %309, %310 : vector<8x128xf32>
      %312 = vector.extract_strided_slice %209 {offsets = [40, 0], sizes = [8, 512], strides = [1, 1]} : vector<64x512xf32> to vector<8x512xf32>
      %313 = arith.truncf %311 : vector<8x128xf32> to vector<8x128xbf16>
      %cst_107 = arith.constant dense<0.000000e+00> : vector<8x512xf32>
      %314 = tpu.matmul %313, %200, %cst_107 {dimension_numbers = #tpu.dot_dimension_numbers<[1], [0], [0], [1], [0, 0, 1, 1], [], []>} : vector<8x128xbf16>, vector<128x512xbf16>, vector<8x512xf32> -> vector<8x512xf32>
      %315 = arith.addf %312, %314 : vector<8x512xf32>
      %316 = vector.extract_strided_slice %315 {offsets = [0, 0], sizes = [8, 384], strides = [1, 1]} : vector<8x512xf32> to vector<8x384xf32>
      %317 = arith.negf %316 : vector<8x384xf32>
      %318 = math.exp %317 : vector<8x384xf32>
      %cst_108 = arith.constant 1.000000e+00 : f32
      %319 = vector.broadcast %cst_108 : f32 to vector<8x384xf32>
      %320 = arith.addf %319, %318 : vector<8x384xf32>
      %321 = arith.divf %319, %320 : vector<8x384xf32>
      %322 = vector.extract_strided_slice %315 {offsets = [0, 384], sizes = [8, 128], strides = [1, 1]} : vector<8x512xf32> to vector<8x128xf32>
      %323 = math.tanh %322 : vector<8x128xf32>
      %324 = vector.extract_strided_slice %321 {offsets = [0, 128], sizes = [8, 128], strides = [1, 1]} : vector<8x384xf32> to vector<8x128xf32>
      %325 = arith.mulf %324, %308 : vector<8x128xf32>
      %326 = vector.extract_strided_slice %321 {offsets = [0, 0], sizes = [8, 128], strides = [1, 1]} : vector<8x384xf32> to vector<8x128xf32>
      %327 = arith.mulf %326, %323 : vector<8x128xf32>
      %328 = arith.addf %325, %327 : vector<8x128xf32>
      %329 = vector.extract_strided_slice %321 {offsets = [0, 256], sizes = [8, 128], strides = [1, 1]} : vector<8x384xf32> to vector<8x128xf32>
      %330 = math.tanh %328 : vector<8x128xf32>
      %331 = arith.mulf %329, %330 : vector<8x128xf32>
      %332 = vector.extract_strided_slice %209 {offsets = [48, 0], sizes = [8, 512], strides = [1, 1]} : vector<64x512xf32> to vector<8x512xf32>
      %333 = arith.truncf %331 : vector<8x128xf32> to vector<8x128xbf16>
      %cst_109 = arith.constant dense<0.000000e+00> : vector<8x512xf32>
      %334 = tpu.matmul %333, %200, %cst_109 {dimension_numbers = #tpu.dot_dimension_numbers<[1], [0], [0], [1], [0, 0, 1, 1], [], []>} : vector<8x128xbf16>, vector<128x512xbf16>, vector<8x512xf32> -> vector<8x512xf32>
      %335 = arith.addf %332, %334 : vector<8x512xf32>
      %336 = vector.extract_strided_slice %335 {offsets = [0, 0], sizes = [8, 384], strides = [1, 1]} : vector<8x512xf32> to vector<8x384xf32>
      %337 = arith.negf %336 : vector<8x384xf32>
      %338 = math.exp %337 : vector<8x384xf32>
      %cst_110 = arith.constant 1.000000e+00 : f32
      %339 = vector.broadcast %cst_110 : f32 to vector<8x384xf32>
      %340 = arith.addf %339, %338 : vector<8x384xf32>
      %341 = arith.divf %339, %340 : vector<8x384xf32>
      %342 = vector.extract_strided_slice %335 {offsets = [0, 384], sizes = [8, 128], strides = [1, 1]} : vector<8x512xf32> to vector<8x128xf32>
      %343 = math.tanh %342 : vector<8x128xf32>
      %344 = vector.extract_strided_slice %341 {offsets = [0, 128], sizes = [8, 128], strides = [1, 1]} : vector<8x384xf32> to vector<8x128xf32>
      %345 = arith.mulf %344, %328 : vector<8x128xf32>
      %346 = vector.extract_strided_slice %341 {offsets = [0, 0], sizes = [8, 128], strides = [1, 1]} : vector<8x384xf32> to vector<8x128xf32>
      %347 = arith.mulf %346, %343 : vector<8x128xf32>
      %348 = arith.addf %345, %347 : vector<8x128xf32>
      %349 = vector.extract_strided_slice %341 {offsets = [0, 256], sizes = [8, 128], strides = [1, 1]} : vector<8x384xf32> to vector<8x128xf32>
      %350 = math.tanh %348 : vector<8x128xf32>
      %351 = arith.mulf %349, %350 : vector<8x128xf32>
      %352 = vector.extract_strided_slice %209 {offsets = [56, 0], sizes = [8, 512], strides = [1, 1]} : vector<64x512xf32> to vector<8x512xf32>
      %353 = arith.truncf %351 : vector<8x128xf32> to vector<8x128xbf16>
      %cst_111 = arith.constant dense<0.000000e+00> : vector<8x512xf32>
      %354 = tpu.matmul %353, %200, %cst_111 {dimension_numbers = #tpu.dot_dimension_numbers<[1], [0], [0], [1], [0, 0, 1, 1], [], []>} : vector<8x128xbf16>, vector<128x512xbf16>, vector<8x512xf32> -> vector<8x512xf32>
      %355 = arith.addf %352, %354 : vector<8x512xf32>
      %356 = vector.extract_strided_slice %355 {offsets = [0, 0], sizes = [8, 384], strides = [1, 1]} : vector<8x512xf32> to vector<8x384xf32>
      %357 = arith.negf %356 : vector<8x384xf32>
      %358 = math.exp %357 : vector<8x384xf32>
      %cst_112 = arith.constant 1.000000e+00 : f32
      %359 = vector.broadcast %cst_112 : f32 to vector<8x384xf32>
      %360 = arith.addf %359, %358 : vector<8x384xf32>
      %361 = arith.divf %359, %360 : vector<8x384xf32>
      %362 = vector.extract_strided_slice %355 {offsets = [0, 384], sizes = [8, 128], strides = [1, 1]} : vector<8x512xf32> to vector<8x128xf32>
      %363 = math.tanh %362 : vector<8x128xf32>
      %364 = vector.extract_strided_slice %361 {offsets = [0, 128], sizes = [8, 128], strides = [1, 1]} : vector<8x384xf32> to vector<8x128xf32>
      %365 = arith.mulf %364, %348 : vector<8x128xf32>
      %366 = vector.extract_strided_slice %361 {offsets = [0, 0], sizes = [8, 128], strides = [1, 1]} : vector<8x384xf32> to vector<8x128xf32>
      %367 = arith.mulf %366, %363 : vector<8x128xf32>
      %368 = arith.addf %365, %367 : vector<8x128xf32>
      %369 = vector.extract_strided_slice %361 {offsets = [0, 256], sizes = [8, 128], strides = [1, 1]} : vector<8x384xf32> to vector<8x128xf32>
      %370 = math.tanh %368 : vector<8x128xf32>
      %371 = arith.mulf %369, %370 : vector<8x128xf32>
      %372 = tpu.concatenate %231, %251, %271, %291, %311, %331, %351, %371 in 0 : vector<8x128xf32>, vector<8x128xf32>, vector<8x128xf32>, vector<8x128xf32>, vector<8x128xf32>, vector<8x128xf32>, vector<8x128xf32>, vector<8x128xf32> -> vector<64x128xf32>
      %373 = tpu.concatenate %371, %351, %331, %311, %291, %271, %251, %231 in 0 : vector<8x128xf32>, vector<8x128xf32>, vector<8x128xf32>, vector<8x128xf32>, vector<8x128xf32>, vector<8x128xf32>, vector<8x128xf32>, vector<8x128xf32> -> vector<64x128xf32>
      %c1 = arith.constant 1 : index
      %c0_113 = arith.constant 0 : index
      %c0_114 = arith.constant 0 : index
      %374 = vector.load %arg2[%c1, %c0_113, %c0_114] : memref<2x128x512xbf16, #tpu.memory_space<vmem>>, vector<1x128x512xbf16>
      %375 = vector.shape_cast %374 : vector<1x128x512xbf16> to vector<128x512xbf16>
      %c1_115 = arith.constant 1 : index
      %c0_116 = arith.constant 0 : index
      %c0_117 = arith.constant 0 : index
      %376 = vector.load %arg3[%c1_115, %c0_116, %c0_117] : memref<2x128x512xbf16, #tpu.memory_space<vmem>>, vector<1x128x512xbf16>
      %377 = vector.shape_cast %376 : vector<1x128x512xbf16> to vector<128x512xbf16>
      %c1_118 = arith.constant 1 : index
      %c0_119 = arith.constant 0 : index
      %c0_120 = arith.constant 0 : index
      %378 = vector.load %arg4[%c1_118, %c0_119, %c0_120] : memref<2x128x512xbf16, #tpu.memory_space<vmem>>, vector<1x128x512xbf16>
      %379 = vector.shape_cast %378 : vector<1x128x512xbf16> to vector<128x512xbf16>
      %c1_121 = arith.constant 1 : index
      %c0_122 = arith.constant 0 : index
      %c0_123 = arith.constant 0 : index
      %380 = vector.load %arg5[%c1_121, %c0_122, %c0_123] : memref<2x1x512xf32, #tpu.memory_space<vmem>>, vector<1x1x512xf32>
      %381 = vector.shape_cast %380 : vector<1x1x512xf32> to vector<1x512xf32>
      %382 = arith.truncf %372 : vector<64x128xf32> to vector<64x128xbf16>
      %cst_124 = arith.constant dense<0.000000e+00> : vector<64x512xf32>
      %383 = tpu.matmul %382, %375, %cst_124 {dimension_numbers = #tpu.dot_dimension_numbers<[1], [0], [0], [1], [0, 0, 1, 1], [], []>} : vector<64x128xbf16>, vector<128x512xbf16>, vector<64x512xf32> -> vector<64x512xf32>
      %384 = arith.truncf %373 : vector<64x128xf32> to vector<64x128xbf16>
      %cst_125 = arith.constant dense<0.000000e+00> : vector<64x512xf32>
      %385 = tpu.matmul %384, %377, %cst_125 {dimension_numbers = #tpu.dot_dimension_numbers<[1], [0], [0], [1], [0, 0, 1, 1], [], []>} : vector<64x128xbf16>, vector<128x512xbf16>, vector<64x512xf32> -> vector<64x512xf32>
      %386 = arith.addf %383, %385 : vector<64x512xf32>
      %387 = vector.broadcast %381 : vector<1x512xf32> to vector<64x512xf32>
      %388 = arith.addf %386, %387 : vector<64x512xf32>
      %cst_126 = arith.constant 0.000000e+00 : f32
      %389 = vector.broadcast %cst_126 : f32 to vector<8x128xf32>
      %cst_127 = arith.constant 0.000000e+00 : f32
      %390 = vector.broadcast %cst_127 : f32 to vector<8x128xf32>
      %391 = vector.extract_strided_slice %388 {offsets = [0, 0], sizes = [8, 512], strides = [1, 1]} : vector<64x512xf32> to vector<8x512xf32>
      %392 = arith.truncf %389 : vector<8x128xf32> to vector<8x128xbf16>
      %cst_128 = arith.constant dense<0.000000e+00> : vector<8x512xf32>
      %393 = tpu.matmul %392, %379, %cst_128 {dimension_numbers = #tpu.dot_dimension_numbers<[1], [0], [0], [1], [0, 0, 1, 1], [], []>} : vector<8x128xbf16>, vector<128x512xbf16>, vector<8x512xf32> -> vector<8x512xf32>
      %394 = arith.addf %391, %393 : vector<8x512xf32>
      %395 = vector.extract_strided_slice %394 {offsets = [0, 0], sizes = [8, 384], strides = [1, 1]} : vector<8x512xf32> to vector<8x384xf32>
      %396 = arith.negf %395 : vector<8x384xf32>
      %397 = math.exp %396 : vector<8x384xf32>
      %cst_129 = arith.constant 1.000000e+00 : f32
      %398 = vector.broadcast %cst_129 : f32 to vector<8x384xf32>
      %399 = arith.addf %398, %397 : vector<8x384xf32>
      %400 = arith.divf %398, %399 : vector<8x384xf32>
      %401 = vector.extract_strided_slice %394 {offsets = [0, 384], sizes = [8, 128], strides = [1, 1]} : vector<8x512xf32> to vector<8x128xf32>
      %402 = math.tanh %401 : vector<8x128xf32>
      %403 = vector.extract_strided_slice %400 {offsets = [0, 128], sizes = [8, 128], strides = [1, 1]} : vector<8x384xf32> to vector<8x128xf32>
      %404 = arith.mulf %403, %390 : vector<8x128xf32>
      %405 = vector.extract_strided_slice %400 {offsets = [0, 0], sizes = [8, 128], strides = [1, 1]} : vector<8x384xf32> to vector<8x128xf32>
      %406 = arith.mulf %405, %402 : vector<8x128xf32>
      %407 = arith.addf %404, %406 : vector<8x128xf32>
      %408 = vector.extract_strided_slice %400 {offsets = [0, 256], sizes = [8, 128], strides = [1, 1]} : vector<8x384xf32> to vector<8x128xf32>
      %409 = math.tanh %407 : vector<8x128xf32>
      %410 = arith.mulf %408, %409 : vector<8x128xf32>
      %411 = vector.extract_strided_slice %388 {offsets = [8, 0], sizes = [8, 512], strides = [1, 1]} : vector<64x512xf32> to vector<8x512xf32>
      %412 = arith.truncf %410 : vector<8x128xf32> to vector<8x128xbf16>
      %cst_130 = arith.constant dense<0.000000e+00> : vector<8x512xf32>
      %413 = tpu.matmul %412, %379, %cst_130 {dimension_numbers = #tpu.dot_dimension_numbers<[1], [0], [0], [1], [0, 0, 1, 1], [], []>} : vector<8x128xbf16>, vector<128x512xbf16>, vector<8x512xf32> -> vector<8x512xf32>
      %414 = arith.addf %411, %413 : vector<8x512xf32>
      %415 = vector.extract_strided_slice %414 {offsets = [0, 0], sizes = [8, 384], strides = [1, 1]} : vector<8x512xf32> to vector<8x384xf32>
      %416 = arith.negf %415 : vector<8x384xf32>
      %417 = math.exp %416 : vector<8x384xf32>
      %cst_131 = arith.constant 1.000000e+00 : f32
      %418 = vector.broadcast %cst_131 : f32 to vector<8x384xf32>
      %419 = arith.addf %418, %417 : vector<8x384xf32>
      %420 = arith.divf %418, %419 : vector<8x384xf32>
      %421 = vector.extract_strided_slice %414 {offsets = [0, 384], sizes = [8, 128], strides = [1, 1]} : vector<8x512xf32> to vector<8x128xf32>
      %422 = math.tanh %421 : vector<8x128xf32>
      %423 = vector.extract_strided_slice %420 {offsets = [0, 128], sizes = [8, 128], strides = [1, 1]} : vector<8x384xf32> to vector<8x128xf32>
      %424 = arith.mulf %423, %407 : vector<8x128xf32>
      %425 = vector.extract_strided_slice %420 {offsets = [0, 0], sizes = [8, 128], strides = [1, 1]} : vector<8x384xf32> to vector<8x128xf32>
      %426 = arith.mulf %425, %422 : vector<8x128xf32>
      %427 = arith.addf %424, %426 : vector<8x128xf32>
      %428 = vector.extract_strided_slice %420 {offsets = [0, 256], sizes = [8, 128], strides = [1, 1]} : vector<8x384xf32> to vector<8x128xf32>
      %429 = math.tanh %427 : vector<8x128xf32>
      %430 = arith.mulf %428, %429 : vector<8x128xf32>
      %431 = vector.extract_strided_slice %388 {offsets = [16, 0], sizes = [8, 512], strides = [1, 1]} : vector<64x512xf32> to vector<8x512xf32>
      %432 = arith.truncf %430 : vector<8x128xf32> to vector<8x128xbf16>
      %cst_132 = arith.constant dense<0.000000e+00> : vector<8x512xf32>
      %433 = tpu.matmul %432, %379, %cst_132 {dimension_numbers = #tpu.dot_dimension_numbers<[1], [0], [0], [1], [0, 0, 1, 1], [], []>} : vector<8x128xbf16>, vector<128x512xbf16>, vector<8x512xf32> -> vector<8x512xf32>
      %434 = arith.addf %431, %433 : vector<8x512xf32>
      %435 = vector.extract_strided_slice %434 {offsets = [0, 0], sizes = [8, 384], strides = [1, 1]} : vector<8x512xf32> to vector<8x384xf32>
      %436 = arith.negf %435 : vector<8x384xf32>
      %437 = math.exp %436 : vector<8x384xf32>
      %cst_133 = arith.constant 1.000000e+00 : f32
      %438 = vector.broadcast %cst_133 : f32 to vector<8x384xf32>
      %439 = arith.addf %438, %437 : vector<8x384xf32>
      %440 = arith.divf %438, %439 : vector<8x384xf32>
      %441 = vector.extract_strided_slice %434 {offsets = [0, 384], sizes = [8, 128], strides = [1, 1]} : vector<8x512xf32> to vector<8x128xf32>
      %442 = math.tanh %441 : vector<8x128xf32>
      %443 = vector.extract_strided_slice %440 {offsets = [0, 128], sizes = [8, 128], strides = [1, 1]} : vector<8x384xf32> to vector<8x128xf32>
      %444 = arith.mulf %443, %427 : vector<8x128xf32>
      %445 = vector.extract_strided_slice %440 {offsets = [0, 0], sizes = [8, 128], strides = [1, 1]} : vector<8x384xf32> to vector<8x128xf32>
      %446 = arith.mulf %445, %442 : vector<8x128xf32>
      %447 = arith.addf %444, %446 : vector<8x128xf32>
      %448 = vector.extract_strided_slice %440 {offsets = [0, 256], sizes = [8, 128], strides = [1, 1]} : vector<8x384xf32> to vector<8x128xf32>
      %449 = math.tanh %447 : vector<8x128xf32>
      %450 = arith.mulf %448, %449 : vector<8x128xf32>
      %451 = vector.extract_strided_slice %388 {offsets = [24, 0], sizes = [8, 512], strides = [1, 1]} : vector<64x512xf32> to vector<8x512xf32>
      %452 = arith.truncf %450 : vector<8x128xf32> to vector<8x128xbf16>
      %cst_134 = arith.constant dense<0.000000e+00> : vector<8x512xf32>
      %453 = tpu.matmul %452, %379, %cst_134 {dimension_numbers = #tpu.dot_dimension_numbers<[1], [0], [0], [1], [0, 0, 1, 1], [], []>} : vector<8x128xbf16>, vector<128x512xbf16>, vector<8x512xf32> -> vector<8x512xf32>
      %454 = arith.addf %451, %453 : vector<8x512xf32>
      %455 = vector.extract_strided_slice %454 {offsets = [0, 0], sizes = [8, 384], strides = [1, 1]} : vector<8x512xf32> to vector<8x384xf32>
      %456 = arith.negf %455 : vector<8x384xf32>
      %457 = math.exp %456 : vector<8x384xf32>
      %cst_135 = arith.constant 1.000000e+00 : f32
      %458 = vector.broadcast %cst_135 : f32 to vector<8x384xf32>
      %459 = arith.addf %458, %457 : vector<8x384xf32>
      %460 = arith.divf %458, %459 : vector<8x384xf32>
      %461 = vector.extract_strided_slice %454 {offsets = [0, 384], sizes = [8, 128], strides = [1, 1]} : vector<8x512xf32> to vector<8x128xf32>
      %462 = math.tanh %461 : vector<8x128xf32>
      %463 = vector.extract_strided_slice %460 {offsets = [0, 128], sizes = [8, 128], strides = [1, 1]} : vector<8x384xf32> to vector<8x128xf32>
      %464 = arith.mulf %463, %447 : vector<8x128xf32>
      %465 = vector.extract_strided_slice %460 {offsets = [0, 0], sizes = [8, 128], strides = [1, 1]} : vector<8x384xf32> to vector<8x128xf32>
      %466 = arith.mulf %465, %462 : vector<8x128xf32>
      %467 = arith.addf %464, %466 : vector<8x128xf32>
      %468 = vector.extract_strided_slice %460 {offsets = [0, 256], sizes = [8, 128], strides = [1, 1]} : vector<8x384xf32> to vector<8x128xf32>
      %469 = math.tanh %467 : vector<8x128xf32>
      %470 = arith.mulf %468, %469 : vector<8x128xf32>
      %471 = vector.extract_strided_slice %388 {offsets = [32, 0], sizes = [8, 512], strides = [1, 1]} : vector<64x512xf32> to vector<8x512xf32>
      %472 = arith.truncf %470 : vector<8x128xf32> to vector<8x128xbf16>
      %cst_136 = arith.constant dense<0.000000e+00> : vector<8x512xf32>
      %473 = tpu.matmul %472, %379, %cst_136 {dimension_numbers = #tpu.dot_dimension_numbers<[1], [0], [0], [1], [0, 0, 1, 1], [], []>} : vector<8x128xbf16>, vector<128x512xbf16>, vector<8x512xf32> -> vector<8x512xf32>
      %474 = arith.addf %471, %473 : vector<8x512xf32>
      %475 = vector.extract_strided_slice %474 {offsets = [0, 0], sizes = [8, 384], strides = [1, 1]} : vector<8x512xf32> to vector<8x384xf32>
      %476 = arith.negf %475 : vector<8x384xf32>
      %477 = math.exp %476 : vector<8x384xf32>
      %cst_137 = arith.constant 1.000000e+00 : f32
      %478 = vector.broadcast %cst_137 : f32 to vector<8x384xf32>
      %479 = arith.addf %478, %477 : vector<8x384xf32>
      %480 = arith.divf %478, %479 : vector<8x384xf32>
      %481 = vector.extract_strided_slice %474 {offsets = [0, 384], sizes = [8, 128], strides = [1, 1]} : vector<8x512xf32> to vector<8x128xf32>
      %482 = math.tanh %481 : vector<8x128xf32>
      %483 = vector.extract_strided_slice %480 {offsets = [0, 128], sizes = [8, 128], strides = [1, 1]} : vector<8x384xf32> to vector<8x128xf32>
      %484 = arith.mulf %483, %467 : vector<8x128xf32>
      %485 = vector.extract_strided_slice %480 {offsets = [0, 0], sizes = [8, 128], strides = [1, 1]} : vector<8x384xf32> to vector<8x128xf32>
      %486 = arith.mulf %485, %482 : vector<8x128xf32>
      %487 = arith.addf %484, %486 : vector<8x128xf32>
      %488 = vector.extract_strided_slice %480 {offsets = [0, 256], sizes = [8, 128], strides = [1, 1]} : vector<8x384xf32> to vector<8x128xf32>
      %489 = math.tanh %487 : vector<8x128xf32>
      %490 = arith.mulf %488, %489 : vector<8x128xf32>
      %491 = vector.extract_strided_slice %388 {offsets = [40, 0], sizes = [8, 512], strides = [1, 1]} : vector<64x512xf32> to vector<8x512xf32>
      %492 = arith.truncf %490 : vector<8x128xf32> to vector<8x128xbf16>
      %cst_138 = arith.constant dense<0.000000e+00> : vector<8x512xf32>
      %493 = tpu.matmul %492, %379, %cst_138 {dimension_numbers = #tpu.dot_dimension_numbers<[1], [0], [0], [1], [0, 0, 1, 1], [], []>} : vector<8x128xbf16>, vector<128x512xbf16>, vector<8x512xf32> -> vector<8x512xf32>
      %494 = arith.addf %491, %493 : vector<8x512xf32>
      %495 = vector.extract_strided_slice %494 {offsets = [0, 0], sizes = [8, 384], strides = [1, 1]} : vector<8x512xf32> to vector<8x384xf32>
      %496 = arith.negf %495 : vector<8x384xf32>
      %497 = math.exp %496 : vector<8x384xf32>
      %cst_139 = arith.constant 1.000000e+00 : f32
      %498 = vector.broadcast %cst_139 : f32 to vector<8x384xf32>
      %499 = arith.addf %498, %497 : vector<8x384xf32>
      %500 = arith.divf %498, %499 : vector<8x384xf32>
      %501 = vector.extract_strided_slice %494 {offsets = [0, 384], sizes = [8, 128], strides = [1, 1]} : vector<8x512xf32> to vector<8x128xf32>
      %502 = math.tanh %501 : vector<8x128xf32>
      %503 = vector.extract_strided_slice %500 {offsets = [0, 128], sizes = [8, 128], strides = [1, 1]} : vector<8x384xf32> to vector<8x128xf32>
      %504 = arith.mulf %503, %487 : vector<8x128xf32>
      %505 = vector.extract_strided_slice %500 {offsets = [0, 0], sizes = [8, 128], strides = [1, 1]} : vector<8x384xf32> to vector<8x128xf32>
      %506 = arith.mulf %505, %502 : vector<8x128xf32>
      %507 = arith.addf %504, %506 : vector<8x128xf32>
      %508 = vector.extract_strided_slice %500 {offsets = [0, 256], sizes = [8, 128], strides = [1, 1]} : vector<8x384xf32> to vector<8x128xf32>
      %509 = math.tanh %507 : vector<8x128xf32>
      %510 = arith.mulf %508, %509 : vector<8x128xf32>
      %511 = vector.extract_strided_slice %388 {offsets = [48, 0], sizes = [8, 512], strides = [1, 1]} : vector<64x512xf32> to vector<8x512xf32>
      %512 = arith.truncf %510 : vector<8x128xf32> to vector<8x128xbf16>
      %cst_140 = arith.constant dense<0.000000e+00> : vector<8x512xf32>
      %513 = tpu.matmul %512, %379, %cst_140 {dimension_numbers = #tpu.dot_dimension_numbers<[1], [0], [0], [1], [0, 0, 1, 1], [], []>} : vector<8x128xbf16>, vector<128x512xbf16>, vector<8x512xf32> -> vector<8x512xf32>
      %514 = arith.addf %511, %513 : vector<8x512xf32>
      %515 = vector.extract_strided_slice %514 {offsets = [0, 0], sizes = [8, 384], strides = [1, 1]} : vector<8x512xf32> to vector<8x384xf32>
      %516 = arith.negf %515 : vector<8x384xf32>
      %517 = math.exp %516 : vector<8x384xf32>
      %cst_141 = arith.constant 1.000000e+00 : f32
      %518 = vector.broadcast %cst_141 : f32 to vector<8x384xf32>
      %519 = arith.addf %518, %517 : vector<8x384xf32>
      %520 = arith.divf %518, %519 : vector<8x384xf32>
      %521 = vector.extract_strided_slice %514 {offsets = [0, 384], sizes = [8, 128], strides = [1, 1]} : vector<8x512xf32> to vector<8x128xf32>
      %522 = math.tanh %521 : vector<8x128xf32>
      %523 = vector.extract_strided_slice %520 {offsets = [0, 128], sizes = [8, 128], strides = [1, 1]} : vector<8x384xf32> to vector<8x128xf32>
      %524 = arith.mulf %523, %507 : vector<8x128xf32>
      %525 = vector.extract_strided_slice %520 {offsets = [0, 0], sizes = [8, 128], strides = [1, 1]} : vector<8x384xf32> to vector<8x128xf32>
      %526 = arith.mulf %525, %522 : vector<8x128xf32>
      %527 = arith.addf %524, %526 : vector<8x128xf32>
      %528 = vector.extract_strided_slice %520 {offsets = [0, 256], sizes = [8, 128], strides = [1, 1]} : vector<8x384xf32> to vector<8x128xf32>
      %529 = math.tanh %527 : vector<8x128xf32>
      %530 = arith.mulf %528, %529 : vector<8x128xf32>
      %531 = vector.extract_strided_slice %388 {offsets = [56, 0], sizes = [8, 512], strides = [1, 1]} : vector<64x512xf32> to vector<8x512xf32>
      %532 = arith.truncf %530 : vector<8x128xf32> to vector<8x128xbf16>
      %cst_142 = arith.constant dense<0.000000e+00> : vector<8x512xf32>
      %533 = tpu.matmul %532, %379, %cst_142 {dimension_numbers = #tpu.dot_dimension_numbers<[1], [0], [0], [1], [0, 0, 1, 1], [], []>} : vector<8x128xbf16>, vector<128x512xbf16>, vector<8x512xf32> -> vector<8x512xf32>
      %534 = arith.addf %531, %533 : vector<8x512xf32>
      %535 = vector.extract_strided_slice %534 {offsets = [0, 0], sizes = [8, 384], strides = [1, 1]} : vector<8x512xf32> to vector<8x384xf32>
      %536 = arith.negf %535 : vector<8x384xf32>
      %537 = math.exp %536 : vector<8x384xf32>
      %cst_143 = arith.constant 1.000000e+00 : f32
      %538 = vector.broadcast %cst_143 : f32 to vector<8x384xf32>
      %539 = arith.addf %538, %537 : vector<8x384xf32>
      %540 = arith.divf %538, %539 : vector<8x384xf32>
      %541 = vector.extract_strided_slice %534 {offsets = [0, 384], sizes = [8, 128], strides = [1, 1]} : vector<8x512xf32> to vector<8x128xf32>
      %542 = math.tanh %541 : vector<8x128xf32>
      %543 = vector.extract_strided_slice %540 {offsets = [0, 128], sizes = [8, 128], strides = [1, 1]} : vector<8x384xf32> to vector<8x128xf32>
      %544 = arith.mulf %543, %527 : vector<8x128xf32>
      %545 = vector.extract_strided_slice %540 {offsets = [0, 0], sizes = [8, 128], strides = [1, 1]} : vector<8x384xf32> to vector<8x128xf32>
      %546 = arith.mulf %545, %542 : vector<8x128xf32>
      %547 = arith.addf %544, %546 : vector<8x128xf32>
      %548 = vector.extract_strided_slice %540 {offsets = [0, 256], sizes = [8, 128], strides = [1, 1]} : vector<8x384xf32> to vector<8x128xf32>
      %549 = math.tanh %547 : vector<8x128xf32>
      %550 = arith.mulf %548, %549 : vector<8x128xf32>
      %551 = tpu.iota {dimensions = array<i32: 1>} : vector<8x128xi32>
      %c64_i32 = arith.constant 64 : i32
      %552 = vector.broadcast %c64_i32 : i32 to vector<8x128xi32>
      %553 = arith.cmpi slt, %551, %552 : vector<8x128xi32>
      %554 = arith.select %553, %550, %410 : vector<8x128xi1>, vector<8x128xf32>
      %555 = vector.extract_strided_slice %554 {offsets = [0, 0], sizes = [2, 128], strides = [1, 1]} : vector<8x128xf32> to vector<2x128xf32>
      %556 = arith.truncf %555 : vector<2x128xf32> to vector<2x128xbf16>
      %c0_144 = arith.constant 0 : index
      %c0_145 = arith.constant 0 : index
      %557 = vector.load %arg6[%c0_144, %c0_145] : memref<128x128xbf16, #tpu.memory_space<vmem>>, vector<128x128xbf16>
      %cst_146 = arith.constant dense<0.000000e+00> : vector<2x128xf32>
      %558 = tpu.matmul %556, %557, %cst_146 {dimension_numbers = #tpu.dot_dimension_numbers<[1], [0], [0], [1], [0, 0, 1, 1], [], []>} : vector<2x128xbf16>, vector<128x128xbf16>, vector<2x128xf32> -> vector<2x128xf32>
      %c0_147 = arith.constant 0 : index
      %c0_148 = arith.constant 0 : index
      %559 = vector.load %arg7[%c0_147, %c0_148] : memref<1x128xf32, #tpu.memory_space<vmem>>, vector<1x128xf32>
      %560 = vector.broadcast %559 : vector<1x128xf32> to vector<2x128xf32>
      %561 = arith.addf %558, %560 : vector<2x128xf32>
      %c0_149 = arith.constant 0 : index
      %c0_150 = arith.constant 0 : index
      %562 = vector.load %arg27[%c0_149, %c0_150] : memref<2x128xf32, #tpu.memory_space<vmem>>, vector<2x128xf32>
      tpu.vector_store %arg27[%c0_149, %c0_150], %561 {strides = array<i32>} : memref<2x128xf32, #tpu.memory_space<vmem>>, vector<2x128xf32>,
    } else {
    }
    %c0 = arith.constant 0 : index
    %c0_1 = arith.constant 0 : index
    %3 = vector.load %arg27[%c0, %c0_1] : memref<2x128xf32, #tpu.memory_space<vmem>>, vector<2x128xf32>
    %4 = arith.truncf %3 : vector<2x128xf32> to vector<2x128xbf16>
    %c0_2 = arith.constant 0 : index
    %c0_3 = arith.constant 0 : index
    %c0_4 = arith.constant 0 : index
    %5 = vector.load %arg8[%c0_2, %c0_3, %c0_4] : memref<1x128x384xbf16, #tpu.memory_space<vmem>>, vector<1x128x384xbf16>
    %6 = vector.shape_cast %5 : vector<1x128x384xbf16> to vector<128x384xbf16>
    %cst = arith.constant dense<0.000000e+00> : vector<2x384xf32>
    %7 = tpu.matmul %4, %6, %cst {dimension_numbers = #tpu.dot_dimension_numbers<[1], [0], [0], [1], [0, 0, 1, 1], [], []>} : vector<2x128xbf16>, vector<128x384xbf16>, vector<2x384xf32> -> vector<2x384xf32>
    %c0_5 = arith.constant 0 : index
    %c0_6 = arith.constant 0 : index
    %c0_7 = arith.constant 0 : index
    %8 = vector.load %arg9[%c0_5, %c0_6, %c0_7] : memref<1x1x384xf32, #tpu.memory_space<vmem>>, vector<1x1x384xf32>
    %9 = vector.shape_cast %8 : vector<1x1x384xf32> to vector<1x384xf32>
    %10 = vector.broadcast %9 : vector<1x384xf32> to vector<2x384xf32>
    %11 = arith.addf %7, %10 : vector<2x384xf32>
    %12 = vector.extract_strided_slice %11 {offsets = [0, 0], sizes = [2, 32], strides = [1, 1]} : vector<2x384xf32> to vector<2x32xf32>
    %cst_8 = arith.constant 0.176776692 : f32
    %13 = vector.broadcast %cst_8 : f32 to vector<2x32xf32>
    %14 = arith.mulf %12, %13 : vector<2x32xf32>
    %15 = vector.extract_strided_slice %11 {offsets = [0, 128], sizes = [2, 32], strides = [1, 1]} : vector<2x384xf32> to vector<2x32xf32>
    %16 = vector.extract_strided_slice %11 {offsets = [0, 256], sizes = [2, 32], strides = [1, 1]} : vector<2x384xf32> to vector<2x32xf32>
    %17 = arith.truncf %14 : vector<2x32xf32> to vector<2x32xbf16>
    %18 = arith.truncf %15 : vector<2x32xf32> to vector<2x32xbf16>
    %cst_9 = arith.constant dense<0.000000e+00> : vector<2x2xf32>
    %19 = tpu.matmul %17, %18, %cst_9 {dimension_numbers = #tpu.dot_dimension_numbers<[1], [1], [0], [0], [0, 0, 1, 0], [], []>} : vector<2x32xbf16>, vector<2x32xbf16>, vector<2x2xf32> -> vector<2x2xf32>
    %cst_10 = arith.constant dense<0xFF800000> : vector<2xf32>
    %20 = vector.multi_reduction <maximumf>, %19, %cst_10 [1] : vector<2x2xf32> to vector<2xf32>
    %cst_11 = arith.constant 0xFF800000 : f32
    %21 = vector.broadcast %cst_11 : f32 to vector<2xf32>
    %22 = arith.maximumf %21, %20 : vector<2xf32>
    %23 = vector.shape_cast %22 : vector<2xf32> to vector<2x1xf32>
    %24 = vector.broadcast %23 : vector<2x1xf32> to vector<2x2xf32>
    %25 = arith.subf %19, %24 : vector<2x2xf32>
    %26 = math.exp %25 : vector<2x2xf32>
    %cst_12 = arith.constant dense<0.000000e+00> : vector<2xf32>
    %27 = vector.multi_reduction <add>, %26, %cst_12 [1] : vector<2x2xf32> to vector<2xf32>
    %28 = vector.shape_cast %27 : vector<2xf32> to vector<2x1xf32>
    %29 = vector.broadcast %28 : vector<2x1xf32> to vector<2x2xf32>
    %30 = arith.divf %26, %29 : vector<2x2xf32>
    %31 = arith.truncf %30 : vector<2x2xf32> to vector<2x2xbf16>
    %32 = arith.truncf %16 : vector<2x32xf32> to vector<2x32xbf16>
    %cst_13 = arith.constant dense<0.000000e+00> : vector<2x32xf32>
    %33 = tpu.matmul %31, %32, %cst_13 {dimension_numbers = #tpu.dot_dimension_numbers<[1], [0], [0], [1], [0, 0, 1, 1], [], []>} : vector<2x2xbf16>, vector<2x32xbf16>, vector<2x32xf32> -> vector<2x32xf32>
    %34 = vector.extract_strided_slice %11 {offsets = [0, 32], sizes = [2, 32], strides = [1, 1]} : vector<2x384xf32> to vector<2x32xf32>
    %cst_14 = arith.constant 0.176776692 : f32
    %35 = vector.broadcast %cst_14 : f32 to vector<2x32xf32>
    %36 = arith.mulf %34, %35 : vector<2x32xf32>
    %37 = vector.extract_strided_slice %11 {offsets = [0, 160], sizes = [2, 32], strides = [1, 1]} : vector<2x384xf32> to vector<2x32xf32>
    %38 = vector.extract_strided_slice %11 {offsets = [0, 288], sizes = [2, 32], strides = [1, 1]} : vector<2x384xf32> to vector<2x32xf32>
    %39 = arith.truncf %36 : vector<2x32xf32> to vector<2x32xbf16>
    %40 = arith.truncf %37 : vector<2x32xf32> to vector<2x32xbf16>
    %cst_15 = arith.constant dense<0.000000e+00> : vector<2x2xf32>
    %41 = tpu.matmul %39, %40, %cst_15 {dimension_numbers = #tpu.dot_dimension_numbers<[1], [1], [0], [0], [0, 0, 1, 0], [], []>} : vector<2x32xbf16>, vector<2x32xbf16>, vector<2x2xf32> -> vector<2x2xf32>
    %cst_16 = arith.constant dense<0xFF800000> : vector<2xf32>
    %42 = vector.multi_reduction <maximumf>, %41, %cst_16 [1] : vector<2x2xf32> to vector<2xf32>
    %cst_17 = arith.constant 0xFF800000 : f32
    %43 = vector.broadcast %cst_17 : f32 to vector<2xf32>
    %44 = arith.maximumf %43, %42 : vector<2xf32>
    %45 = vector.shape_cast %44 : vector<2xf32> to vector<2x1xf32>
    %46 = vector.broadcast %45 : vector<2x1xf32> to vector<2x2xf32>
    %47 = arith.subf %41, %46 : vector<2x2xf32>
    %48 = math.exp %47 : vector<2x2xf32>
    %cst_18 = arith.constant dense<0.000000e+00> : vector<2xf32>
    %49 = vector.multi_reduction <add>, %48, %cst_18 [1] : vector<2x2xf32> to vector<2xf32>
    %50 = vector.shape_cast %49 : vector<2xf32> to vector<2x1xf32>
    %51 = vector.broadcast %50 : vector<2x1xf32> to vector<2x2xf32>
    %52 = arith.divf %48, %51 : vector<2x2xf32>
    %53 = arith.truncf %52 : vector<2x2xf32> to vector<2x2xbf16>
    %54 = arith.truncf %38 : vector<2x32xf32> to vector<2x32xbf16>
    %cst_19 = arith.constant dense<0.000000e+00> : vector<2x32xf32>
    %55 = tpu.matmul %53, %54, %cst_19 {dimension_numbers = #tpu.dot_dimension_numbers<[1], [0], [0], [1], [0, 0, 1, 1], [], []>} : vector<2x2xbf16>, vector<2x32xbf16>, vector<2x32xf32> -> vector<2x32xf32>
    %56 = vector.extract_strided_slice %11 {offsets = [0, 64], sizes = [2, 32], strides = [1, 1]} : vector<2x384xf32> to vector<2x32xf32>
    %cst_20 = arith.constant 0.176776692 : f32
    %57 = vector.broadcast %cst_20 : f32 to vector<2x32xf32>
    %58 = arith.mulf %56, %57 : vector<2x32xf32>
    %59 = vector.extract_strided_slice %11 {offsets = [0, 192], sizes = [2, 32], strides = [1, 1]} : vector<2x384xf32> to vector<2x32xf32>
    %60 = vector.extract_strided_slice %11 {offsets = [0, 320], sizes = [2, 32], strides = [1, 1]} : vector<2x384xf32> to vector<2x32xf32>
    %61 = arith.truncf %58 : vector<2x32xf32> to vector<2x32xbf16>
    %62 = arith.truncf %59 : vector<2x32xf32> to vector<2x32xbf16>
    %cst_21 = arith.constant dense<0.000000e+00> : vector<2x2xf32>
    %63 = tpu.matmul %61, %62, %cst_21 {dimension_numbers = #tpu.dot_dimension_numbers<[1], [1], [0], [0], [0, 0, 1, 0], [], []>} : vector<2x32xbf16>, vector<2x32xbf16>, vector<2x2xf32> -> vector<2x2xf32>
    %cst_22 = arith.constant dense<0xFF800000> : vector<2xf32>
    %64 = vector.multi_reduction <maximumf>, %63, %cst_22 [1] : vector<2x2xf32> to vector<2xf32>
    %cst_23 = arith.constant 0xFF800000 : f32
    %65 = vector.broadcast %cst_23 : f32 to vector<2xf32>
    %66 = arith.maximumf %65, %64 : vector<2xf32>
    %67 = vector.shape_cast %66 : vector<2xf32> to vector<2x1xf32>
    %68 = vector.broadcast %67 : vector<2x1xf32> to vector<2x2xf32>
    %69 = arith.subf %63, %68 : vector<2x2xf32>
    %70 = math.exp %69 : vector<2x2xf32>
    %cst_24 = arith.constant dense<0.000000e+00> : vector<2xf32>
    %71 = vector.multi_reduction <add>, %70, %cst_24 [1] : vector<2x2xf32> to vector<2xf32>
    %72 = vector.shape_cast %71 : vector<2xf32> to vector<2x1xf32>
    %73 = vector.broadcast %72 : vector<2x1xf32> to vector<2x2xf32>
    %74 = arith.divf %70, %73 : vector<2x2xf32>
    %75 = arith.truncf %74 : vector<2x2xf32> to vector<2x2xbf16>
    %76 = arith.truncf %60 : vector<2x32xf32> to vector<2x32xbf16>
    %cst_25 = arith.constant dense<0.000000e+00> : vector<2x32xf32>
    %77 = tpu.matmul %75, %76, %cst_25 {dimension_numbers = #tpu.dot_dimension_numbers<[1], [0], [0], [1], [0, 0, 1, 1], [], []>} : vector<2x2xbf16>, vector<2x32xbf16>, vector<2x32xf32> -> vector<2x32xf32>
    %78 = vector.extract_strided_slice %11 {offsets = [0, 96], sizes = [2, 32], strides = [1, 1]} : vector<2x384xf32> to vector<2x32xf32>
    %cst_26 = arith.constant 0.176776692 : f32
    %79 = vector.broadcast %cst_26 : f32 to vector<2x32xf32>
    %80 = arith.mulf %78, %79 : vector<2x32xf32>
    %81 = vector.extract_strided_slice %11 {offsets = [0, 224], sizes = [2, 32], strides = [1, 1]} : vector<2x384xf32> to vector<2x32xf32>
    %82 = vector.extract_strided_slice %11 {offsets = [0, 352], sizes = [2, 32], strides = [1, 1]} : vector<2x384xf32> to vector<2x32xf32>
    %83 = arith.truncf %80 : vector<2x32xf32> to vector<2x32xbf16>
    %84 = arith.truncf %81 : vector<2x32xf32> to vector<2x32xbf16>
    %cst_27 = arith.constant dense<0.000000e+00> : vector<2x2xf32>
    %85 = tpu.matmul %83, %84, %cst_27 {dimension_numbers = #tpu.dot_dimension_numbers<[1], [1], [0], [0], [0, 0, 1, 0], [], []>} : vector<2x32xbf16>, vector<2x32xbf16>, vector<2x2xf32> -> vector<2x2xf32>
    %cst_28 = arith.constant dense<0xFF800000> : vector<2xf32>
    %86 = vector.multi_reduction <maximumf>, %85, %cst_28 [1] : vector<2x2xf32> to vector<2xf32>
    %cst_29 = arith.constant 0xFF800000 : f32
    %87 = vector.broadcast %cst_29 : f32 to vector<2xf32>
    %88 = arith.maximumf %87, %86 : vector<2xf32>
    %89 = vector.shape_cast %88 : vector<2xf32> to vector<2x1xf32>
    %90 = vector.broadcast %89 : vector<2x1xf32> to vector<2x2xf32>
    %91 = arith.subf %85, %90 : vector<2x2xf32>
    %92 = math.exp %91 : vector<2x2xf32>
    %cst_30 = arith.constant dense<0.000000e+00> : vector<2xf32>
    %93 = vector.multi_reduction <add>, %92, %cst_30 [1] : vector<2x2xf32> to vector<2xf32>
    %94 = vector.shape_cast %93 : vector<2xf32> to vector<2x1xf32>
    %95 = vector.broadcast %94 : vector<2x1xf32> to vector<2x2xf32>
    %96 = arith.divf %92, %95 : vector<2x2xf32>
    %97 = arith.truncf %96 : vector<2x2xf32> to vector<2x2xbf16>
    %98 = arith.truncf %82 : vector<2x32xf32> to vector<2x32xbf16>
    %cst_31 = arith.constant dense<0.000000e+00> : vector<2x32xf32>
    %99 = tpu.matmul %97, %98, %cst_31 {dimension_numbers = #tpu.dot_dimension_numbers<[1], [0], [0], [1], [0, 0, 1, 1], [], []>} : vector<2x2xbf16>, vector<2x32xbf16>, vector<2x32xf32> -> vector<2x32xf32>
    %100 = tpu.concatenate %33, %55, %77, %99 in 1 : vector<2x32xf32>, vector<2x32xf32>, vector<2x32xf32>, vector<2x32xf32> -> vector<2x128xf32>
    %101 = arith.truncf %100 : vector<2x128xf32> to vector<2x128xbf16>
    %c0_32 = arith.constant 0 : index
    %c0_33 = arith.constant 0 : index
    %c0_34 = arith.constant 0 : index
    %102 = vector.load %arg10[%c0_32, %c0_33, %c0_34] : memref<1x128x128xbf16, #tpu.memory_space<vmem>>, vector<1x128x128xbf16>
    %103 = vector.shape_cast %102 : vector<1x128x128xbf16> to vector<128x128xbf16>
    %cst_35 = arith.constant dense<0.000000e+00> : vector<2x128xf32>
    %104 = tpu.matmul %101, %103, %cst_35 {dimension_numbers = #tpu.dot_dimension_numbers<[1], [0], [0], [1], [0, 0, 1, 1], [], []>} : vector<2x128xbf16>, vector<128x128xbf16>, vector<2x128xf32> -> vector<2x128xf32>
    %c0_36 = arith.constant 0 : index
    %c0_37 = arith.constant 0 : index
    %c0_38 = arith.constant 0 : index
    %105 = vector.load %arg11[%c0_36, %c0_37, %c0_38] : memref<1x1x128xf32, #tpu.memory_space<vmem>>, vector<1x1x128xf32>
    %106 = vector.shape_cast %105 : vector<1x1x128xf32> to vector<1x128xf32>
    %107 = vector.broadcast %106 : vector<1x128xf32> to vector<2x128xf32>
    %108 = arith.addf %104, %107 : vector<2x128xf32>
    %109 = arith.addf %3, %108 : vector<2x128xf32>
    %c0_39 = arith.constant 0 : index
    %c0_40 = arith.constant 0 : index
    %c0_41 = arith.constant 0 : index
    %110 = vector.load %arg16[%c0_39, %c0_40, %c0_41] : memref<1x1x128xf32, #tpu.memory_space<vmem>>, vector<1x1x128xf32>
    %111 = vector.shape_cast %110 : vector<1x1x128xf32> to vector<1x128xf32>
    %c0_42 = arith.constant 0 : index
    %c0_43 = arith.constant 0 : index
    %c0_44 = arith.constant 0 : index
    %112 = vector.load %arg17[%c0_42, %c0_43, %c0_44] : memref<1x1x128xf32, #tpu.memory_space<vmem>>, vector<1x1x128xf32>
    %113 = vector.shape_cast %112 : vector<1x1x128xf32> to vector<1x128xf32>
    %cst_45 = arith.constant dense<0.000000e+00> : vector<2xf32>
    %114 = vector.multi_reduction <add>, %109, %cst_45 [1] : vector<2x128xf32> to vector<2xf32>
    %115 = vector.shape_cast %114 : vector<2xf32> to vector<2x1xf32>
    %cst_46 = arith.constant 1.280000e+02 : f32
    %116 = vector.broadcast %cst_46 : f32 to vector<2x1xf32>
    %117 = arith.divf %115, %116 : vector<2x1xf32>
    %118 = vector.broadcast %117 : vector<2x1xf32> to vector<2x128xf32>
    %119 = arith.subf %109, %118 : vector<2x128xf32>
    %120 = arith.mulf %119, %119 : vector<2x128xf32>
    %cst_47 = arith.constant dense<0.000000e+00> : vector<2xf32>
    %121 = vector.multi_reduction <add>, %120, %cst_47 [1] : vector<2x128xf32> to vector<2xf32>
    %122 = vector.shape_cast %121 : vector<2xf32> to vector<2x1xf32>
    %cst_48 = arith.constant 1.280000e+02 : f32
    %123 = vector.broadcast %cst_48 : f32 to vector<2x1xf32>
    %124 = arith.divf %122, %123 : vector<2x1xf32>
    %125 = vector.broadcast %117 : vector<2x1xf32> to vector<2x128xf32>
    %126 = arith.subf %109, %125 : vector<2x128xf32>
    %cst_49 = arith.constant 9.99999974E-6 : f32
    %127 = vector.broadcast %cst_49 : f32 to vector<2x1xf32>
    %128 = arith.addf %124, %127 : vector<2x1xf32>
    %129 = math.rsqrt %128 : vector<2x1xf32>
    %130 = vector.broadcast %129 : vector<2x1xf32> to vector<2x128xf32>
    %131 = arith.mulf %126, %130 : vector<2x128xf32>
    %132 = vector.broadcast %111 : vector<1x128xf32> to vector<2x128xf32>
    %133 = arith.mulf %131, %132 : vector<2x128xf32>
    %134 = vector.broadcast %113 : vector<1x128xf32> to vector<2x128xf32>
    %135 = arith.addf %133, %134 : vector<2x128xf32>
    %136 = arith.truncf %135 : vector<2x128xf32> to vector<2x128xbf16>
    %c0_50 = arith.constant 0 : index
    %c0_51 = arith.constant 0 : index
    %c0_52 = arith.constant 0 : index
    %137 = vector.load %arg12[%c0_50, %c0_51, %c0_52] : memref<1x128x128xbf16, #tpu.memory_space<vmem>>, vector<1x128x128xbf16>
    %138 = vector.shape_cast %137 : vector<1x128x128xbf16> to vector<128x128xbf16>
    %cst_53 = arith.constant dense<0.000000e+00> : vector<2x128xf32>
    %139 = tpu.matmul %136, %138, %cst_53 {dimension_numbers = #tpu.dot_dimension_numbers<[1], [0], [0], [1], [0, 0, 1, 1], [], []>} : vector<2x128xbf16>, vector<128x128xbf16>, vector<2x128xf32> -> vector<2x128xf32>
    %c0_54 = arith.constant 0 : index
    %c0_55 = arith.constant 0 : index
    %c0_56 = arith.constant 0 : index
    %140 = vector.load %arg13[%c0_54, %c0_55, %c0_56] : memref<1x1x128xf32, #tpu.memory_space<vmem>>, vector<1x1x128xf32>
    %141 = vector.shape_cast %140 : vector<1x1x128xf32> to vector<1x128xf32>
    %142 = vector.broadcast %141 : vector<1x128xf32> to vector<2x128xf32>
    %143 = arith.addf %139, %142 : vector<2x128xf32>
    %cst_57 = arith.constant 0.000000e+00 : f32
    %144 = vector.broadcast %cst_57 : f32 to vector<2x128xf32>
    %145 = arith.maximumf %143, %144 : vector<2x128xf32>
    %146 = arith.truncf %145 : vector<2x128xf32> to vector<2x128xbf16>
    %c0_58 = arith.constant 0 : index
    %c0_59 = arith.constant 0 : index
    %c0_60 = arith.constant 0 : index
    %147 = vector.load %arg14[%c0_58, %c0_59, %c0_60] : memref<1x128x128xbf16, #tpu.memory_space<vmem>>, vector<1x128x128xbf16>
    %148 = vector.shape_cast %147 : vector<1x128x128xbf16> to vector<128x128xbf16>
    %cst_61 = arith.constant dense<0.000000e+00> : vector<2x128xf32>
    %149 = tpu.matmul %146, %148, %cst_61 {dimension_numbers = #tpu.dot_dimension_numbers<[1], [0], [0], [1], [0, 0, 1, 1], [], []>} : vector<2x128xbf16>, vector<128x128xbf16>, vector<2x128xf32> -> vector<2x128xf32>
    %c0_62 = arith.constant 0 : index
    %c0_63 = arith.constant 0 : index
    %c0_64 = arith.constant 0 : index
    %150 = vector.load %arg15[%c0_62, %c0_63, %c0_64] : memref<1x1x128xf32, #tpu.memory_space<vmem>>, vector<1x1x128xf32>
    %151 = vector.shape_cast %150 : vector<1x1x128xf32> to vector<1x128xf32>
    %152 = vector.broadcast %151 : vector<1x128xf32> to vector<2x128xf32>
    %153 = arith.addf %149, %152 : vector<2x128xf32>
    %154 = arith.addf %135, %153 : vector<2x128xf32>
    %c0_65 = arith.constant 0 : index
    %c0_66 = arith.constant 0 : index
    %c0_67 = arith.constant 0 : index
    %155 = vector.load %arg18[%c0_65, %c0_66, %c0_67] : memref<1x1x128xf32, #tpu.memory_space<vmem>>, vector<1x1x128xf32>
    %156 = vector.shape_cast %155 : vector<1x1x128xf32> to vector<1x128xf32>
    %c0_68 = arith.constant 0 : index
    %c0_69 = arith.constant 0 : index
    %c0_70 = arith.constant 0 : index
    %157 = vector.load %arg19[%c0_68, %c0_69, %c0_70] : memref<1x1x128xf32, #tpu.memory_space<vmem>>, vector<1x1x128xf32>
    %158 = vector.shape_cast %157 : vector<1x1x128xf32> to vector<1x128xf32>
    %cst_71 = arith.constant dense<0.000000e+00> : vector<2xf32>
    %159 = vector.multi_reduction <add>, %154, %cst_71 [1] : vector<2x128xf32> to vector<2xf32>
    %160 = vector.shape_cast %159 : vector<2xf32> to vector<2x1xf32>
    %cst_72 = arith.constant 1.280000e+02 : f32
    %161 = vector.broadcast %cst_72 : f32 to vector<2x1xf32>
    %162 = arith.divf %160, %161 : vector<2x1xf32>
    %163 = vector.broadcast %162 : vector<2x1xf32> to vector<2x128xf32>
    %164 = arith.subf %154, %163 : vector<2x128xf32>
    %165 = arith.mulf %164, %164 : vector<2x128xf32>
    %cst_73 = arith.constant dense<0.000000e+00> : vector<2xf32>
    %166 = vector.multi_reduction <add>, %165, %cst_73 [1] : vector<2x128xf32> to vector<2xf32>
    %167 = vector.shape_cast %166 : vector<2xf32> to vector<2x1xf32>
    %cst_74 = arith.constant 1.280000e+02 : f32
    %168 = vector.broadcast %cst_74 : f32 to vector<2x1xf32>
    %169 = arith.divf %167, %168 : vector<2x1xf32>
    %170 = vector.broadcast %162 : vector<2x1xf32> to vector<2x128xf32>
    %171 = arith.subf %154, %170 : vector<2x128xf32>
    %cst_75 = arith.constant 9.99999974E-6 : f32
    %172 = vector.broadcast %cst_75 : f32 to vector<2x1xf32>
    %173 = arith.addf %169, %172 : vector<2x1xf32>
    %174 = math.rsqrt %173 : vector<2x1xf32>
    %175 = vector.broadcast %174 : vector<2x1xf32> to vector<2x128xf32>
    %176 = arith.mulf %171, %175 : vector<2x128xf32>
    %177 = vector.broadcast %156 : vector<1x128xf32> to vector<2x128xf32>
    %178 = arith.mulf %176, %177 : vector<2x128xf32>
    %179 = vector.broadcast %158 : vector<1x128xf32> to vector<2x128xf32>
    %180 = arith.addf %178, %179 : vector<2x128xf32>
    %c0_76 = arith.constant 0 : index
    %c0_77 = arith.constant 0 : index
    %181 = vector.load %arg27[%c0_76, %c0_77] : memref<2x128xf32, #tpu.memory_space<vmem>>, vector<2x128xf32>
    tpu.vector_store %arg27[%c0_76, %c0_77], %180 {strides = array<i32>} : memref<2x128xf32, #tpu.memory_space<vmem>>, vector<2x128xf32>,
    %c5_i32 = arith.constant 5 : i32
    %182 = arith.cmpi eq, %arg0, %c5_i32 : i32
    %183 = arith.extui %182 : i1 to i32
    %c0_i32_78 = arith.constant 0 : i32
    %184 = arith.cmpi ne, %183, %c0_i32_78 : i32
    scf.if %184 {
      %c0_79 = arith.constant 0 : index
      %c0_80 = arith.constant 0 : index
      %185 = vector.load %arg20[%c0_79, %c0_80] : memref<1x128xf32, #tpu.memory_space<vmem>>, vector<1x128xf32>
      %c0_81 = arith.constant 0 : index
      %c0_82 = arith.constant 0 : index
      %186 = vector.load %arg21[%c0_81, %c0_82] : memref<1x128xf32, #tpu.memory_space<vmem>>, vector<1x128xf32>
      %cst_83 = arith.constant dense<0.000000e+00> : vector<2xf32>
      %187 = vector.multi_reduction <add>, %180, %cst_83 [1] : vector<2x128xf32> to vector<2xf32>
      %188 = vector.shape_cast %187 : vector<2xf32> to vector<2x1xf32>
      %cst_84 = arith.constant 1.280000e+02 : f32
      %189 = vector.broadcast %cst_84 : f32 to vector<2x1xf32>
      %190 = arith.divf %188, %189 : vector<2x1xf32>
      %191 = vector.broadcast %190 : vector<2x1xf32> to vector<2x128xf32>
      %192 = arith.subf %180, %191 : vector<2x128xf32>
      %193 = arith.mulf %192, %192 : vector<2x128xf32>
      %cst_85 = arith.constant dense<0.000000e+00> : vector<2xf32>
      %194 = vector.multi_reduction <add>, %193, %cst_85 [1] : vector<2x128xf32> to vector<2xf32>
      %195 = vector.shape_cast %194 : vector<2xf32> to vector<2x1xf32>
      %cst_86 = arith.constant 1.280000e+02 : f32
      %196 = vector.broadcast %cst_86 : f32 to vector<2x1xf32>
      %197 = arith.divf %195, %196 : vector<2x1xf32>
      %198 = vector.broadcast %190 : vector<2x1xf32> to vector<2x128xf32>
      %199 = arith.subf %180, %198 : vector<2x128xf32>
      %cst_87 = arith.constant 9.99999974E-6 : f32
      %200 = vector.broadcast %cst_87 : f32 to vector<2x1xf32>
      %201 = arith.addf %197, %200 : vector<2x1xf32>
      %202 = math.rsqrt %201 : vector<2x1xf32>
      %203 = vector.broadcast %202 : vector<2x1xf32> to vector<2x128xf32>
      %204 = arith.mulf %199, %203 : vector<2x128xf32>
      %205 = vector.broadcast %185 : vector<1x128xf32> to vector<2x128xf32>
      %206 = arith.mulf %204, %205 : vector<2x128xf32>
      %207 = vector.broadcast %186 : vector<1x128xf32> to vector<2x128xf32>
      %208 = arith.addf %206, %207 : vector<2x128xf32>
      %209 = arith.truncf %208 : vector<2x128xf32> to vector<2x128xbf16>
      %c0_88 = arith.constant 0 : index
      %c0_89 = arith.constant 0 : index
      %210 = vector.load %arg22[%c0_88, %c0_89] : memref<128x128xbf16, #tpu.memory_space<vmem>>, vector<128x128xbf16>
      %cst_90 = arith.constant dense<0.000000e+00> : vector<2x128xf32>
      %211 = tpu.matmul %209, %210, %cst_90 {dimension_numbers = #tpu.dot_dimension_numbers<[1], [0], [0], [1], [0, 0, 1, 1], [], []>} : vector<2x128xbf16>, vector<128x128xbf16>, vector<2x128xf32> -> vector<2x128xf32>
      %c0_91 = arith.constant 0 : index
      %c0_92 = arith.constant 0 : index
      %212 = vector.load %arg23[%c0_91, %c0_92] : memref<1x128xf32, #tpu.memory_space<vmem>>, vector<1x128xf32>
      %213 = vector.broadcast %212 : vector<1x128xf32> to vector<2x128xf32>
      %214 = arith.addf %211, %213 : vector<2x128xf32>
      %215 = arith.truncf %214 : vector<2x128xf32> to vector<2x128xbf16>
      %c0_93 = arith.constant 0 : index
      %c0_94 = arith.constant 0 : index
      %216 = vector.load %arg24[%c0_93, %c0_94] : memref<128x128xbf16, #tpu.memory_space<vmem>>, vector<128x128xbf16>
      %cst_95 = arith.constant dense<0.000000e+00> : vector<2x128xf32>
      %217 = tpu.matmul %215, %216, %cst_95 {dimension_numbers = #tpu.dot_dimension_numbers<[1], [0], [0], [1], [0, 0, 1, 1], [], []>} : vector<2x128xbf16>, vector<128x128xbf16>, vector<2x128xf32> -> vector<2x128xf32>
      %c0_96 = arith.constant 0 : index
      %c0_97 = arith.constant 0 : index
      %218 = vector.load %arg25[%c0_96, %c0_97] : memref<1x128xf32, #tpu.memory_space<vmem>>, vector<1x128xf32>
      %219 = vector.broadcast %218 : vector<1x128xf32> to vector<2x128xf32>
      %220 = arith.addf %217, %219 : vector<2x128xf32>
      %cst_98 = arith.constant 0.000000e+00 : f32
      %221 = vector.broadcast %cst_98 : f32 to vector<2x128xf32>
      %222 = arith.maximumf %220, %221 : vector<2x128xf32>
      %c0_99 = arith.constant 0 : index
      %c0_100 = arith.constant 0 : index
      %223 = vector.load %arg26[%c0_99, %c0_100] : memref<2x128xf32, #tpu.memory_space<vmem>>, vector<2x128xf32>
      tpu.vector_store %arg26[%c0_99, %c0_100], %222 {strides = array<i32>} : memref<2x128xf32, #tpu.memory_space<vmem>>, vector<2x128xf32>,
    } else {
    }
    return
  }
  func.func @transform_0(%arg0: i32) -> (i32, i32) {
    %c0_i32 = arith.constant 0 : i32
    %c0_i32_0 = arith.constant 0 : i32
    %c0_i32_1 = arith.constant 0 : i32
    return %c0_i32, %c0_i32_0 : i32, i32
  }
  func.func @transform_1(%arg0: i32) -> (i32, i32, i32) {
    %c0_i32 = arith.constant 0 : i32
    %c0_i32_0 = arith.constant 0 : i32
    %c0_i32_1 = arith.constant 0 : i32
    %c0_i32_2 = arith.constant 0 : i32
    return %c0_i32, %c0_i32_0, %c0_i32_1 : i32, i32, i32
  }
  func.func @transform_2(%arg0: i32) -> (i32, i32, i32) {
    %c0_i32 = arith.constant 0 : i32
    %c0_i32_0 = arith.constant 0 : i32
    %c0_i32_1 = arith.constant 0 : i32
    %c0_i32_2 = arith.constant 0 : i32
    return %c0_i32, %c0_i32_0, %c0_i32_1 : i32, i32, i32
  }
  func.func @transform_3(%arg0: i32) -> (i32, i32, i32) {
    %c0_i32 = arith.constant 0 : i32
    %c0_i32_0 = arith.constant 0 : i32
    %c0_i32_1 = arith.constant 0 : i32
    %c0_i32_2 = arith.constant 0 : i32
    return %c0_i32, %c0_i32_0, %c0_i32_1 : i32, i32, i32
  }
  func.func @transform_4(%arg0: i32) -> (i32, i32, i32) {
    %c0_i32 = arith.constant 0 : i32
    %c0_i32_0 = arith.constant 0 : i32
    %c0_i32_1 = arith.constant 0 : i32
    %c0_i32_2 = arith.constant 0 : i32
    return %c0_i32, %c0_i32_0, %c0_i32_1 : i32, i32, i32
  }
  func.func @transform_5(%arg0: i32) -> (i32, i32) {
    %c0_i32 = arith.constant 0 : i32
    %c0_i32_0 = arith.constant 0 : i32
    %c0_i32_1 = arith.constant 0 : i32
    return %c0_i32, %c0_i32_0 : i32, i32
  }
  func.func @transform_6(%arg0: i32) -> (i32, i32) {
    %c0_i32 = arith.constant 0 : i32
    %c0_i32_0 = arith.constant 0 : i32
    %c0_i32_1 = arith.constant 0 : i32
    return %c0_i32, %c0_i32_0 : i32, i32
  }
  func.func @transform_7(%arg0: i32) -> (i32, i32, i32) {
    %c0_i32 = arith.constant 0 : i32
    %c0_i32_0 = arith.constant 0 : i32
    %c0_i32_1 = arith.constant 0 : i32
    return %arg0, %c0_i32, %c0_i32_0 : i32, i32, i32
  }
  func.func @transform_8(%arg0: i32) -> (i32, i32, i32) {
    %c0_i32 = arith.constant 0 : i32
    %c0_i32_0 = arith.constant 0 : i32
    %c0_i32_1 = arith.constant 0 : i32
    return %arg0, %c0_i32, %c0_i32_0 : i32, i32, i32
  }
  func.func @transform_9(%arg0: i32) -> (i32, i32, i32) {
    %c0_i32 = arith.constant 0 : i32
    %c0_i32_0 = arith.constant 0 : i32
    %c0_i32_1 = arith.constant 0 : i32
    return %arg0, %c0_i32, %c0_i32_0 : i32, i32, i32
  }
  func.func @transform_10(%arg0: i32) -> (i32, i32, i32) {
    %c0_i32 = arith.constant 0 : i32
    %c0_i32_0 = arith.constant 0 : i32
    %c0_i32_1 = arith.constant 0 : i32
    return %arg0, %c0_i32, %c0_i32_0 : i32, i32, i32
  }
  func.func @transform_11(%arg0: i32) -> (i32, i32, i32) {
    %c0_i32 = arith.constant 0 : i32
    %c0_i32_0 = arith.constant 0 : i32
    %c0_i32_1 = arith.constant 0 : i32
    return %arg0, %c0_i32, %c0_i32_0 : i32, i32, i32
  }
  func.func @transform_12(%arg0: i32) -> (i32, i32, i32) {
    %c0_i32 = arith.constant 0 : i32
    %c0_i32_0 = arith.constant 0 : i32
    %c0_i32_1 = arith.constant 0 : i32
    return %arg0, %c0_i32, %c0_i32_0 : i32, i32, i32
  }
  func.func @transform_13(%arg0: i32) -> (i32, i32, i32) {
    %c0_i32 = arith.constant 0 : i32
    %c0_i32_0 = arith.constant 0 : i32
    %c0_i32_1 = arith.constant 0 : i32
    return %arg0, %c0_i32, %c0_i32_0 : i32, i32, i32
  }
  func.func @transform_14(%arg0: i32) -> (i32, i32, i32) {
    %c0_i32 = arith.constant 0 : i32
    %c0_i32_0 = arith.constant 0 : i32
    %c0_i32_1 = arith.constant 0 : i32
    return %arg0, %c0_i32, %c0_i32_0 : i32, i32, i32
  }
  func.func @transform_15(%arg0: i32) -> (i32, i32, i32) {
    %c0_i32 = arith.constant 0 : i32
    %c0_i32_0 = arith.constant 0 : i32
    %c0_i32_1 = arith.constant 0 : i32
    return %arg0, %c0_i32, %c0_i32_0 : i32, i32, i32
  }
  func.func @transform_16(%arg0: i32) -> (i32, i32, i32) {
    %c0_i32 = arith.constant 0 : i32
    %c0_i32_0 = arith.constant 0 : i32
    %c0_i32_1 = arith.constant 0 : i32
    return %arg0, %c0_i32, %c0_i32_0 : i32, i32, i32
  }
  func.func @transform_17(%arg0: i32) -> (i32, i32, i32) {
    %c0_i32 = arith.constant 0 : i32
    %c0_i32_0 = arith.constant 0 : i32
    %c0_i32_1 = arith.constant 0 : i32
    return %arg0, %c0_i32, %c0_i32_0 : i32, i32, i32
  }
  func.func @transform_18(%arg0: i32) -> (i32, i32, i32) {
    %c0_i32 = arith.constant 0 : i32
    %c0_i32_0 = arith.constant 0 : i32
    %c0_i32_1 = arith.constant 0 : i32
    return %arg0, %c0_i32, %c0_i32_0 : i32, i32, i32
  }
  func.func @transform_19(%arg0: i32) -> (i32, i32) {
    %c0_i32 = arith.constant 0 : i32
    %c0_i32_0 = arith.constant 0 : i32
    %c0_i32_1 = arith.constant 0 : i32
    return %c0_i32, %c0_i32_0 : i32, i32
  }
  func.func @transform_20(%arg0: i32) -> (i32, i32) {
    %c0_i32 = arith.constant 0 : i32
    %c0_i32_0 = arith.constant 0 : i32
    %c0_i32_1 = arith.constant 0 : i32
    return %c0_i32, %c0_i32_0 : i32, i32
  }
  func.func @transform_21(%arg0: i32) -> (i32, i32) {
    %c0_i32 = arith.constant 0 : i32
    %c0_i32_0 = arith.constant 0 : i32
    %c0_i32_1 = arith.constant 0 : i32
    return %c0_i32, %c0_i32_0 : i32, i32
  }
  func.func @transform_22(%arg0: i32) -> (i32, i32) {
    %c0_i32 = arith.constant 0 : i32
    %c0_i32_0 = arith.constant 0 : i32
    %c0_i32_1 = arith.constant 0 : i32
    return %c0_i32, %c0_i32_0 : i32, i32
  }
  func.func @transform_23(%arg0: i32) -> (i32, i32) {
    %c0_i32 = arith.constant 0 : i32
    %c0_i32_0 = arith.constant 0 : i32
    %c0_i32_1 = arith.constant 0 : i32
    return %c0_i32, %c0_i32_0 : i32, i32
  }
  func.func @transform_24(%arg0: i32) -> (i32, i32) {
    %c0_i32 = arith.constant 0 : i32
    %c0_i32_0 = arith.constant 0 : i32
    %c0_i32_1 = arith.constant 0 : i32
    return %c0_i32, %c0_i32_0 : i32, i32
  }
  func.func @transform_25(%arg0: i32) -> (i32, i32) {
    %c0_i32 = arith.constant 0 : i32
    %c0_i32_0 = arith.constant 0 : i32
    %c0_i32_1 = arith.constant 0 : i32
    return %c0_i32, %c0_i32_0 : i32, i32
  }
}

</mosaic_0001>

<llo_original>
// kernel: bilstm_transformer_forward.1
$region0: #{bilstm_transformer_forward.1}
  #allocation0 [shape = 'u32[]', space=smem, size = 0x4, offset = 0x4, fixed_abs, tag = 'smem constant byte address 0x4 - core index']
  #allocation1 [shape = 'u32[144,128]{1,0:T(1,128)}', space=vmem, size = 0x12000, scoped, tag = 'internal scratch']
  #allocation2 [shape = 'f32[2,128]{1,0:T(2,128)}', space=vmem, size = 0x400, scoped, tag = 'scratch operand']
  %s0 = inlined_call_operand.vmem [shape: f32[64,128], index: 0, kind: input, shape index: {}]
  %s1 = inlined_call_operand.hbm [shape: bf16[2,128,512], index: 1, kind: input, shape index: {}]
  %s2 = inlined_call_operand.hbm [shape: bf16[2,128,512], index: 2, kind: input, shape index: {}]
  %s3 = inlined_call_operand.hbm [shape: bf16[2,128,512], index: 3, kind: input, shape index: {}]
  %s4 = inlined_call_operand.vmem [shape: f32[2,1,512], index: 4, kind: input, shape index: {}]
  %s5 = inlined_call_operand.vmem [shape: bf16[128,128], index: 5, kind: input, shape index: {}]
  %s6 = inlined_call_operand.hbm [shape: f32[1,128], index: 6, kind: input, shape index: {}]
  %s7 = inlined_call_operand.hbm [shape: bf16[6,128,384], index: 7, kind: input, shape index: {}]
  %s8 = inlined_call_operand.vmem [shape: f32[6,1,384], index: 8, kind: input, shape index: {}]
  %s9 = inlined_call_operand.hbm [shape: bf16[6,128,128], index: 9, kind: input, shape index: {}]
  %s10 = inlined_call_operand.vmem [shape: f32[6,1,128], index: 10, kind: input, shape index: {}]
  %s11 = inlined_call_operand.hbm [shape: bf16[6,128,128], index: 11, kind: input, shape index: {}]
  %s12 = inlined_call_operand.hbm [shape: f32[6,1,128], index: 12, kind: input, shape index: {}]
  %s13 = inlined_call_operand.hbm [shape: bf16[6,128,128], index: 13, kind: input, shape index: {}]
  %s14 = inlined_call_operand.hbm [shape: f32[6,1,128], index: 14, kind: input, shape index: {}]
  %s15 = inlined_call_operand.vmem [shape: f32[6,1,128], index: 15, kind: input, shape index: {}]
  %s16 = inlined_call_operand.hbm [shape: f32[6,1,128], index: 16, kind: input, shape index: {}]
  %s17 = inlined_call_operand.vmem [shape: f32[6,1,128], index: 17, kind: input, shape index: {}]
  %s18 = inlined_call_operand.hbm [shape: f32[6,1,128], index: 18, kind: input, shape index: {}]
  %s19 = inlined_call_operand.vmem [shape: f32[1,128], index: 19, kind: input, shape index: {}]
  %s20 = inlined_call_operand.vmem [shape: f32[1,128], index: 20, kind: input, shape index: {}]
  %s21 = inlined_call_operand.vmem [shape: bf16[128,128], index: 21, kind: input, shape index: {}]
  %s22 = inlined_call_operand.vmem [shape: f32[1,128], index: 22, kind: input, shape index: {}]
  %s23 = inlined_call_operand.vmem [shape: bf16[128,128], index: 23, kind: input, shape index: {}]
  %s24 = inlined_call_operand.vmem [shape: f32[1,128], index: 24, kind: input, shape index: {}]
  %s25 = inlined_call_operand.hbm [shape: f32[2,128], index: 25, kind: output, shape index: {}]
  %s26 = sld [smem:[#allocation0]]
  $region189: #{bilstm_transformer_forward.1} parent=0
    _
  %s28 = ssub.s32 1, %s26
  %s29 = scalar_select 0, %s28, %s26
  $region1: #{bilstm_transformer_forward.1} parent=0
    #allocation3 [shape = 'u8[262144]{0}', space=vmem, size = 0x40000, scoped, tag = 'input window, operand 1, single buffered']
    #allocation4 [shape = 's32[2]{0}', space=sflag, size = 0x8, scoped, tag = 'scoped memory for bilstm_transformer_forward.1']
    #allocation5 [shape = 's32[2]{0}', space=sflag, size = 0x8, scoped, tag = 'scoped memory for bilstm_transformer_forward.1']
    #allocation6 [shape = 'u8[262144]{0}', space=vmem, size = 0x40000, scoped, tag = 'input window, operand 2, single buffered']
    #allocation7 [shape = 's32[1]{0}', space=sflag, size = 0x4, scoped, tag = 'scoped memory for bilstm_transformer_forward.1']
    #allocation8 [shape = 'u8[262144]{0}', space=vmem, size = 0x40000, scoped, tag = 'input window, operand 3, single buffered']
    #allocation9 [shape = 'u8[512]{0}', space=vmem, size = 0x400, scoped, tag = 'input window, operand 6, single buffered']
    #allocation10 [shape = 's32[1]{0}', space=sflag, size = 0x4, scoped, tag = 'scoped memory for bilstm_transformer_forward.1']
    #allocation11 [shape = 'u8[196608]{0}', space=vmem, size = 0x30000, scoped, tag = 'input window, operand 7']
    #allocation12 [shape = 'u8[65536]{0}', space=vmem, size = 0x10000, scoped, tag = 'input window, operand 9']
    #allocation13 [shape = 'u8[65536]{0}', space=vmem, size = 0x10000, scoped, tag = 'input window, operand 11']
    #allocation14 [shape = 'u8[1024]{0}', space=vmem, size = 0x400, scoped, tag = 'input window, operand 12']
    #allocation15 [shape = 'u8[65536]{0}', space=vmem, size = 0x10000, scoped, tag = 'input window, operand 13']
    #allocation16 [shape = 'u8[1024]{0}', space=vmem, size = 0x400, scoped, tag = 'input window, operand 14']
    #allocation17 [shape = 'u8[1024]{0}', space=vmem, size = 0x400, scoped, tag = 'input window, operand 16']
    #allocation18 [shape = 'u8[1024]{0}', space=vmem, size = 0x400, scoped, tag = 'input window, operand 18']
    #allocation19 [shape = 'u8[1024]{0}', space=vmem, size = 0x400, scoped, tag = 'output window, operand 0, single buffered']
    %30 = vsyncpa [#allocation4], 0
    %31 = vsyncpa [#allocation7], 0
    %32 = vsyncpa [#allocation10], 0
    %33 = vsyncpa [#allocation5], 0
    loop: start=0, step=1, limit=8
    $region2: #{bilstm_transformer_forward.1} parent=1 // loop_pre_header
      _
    $region3: #{bilstm_transformer_forward.1} parent=1 // loop_header
      %s35 = sphi 0, %s39
      %p36 = scmp.ge.s32.totalorder %s35, 8
      %s43 = sphi 0, %s43
      %s45 = sphi 0, %s43
      %s46 = sphi 0, %s45
      %s60 = sphi 0, %s46
      %s64 = sphi 0, %s64
      %s66 = sphi 0, %s64
      %s67 = sphi 0, %s66
      %s81 = sphi 0, %s67
      %s85 = sphi 0, %s85
      %s87 = sphi 0, %s85
      %s88 = sphi 0, %s87
      %s102 = sphi 0, %s88
      %s106 = sphi 0, %s106
      %s108 = sphi 0, %s106
      %s109 = sphi 0, %s108
      %s123 = sphi 0, %s109
      %s127 = sphi 0, %s127
      %s129 = sphi 0, %s127
      %s130 = sphi 0, %s129
      %s144 = sphi 0, %s130
      %s148 = sphi 0, %s148
      %s150 = sphi 0, %s148
      %s151 = sphi 0, %s150
      %s165 = sphi 0, %s151
      %s169 = sphi 0, %s169
      %s171 = sphi 0, %s169
      %s172 = sphi 0, %s171
      %s186 = sphi 0, %s172
      %s192 = sphi 0, %s194
      %s195 = sphi 0, %s192
      %s196 = sphi 0, %s195
      %s212 = sphi 0, %s196
      %s218 = sphi 0, %s220
      %s221 = sphi 0, %s218
      %s222 = sphi 0, %s221
      %s238 = sphi 0, %s222
      %s244 = sphi 0, %s246
      %s247 = sphi 0, %s244
      %s248 = sphi 0, %s247
      %s264 = sphi 0, %s248
      %s270 = sphi 0, %s272
      %s273 = sphi 0, %s270
      %s274 = sphi 0, %s273
      %s290 = sphi 0, %s274
      %s296 = sphi 0, %s298
      %s299 = sphi 0, %s296
      %s300 = sphi 0, %s299
      %s316 = sphi 0, %s300
      %s322 = sphi 0, %s324
      %s325 = sphi 0, %s322
      %s326 = sphi 0, %s325
      %s342 = sphi 0, %s326
      %s348 = sphi 0, %s350
      %s351 = sphi 0, %s348
      %s352 = sphi 0, %s351
      %s368 = sphi 0, %s352
      %s374 = sphi 0, %s376
      %s377 = sphi 0, %s374
      %s378 = sphi 0, %s377
      %s394 = sphi 0, %s378
      %s400 = sphi 0, %s402
      %s403 = sphi 0, %s400
      %s404 = sphi 0, %s403
      %s420 = sphi 0, %s404
      %s426 = sphi 0, %s428
      %s429 = sphi 0, %s426
      %s430 = sphi 0, %s429
      %s446 = sphi 0, %s430
      %s452 = sphi 0, %s454
      %s455 = sphi 0, %s452
      %s456 = sphi 0, %s455
      %s472 = sphi 0, %s456
      %s478 = sphi 0, %s480
      %s481 = sphi 0, %s478
      %s482 = sphi 0, %s481
      %s498 = sphi 0, %s482
      %s502 = sphi 0, %s502
      %s504 = sphi 0, %s502
      %s505 = sphi 0, %s504
      %s519 = sphi 0, %s505
      %s523 = sphi 0, %s523
      %s525 = sphi 0, %s523
      %s526 = sphi 0, %s525
      %s540 = sphi 0, %s526
      %s544 = sphi 0, %s544
      %s546 = sphi 0, %s544
      %s547 = sphi 0, %s546
      %s561 = sphi 0, %s547
      %s565 = sphi 0, %s565
      %s567 = sphi 0, %s565
      %s568 = sphi 0, %s567
      %s582 = sphi 0, %s568
      %s586 = sphi 0, %s586
      %s588 = sphi 0, %s586
      %s589 = sphi 0, %s588
      %s603 = sphi 0, %s589
      %s607 = sphi 0, %s607
      %s609 = sphi 0, %s607
      %s610 = sphi 0, %s609
      %s624 = sphi 0, %s610
      %s628 = sphi 0, %s628
      %s630 = sphi 0, %s628
      %s631 = sphi 0, %s630
      %s645 = sphi 0, %s631
    $region4: #{bilstm_transformer_forward.1} parent=1 // loop_header_branch
      %38 = sbr.rel (%p36) target = $region8
    $region5: #{bilstm_transformer_forward.1} parent=1 // loop_body
      %s40 = ssub.s32 %s35, 1
      %s41 = ssub.s32 %s35, 2
      %s42 = sadd.s32 %s35, 1
      %s44 = sadd.s32 %s43, 1
      %p47 = scmp.eq.s32.totalorder %s35, 5
      %p48 = scmp.ne.s32.totalorder %s43, %s45
      %p49 = scmp.eq.s32.totalorder %s35, 0
      %p50 = por %p48, %p49
      %p51 = scmp.ne.s32.totalorder %s43, %s45
      %p52 = scmp.eq.s32.totalorder %s40, 5
      %p53 = por %p51, %p52
      %p54 = scmp.ne.s32.totalorder %s45, %s46
      %p55 = scmp.eq.s32.totalorder %s40, 0
      %p56 = por %p54, %p55
      %p57 = scmp.ne.s32.totalorder %s45, %s46
      %p58 = scmp.eq.s32.totalorder %s41, 5
      %p59 = por %p57, %p58
      %p61 = scmp.ne.s32.totalorder %s46, %s60
      %p62 = scmp.eq.s32.totalorder %s41, 0
      %p63 = por %p61, %p62
      %s65 = sadd.s32 %s64, 1
      %p68 = scmp.eq.s32.totalorder %s35, 5
      %p69 = scmp.ne.s32.totalorder %s64, %s66
      %p70 = scmp.eq.s32.totalorder %s35, 0
      %p71 = por %p69, %p70
      %p72 = scmp.ne.s32.totalorder %s64, %s66
      %p73 = scmp.eq.s32.totalorder %s40, 5
      %p74 = por %p72, %p73
      %p75 = scmp.ne.s32.totalorder %s66, %s67
      %p76 = scmp.eq.s32.totalorder %s40, 0
      %p77 = por %p75, %p76
      %p78 = scmp.ne.s32.totalorder %s66, %s67
      %p79 = scmp.eq.s32.totalorder %s41, 5
      %p80 = por %p78, %p79
      %p82 = scmp.ne.s32.totalorder %s67, %s81
      %p83 = scmp.eq.s32.totalorder %s41, 0
      %p84 = por %p82, %p83
      %s86 = sadd.s32 %s85, 1
      %p89 = scmp.eq.s32.totalorder %s35, 5
      %p90 = scmp.ne.s32.totalorder %s85, %s87
      %p91 = scmp.eq.s32.totalorder %s35, 0
      %p92 = por %p90, %p91
      %p93 = scmp.ne.s32.totalorder %s85, %s87
      %p94 = scmp.eq.s32.totalorder %s40, 5
      %p95 = por %p93, %p94
      %p96 = scmp.ne.s32.totalorder %s87, %s88
      %p97 = scmp.eq.s32.totalorder %s40, 0
      %p98 = por %p96, %p97
      %p99 = scmp.ne.s32.totalorder %s87, %s88
      %p100 = scmp.eq.s32.totalorder %s41, 5
      %p101 = por %p99, %p100
      %p103 = scmp.ne.s32.totalorder %s88, %s102
      %p104 = scmp.eq.s32.totalorder %s41, 0
      %p105 = por %p103, %p104
      %s107 = sadd.s32 %s106, 1
      %p110 = scmp.eq.s32.totalorder %s35, 5
      %p111 = scmp.ne.s32.totalorder %s106, %s108
      %p112 = scmp.eq.s32.totalorder %s35, 0
      %p113 = por %p111, %p112
      %p114 = scmp.ne.s32.totalorder %s106, %s108
      %p115 = scmp.eq.s32.totalorder %s40, 5
      %p116 = por %p114, %p115
      %p117 = scmp.ne.s32.totalorder %s108, %s109
      %p118 = scmp.eq.s32.totalorder %s40, 0
      %p119 = por %p117, %p118
      %p120 = scmp.ne.s32.totalorder %s108, %s109
      %p121 = scmp.eq.s32.totalorder %s41, 5
      %p122 = por %p120, %p121
      %p124 = scmp.ne.s32.totalorder %s109, %s123
      %p125 = scmp.eq.s32.totalorder %s41, 0
      %p126 = por %p124, %p125
      %s128 = sadd.s32 %s127, 1
      %p131 = scmp.eq.s32.totalorder %s35, 5
      %p132 = scmp.ne.s32.totalorder %s127, %s129
      %p133 = scmp.eq.s32.totalorder %s35, 0
      %p134 = por %p132, %p133
      %p135 = scmp.ne.s32.totalorder %s127, %s129
      %p136 = scmp.eq.s32.totalorder %s40, 5
      %p137 = por %p135, %p136
      %p138 = scmp.ne.s32.totalorder %s129, %s130
      %p139 = scmp.eq.s32.totalorder %s40, 0
      %p140 = por %p138, %p139
      %p141 = scmp.ne.s32.totalorder %s129, %s130
      %p142 = scmp.eq.s32.totalorder %s41, 5
      %p143 = por %p141, %p142
      %p145 = scmp.ne.s32.totalorder %s130, %s144
      %p146 = scmp.eq.s32.totalorder %s41, 0
      %p147 = por %p145, %p146
      %s149 = sadd.s32 %s148, 1
      %p152 = scmp.eq.s32.totalorder %s35, 5
      %p153 = scmp.ne.s32.totalorder %s148, %s150
      %p154 = scmp.eq.s32.totalorder %s35, 0
      %p155 = por %p153, %p154
      %p156 = scmp.ne.s32.totalorder %s148, %s150
      %p157 = scmp.eq.s32.totalorder %s40, 5
      %p158 = por %p156, %p157
      %p159 = scmp.ne.s32.totalorder %s150, %s151
      %p160 = scmp.eq.s32.totalorder %s40, 0
      %p161 = por %p159, %p160
      %p162 = scmp.ne.s32.totalorder %s150, %s151
      %p163 = scmp.eq.s32.totalorder %s41, 5
      %p164 = por %p162, %p163
      %p166 = scmp.ne.s32.totalorder %s151, %s165
      %p167 = scmp.eq.s32.totalorder %s41, 0
      %p168 = por %p166, %p167
      %s170 = sadd.s32 %s169, 1
      %p173 = scmp.eq.s32.totalorder %s35, 5
      %p174 = scmp.ne.s32.totalorder %s169, %s171
      %p175 = scmp.eq.s32.totalorder %s35, 0
      %p176 = por %p174, %p175
      %p177 = scmp.ne.s32.totalorder %s169, %s171
      %p178 = scmp.eq.s32.totalorder %s40, 5
      %p179 = por %p177, %p178
      %p180 = scmp.ne.s32.totalorder %s171, %s172
      %p181 = scmp.eq.s32.totalorder %s40, 0
      %p182 = por %p180, %p181
      %p183 = scmp.ne.s32.totalorder %s171, %s172
      %p184 = scmp.eq.s32.totalorder %s41, 5
      %p185 = por %p183, %p184
      %p187 = scmp.ne.s32.totalorder %s172, %s186
      %p188 = scmp.eq.s32.totalorder %s41, 0
      %p189 = por %p187, %p188
      %s190 = ssub.s32 %s35, %s42
      %p191 = scmp.eq.s32.totalorder %s190, 0
      %s193 = sadd.s32 %s192, 1
      %s194 = scalar_select %p191, %s192, %s193
      %p197 = pneg %p191
      %p198 = scmp.eq.s32.totalorder %s35, 5
      %p199 = por %p197, %p198
      %p200 = scmp.ne.s32.totalorder %s192, %s195
      %p201 = scmp.eq.s32.totalorder %s35, 0
      %p202 = por %p200, %p201
      %p203 = scmp.ne.s32.totalorder %s192, %s195
      %p204 = scmp.eq.s32.totalorder %s40, 5
      %p205 = por %p203, %p204
      %p206 = scmp.ne.s32.totalorder %s195, %s196
      %p207 = scmp.eq.s32.totalorder %s40, 0
      %p208 = por %p206, %p207
      %p209 = scmp.ne.s32.totalorder %s195, %s196
      %p210 = scmp.eq.s32.totalorder %s41, 5
      %p211 = por %p209, %p210
      %p213 = scmp.ne.s32.totalorder %s196, %s212
      %p214 = scmp.eq.s32.totalorder %s41, 0
      %p215 = por %p213, %p214
      %s216 = ssub.s32 %s35, %s42
      %p217 = scmp.eq.s32.totalorder %s216, 0
      %s219 = sadd.s32 %s218, 1
      %s220 = scalar_select %p217, %s218, %s219
      %p223 = pneg %p217
      %p224 = scmp.eq.s32.totalorder %s35, 5
      %p225 = por %p223, %p224
      %p226 = scmp.ne.s32.totalorder %s218, %s221
      %p227 = scmp.eq.s32.totalorder %s35, 0
      %p228 = por %p226, %p227
      %p229 = scmp.ne.s32.totalorder %s218, %s221
      %p230 = scmp.eq.s32.totalorder %s40, 5
      %p231 = por %p229, %p230
      %p232 = scmp.ne.s32.totalorder %s221, %s222
      %p233 = scmp.eq.s32.totalorder %s40, 0
      %p234 = por %p232, %p233
      %p235 = scmp.ne.s32.totalorder %s221, %s222
      %p236 = scmp.eq.s32.totalorder %s41, 5
      %p237 = por %p235, %p236
      %p239 = scmp.ne.s32.totalorder %s222, %s238
      %p240 = scmp.eq.s32.totalorder %s41, 0
      %p241 = por %p239, %p240
      %s242 = ssub.s32 %s35, %s42
      %p243 = scmp.eq.s32.totalorder %s242, 0
      %s245 = sadd.s32 %s244, 1
      %s246 = scalar_select %p243, %s244, %s245
      %p249 = pneg %p243
      %p250 = scmp.eq.s32.totalorder %s35, 5
      %p251 = por %p249, %p250
      %p252 = scmp.ne.s32.totalorder %s244, %s247
      %p253 = scmp.eq.s32.totalorder %s35, 0
      %p254 = por %p252, %p253
      %p255 = scmp.ne.s32.totalorder %s244, %s247
      %p256 = scmp.eq.s32.totalorder %s40, 5
      %p257 = por %p255, %p256
      %p258 = scmp.ne.s32.totalorder %s247, %s248
      %p259 = scmp.eq.s32.totalorder %s40, 0
      %p260 = por %p258, %p259
      %p261 = scmp.ne.s32.totalorder %s247, %s248
      %p262 = scmp.eq.s32.totalorder %s41, 5
      %p263 = por %p261, %p262
      %p265 = scmp.ne.s32.totalorder %s248, %s264
      %p266 = scmp.eq.s32.totalorder %s41, 0
      %p267 = por %p265, %p266
      %s268 = ssub.s32 %s35, %s42
      %p269 = scmp.eq.s32.totalorder %s268, 0
      %s271 = sadd.s32 %s270, 1
      %s272 = scalar_select %p269, %s270, %s271
      %p275 = pneg %p269
      %p276 = scmp.eq.s32.totalorder %s35, 5
      %p277 = por %p275, %p276
      %p278 = scmp.ne.s32.totalorder %s270, %s273
      %p279 = scmp.eq.s32.totalorder %s35, 0
      %p280 = por %p278, %p279
      %p281 = scmp.ne.s32.totalorder %s270, %s273
      %p282 = scmp.eq.s32.totalorder %s40, 5
      %p283 = por %p281, %p282
      %p284 = scmp.ne.s32.totalorder %s273, %s274
      %p285 = scmp.eq.s32.totalorder %s40, 0
      %p286 = por %p284, %p285
      %p287 = scmp.ne.s32.totalorder %s273, %s274
      %p288 = scmp.eq.s32.totalorder %s41, 5
      %p289 = por %p287, %p288
      %p291 = scmp.ne.s32.totalorder %s274, %s290
      %p292 = scmp.eq.s32.totalorder %s41, 0
      %p293 = por %p291, %p292
      %s294 = ssub.s32 %s35, %s42
      %p295 = scmp.eq.s32.totalorder %s294, 0
      %s297 = sadd.s32 %s296, 1
      %s298 = scalar_select %p295, %s296, %s297
      %p301 = pneg %p295
      %p302 = scmp.eq.s32.totalorder %s35, 5
      %p303 = por %p301, %p302
      %p304 = scmp.ne.s32.totalorder %s296, %s299
      %p305 = scmp.eq.s32.totalorder %s35, 0
      %p306 = por %p304, %p305
      %p307 = scmp.ne.s32.totalorder %s296, %s299
      %p308 = scmp.eq.s32.totalorder %s40, 5
      %p309 = por %p307, %p308
      %p310 = scmp.ne.s32.totalorder %s299, %s300
      %p311 = scmp.eq.s32.totalorder %s40, 0
      %p312 = por %p310, %p311
      %p313 = scmp.ne.s32.totalorder %s299, %s300
      %p314 = scmp.eq.s32.totalorder %s41, 5
      %p315 = por %p313, %p314
      %p317 = scmp.ne.s32.totalorder %s300, %s316
      %p318 = scmp.eq.s32.totalorder %s41, 0
      %p319 = por %p317, %p318
      %s320 = ssub.s32 %s35, %s42
      %p321 = scmp.eq.s32.totalorder %s320, 0
      %s323 = sadd.s32 %s322, 1
      %s324 = scalar_select %p321, %s322, %s323
      %p327 = pneg %p321
      %p328 = scmp.eq.s32.totalorder %s35, 5
      %p329 = por %p327, %p328
      %p330 = scmp.ne.s32.totalorder %s322, %s325
      %p331 = scmp.eq.s32.totalorder %s35, 0
      %p332 = por %p330, %p331
      %p333 = scmp.ne.s32.totalorder %s322, %s325
      %p334 = scmp.eq.s32.totalorder %s40, 5
      %p335 = por %p333, %p334
      %p336 = scmp.ne.s32.totalorder %s325, %s326
      %p337 = scmp.eq.s32.totalorder %s40, 0
      %p338 = por %p336, %p337
      %p339 = scmp.ne.s32.totalorder %s325, %s326
      %p340 = scmp.eq.s32.totalorder %s41, 5
      %p341 = por %p339, %p340
      %p343 = scmp.ne.s32.totalorder %s326, %s342
      %p344 = scmp.eq.s32.totalorder %s41, 0
      %p345 = por %p343, %p344
      %s346 = ssub.s32 %s35, %s42
      %p347 = scmp.eq.s32.totalorder %s346, 0
      %s349 = sadd.s32 %s348, 1
      %s350 = scalar_select %p347, %s348, %s349
      %p353 = pneg %p347
      %p354 = scmp.eq.s32.totalorder %s35, 5
      %p355 = por %p353, %p354
      %p356 = scmp.ne.s32.totalorder %s348, %s351
      %p357 = scmp.eq.s32.totalorder %s35, 0
      %p358 = por %p356, %p357
      %p359 = scmp.ne.s32.totalorder %s348, %s351
      %p360 = scmp.eq.s32.totalorder %s40, 5
      %p361 = por %p359, %p360
      %p362 = scmp.ne.s32.totalorder %s351, %s352
      %p363 = scmp.eq.s32.totalorder %s40, 0
      %p364 = por %p362, %p363
      %p365 = scmp.ne.s32.totalorder %s351, %s352
      %p366 = scmp.eq.s32.totalorder %s41, 5
      %p367 = por %p365, %p366
      %p369 = scmp.ne.s32.totalorder %s352, %s368
      %p370 = scmp.eq.s32.totalorder %s41, 0
      %p371 = por %p369, %p370
      %s372 = ssub.s32 %s35, %s42
      %p373 = scmp.eq.s32.totalorder %s372, 0
      %s375 = sadd.s32 %s374, 1
      %s376 = scalar_select %p373, %s374, %s375
      %p379 = pneg %p373
      %p380 = scmp.eq.s32.totalorder %s35, 5
      %p381 = por %p379, %p380
      %p382 = scmp.ne.s32.totalorder %s374, %s377
      %p383 = scmp.eq.s32.totalorder %s35, 0
      %p384 = por %p382, %p383
      %p385 = scmp.ne.s32.totalorder %s374, %s377
      %p386 = scmp.eq.s32.totalorder %s40, 5
      %p387 = por %p385, %p386
      %p388 = scmp.ne.s32.totalorder %s377, %s378
      %p389 = scmp.eq.s32.totalorder %s40, 0
      %p390 = por %p388, %p389
      %p391 = scmp.ne.s32.totalorder %s377, %s378
      %p392 = scmp.eq.s32.totalorder %s41, 5
      %p393 = por %p391, %p392
      %p395 = scmp.ne.s32.totalorder %s378, %s394
      %p396 = scmp.eq.s32.totalorder %s41, 0
      %p397 = por %p395, %p396
      %s398 = ssub.s32 %s35, %s42
      %p399 = scmp.eq.s32.totalorder %s398, 0
      %s401 = sadd.s32 %s400, 1
      %s402 = scalar_select %p399, %s400, %s401
      %p405 = pneg %p399
      %p406 = scmp.eq.s32.totalorder %s35, 5
      %p407 = por %p405, %p406
      %p408 = scmp.ne.s32.totalorder %s400, %s403
      %p409 = scmp.eq.s32.totalorder %s35, 0
      %p410 = por %p408, %p409
      %p411 = scmp.ne.s32.totalorder %s400, %s403
      %p412 = scmp.eq.s32.totalorder %s40, 5
      %p413 = por %p411, %p412
      %p414 = scmp.ne.s32.totalorder %s403, %s404
      %p415 = scmp.eq.s32.totalorder %s40, 0
      %p416 = por %p414, %p415
      %p417 = scmp.ne.s32.totalorder %s403, %s404
      %p418 = scmp.eq.s32.totalorder %s41, 5
      %p419 = por %p417, %p418
      %p421 = scmp.ne.s32.totalorder %s404, %s420
      %p422 = scmp.eq.s32.totalorder %s41, 0
      %p423 = por %p421, %p422
      %s424 = ssub.s32 %s35, %s42
      %p425 = scmp.eq.s32.totalorder %s424, 0
      %s427 = sadd.s32 %s426, 1
      %s428 = scalar_select %p425, %s426, %s427
      %p431 = pneg %p425
      %p432 = scmp.eq.s32.totalorder %s35, 5
      %p433 = por %p431, %p432
      %p434 = scmp.ne.s32.totalorder %s426, %s429
      %p435 = scmp.eq.s32.totalorder %s35, 0
      %p436 = por %p434, %p435
      %p437 = scmp.ne.s32.totalorder %s426, %s429
      %p438 = scmp.eq.s32.totalorder %s40, 5
      %p439 = por %p437, %p438
      %p440 = scmp.ne.s32.totalorder %s429, %s430
      %p441 = scmp.eq.s32.totalorder %s40, 0
      %p442 = por %p440, %p441
      %p443 = scmp.ne.s32.totalorder %s429, %s430
      %p444 = scmp.eq.s32.totalorder %s41, 5
      %p445 = por %p443, %p444
      %p447 = scmp.ne.s32.totalorder %s430, %s446
      %p448 = scmp.eq.s32.totalorder %s41, 0
      %p449 = por %p447, %p448
      %s450 = ssub.s32 %s35, %s42
      %p451 = scmp.eq.s32.totalorder %s450, 0
      %s453 = sadd.s32 %s452, 1
      %s454 = scalar_select %p451, %s452, %s453
      %p457 = pneg %p451
      %p458 = scmp.eq.s32.totalorder %s35, 5
      %p459 = por %p457, %p458
      %p460 = scmp.ne.s32.totalorder %s452, %s455
      %p461 = scmp.eq.s32.totalorder %s35, 0
      %p462 = por %p460, %p461
      %p463 = scmp.ne.s32.totalorder %s452, %s455
      %p464 = scmp.eq.s32.totalorder %s40, 5
      %p465 = por %p463, %p464
      %p466 = scmp.ne.s32.totalorder %s455, %s456
      %p467 = scmp.eq.s32.totalorder %s40, 0
      %p468 = por %p466, %p467
      %p469 = scmp.ne.s32.totalorder %s455, %s456
      %p470 = scmp.eq.s32.totalorder %s41, 5
      %p471 = por %p469, %p470
      %p473 = scmp.ne.s32.totalorder %s456, %s472
      %p474 = scmp.eq.s32.totalorder %s41, 0
      %p475 = por %p473, %p474
      %s476 = ssub.s32 %s35, %s42
      %p477 = scmp.eq.s32.totalorder %s476, 0
      %s479 = sadd.s32 %s478, 1
      %s480 = scalar_select %p477, %s478, %s479
      %p483 = pneg %p477
      %p484 = scmp.eq.s32.totalorder %s35, 5
      %p485 = por %p483, %p484
      %p486 = scmp.ne.s32.totalorder %s478, %s481
      %p487 = scmp.eq.s32.totalorder %s35, 0
      %p488 = por %p486, %p487
      %p489 = scmp.ne.s32.totalorder %s478, %s481
      %p490 = scmp.eq.s32.totalorder %s40, 5
      %p491 = por %p489, %p490
      %p492 = scmp.ne.s32.totalorder %s481, %s482
      %p493 = scmp.eq.s32.totalorder %s40, 0
      %p494 = por %p492, %p493
      %p495 = scmp.ne.s32.totalorder %s481, %s482
      %p496 = scmp.eq.s32.totalorder %s41, 5
      %p497 = por %p495, %p496
      %p499 = scmp.ne.s32.totalorder %s482, %s498
      %p500 = scmp.eq.s32.totalorder %s41, 0
      %p501 = por %p499, %p500
      %s503 = sadd.s32 %s502, 1
      %p506 = scmp.eq.s32.totalorder %s35, 5
      %p507 = scmp.ne.s32.totalorder %s502, %s504
      %p508 = scmp.eq.s32.totalorder %s35, 0
      %p509 = por %p507, %p508
      %p510 = scmp.ne.s32.totalorder %s502, %s504
      %p511 = scmp.eq.s32.totalorder %s40, 5
      %p512 = por %p510, %p511
      %p513 = scmp.ne.s32.totalorder %s504, %s505
      %p514 = scmp.eq.s32.totalorder %s40, 0
      %p515 = por %p513, %p514
      %p516 = scmp.ne.s32.totalorder %s504, %s505
      %p517 = scmp.eq.s32.totalorder %s41, 5
      %p518 = por %p516, %p517
      %p520 = scmp.ne.s32.totalorder %s505, %s519
      %p521 = scmp.eq.s32.totalorder %s41, 0
      %p522 = por %p520, %p521
      %s524 = sadd.s32 %s523, 1
      %p527 = scmp.eq.s32.totalorder %s35, 5
      %p528 = scmp.ne.s32.totalorder %s523, %s525
      %p529 = scmp.eq.s32.totalorder %s35, 0
      %p530 = por %p528, %p529
      %p531 = scmp.ne.s32.totalorder %s523, %s525
      %p532 = scmp.eq.s32.totalorder %s40, 5
      %p533 = por %p531, %p532
      %p534 = scmp.ne.s32.totalorder %s525, %s526
      %p535 = scmp.eq.s32.totalorder %s40, 0
      %p536 = por %p534, %p535
      %p537 = scmp.ne.s32.totalorder %s525, %s526
      %p538 = scmp.eq.s32.totalorder %s41, 5
      %p539 = por %p537, %p538
      %p541 = scmp.ne.s32.totalorder %s526, %s540
      %p542 = scmp.eq.s32.totalorder %s41, 0
      %p543 = por %p541, %p542
      %s545 = sadd.s32 %s544, 1
      %p548 = scmp.eq.s32.totalorder %s35, 5
      %p549 = scmp.ne.s32.totalorder %s544, %s546
      %p550 = scmp.eq.s32.totalorder %s35, 0
      %p551 = por %p549, %p550
      %p552 = scmp.ne.s32.totalorder %s544, %s546
      %p553 = scmp.eq.s32.totalorder %s40, 5
      %p554 = por %p552, %p553
      %p555 = scmp.ne.s32.totalorder %s546, %s547
      %p556 = scmp.eq.s32.totalorder %s40, 0
      %p557 = por %p555, %p556
      %p558 = scmp.ne.s32.totalorder %s546, %s547
      %p559 = scmp.eq.s32.totalorder %s41, 5
      %p560 = por %p558, %p559
      %p562 = scmp.ne.s32.totalorder %s547, %s561
      %p563 = scmp.eq.s32.totalorder %s41, 0
      %p564 = por %p562, %p563
      %s566 = sadd.s32 %s565, 1
      %p569 = scmp.eq.s32.totalorder %s35, 5
      %p570 = scmp.ne.s32.totalorder %s565, %s567
      %p571 = scmp.eq.s32.totalorder %s35, 0
      %p572 = por %p570, %p571
      %p573 = scmp.ne.s32.totalorder %s565, %s567
      %p574 = scmp.eq.s32.totalorder %s40, 5
      %p575 = por %p573, %p574
      %p576 = scmp.ne.s32.totalorder %s567, %s568
      %p577 = scmp.eq.s32.totalorder %s40, 0
      %p578 = por %p576, %p577
      %p579 = scmp.ne.s32.totalorder %s567, %s568
      %p580 = scmp.eq.s32.totalorder %s41, 5
      %p581 = por %p579, %p580
      %p583 = scmp.ne.s32.totalorder %s568, %s582
      %p584 = scmp.eq.s32.totalorder %s41, 0
      %p585 = por %p583, %p584
      %s587 = sadd.s32 %s586, 1
      %p590 = scmp.eq.s32.totalorder %s35, 5
      %p591 = scmp.ne.s32.totalorder %s586, %s588
      %p592 = scmp.eq.s32.totalorder %s35, 0
      %p593 = por %p591, %p592
      %p594 = scmp.ne.s32.totalorder %s586, %s588
      %p595 = scmp.eq.s32.totalorder %s40, 5
      %p596 = por %p594, %p595
      %p597 = scmp.ne.s32.totalorder %s588, %s589
      %p598 = scmp.eq.s32.totalorder %s40, 0
      %p599 = por %p597, %p598
      %p600 = scmp.ne.s32.totalorder %s588, %s589
      %p601 = scmp.eq.s32.totalorder %s41, 5
      %p602 = por %p600, %p601
      %p604 = scmp.ne.s32.totalorder %s589, %s603
      %p605 = scmp.eq.s32.totalorder %s41, 0
      %p606 = por %p604, %p605
      %s608 = sadd.s32 %s607, 1
      %p611 = scmp.eq.s32.totalorder %s35, 5
      %p612 = scmp.ne.s32.totalorder %s607, %s609
      %p613 = scmp.eq.s32.totalorder %s35, 0
      %p614 = por %p612, %p613
      %p615 = scmp.ne.s32.totalorder %s607, %s609
      %p616 = scmp.eq.s32.totalorder %s40, 5
      %p617 = por %p615, %p616
      %p618 = scmp.ne.s32.totalorder %s609, %s610
      %p619 = scmp.eq.s32.totalorder %s40, 0
      %p620 = por %p618, %p619
      %p621 = scmp.ne.s32.totalorder %s609, %s610
      %p622 = scmp.eq.s32.totalorder %s41, 5
      %p623 = por %p621, %p622
      %p625 = scmp.ne.s32.totalorder %s610, %s624
      %p626 = scmp.eq.s32.totalorder %s41, 0
      %p627 = por %p625, %p626
      %s629 = sadd.s32 %s628, 1
      %p632 = scmp.eq.s32.totalorder %s35, 5
      %p633 = scmp.ne.s32.totalorder %s628, %s630
      %p634 = scmp.eq.s32.totalorder %s35, 0
      %p635 = por %p633, %p634
      %p636 = scmp.ne.s32.totalorder %s628, %s630
      %p637 = scmp.eq.s32.totalorder %s40, 5
      %p638 = por %p636, %p637
      %p639 = scmp.ne.s32.totalorder %s630, %s631
      %p640 = scmp.eq.s32.totalorder %s40, 0
      %p641 = por %p639, %p640
      %p642 = scmp.ne.s32.totalorder %s630, %s631
      %p643 = scmp.eq.s32.totalorder %s41, 5
      %p644 = por %p642, %p643
      %p646 = scmp.ne.s32.totalorder %s631, %s645
      %p647 = scmp.eq.s32.totalorder %s41, 0
      %p648 = por %p646, %p647
      %p649 = scmp.le.s32.totalorder 1, %s35
      %p650 = scmp.lt.s32.totalorder %s35, 7
      %p651 = pnand %p649, %p650
      %p652 = pneg %p651
      // Predicated region
      $region9: #{bilstm_transformer_forward.1} parent=5 // pred_check
        _
      $region10: #{bilstm_transformer_forward.1} parent=5 // pred_check_branch
        %654 = sbr.rel (%p651) target = $region12
      $region11: #{bilstm_transformer_forward.1} parent=5 // pred_region
        %s655 = ssub.s32 %s35, 1
        // Predicated region
        $region13: #{bilstm_transformer_forward.1} parent=11 // pred_check
          %p656 = pneg %p56
        $region14: #{bilstm_transformer_forward.1} parent=11 // pred_check_branch
          %658 = sbr.rel (%p656) target = $region16
        $region15: #{bilstm_transformer_forward.1} parent=11 // pred_region
          _
        $region16: #{bilstm_transformer_forward.1} parent=11 // pred_fallthru
          _
        // Predicated region
        $region17: #{bilstm_transformer_forward.1} parent=11 // pred_check
          %p659 = pneg %p77
        $region18: #{bilstm_transformer_forward.1} parent=11 // pred_check_branch
          %661 = sbr.rel (%p659) target = $region20
        $region19: #{bilstm_transformer_forward.1} parent=11 // pred_region
          %s663 = ssub.s32 8192, 8192
          %664 = vsyncadd [#allocation4], %s663
          %s665 = sshll.u32 [#allocation3], 4
          %s666 = int_to_ptr.vmem [resolvable:$true] %s665
          %671 = dma.hbm_to_vmem [thread:$0]  %s1, 8192, %s666, [#allocation4], 256, 256, 16
        $region20: #{bilstm_transformer_forward.1} parent=11 // pred_fallthru
          _
        // Predicated region
        $region21: #{bilstm_transformer_forward.1} parent=11 // pred_check
          %p672 = pneg %p98
        $region22: #{bilstm_transformer_forward.1} parent=11 // pred_check_branch
          %674 = sbr.rel (%p672) target = $region24
        $region23: #{bilstm_transformer_forward.1} parent=11 // pred_region
          %s676 = ssub.s32 8192, 8192
          %677 = vsyncadd [#allocation7], %s676
          %s678 = sshll.u32 [#allocation6], 4
          %s679 = int_to_ptr.vmem [resolvable:$true] %s678
          %684 = dma.hbm_to_vmem [thread:$0]  %s2, 8192, %s679, [#allocation7], 256, 256, 16
        $region24: #{bilstm_transformer_forward.1} parent=11 // pred_fallthru
          _
        // Predicated region
        $region25: #{bilstm_transformer_forward.1} parent=11 // pred_check
          %p685 = pneg %p119
        $region26: #{bilstm_transformer_forward.1} parent=11 // pred_check_branch
          %687 = sbr.rel (%p685) target = $region28
        $region27: #{bilstm_transformer_forward.1} parent=11 // pred_region
          %s689 = ssub.s32 8192, 8192
          %690 = vsyncadd [#allocation7], %s689
          %s691 = sshll.u32 [#allocation8], 4
          %s692 = int_to_ptr.vmem [resolvable:$true] %s691
          %697 = dma.hbm_to_vmem [thread:$0]  %s3, 8192, %s692, [#allocation7], 256, 256, 16
        $region28: #{bilstm_transformer_forward.1} parent=11 // pred_fallthru
          _
        // Predicated region
        $region29: #{bilstm_transformer_forward.1} parent=11 // pred_check
          %p698 = pneg %p140
        $region30: #{bilstm_transformer_forward.1} parent=11 // pred_check_branch
          %700 = sbr.rel (%p698) target = $region32
        $region31: #{bilstm_transformer_forward.1} parent=11 // pred_region
          _
        $region32: #{bilstm_transformer_forward.1} parent=11 // pred_fallthru
          _
        // Predicated region
        $region33: #{bilstm_transformer_forward.1} parent=11 // pred_check
          %p701 = pneg %p161
        $region34: #{bilstm_transformer_forward.1} parent=11 // pred_check_branch
          %703 = sbr.rel (%p701) target = $region36
        $region35: #{bilstm_transformer_forward.1} parent=11 // pred_region
          _
        $region36: #{bilstm_transformer_forward.1} parent=11 // pred_fallthru
          _
        // Predicated region
        $region37: #{bilstm_transformer_forward.1} parent=11 // pred_check
          %p704 = pneg %p182
        $region38: #{bilstm_transformer_forward.1} parent=11 // pred_check_branch
          %706 = sbr.rel (%p704) target = $region40
        $region39: #{bilstm_transformer_forward.1} parent=11 // pred_region
          %s708 = ssub.s32 16, 16
          %709 = vsyncadd [#allocation10], %s708
          %s711 = sshll.u32 [#allocation9], 4
          %s712 = int_to_ptr.vmem [resolvable:$true] %s711
          %714 = dma.hbm_to_vmem [thread:$0]  %s6, 16, %s712, [#allocation10]
        $region40: #{bilstm_transformer_forward.1} parent=11 // pred_fallthru
          _
        // Predicated region
        $region41: #{bilstm_transformer_forward.1} parent=11 // pred_check
          %p715 = pneg %p515
        $region42: #{bilstm_transformer_forward.1} parent=11 // pred_check_branch
          %717 = sbr.rel (%p715) target = $region44
        $region43: #{bilstm_transformer_forward.1} parent=11 // pred_region
          _
        $region44: #{bilstm_transformer_forward.1} parent=11 // pred_fallthru
          _
        // Predicated region
        $region45: #{bilstm_transformer_forward.1} parent=11 // pred_check
          %p718 = pneg %p536
        $region46: #{bilstm_transformer_forward.1} parent=11 // pred_check_branch
          %720 = sbr.rel (%p718) target = $region48
        $region47: #{bilstm_transformer_forward.1} parent=11 // pred_region
          _
        $region48: #{bilstm_transformer_forward.1} parent=11 // pred_fallthru
          _
        // Predicated region
        $region49: #{bilstm_transformer_forward.1} parent=11 // pred_check
          %p721 = pneg %p557
        $region50: #{bilstm_transformer_forward.1} parent=11 // pred_check_branch
          %723 = sbr.rel (%p721) target = $region52
        $region51: #{bilstm_transformer_forward.1} parent=11 // pred_region
          _
        $region52: #{bilstm_transformer_forward.1} parent=11 // pred_fallthru
          _
        // Predicated region
        $region53: #{bilstm_transformer_forward.1} parent=11 // pred_check
          %p724 = pneg %p578
        $region54: #{bilstm_transformer_forward.1} parent=11 // pred_check_branch
          %726 = sbr.rel (%p724) target = $region56
        $region55: #{bilstm_transformer_forward.1} parent=11 // pred_region
          _
        $region56: #{bilstm_transformer_forward.1} parent=11 // pred_fallthru
          _
        // Predicated region
        $region57: #{bilstm_transformer_forward.1} parent=11 // pred_check
          %p727 = pneg %p599
        $region58: #{bilstm_transformer_forward.1} parent=11 // pred_check_branch
          %729 = sbr.rel (%p727) target = $region60
        $region59: #{bilstm_transformer_forward.1} parent=11 // pred_region
          _
        $region60: #{bilstm_transformer_forward.1} parent=11 // pred_fallthru
          _
        // Predicated region
        $region61: #{bilstm_transformer_forward.1} parent=11 // pred_check
          %p730 = pneg %p620
        $region62: #{bilstm_transformer_forward.1} parent=11 // pred_check_branch
          %732 = sbr.rel (%p730) target = $region64
        $region63: #{bilstm_transformer_forward.1} parent=11 // pred_region
          _
        $region64: #{bilstm_transformer_forward.1} parent=11 // pred_fallthru
          _
      $region12: #{bilstm_transformer_forward.1} parent=5 // pred_fallthru
        _
      %p733 = scmp.lt.s32.totalorder %s35, 6
      // Predicated region
      $region65: #{bilstm_transformer_forward.1} parent=5 // pred_check
        %p734 = pneg %p733
      $region66: #{bilstm_transformer_forward.1} parent=5 // pred_check_branch
        %736 = sbr.rel (%p734) target = $region68
      $region67: #{bilstm_transformer_forward.1} parent=5 // pred_region
        // Predicated region
        $region69: #{bilstm_transformer_forward.1} parent=67 // pred_check
          %p737 = pneg %p202
        $region70: #{bilstm_transformer_forward.1} parent=67 // pred_check_branch
          %739 = sbr.rel (%p737) target = $region72
        $region71: #{bilstm_transformer_forward.1} parent=67 // pred_region
          %s740 = sand.u32 %s35, 1
          %s741 = scalar_lea.sflag [#allocation4], %s740
          %s742 = sand.u32 %s192, 1
          %s743 = smul.addr %s742, 192
          %s744 = scalar_lea.vmem [#allocation11], %s743
          %s746 = ssub.s32 3072, 3072
          %747 = vsyncadd %s741, %s746
          %s748 = smul.addr %s35, 48
          %s749 = smul.addr %s748, 64
          %s750 = scalar_lea.hbm %s7, %s749
          %s751 = sshll.u32 %s744, 4
          %s752 = int_to_ptr.vmem [resolvable:$true] %s751
          %757 = dma.hbm_to_vmem [thread:$0]  %s750, 3072, %s752, %s741, 192, 192, 12
        $region72: #{bilstm_transformer_forward.1} parent=67 // pred_fallthru
          _
        // Predicated region
        $region73: #{bilstm_transformer_forward.1} parent=67 // pred_check
          %p758 = pneg %p228
        $region74: #{bilstm_transformer_forward.1} parent=67 // pred_check_branch
          %760 = sbr.rel (%p758) target = $region76
        $region75: #{bilstm_transformer_forward.1} parent=67 // pred_region
          %p761 = scmp.lt.s32.totalorder %s35, 5
          %s762 = scalar_select %p761, %s35, 5
          %s763 = smul.addr %s762, 3
          %s764 = scalar_lea.vmem %s8, %s763
        $region76: #{bilstm_transformer_forward.1} parent=67 // pred_fallthru
          _
        // Predicated region
        $region77: #{bilstm_transformer_forward.1} parent=67 // pred_check
          %p765 = pneg %p254
        $region78: #{bilstm_transformer_forward.1} parent=67 // pred_check_branch
          %767 = sbr.rel (%p765) target = $region80
        $region79: #{bilstm_transformer_forward.1} parent=67 // pred_region
          %s768 = sand.u32 %s35, 1
          %s769 = scalar_lea.sflag [#allocation4], %s768
          %s770 = sand.u32 %s244, 1
          %s771 = smul.addr %s770, 64
          %s772 = scalar_lea.vmem [#allocation12], %s771
          %s774 = ssub.s32 1024, 1024
          %775 = vsyncadd %s769, %s774
          %s776 = smul.addr %s35, 16
          %s777 = smul.addr %s776, 64
          %s778 = scalar_lea.hbm %s9, %s777
          %s779 = sshll.u32 %s772, 4
          %s780 = int_to_ptr.vmem [resolvable:$true] %s779
          %785 = dma.hbm_to_vmem [thread:$0]  %s778, 1024, %s780, %s769, 64, 64, 4
        $region80: #{bilstm_transformer_forward.1} parent=67 // pred_fallthru
          _
        // Predicated region
        $region81: #{bilstm_transformer_forward.1} parent=67 // pred_check
          %p786 = pneg %p280
        $region82: #{bilstm_transformer_forward.1} parent=67 // pred_check_branch
          %788 = sbr.rel (%p786) target = $region84
        $region83: #{bilstm_transformer_forward.1} parent=67 // pred_region
          %p789 = scmp.lt.s32.totalorder %s35, 5
          %s790 = scalar_select %p789, %s35, 5
          %s791 = scalar_lea.vmem %s10, %s790
        $region84: #{bilstm_transformer_forward.1} parent=67 // pred_fallthru
          _
        // Predicated region
        $region85: #{bilstm_transformer_forward.1} parent=67 // pred_check
          %p792 = pneg %p306
        $region86: #{bilstm_transformer_forward.1} parent=67 // pred_check_branch
          %794 = sbr.rel (%p792) target = $region88
        $region87: #{bilstm_transformer_forward.1} parent=67 // pred_region
          %s795 = sand.u32 %s35, 1
          %s796 = scalar_lea.sflag [#allocation4], %s795
          %s797 = sand.u32 %s296, 1
          %s798 = smul.addr %s797, 64
          %s799 = scalar_lea.vmem [#allocation13], %s798
          %s801 = ssub.s32 1024, 1024
          %802 = vsyncadd %s796, %s801
          %s803 = smul.addr %s35, 16
          %s804 = smul.addr %s803, 64
          %s805 = scalar_lea.hbm %s11, %s804
          %s806 = sshll.u32 %s799, 4
          %s807 = int_to_ptr.vmem [resolvable:$true] %s806
          %812 = dma.hbm_to_vmem [thread:$0]  %s805, 1024, %s807, %s796, 64, 64, 4
        $region88: #{bilstm_transformer_forward.1} parent=67 // pred_fallthru
          _
        // Predicated region
        $region89: #{bilstm_transformer_forward.1} parent=67 // pred_check
          %p813 = pneg %p332
        $region90: #{bilstm_transformer_forward.1} parent=67 // pred_check_branch
          %815 = sbr.rel (%p813) target = $region92
        $region91: #{bilstm_transformer_forward.1} parent=67 // pred_region
          %s816 = sand.u32 %s35, 1
          %s817 = scalar_lea.sflag [#allocation4], %s816
          %s818 = sand.u32 %s322, 1
          %s819 = scalar_lea.vmem [#allocation14], %s818
          %s821 = ssub.s32 16, 16
          %822 = vsyncadd %s817, %s821
          %s823 = smul.addr %s35, 16
          %s824 = scalar_lea.hbm %s12, %s823
          %s826 = sshll.u32 %s819, 4
          %s827 = int_to_ptr.vmem [resolvable:$true] %s826
          %829 = dma.hbm_to_vmem [thread:$0]  %s824, 16, %s827, %s817
        $region92: #{bilstm_transformer_forward.1} parent=67 // pred_fallthru
          _
        // Predicated region
        $region93: #{bilstm_transformer_forward.1} parent=67 // pred_check
          %p830 = pneg %p358
        $region94: #{bilstm_transformer_forward.1} parent=67 // pred_check_branch
          %832 = sbr.rel (%p830) target = $region96
        $region95: #{bilstm_transformer_forward.1} parent=67 // pred_region
          %s833 = sand.u32 %s35, 1
          %s834 = scalar_lea.sflag [#allocation4], %s833
          %s835 = sand.u32 %s348, 1
          %s836 = smul.addr %s835, 64
          %s837 = scalar_lea.vmem [#allocation15], %s836
          %s839 = ssub.s32 1024, 1024
          %840 = vsyncadd %s834, %s839
          %s841 = smul.addr %s35, 16
          %s842 = smul.addr %s841, 64
          %s843 = scalar_lea.hbm %s13, %s842
          %s844 = sshll.u32 %s837, 4
          %s845 = int_to_ptr.vmem [resolvable:$true] %s844
          %850 = dma.hbm_to_vmem [thread:$0]  %s843, 1024, %s845, %s834, 64, 64, 4
        $region96: #{bilstm_transformer_forward.1} parent=67 // pred_fallthru
          _
        // Predicated region
        $region97: #{bilstm_transformer_forward.1} parent=67 // pred_check
          %p851 = pneg %p384
        $region98: #{bilstm_transformer_forward.1} parent=67 // pred_check_branch
          %853 = sbr.rel (%p851) target = $region100
        $region99: #{bilstm_transformer_forward.1} parent=67 // pred_region
          %s854 = sand.u32 %s35, 1
          %s855 = scalar_lea.sflag [#allocation4], %s854
          %s856 = sand.u32 %s374, 1
          %s857 = scalar_lea.vmem [#allocation16], %s856
          %s859 = ssub.s32 16, 16
          %860 = vsyncadd %s855, %s859
          %s861 = smul.addr %s35, 16
          %s862 = scalar_lea.hbm %s14, %s861
          %s864 = sshll.u32 %s857, 4
          %s865 = int_to_ptr.vmem [resolvable:$true] %s864
          %867 = dma.hbm_to_vmem [thread:$0]  %s862, 16, %s865, %s855
        $region100: #{bilstm_transformer_forward.1} parent=67 // pred_fallthru
          _
        // Predicated region
        $region101: #{bilstm_transformer_forward.1} parent=67 // pred_check
          %p868 = pneg %p410
        $region102: #{bilstm_transformer_forward.1} parent=67 // pred_check_branch
          %870 = sbr.rel (%p868) target = $region104
        $region103: #{bilstm_transformer_forward.1} parent=67 // pred_region
          %p871 = scmp.lt.s32.totalorder %s35, 5
          %s872 = scalar_select %p871, %s35, 5
          %s873 = scalar_lea.vmem %s15, %s872
        $region104: #{bilstm_transformer_forward.1} parent=67 // pred_fallthru
          _
        // Predicated region
        $region105: #{bilstm_transformer_forward.1} parent=67 // pred_check
          %p874 = pneg %p436
        $region106: #{bilstm_transformer_forward.1} parent=67 // pred_check_branch
          %876 = sbr.rel (%p874) target = $region108
        $region107: #{bilstm_transformer_forward.1} parent=67 // pred_region
          %s877 = sand.u32 %s35, 1
          %s878 = scalar_lea.sflag [#allocation4], %s877
          %s879 = sand.u32 %s426, 1
          %s880 = scalar_lea.vmem [#allocation17], %s879
          %s882 = ssub.s32 16, 16
          %883 = vsyncadd %s878, %s882
          %s884 = smul.addr %s35, 16
          %s885 = scalar_lea.hbm %s16, %s884
          %s887 = sshll.u32 %s880, 4
          %s888 = int_to_ptr.vmem [resolvable:$true] %s887
          %890 = dma.hbm_to_vmem [thread:$0]  %s885, 16, %s888, %s878
        $region108: #{bilstm_transformer_forward.1} parent=67 // pred_fallthru
          _
        // Predicated region
        $region109: #{bilstm_transformer_forward.1} parent=67 // pred_check
          %p891 = pneg %p462
        $region110: #{bilstm_transformer_forward.1} parent=67 // pred_check_branch
          %893 = sbr.rel (%p891) target = $region112
        $region111: #{bilstm_transformer_forward.1} parent=67 // pred_region
          %p894 = scmp.lt.s32.totalorder %s35, 5
          %s895 = scalar_select %p894, %s35, 5
          %s896 = scalar_lea.vmem %s17, %s895
        $region112: #{bilstm_transformer_forward.1} parent=67 // pred_fallthru
          _
        // Predicated region
        $region113: #{bilstm_transformer_forward.1} parent=67 // pred_check
          %p897 = pneg %p488
        $region114: #{bilstm_transformer_forward.1} parent=67 // pred_check_branch
          %899 = sbr.rel (%p897) target = $region116
        $region115: #{bilstm_transformer_forward.1} parent=67 // pred_region
          %s900 = sand.u32 %s35, 1
          %s901 = scalar_lea.sflag [#allocation4], %s900
          %s902 = sand.u32 %s478, 1
          %s903 = scalar_lea.vmem [#allocation18], %s902
          %s905 = ssub.s32 16, 16
          %906 = vsyncadd %s901, %s905
          %s907 = smul.addr %s35, 16
          %s908 = scalar_lea.hbm %s18, %s907
          %s910 = sshll.u32 %s903, 4
          %s911 = int_to_ptr.vmem [resolvable:$true] %s910
          %913 = dma.hbm_to_vmem [thread:$0]  %s908, 16, %s911, %s901
        $region116: #{bilstm_transformer_forward.1} parent=67 // pred_fallthru
          _
      $region68: #{bilstm_transformer_forward.1} parent=5 // pred_fallthru
        _
      %p914 = scmp.le.s32.totalorder 1, %s35
      %p915 = scmp.lt.s32.totalorder %s35, 7
      %p916 = pnand %p914, %p915
      %p917 = pneg %p916
      // Predicated region
      $region117: #{bilstm_transformer_forward.1} parent=5 // pred_check
        _
      $region118: #{bilstm_transformer_forward.1} parent=5 // pred_check_branch
        %919 = sbr.rel (%p916) target = $region120
      $region119: #{bilstm_transformer_forward.1} parent=5 // pred_region
        %s920 = ssub.s32 %s35, 1
        // Predicated region
        $region121: #{bilstm_transformer_forward.1} parent=119 // pred_check
          %p921 = pneg %p77
        $region122: #{bilstm_transformer_forward.1} parent=119 // pred_check_branch
          %923 = sbr.rel (%p921) target = $region124
        $region123: #{bilstm_transformer_forward.1} parent=119 // pred_region
          %924 = dma.done [#allocation4], 8192
        $region124: #{bilstm_transformer_forward.1} parent=119 // pred_fallthru
          _
        // Predicated region
        $region125: #{bilstm_transformer_forward.1} parent=119 // pred_check
          %p925 = pneg %p98
        $region126: #{bilstm_transformer_forward.1} parent=119 // pred_check_branch
          %927 = sbr.rel (%p925) target = $region128
        $region127: #{bilstm_transformer_forward.1} parent=119 // pred_region
          %928 = dma.done [#allocation7], 8192
        $region128: #{bilstm_transformer_forward.1} parent=119 // pred_fallthru
          _
        // Predicated region
        $region129: #{bilstm_transformer_forward.1} parent=119 // pred_check
          %p929 = pneg %p119
        $region130: #{bilstm_transformer_forward.1} parent=119 // pred_check_branch
          %931 = sbr.rel (%p929) target = $region132
        $region131: #{bilstm_transformer_forward.1} parent=119 // pred_region
          %932 = dma.done [#allocation7], 8192
        $region132: #{bilstm_transformer_forward.1} parent=119 // pred_fallthru
          _
        // Predicated region
        $region133: #{bilstm_transformer_forward.1} parent=119 // pred_check
          %p933 = pneg %p182
        $region134: #{bilstm_transformer_forward.1} parent=119 // pred_check_branch
          %935 = sbr.rel (%p933) target = $region136
        $region135: #{bilstm_transformer_forward.1} parent=119 // pred_region
          %936 = dma.done [#allocation10], 16
        $region136: #{bilstm_transformer_forward.1} parent=119 // pred_fallthru
          _
        %s937 = sand.u32 %s40, 1
        %s938 = scalar_lea.sflag [#allocation4], %s937
        %s939 = sand.u32 %s195, 1
        %s940 = smul.addr %s939, 192
        %s941 = scalar_lea.vmem [#allocation11], %s940
        // Predicated region
        $region137: #{bilstm_transformer_forward.1} parent=119 // pred_check
          %p942 = pneg %p208
        $region138: #{bilstm_transformer_forward.1} parent=119 // pred_check_branch
          %944 = sbr.rel (%p942) target = $region140
        $region139: #{bilstm_transformer_forward.1} parent=119 // pred_region
          %945 = dma.done %s938, 3072
        $region140: #{bilstm_transformer_forward.1} parent=119 // pred_fallthru
          _
        %s946 = sand.u32 %s40, 1
        %s947 = scalar_lea.sflag [#allocation4], %s946
        %s948 = sand.u32 %s247, 1
        %s949 = smul.addr %s948, 64
        %s950 = scalar_lea.vmem [#allocation12], %s949
        // Predicated region
        $region141: #{bilstm_transformer_forward.1} parent=119 // pred_check
          %p951 = pneg %p260
        $region142: #{bilstm_transformer_forward.1} parent=119 // pred_check_branch
          %953 = sbr.rel (%p951) target = $region144
        $region143: #{bilstm_transformer_forward.1} parent=119 // pred_region
          %954 = dma.done %s947, 1024
        $region144: #{bilstm_transformer_forward.1} parent=119 // pred_fallthru
          _
        %s955 = sand.u32 %s40, 1
        %s956 = scalar_lea.sflag [#allocation4], %s955
        %s957 = sand.u32 %s299, 1
        %s958 = smul.addr %s957, 64
        %s959 = scalar_lea.vmem [#allocation13], %s958
        // Predicated region
        $region145: #{bilstm_transformer_forward.1} parent=119 // pred_check
          %p960 = pneg %p312
        $region146: #{bilstm_transformer_forward.1} parent=119 // pred_check_branch
          %962 = sbr.rel (%p960) target = $region148
        $region147: #{bilstm_transformer_forward.1} parent=119 // pred_region
          %963 = dma.done %s956, 1024
        $region148: #{bilstm_transformer_forward.1} parent=119 // pred_fallthru
          _
        %s964 = sand.u32 %s40, 1
        %s965 = scalar_lea.sflag [#allocation4], %s964
        %s966 = sand.u32 %s325, 1
        %s967 = scalar_lea.vmem [#allocation14], %s966
        // Predicated region
        $region149: #{bilstm_transformer_forward.1} parent=119 // pred_check
          %p968 = pneg %p338
        $region150: #{bilstm_transformer_forward.1} parent=119 // pred_check_branch
          %970 = sbr.rel (%p968) target = $region152
        $region151: #{bilstm_transformer_forward.1} parent=119 // pred_region
          %971 = dma.done %s965, 16
        $region152: #{bilstm_transformer_forward.1} parent=119 // pred_fallthru
          _
        %s972 = sand.u32 %s40, 1
        %s973 = scalar_lea.sflag [#allocation4], %s972
        %s974 = sand.u32 %s351, 1
        %s975 = smul.addr %s974, 64
        %s976 = scalar_lea.vmem [#allocation15], %s975
        // Predicated region
        $region153: #{bilstm_transformer_forward.1} parent=119 // pred_check
          %p977 = pneg %p364
        $region154: #{bilstm_transformer_forward.1} parent=119 // pred_check_branch
          %979 = sbr.rel (%p977) target = $region156
        $region155: #{bilstm_transformer_forward.1} parent=119 // pred_region
          %980 = dma.done %s973, 1024
        $region156: #{bilstm_transformer_forward.1} parent=119 // pred_fallthru
          _
        %s981 = sand.u32 %s40, 1
        %s982 = scalar_lea.sflag [#allocation4], %s981
        %s983 = sand.u32 %s377, 1
        %s984 = scalar_lea.vmem [#allocation16], %s983
        // Predicated region
        $region157: #{bilstm_transformer_forward.1} parent=119 // pred_check
          %p985 = pneg %p390
        $region158: #{bilstm_transformer_forward.1} parent=119 // pred_check_branch
          %987 = sbr.rel (%p985) target = $region160
        $region159: #{bilstm_transformer_forward.1} parent=119 // pred_region
          %988 = dma.done %s982, 16
        $region160: #{bilstm_transformer_forward.1} parent=119 // pred_fallthru
          _
        %s989 = sand.u32 %s40, 1
        %s990 = scalar_lea.sflag [#allocation4], %s989
        %s991 = sand.u32 %s429, 1
        %s992 = scalar_lea.vmem [#allocation17], %s991
        // Predicated region
        $region161: #{bilstm_transformer_forward.1} parent=119 // pred_check
          %p993 = pneg %p442
        $region162: #{bilstm_transformer_forward.1} parent=119 // pred_check_branch
          %995 = sbr.rel (%p993) target = $region164
        $region163: #{bilstm_transformer_forward.1} parent=119 // pred_region
          %996 = dma.done %s990, 16
        $region164: #{bilstm_transformer_forward.1} parent=119 // pred_fallthru
          _
        %s997 = sand.u32 %s40, 1
        %s998 = scalar_lea.sflag [#allocation4], %s997
        %s999 = sand.u32 %s481, 1
        %s1000 = scalar_lea.vmem [#allocation18], %s999
        // Predicated region
        $region165: #{bilstm_transformer_forward.1} parent=119 // pred_check
          %p1001 = pneg %p494
        $region166: #{bilstm_transformer_forward.1} parent=119 // pred_check_branch
          %1003 = sbr.rel (%p1001) target = $region168
        $region167: #{bilstm_transformer_forward.1} parent=119 // pred_region
          %1004 = dma.done %s998, 16
        $region168: #{bilstm_transformer_forward.1} parent=119 // pred_fallthru
          _
        %p1005 = pneg %p56
        %p1006 = pneg %p53
        %p1007 = pneg %p77
        %p1008 = pneg %p74
        %p1009 = pneg %p98
        %p1010 = pneg %p95
        %p1011 = pneg %p119
        %p1012 = pneg %p116
        %p1013 = pneg %p140
        %p1014 = pneg %p137
        %p1015 = pneg %p161
        %p1016 = pneg %p158
        %p1017 = pneg %p182
        %p1018 = pneg %p179
        %s1019 = sand.u32 %s40, 1
        %s1020 = scalar_lea.sflag [#allocation4], %s1019
        %s1021 = sand.u32 %s195, 1
        %s1022 = smul.addr %s1021, 192
        %s1023 = scalar_lea.vmem [#allocation11], %s1022
        %p1024 = pneg %p208
        %p1025 = pneg %p205
        %p1026 = scmp.lt.s32.totalorder %s40, 5
        %s1027 = scalar_select %p1026, %s40, 5
        %s1028 = smul.addr %s1027, 3
        %s1029 = scalar_lea.vmem %s8, %s1028
        %p1030 = pneg %p234
        %p1031 = pneg %p231
        %s1032 = sand.u32 %s40, 1
        %s1033 = scalar_lea.sflag [#allocation4], %s1032
        %s1034 = sand.u32 %s247, 1
        %s1035 = smul.addr %s1034, 64
        %s1036 = scalar_lea.vmem [#allocation12], %s1035
        %p1037 = pneg %p260
        %p1038 = pneg %p257
        %p1039 = scmp.lt.s32.totalorder %s40, 5
        %s1040 = scalar_select %p1039, %s40, 5
        %s1041 = scalar_lea.vmem %s10, %s1040
        %p1042 = pneg %p286
        %p1043 = pneg %p283
        %s1044 = sand.u32 %s40, 1
        %s1045 = scalar_lea.sflag [#allocation4], %s1044
        %s1046 = sand.u32 %s299, 1
        %s1047 = smul.addr %s1046, 64
        %s1048 = scalar_lea.vmem [#allocation13], %s1047
        %p1049 = pneg %p312
        %p1050 = pneg %p309
        %s1051 = sand.u32 %s40, 1
        %s1052 = scalar_lea.sflag [#allocation4], %s1051
        %s1053 = sand.u32 %s325, 1
        %s1054 = scalar_lea.vmem [#allocation14], %s1053
        %p1055 = pneg %p338
        %p1056 = pneg %p335
        %s1057 = sand.u32 %s40, 1
        %s1058 = scalar_lea.sflag [#allocation4], %s1057
        %s1059 = sand.u32 %s351, 1
        %s1060 = smul.addr %s1059, 64
        %s1061 = scalar_lea.vmem [#allocation15], %s1060
        %p1062 = pneg %p364
        %p1063 = pneg %p361
        %s1064 = sand.u32 %s40, 1
        %s1065 = scalar_lea.sflag [#allocation4], %s1064
        %s1066 = sand.u32 %s377, 1
        %s1067 = scalar_lea.vmem [#allocation16], %s1066
        %p1068 = pneg %p390
        %p1069 = pneg %p387
        %p1070 = scmp.lt.s32.totalorder %s40, 5
        %s1071 = scalar_select %p1070, %s40, 5
        %s1072 = scalar_lea.vmem %s15, %s1071
        %p1073 = pneg %p416
        %p1074 = pneg %p413
        %s1075 = sand.u32 %s40, 1
        %s1076 = scalar_lea.sflag [#allocation4], %s1075
        %s1077 = sand.u32 %s429, 1
        %s1078 = scalar_lea.vmem [#allocation17], %s1077
        %p1079 = pneg %p442
        %p1080 = pneg %p439
        %p1081 = scmp.lt.s32.totalorder %s40, 5
        %s1082 = scalar_select %p1081, %s40, 5
        %s1083 = scalar_lea.vmem %s17, %s1082
        %p1084 = pneg %p468
        %p1085 = pneg %p465
        %s1086 = sand.u32 %s40, 1
        %s1087 = scalar_lea.sflag [#allocation4], %s1086
        %s1088 = sand.u32 %s481, 1
        %s1089 = scalar_lea.vmem [#allocation18], %s1088
        %p1090 = pneg %p494
        %p1091 = pneg %p491
        %p1092 = pneg %p515
        %p1093 = pneg %p512
        %p1094 = pneg %p536
        %p1095 = pneg %p533
        %p1096 = pneg %p557
        %p1097 = pneg %p554
        %p1098 = pneg %p578
        %p1099 = pneg %p575
        %p1100 = pneg %p599
        %p1101 = pneg %p596
        %p1102 = pneg %p620
        %p1103 = pneg %p617
        %p1104 = pneg %p641
        %p1105 = pneg %p638
        %p1106 = scmp.lt.s32.totalorder %s40, 5
        %s1107 = scalar_select %p1106, %s40, 5
        %s1108 = smul.addr %s1107, 3
        %s1109 = scalar_lea.vmem %s8, %s1108
        %p1110 = scmp.lt.s32.totalorder %s40, 5
        %s1111 = scalar_select %p1110, %s40, 5
        %s1112 = scalar_lea.vmem %s10, %s1111
        %p1113 = scmp.lt.s32.totalorder %s40, 5
        %s1114 = scalar_select %p1113, %s40, 5
        %s1115 = scalar_lea.vmem %s15, %s1114
        %p1116 = scmp.lt.s32.totalorder %s40, 5
        %s1117 = scalar_select %p1116, %s40, 5
        %s1118 = scalar_lea.vmem %s17, %s1117
        %p1120 = scmp.eq.s32.totalorder %s40, 0
        // Predicated region
        $region169: #{bilstm_transformer_forward.1} parent=119 // pred_check
          %p1121 = pneg %p1120
        $region170: #{bilstm_transformer_forward.1} parent=119 // pred_check_branch
          %1123 = sbr.rel (%p1121) target = $region172
        $region171: #{bilstm_transformer_forward.1} parent=119 // pred_region
          %v1124 = vld [vmem:[%s0] sm:$0xff]
          %v1125 = vld [vmem:[%s0 + $0x8] sm:$0xff]
          %v1126 = vld [vmem:[%s0 + $0x10] sm:$0xff]
          %v1127 = vld [vmem:[%s0 + $0x18] sm:$0xff]
          %v1128 = vld [vmem:[%s0 + $0x20] sm:$0xff]
          %v1129 = vld [vmem:[%s0 + $0x28] sm:$0xff]
          %v1130 = vld [vmem:[%s0 + $0x30] sm:$0xff]
          %v1131 = vld [vmem:[%s0 + $0x38] sm:$0xff]
          %v1132 = vld [vmem:[#allocation3] sm:$0xff]
          %v1133 = vld [vmem:[#allocation3 + $0x8] sm:$0xff]
          %v1134 = vld [vmem:[#allocation3 + $0x10] sm:$0xff]
          %v1135 = vld [vmem:[#allocation3 + $0x18] sm:$0xff]
          %v1136 = vld [vmem:[#allocation3 + $0x20] sm:$0xff]
          %v1137 = vld [vmem:[#allocation3 + $0x28] sm:$0xff]
          %v1138 = vld [vmem:[#allocation3 + $0x30] sm:$0xff]
          %v1139 = vld [vmem:[#allocation3 + $0x38] sm:$0xff]
          %v1140 = vld [vmem:[#allocation3 + $0x40] sm:$0xff]
          %v1141 = vld [vmem:[#allocation3 + $0x48] sm:$0xff]
          %v1142 = vld [vmem:[#allocation3 + $0x50] sm:$0xff]
          %v1143 = vld [vmem:[#allocation3 + $0x58] sm:$0xff]
          %v1144 = vld [vmem:[#allocation3 + $0x60] sm:$0xff]
          %v1145 = vld [vmem:[#allocation3 + $0x68] sm:$0xff]
          %v1146 = vld [vmem:[#allocation3 + $0x70] sm:$0xff]
          %v1147 = vld [vmem:[#allocation3 + $0x78] sm:$0xff]
          %v1148 = vld [vmem:[#allocation3 + $0x80] sm:$0xff]
          %v1149 = vld [vmem:[#allocation3 + $0x88] sm:$0xff]
          %v1150 = vld [vmem:[#allocation3 + $0x90] sm:$0xff]
          %v1151 = vld [vmem:[#allocation3 + $0x98] sm:$0xff]
          %v1152 = vld [vmem:[#allocation3 + $0xa0] sm:$0xff]
          %v1153 = vld [vmem:[#allocation3 + $0xa8] sm:$0xff]
          %v1154 = vld [vmem:[#allocation3 + $0xb0] sm:$0xff]
          %v1155 = vld [vmem:[#allocation3 + $0xb8] sm:$0xff]
          %v1156 = vld [vmem:[#allocation3 + $0xc0] sm:$0xff]
          %v1157 = vld [vmem:[#allocation3 + $0xc8] sm:$0xff]
          %v1158 = vld [vmem:[#allocation3 + $0xd0] sm:$0xff]
          %v1159 = vld [vmem:[#allocation3 + $0xd8] sm:$0xff]
          %v1160 = vld [vmem:[#allocation3 + $0xe0] sm:$0xff]
          %v1161 = vld [vmem:[#allocation3 + $0xe8] sm:$0xff]
          %v1162 = vld [vmem:[#allocation3 + $0xf0] sm:$0xff]
          %v1163 = vld [vmem:[#allocation3 + $0xf8] sm:$0xff]
          %v1164 = vld [vmem:[#allocation6] sm:$0xff]
          %v1165 = vld [vmem:[#allocation6 + $0x8] sm:$0xff]
          %v1166 = vld [vmem:[#allocation6 + $0x10] sm:$0xff]
          %v1167 = vld [vmem:[#allocation6 + $0x18] sm:$0xff]
          %v1168 = vld [vmem:[#allocation6 + $0x20] sm:$0xff]
          %v1169 = vld [vmem:[#allocation6 + $0x28] sm:$0xff]
          %v1170 = vld [vmem:[#allocation6 + $0x30] sm:$0xff]
          %v1171 = vld [vmem:[#allocation6 + $0x38] sm:$0xff]
          %v1172 = vld [vmem:[#allocation6 + $0x40] sm:$0xff]
          %v1173 = vld [vmem:[#allocation6 + $0x48] sm:$0xff]
          %v1174 = vld [vmem:[#allocation6 + $0x50] sm:$0xff]
          %v1175 = vld [vmem:[#allocation6 + $0x58] sm:$0xff]
          %v1176 = vld [vmem:[#allocation6 + $0x60] sm:$0xff]
          %v1177 = vld [vmem:[#allocation6 + $0x68] sm:$0xff]
          %v1178 = vld [vmem:[#allocation6 + $0x70] sm:$0xff]
          %v1179 = vld [vmem:[#allocation6 + $0x78] sm:$0xff]
          %v1180 = vld [vmem:[#allocation6 + $0x80] sm:$0xff]
          %v1181 = vld [vmem:[#allocation6 + $0x88] sm:$0xff]
          %v1182 = vld [vmem:[#allocation6 + $0x90] sm:$0xff]
          %v1183 = vld [vmem:[#allocation6 + $0x98] sm:$0xff]
          %v1184 = vld [vmem:[#allocation6 + $0xa0] sm:$0xff]
          %v1185 = vld [vmem:[#allocation6 + $0xa8] sm:$0xff]
          %v1186 = vld [vmem:[#allocation6 + $0xb0] sm:$0xff]
          %v1187 = vld [vmem:[#allocation6 + $0xb8] sm:$0xff]
          %v1188 = vld [vmem:[#allocation6 + $0xc0] sm:$0xff]
          %v1189 = vld [vmem:[#allocation6 + $0xc8] sm:$0xff]
          %v1190 = vld [vmem:[#allocation6 + $0xd0] sm:$0xff]
          %v1191 = vld [vmem:[#allocation6 + $0xd8] sm:$0xff]
          %v1192 = vld [vmem:[#allocation6 + $0xe0] sm:$0xff]
          %v1193 = vld [vmem:[#allocation6 + $0xe8] sm:$0xff]
          %v1194 = vld [vmem:[#allocation6 + $0xf0] sm:$0xff]
          %v1195 = vld [vmem:[#allocation6 + $0xf8] sm:$0xff]
          %v1196 = vld [vmem:[#allocation8] sm:$0xff]
          %v1197 = vld [vmem:[#allocation8 + $0x8] sm:$0xff]
          %v1198 = vld [vmem:[#allocation8 + $0x10] sm:$0xff]
          %v1199 = vld [vmem:[#allocation8 + $0x18] sm:$0xff]
          %v1200 = vld [vmem:[#allocation8 + $0x20] sm:$0xff]
          %v1201 = vld [vmem:[#allocation8 + $0x28] sm:$0xff]
          %v1202 = vld [vmem:[#allocation8 + $0x30] sm:$0xff]
          %v1203 = vld [vmem:[#allocation8 + $0x38] sm:$0xff]
          %v1204 = vld [vmem:[#allocation8 + $0x40] sm:$0xff]
          %v1205 = vld [vmem:[#allocation8 + $0x48] sm:$0xff]
          %v1206 = vld [vmem:[#allocation8 + $0x50] sm:$0xff]
          %v1207 = vld [vmem:[#allocation8 + $0x58] sm:$0xff]
          %v1208 = vld [vmem:[#allocation8 + $0x60] sm:$0xff]
          %v1209 = vld [vmem:[#allocation8 + $0x68] sm:$0xff]
          %v1210 = vld [vmem:[#allocation8 + $0x70] sm:$0xff]
          %v1211 = vld [vmem:[#allocation8 + $0x78] sm:$0xff]
          %v1212 = vld [vmem:[#allocation8 + $0x80] sm:$0xff]
          %v1213 = vld [vmem:[#allocation8 + $0x88] sm:$0xff]
          %v1214 = vld [vmem:[#allocation8 + $0x90] sm:$0xff]
          %v1215 = vld [vmem:[#allocation8 + $0x98] sm:$0xff]
          %v1216 = vld [vmem:[#allocation8 + $0xa0] sm:$0xff]
          %v1217 = vld [vmem:[#allocation8 + $0xa8] sm:$0xff]
          %v1218 = vld [vmem:[#allocation8 + $0xb0] sm:$0xff]
          %v1219 = vld [vmem:[#allocation8 + $0xb8] sm:$0xff]
          %v1220 = vld [vmem:[#allocation8 + $0xc0] sm:$0xff]
          %v1221 = vld [vmem:[#allocation8 + $0xc8] sm:$0xff]
          %v1222 = vld [vmem:[#allocation8 + $0xd0] sm:$0xff]
          %v1223 = vld [vmem:[#allocation8 + $0xd8] sm:$0xff]
          %v1224 = vld [vmem:[#allocation8 + $0xe0] sm:$0xff]
          %v1225 = vld [vmem:[#allocation8 + $0xe8] sm:$0xff]
          %v1226 = vld [vmem:[#allocation8 + $0xf0] sm:$0xff]
          %v1227 = vld [vmem:[#allocation8 + $0xf8] sm:$0xff]
          %v1228 = vld [vmem:[%s4] sm:$0xf]
          %v1229 = vpack.c.bf16 %v1125, %v1124
          %v1230 = vpack.c.bf16 %v1127, %v1126
          %v1231 = vpack.c.bf16 %v1129, %v1128
          %v1232 = vpack.c.bf16 %v1131, %v1130
          %v1233 = vpack.c.bf16 %v1130, %v1131
          %v1234 = vpack.c.bf16 %v1128, %v1129
          %v1235 = vpack.c.bf16 %v1126, %v1127
          %v1236 = vpack.c.bf16 %v1124, %v1125
          %v1269 = vunpack.c.l.b16 %v1164
          %v1270 = vunpack.c.h.b16 %v1164
          %v1271 = vunpack.c.l.b16 %v1165
          %v1272 = vunpack.c.h.b16 %v1165
          %v1273 = vunpack.c.l.b16 %v1166
          %v1274 = vunpack.c.h.b16 %v1166
          %v1275 = vunpack.c.l.b16 %v1167
          %v1276 = vunpack.c.h.b16 %v1167
          %v1277 = vunpack.c.l.b16 %v1168
          %v1278 = vunpack.c.h.b16 %v1168
          %v1279 = vunpack.c.l.b16 %v1169
          %v1280 = vunpack.c.h.b16 %v1169
          %v1281 = vunpack.c.l.b16 %v1170
          %v1282 = vunpack.c.h.b16 %v1170
          %v1283 = vunpack.c.l.b16 %v1171
          %v1284 = vunpack.c.h.b16 %v1171
          %v1285 = vunpack.c.l.b16 %v1172
          %v1286 = vunpack.c.h.b16 %v1172
          %v1287 = vunpack.c.l.b16 %v1173
          %v1288 = vunpack.c.h.b16 %v1173
          %v1289 = vunpack.c.l.b16 %v1174
          %v1290 = vunpack.c.h.b16 %v1174
          %v1291 = vunpack.c.l.b16 %v1175
          %v1292 = vunpack.c.h.b16 %v1175
          %v1293 = vunpack.c.l.b16 %v1176
          %v1294 = vunpack.c.h.b16 %v1176
          %v1295 = vunpack.c.l.b16 %v1177
          %v1296 = vunpack.c.h.b16 %v1177
          %v1297 = vunpack.c.l.b16 %v1178
          %v1298 = vunpack.c.h.b16 %v1178
          %v1299 = vunpack.c.l.b16 %v1179
          %v1300 = vunpack.c.h.b16 %v1179
          %v1301 = vunpack.c.l.b16 %v1180
          %v1302 = vunpack.c.h.b16 %v1180
          %v1303 = vunpack.c.l.b16 %v1181
          %v1304 = vunpack.c.h.b16 %v1181
          %v1305 = vunpack.c.l.b16 %v1182
          %v1306 = vunpack.c.h.b16 %v1182
          %v1307 = vunpack.c.l.b16 %v1183
          %v1308 = vunpack.c.h.b16 %v1183
          %v1309 = vunpack.c.l.b16 %v1184
          %v1310 = vunpack.c.h.b16 %v1184
          %v1311 = vunpack.c.l.b16 %v1185
          %v1312 = vunpack.c.h.b16 %v1185
          %v1313 = vunpack.c.l.b16 %v1186
          %v1314 = vunpack.c.h.b16 %v1186
          %v1315 = vunpack.c.l.b16 %v1187
          %v1316 = vunpack.c.h.b16 %v1187
          %v1317 = vunpack.c.l.b16 %v1188
          %v1318 = vunpack.c.h.b16 %v1188
          %v1319 = vunpack.c.l.b16 %v1189
          %v1320 = vunpack.c.h.b16 %v1189
          %v1321 = vunpack.c.l.b16 %v1190
          %v1322 = vunpack.c.h.b16 %v1190
          %v1323 = vunpack.c.l.b16 %v1191
          %v1324 = vunpack.c.h.b16 %v1191
          %v1325 = vunpack.c.l.b16 %v1192
          %v1326 = vunpack.c.h.b16 %v1192
          %v1327 = vunpack.c.l.b16 %v1193
          %v1328 = vunpack.c.h.b16 %v1193
          %v1329 = vunpack.c.l.b16 %v1194
          %v1330 = vunpack.c.h.b16 %v1194
          %v1331 = vunpack.c.l.b16 %v1195
          %v1332 = vunpack.c.h.b16 %v1195
          %v1333 = vpack.c.b16 %v1273, %v1269
          %v1334 = vpack.c.b16 %v1274, %v1270
          %v1335 = vpack.c.b16 %v1275, %v1271
          %v1336 = vpack.c.b16 %v1276, %v1272
          %v1337 = vpack.c.b16 %v1281, %v1277
          %v1338 = vpack.c.b16 %v1282, %v1278
          %v1339 = vpack.c.b16 %v1283, %v1279
          %v1340 = vpack.c.b16 %v1284, %v1280
          %v1341 = vpack.c.b16 %v1289, %v1285
          %v1342 = vpack.c.b16 %v1290, %v1286
          %v1343 = vpack.c.b16 %v1291, %v1287
          %v1344 = vpack.c.b16 %v1292, %v1288
          %v1345 = vpack.c.b16 %v1297, %v1293
          %v1346 = vpack.c.b16 %v1298, %v1294
          %v1347 = vpack.c.b16 %v1299, %v1295
          %v1348 = vpack.c.b16 %v1300, %v1296
          %v1349 = vpack.c.b16 %v1305, %v1301
          %v1350 = vpack.c.b16 %v1306, %v1302
          %v1351 = vpack.c.b16 %v1307, %v1303
          %v1352 = vpack.c.b16 %v1308, %v1304
          %v1353 = vpack.c.b16 %v1313, %v1309
          %v1354 = vpack.c.b16 %v1314, %v1310
          %v1355 = vpack.c.b16 %v1315, %v1311
          %v1356 = vpack.c.b16 %v1316, %v1312
          %v1357 = vpack.c.b16 %v1321, %v1317
          %v1358 = vpack.c.b16 %v1322, %v1318
          %v1359 = vpack.c.b16 %v1323, %v1319
          %v1360 = vpack.c.b16 %v1324, %v1320
          %v1361 = vpack.c.b16 %v1329, %v1325
          %v1362 = vpack.c.b16 %v1330, %v1326
          %v1363 = vpack.c.b16 %v1331, %v1327
          %v1364 = vpack.c.b16 %v1332, %v1328
          %1397 = vmatprep.subr.bf16.mxu0 %v1334
          %1398 = vmatpush1.bf16.msra.mxu0 %v1333
          %1399 = vmatprep.subr.bf16.mxu0 %v1338
          %1400 = vmatpush1.bf16.msra.mxu0 %v1337
          %1401 = vmatprep.subr.bf16.mxu0 %v1342
          %1402 = vmatpush1.bf16.msra.mxu0 %v1341
          %1403 = vmatprep.subr.bf16.mxu0 %v1346
          %1404 = vmatpush1.bf16.msra.mxu0 %v1345
          %1405 = vmatprep.subr.bf16.mxu0 %v1350
          %1406 = vmatpush1.bf16.msra.mxu0 %v1349
          %1407 = vmatprep.subr.bf16.mxu0 %v1354
          %1408 = vmatpush1.bf16.msra.mxu0 %v1353
          %1409 = vmatprep.subr.bf16.mxu0 %v1358
          %1410 = vmatpush1.bf16.msra.mxu0 %v1357
          %1411 = vmatprep.subr.bf16.mxu0 %v1362
          %1412 = vmatpush1.bf16.msra.mxu0 %v1361
          %1413 = vmatprep.subr.bf16.mxu0 0
          %1414 = vmatpush1.bf16.msra.mxu0 0
          %1415 = vmatprep.subr.bf16.mxu0 0
          %1416 = vmatpush1.bf16.msra.mxu0 0
          %1417 = vmatprep.subr.bf16.mxu0 0
          %1418 = vmatpush1.bf16.msra.mxu0 0
          %1419 = vmatprep.subr.bf16.mxu0 0
          %1420 = vmatpush1.bf16.msra.mxu0 0
          %1421 = vmatprep.subr.bf16.mxu0 0
          %1422 = vmatpush1.bf16.msra.mxu0 0
          %1423 = vmatprep.subr.bf16.mxu0 0
          %1424 = vmatpush1.bf16.msra.mxu0 0
          %1425 = vmatprep.subr.bf16.mxu0 0
          %1426 = vmatpush1.bf16.msra.mxu0 0
          %1427 = vmatprep.subr.bf16.mxu0 0
          %1428 = vmatpush1.bf16.msra.mxu0 0
          %1429 = vmatprep.mubr.bf16.mxu0 0
          %1430 = vmatmul.mubr.bf16.gmra.mrb[0].mxu0 %v1233
          %v1431 = vpop.f32.mrb[0].mxu0
          %v1432 = vadd.f32 0.0, %v1431
          %v1433 = vpop.f32.mrb[0].mxu0
          %v1434 = vadd.f32 0.0, %v1433
          %v1435 = vpop.f32.mrb[0].mxu0
          %v1436 = vadd.f32 0.0, %v1435
          %v1437 = vpop.f32.mrb[0].mxu0
          %v1438 = vadd.f32 0.0, %v1437
          %1439 = vmatprep.mubr.bf16.mxu0 0
          %1440 = vmatmul.mubr.bf16.gmra.mrb[0].mxu0 %v1234
          %v1441 = vpop.f32.mrb[0].mxu0
          %v1442 = vadd.f32 0.0, %v1441
          %v1443 = vpop.f32.mrb[0].mxu0
          %v1444 = vadd.f32 0.0, %v1443
          %v1445 = vpop.f32.mrb[0].mxu0
          %v1446 = vadd.f32 0.0, %v1445
          %v1447 = vpop.f32.mrb[0].mxu0
          %v1448 = vadd.f32 0.0, %v1447
          %1449 = vmatprep.mubr.bf16.mxu0 0
          %1450 = vmatmul.mubr.bf16.gmra.mrb[0].mxu0 %v1235
          %v1451 = vpop.f32.mrb[0].mxu0
          %v1452 = vadd.f32 0.0, %v1451
          %v1453 = vpop.f32.mrb[0].mxu0
          %v1454 = vadd.f32 0.0, %v1453
          %v1455 = vpop.f32.mrb[0].mxu0
          %v1456 = vadd.f32 0.0, %v1455
          %v1457 = vpop.f32.mrb[0].mxu0
          %v1458 = vadd.f32 0.0, %v1457
          %1459 = vmatprep.mubr.bf16.mxu0 0
          %1460 = vmatmul.mubr.bf16.gmra.mrb[0].mxu0 %v1236
          %v1461 = vpop.f32.mrb[0].mxu0
          %v1462 = vadd.f32 0.0, %v1461
          %v1463 = vpop.f32.mrb[0].mxu0
          %v1464 = vadd.f32 0.0, %v1463
          %v1465 = vpop.f32.mrb[0].mxu0
          %v1466 = vadd.f32 0.0, %v1465
          %v1467 = vpop.f32.mrb[0].mxu0
          %v1468 = vadd.f32 0.0, %v1467
          %1469 = vdwg.mxu0
          %1470 = vmatprep.subr.bf16.mxu0 %v1336
          %1471 = vmatpush1.bf16.msra.mxu0 %v1335
          %1472 = vmatprep.subr.bf16.mxu0 %v1340
          %1473 = vmatpush1.bf16.msra.mxu0 %v1339
          %1474 = vmatprep.subr.bf16.mxu0 %v1344
          %1475 = vmatpush1.bf16.msra.mxu0 %v1343
          %1476 = vmatprep.subr.bf16.mxu0 %v1348
          %1477 = vmatpush1.bf16.msra.mxu0 %v1347
          %1478 = vmatprep.subr.bf16.mxu0 %v1352
          %1479 = vmatpush1.bf16.msra.mxu0 %v1351
          %1480 = vmatprep.subr.bf16.mxu0 %v1356
          %1481 = vmatpush1.bf16.msra.mxu0 %v1355
          %1482 = vmatprep.subr.bf16.mxu0 %v1360
          %1483 = vmatpush1.bf16.msra.mxu0 %v1359
          %1484 = vmatprep.subr.bf16.mxu0 %v1364
          %1485 = vmatpush1.bf16.msra.mxu0 %v1363
          %1486 = vmatprep.subr.bf16.mxu0 0
          %1487 = vmatpush1.bf16.msra.mxu0 0
          %1488 = vmatprep.subr.bf16.mxu0 0
          %1489 = vmatpush1.bf16.msra.mxu0 0
          %1490 = vmatprep.subr.bf16.mxu0 0
          %1491 = vmatpush1.bf16.msra.mxu0 0
          %1492 = vmatprep.subr.bf16.mxu0 0
          %1493 = vmatpush1.bf16.msra.mxu0 0
          %1494 = vmatprep.subr.bf16.mxu0 0
          %1495 = vmatpush1.bf16.msra.mxu0 0
          %1496 = vmatprep.subr.bf16.mxu0 0
          %1497 = vmatpush1.bf16.msra.mxu0 0
          %1498 = vmatprep.subr.bf16.mxu0 0
          %1499 = vmatpush1.bf16.msra.mxu0 0
          %1500 = vmatprep.subr.bf16.mxu0 0
          %1501 = vmatpush1.bf16.msra.mxu0 0
          %1502 = vmatprep.mubr.bf16.mxu0 0
          %1503 = vmatmul.mubr.bf16.gmra.mrb[0].mxu0 %v1233
          %v1504 = vpop.f32.mrb[0].mxu0
          %v1505 = vadd.f32 0.0, %v1504
          %v1506 = vpop.f32.mrb[0].mxu0
          %v1507 = vadd.f32 0.0, %v1506
          %v1508 = vpop.f32.mrb[0].mxu0
          %v1509 = vadd.f32 0.0, %v1508
          %v1510 = vpop.f32.mrb[0].mxu0
          %v1511 = vadd.f32 0.0, %v1510
          %1512 = vmatprep.mubr.bf16.mxu0 0
          %1513 = vmatmul.mubr.bf16.gmra.mrb[0].mxu0 %v1234
          %v1514 = vpop.f32.mrb[0].mxu0
          %v1515 = vadd.f32 0.0, %v1514
          %v1516 = vpop.f32.mrb[0].mxu0
          %v1517 = vadd.f32 0.0, %v1516
          %v1518 = vpop.f32.mrb[0].mxu0
          %v1519 = vadd.f32 0.0, %v1518
          %v1520 = vpop.f32.mrb[0].mxu0
          %v1521 = vadd.f32 0.0, %v1520
          %1522 = vmatprep.mubr.bf16.mxu0 0
          %1523 = vmatmul.mubr.bf16.gmra.mrb[0].mxu0 %v1235
          %v1524 = vpop.f32.mrb[0].mxu0
          %v1525 = vadd.f32 0.0, %v1524
          %v1526 = vpop.f32.mrb[0].mxu0
          %v1527 = vadd.f32 0.0, %v1526
          %v1528 = vpop.f32.mrb[0].mxu0
          %v1529 = vadd.f32 0.0, %v1528
          %v1530 = vpop.f32.mrb[0].mxu0
          %v1531 = vadd.f32 0.0, %v1530
          %1532 = vmatprep.mubr.bf16.mxu0 0
          %1533 = vmatmul.mubr.bf16.gmra.mrb[0].mxu0 %v1236
          %v1534 = vpop.f32.mrb[0].mxu0
          %v1535 = vadd.f32 0.0, %v1534
          %v1536 = vpop.f32.mrb[0].mxu0
          %v1537 = vadd.f32 0.0, %v1536
          %v1538 = vpop.f32.mrb[0].mxu0
          %v1539 = vadd.f32 0.0, %v1538
          %v1540 = vpop.f32.mrb[0].mxu0
          %v1541 = vadd.f32 0.0, %v1540
          %1542 = vdwg.mxu0
          %v1575 = vunpack.c.l.b16 %v1132
          %v1576 = vunpack.c.h.b16 %v1132
          %v1577 = vunpack.c.l.b16 %v1133
          %v1578 = vunpack.c.h.b16 %v1133
          %v1579 = vunpack.c.l.b16 %v1134
          %v1580 = vunpack.c.h.b16 %v1134
          %v1581 = vunpack.c.l.b16 %v1135
          %v1582 = vunpack.c.h.b16 %v1135
          %v1583 = vunpack.c.l.b16 %v1136
          %v1584 = vunpack.c.h.b16 %v1136
          %v1585 = vunpack.c.l.b16 %v1137
          %v1586 = vunpack.c.h.b16 %v1137
          %v1587 = vunpack.c.l.b16 %v1138
          %v1588 = vunpack.c.h.b16 %v1138
          %v1589 = vunpack.c.l.b16 %v1139
          %v1590 = vunpack.c.h.b16 %v1139
          %v1591 = vunpack.c.l.b16 %v1140
          %v1592 = vunpack.c.h.b16 %v1140
          %v1593 = vunpack.c.l.b16 %v1141
          %v1594 = vunpack.c.h.b16 %v1141
          %v1595 = vunpack.c.l.b16 %v1142
          %v1596 = vunpack.c.h.b16 %v1142
          %v1597 = vunpack.c.l.b16 %v1143
          %v1598 = vunpack.c.h.b16 %v1143
          %v1599 = vunpack.c.l.b16 %v1144
          %v1600 = vunpack.c.h.b16 %v1144
          %v1601 = vunpack.c.l.b16 %v1145
          %v1602 = vunpack.c.h.b16 %v1145
          %v1603 = vunpack.c.l.b16 %v1146
          %v1604 = vunpack.c.h.b16 %v1146
          %v1605 = vunpack.c.l.b16 %v1147
          %v1606 = vunpack.c.h.b16 %v1147
          %v1607 = vunpack.c.l.b16 %v1148
          %v1608 = vunpack.c.h.b16 %v1148
          %v1609 = vunpack.c.l.b16 %v1149
          %v1610 = vunpack.c.h.b16 %v1149
          %v1611 = vunpack.c.l.b16 %v1150
          %v1612 = vunpack.c.h.b16 %v1150
          %v1613 = vunpack.c.l.b16 %v1151
          %v1614 = vunpack.c.h.b16 %v1151
          %v1615 = vunpack.c.l.b16 %v1152
          %v1616 = vunpack.c.h.b16 %v1152
          %v1617 = vunpack.c.l.b16 %v1153
          %v1618 = vunpack.c.h.b16 %v1153
          %v1619 = vunpack.c.l.b16 %v1154
          %v1620 = vunpack.c.h.b16 %v1154
          %v1621 = vunpack.c.l.b16 %v1155
          %v1622 = vunpack.c.h.b16 %v1155
          %v1623 = vunpack.c.l.b16 %v1156
          %v1624 = vunpack.c.h.b16 %v1156
          %v1625 = vunpack.c.l.b16 %v1157
          %v1626 = vunpack.c.h.b16 %v1157
          %v1627 = vunpack.c.l.b16 %v1158
          %v1628 = vunpack.c.h.b16 %v1158
          %v1629 = vunpack.c.l.b16 %v1159
          %v1630 = vunpack.c.h.b16 %v1159
          %v1631 = vunpack.c.l.b16 %v1160
          %v1632 = vunpack.c.h.b16 %v1160
          %v1633 = vunpack.c.l.b16 %v1161
          %v1634 = vunpack.c.h.b16 %v1161
          %v1635 = vunpack.c.l.b16 %v1162
          %v1636 = vunpack.c.h.b16 %v1162
          %v1637 = vunpack.c.l.b16 %v1163
          %v1638 = vunpack.c.h.b16 %v1163
          %v1639 = vpack.c.b16 %v1579, %v1575
          %v1640 = vpack.c.b16 %v1580, %v1576
          %v1641 = vpack.c.b16 %v1581, %v1577
          %v1642 = vpack.c.b16 %v1582, %v1578
          %v1643 = vpack.c.b16 %v1587, %v1583
          %v1644 = vpack.c.b16 %v1588, %v1584
          %v1645 = vpack.c.b16 %v1589, %v1585
          %v1646 = vpack.c.b16 %v1590, %v1586
          %v1647 = vpack.c.b16 %v1595, %v1591
          %v1648 = vpack.c.b16 %v1596, %v1592
          %v1649 = vpack.c.b16 %v1597, %v1593
          %v1650 = vpack.c.b16 %v1598, %v1594
          %v1651 = vpack.c.b16 %v1603, %v1599
          %v1652 = vpack.c.b16 %v1604, %v1600
          %v1653 = vpack.c.b16 %v1605, %v1601
          %v1654 = vpack.c.b16 %v1606, %v1602
          %v1655 = vpack.c.b16 %v1611, %v1607
          %v1656 = vpack.c.b16 %v1612, %v1608
          %v1657 = vpack.c.b16 %v1613, %v1609
          %v1658 = vpack.c.b16 %v1614, %v1610
          %v1659 = vpack.c.b16 %v1619, %v1615
          %v1660 = vpack.c.b16 %v1620, %v1616
          %v1661 = vpack.c.b16 %v1621, %v1617
          %v1662 = vpack.c.b16 %v1622, %v1618
          %v1663 = vpack.c.b16 %v1627, %v1623
          %v1664 = vpack.c.b16 %v1628, %v1624
          %v1665 = vpack.c.b16 %v1629, %v1625
          %v1666 = vpack.c.b16 %v1630, %v1626
          %v1667 = vpack.c.b16 %v1635, %v1631
          %v1668 = vpack.c.b16 %v1636, %v1632
          %v1669 = vpack.c.b16 %v1637, %v1633
          %v1670 = vpack.c.b16 %v1638, %v1634
          %1703 = vmatprep.subr.bf16.mxu0 %v1640
          %1704 = vmatpush1.bf16.msra.mxu0 %v1639
          %1705 = vmatprep.subr.bf16.mxu0 %v1644
          %1706 = vmatpush1.bf16.msra.mxu0 %v1643
          %1707 = vmatprep.subr.bf16.mxu0 %v1648
          %1708 = vmatpush1.bf16.msra.mxu0 %v1647
          %1709 = vmatprep.subr.bf16.mxu0 %v1652
          %1710 = vmatpush1.bf16.msra.mxu0 %v1651
          %1711 = vmatprep.subr.bf16.mxu0 %v1656
          %1712 = vmatpush1.bf16.msra.mxu0 %v1655
          %1713 = vmatprep.subr.bf16.mxu0 %v1660
          %1714 = vmatpush1.bf16.msra.mxu0 %v1659
          %1715 = vmatprep.subr.bf16.mxu0 %v1664
          %1716 = vmatpush1.bf16.msra.mxu0 %v1663
          %1717 = vmatprep.subr.bf16.mxu0 %v1668
          %1718 = vmatpush1.bf16.msra.mxu0 %v1667
          %1719 = vmatprep.subr.bf16.mxu0 0
          %1720 = vmatpush1.bf16.msra.mxu0 0
          %1721 = vmatprep.subr.bf16.mxu0 0
          %1722 = vmatpush1.bf16.msra.mxu0 0
          %1723 = vmatprep.subr.bf16.mxu0 0
          %1724 = vmatpush1.bf16.msra.mxu0 0
          %1725 = vmatprep.subr.bf16.mxu0 0
          %1726 = vmatpush1.bf16.msra.mxu0 0
          %1727 = vmatprep.subr.bf16.mxu0 0
          %1728 = vmatpush1.bf16.msra.mxu0 0
          %1729 = vmatprep.subr.bf16.mxu0 0
          %1730 = vmatpush1.bf16.msra.mxu0 0
          %1731 = vmatprep.subr.bf16.mxu0 0
          %1732 = vmatpush1.bf16.msra.mxu0 0
          %1733 = vmatprep.subr.bf16.mxu0 0
          %1734 = vmatpush1.bf16.msra.mxu0 0
          %1735 = vmatprep.mubr.bf16.mxu0 0
          %1736 = vmatmul.mubr.bf16.gmra.mrb[0].mxu0 %v1229
          %v1737 = vpop.f32.mrb[0].mxu0
          %v1738 = vadd.f32 %v1432, %v1737
          %v1739 = vpop.f32.mrb[0].mxu0
          %v1740 = vadd.f32 %v1434, %v1739
          %v1741 = vpop.f32.mrb[0].mxu0
          %v1742 = vadd.f32 %v1436, %v1741
          %v1743 = vpop.f32.mrb[0].mxu0
          %v1744 = vadd.f32 %v1438, %v1743
          %1745 = vmatprep.mubr.bf16.mxu0 0
          %1746 = vmatmul.mubr.bf16.gmra.mrb[0].mxu0 %v1230
          %v1747 = vpop.f32.mrb[0].mxu0
          %v1748 = vadd.f32 %v1442, %v1747
          %v1749 = vpop.f32.mrb[0].mxu0
          %v1750 = vadd.f32 %v1444, %v1749
          %v1751 = vpop.f32.mrb[0].mxu0
          %v1752 = vadd.f32 %v1446, %v1751
          %v1753 = vpop.f32.mrb[0].mxu0
          %v1754 = vadd.f32 %v1448, %v1753
          %1755 = vmatprep.mubr.bf16.mxu0 0
          %1756 = vmatmul.mubr.bf16.gmra.mrb[0].mxu0 %v1231
          %v1757 = vpop.f32.mrb[0].mxu0
          %v1758 = vadd.f32 %v1452, %v1757
          %v1759 = vpop.f32.mrb[0].mxu0
          %v1760 = vadd.f32 %v1454, %v1759
          %v1761 = vpop.f32.mrb[0].mxu0
          %v1762 = vadd.f32 %v1456, %v1761
          %v1763 = vpop.f32.mrb[0].mxu0
          %v1764 = vadd.f32 %v1458, %v1763
          %1765 = vmatprep.mubr.bf16.mxu0 0
          %1766 = vmatmul.mubr.bf16.gmra.mrb[0].mxu0 %v1232
          %v1767 = vpop.f32.mrb[0].mxu0
          %v1768 = vadd.f32 %v1462, %v1767
          %v1769 = vpop.f32.mrb[0].mxu0
          %v1770 = vadd.f32 %v1464, %v1769
          %v1771 = vpop.f32.mrb[0].mxu0
          %v1772 = vadd.f32 %v1466, %v1771
          %v1773 = vpop.f32.mrb[0].mxu0
          %v1774 = vadd.f32 %v1468, %v1773
          %1775 = vdwg.mxu0
          %1776 = vmatprep.subr.bf16.mxu0 %v1642
          %1777 = vmatpush1.bf16.msra.mxu0 %v1641
          %1778 = vmatprep.subr.bf16.mxu0 %v1646
          %1779 = vmatpush1.bf16.msra.mxu0 %v1645
          %1780 = vmatprep.subr.bf16.mxu0 %v1650
          %1781 = vmatpush1.bf16.msra.mxu0 %v1649
          %1782 = vmatprep.subr.bf16.mxu0 %v1654
          %1783 = vmatpush1.bf16.msra.mxu0 %v1653
          %1784 = vmatprep.subr.bf16.mxu0 %v1658
          %1785 = vmatpush1.bf16.msra.mxu0 %v1657
          %1786 = vmatprep.subr.bf16.mxu0 %v1662
          %1787 = vmatpush1.bf16.msra.mxu0 %v1661
          %1788 = vmatprep.subr.bf16.mxu0 %v1666
          %1789 = vmatpush1.bf16.msra.mxu0 %v1665
          %1790 = vmatprep.subr.bf16.mxu0 %v1670
          %1791 = vmatpush1.bf16.msra.mxu0 %v1669
          %1792 = vmatprep.subr.bf16.mxu0 0
          %1793 = vmatpush1.bf16.msra.mxu0 0
          %1794 = vmatprep.subr.bf16.mxu0 0
          %1795 = vmatpush1.bf16.msra.mxu0 0
          %1796 = vmatprep.subr.bf16.mxu0 0
          %1797 = vmatpush1.bf16.msra.mxu0 0
          %1798 = vmatprep.subr.bf16.mxu0 0
          %1799 = vmatpush1.bf16.msra.mxu0 0
          %1800 = vmatprep.subr.bf16.mxu0 0
          %1801 = vmatpush1.bf16.msra.mxu0 0
          %1802 = vmatprep.subr.bf16.mxu0 0
          %1803 = vmatpush1.bf16.msra.mxu0 0
          %1804 = vmatprep.subr.bf16.mxu0 0
          %1805 = vmatpush1.bf16.msra.mxu0 0
          %1806 = vmatprep.subr.bf16.mxu0 0
          %1807 = vmatpush1.bf16.msra.mxu0 0
          %1808 = vmatprep.mubr.bf16.mxu0 0
          %1809 = vmatmul.mubr.bf16.gmra.mrb[0].mxu0 %v1229
          %v1810 = vpop.f32.mrb[0].mxu0
          %v1811 = vadd.f32 %v1505, %v1810
          %v1812 = vpop.f32.mrb[0].mxu0
          %v1813 = vadd.f32 %v1507, %v1812
          %v1814 = vpop.f32.mrb[0].mxu0
          %v1815 = vadd.f32 %v1509, %v1814
          %v1816 = vpop.f32.mrb[0].mxu0
          %v1817 = vadd.f32 %v1511, %v1816
          %1818 = vmatprep.mubr.bf16.mxu0 0
          %1819 = vmatmul.mubr.bf16.gmra.mrb[0].mxu0 %v1230
          %v1820 = vpop.f32.mrb[0].mxu0
          %v1821 = vadd.f32 %v1515, %v1820
          %v1822 = vpop.f32.mrb[0].mxu0
          %v1823 = vadd.f32 %v1517, %v1822
          %v1824 = vpop.f32.mrb[0].mxu0
          %v1825 = vadd.f32 %v1519, %v1824
          %v1826 = vpop.f32.mrb[0].mxu0
          %v1827 = vadd.f32 %v1521, %v1826
          %1828 = vmatprep.mubr.bf16.mxu0 0
          %1829 = vmatmul.mubr.bf16.gmra.mrb[0].mxu0 %v1231
          %v1830 = vpop.f32.mrb[0].mxu0
          %v1831 = vadd.f32 %v1525, %v1830
          %v1832 = vpop.f32.mrb[0].mxu0
          %v1833 = vadd.f32 %v1527, %v1832
          %v1834 = vpop.f32.mrb[0].mxu0
          %v1835 = vadd.f32 %v1529, %v1834
          %v1836 = vpop.f32.mrb[0].mxu0
          %v1837 = vadd.f32 %v1531, %v1836
          %1838 = vmatprep.mubr.bf16.mxu0 0
          %1839 = vmatmul.mubr.bf16.gmra.mrb[0].mxu0 %v1232
          %v1840 = vpop.f32.mrb[0].mxu0
          %v1841 = vadd.f32 %v1535, %v1840
          %v1842 = vpop.f32.mrb[0].mxu0
          %v1843 = vadd.f32 %v1537, %v1842
          %v1844 = vpop.f32.mrb[0].mxu0
          %v1845 = vadd.f32 %v1539, %v1844
          %v1846 = vpop.f32.mrb[0].mxu0
          %v1847 = vadd.f32 %v1541, %v1846
          %1848 = vdwg.mxu0
          %v1850 = vlaneseq
          %v1851 = vshrl.u32 %v1850, 7
          %v1852 = vsub.s32 0, %v1851
          %v1853 = vrot.slane %v1228, %v1852
          %v1854 = vlaneseq
          %v1855 = vshrl.u32 %v1854, 7
          %v1856 = vsub.s32 1, %v1855
          %v1857 = vrot.slane %v1228, %v1856
          %v1858 = vlaneseq
          %v1859 = vshrl.u32 %v1858, 7
          %v1860 = vsub.s32 2, %v1859
          %v1861 = vrot.slane %v1228, %v1860
          %v1862 = vlaneseq
          %v1863 = vshrl.u32 %v1862, 7
          %v1864 = vsub.s32 3, %v1863
          %v1865 = vrot.slane %v1228, %v1864
          %v1870 = vadd.f32 %v1738, %v1853
          %v1871 = vadd.f32 %v1740, %v1857
          %v1872 = vadd.f32 %v1811, %v1861
          %v1873 = vadd.f32 %v1813, %v1865
          %v1874 = vadd.f32 %v1742, %v1853
          %v1875 = vadd.f32 %v1744, %v1857
          %v1876 = vadd.f32 %v1815, %v1861
          %v1877 = vadd.f32 %v1817, %v1865
          %v1878 = vadd.f32 %v1748, %v1853
          %v1879 = vadd.f32 %v1750, %v1857
          %v1880 = vadd.f32 %v1821, %v1861
          %v1881 = vadd.f32 %v1823, %v1865
          %v1882 = vadd.f32 %v1752, %v1853
          %v1883 = vadd.f32 %v1754, %v1857
          %v1884 = vadd.f32 %v1825, %v1861
          %v1885 = vadd.f32 %v1827, %v1865
          %v1886 = vadd.f32 %v1758, %v1853
          %v1887 = vadd.f32 %v1760, %v1857
          %v1888 = vadd.f32 %v1831, %v1861
          %v1889 = vadd.f32 %v1833, %v1865
          %v1890 = vadd.f32 %v1762, %v1853
          %v1891 = vadd.f32 %v1764, %v1857
          %v1892 = vadd.f32 %v1835, %v1861
          %v1893 = vadd.f32 %v1837, %v1865
          %v1894 = vadd.f32 %v1768, %v1853
          %v1895 = vadd.f32 %v1770, %v1857
          %v1896 = vadd.f32 %v1841, %v1861
          %v1897 = vadd.f32 %v1843, %v1865
          %v1898 = vadd.f32 %v1772, %v1853
          %v1899 = vadd.f32 %v1774, %v1857
          %v1900 = vadd.f32 %v1845, %v1861
          %v1901 = vadd.f32 %v1847, %v1865
          %v1934 = vunpack.c.l.b16 %v1196
          %v1935 = vunpack.c.h.b16 %v1196
          %v1936 = vunpack.c.l.b16 %v1197
          %v1937 = vunpack.c.h.b16 %v1197
          %v1938 = vunpack.c.l.b16 %v1198
          %v1939 = vunpack.c.h.b16 %v1198
          %v1940 = vunpack.c.l.b16 %v1199
          %v1941 = vunpack.c.h.b16 %v1199
          %v1942 = vunpack.c.l.b16 %v1200
          %v1943 = vunpack.c.h.b16 %v1200
          %v1944 = vunpack.c.l.b16 %v1201
          %v1945 = vunpack.c.h.b16 %v1201
          %v1946 = vunpack.c.l.b16 %v1202
          %v1947 = vunpack.c.h.b16 %v1202
          %v1948 = vunpack.c.l.b16 %v1203
          %v1949 = vunpack.c.h.b16 %v1203
          %v1950 = vunpack.c.l.b16 %v1204
          %v1951 = vunpack.c.h.b16 %v1204
          %v1952 = vunpack.c.l.b16 %v1205
          %v1953 = vunpack.c.h.b16 %v1205
          %v1954 = vunpack.c.l.b16 %v1206
          %v1955 = vunpack.c.h.b16 %v1206
          %v1956 = vunpack.c.l.b16 %v1207
          %v1957 = vunpack.c.h.b16 %v1207
          %v1958 = vunpack.c.l.b16 %v1208
          %v1959 = vunpack.c.h.b16 %v1208
          %v1960 = vunpack.c.l.b16 %v1209
          %v1961 = vunpack.c.h.b16 %v1209
          %v1962 = vunpack.c.l.b16 %v1210
          %v1963 = vunpack.c.h.b16 %v1210
          %v1964 = vunpack.c.l.b16 %v1211
          %v1965 = vunpack.c.h.b16 %v1211
          %v1966 = vunpack.c.l.b16 %v1212
          %v1967 = vunpack.c.h.b16 %v1212
          %v1968 = vunpack.c.l.b16 %v1213
          %v1969 = vunpack.c.h.b16 %v1213
          %v1970 = vunpack.c.l.b16 %v1214
          %v1971 = vunpack.c.h.b16 %v1214
          %v1972 = vunpack.c.l.b16 %v1215
          %v1973 = vunpack.c.h.b16 %v1215
          %v1974 = vunpack.c.l.b16 %v1216
          %v1975 = vunpack.c.h.b16 %v1216
          %v1976 = vunpack.c.l.b16 %v1217
          %v1977 = vunpack.c.h.b16 %v1217
          %v1978 = vunpack.c.l.b16 %v1218
          %v1979 = vunpack.c.h.b16 %v1218
          %v1980 = vunpack.c.l.b16 %v1219
          %v1981 = vunpack.c.h.b16 %v1219
          %v1982 = vunpack.c.l.b16 %v1220
          %v1983 = vunpack.c.h.b16 %v1220
          %v1984 = vunpack.c.l.b16 %v1221
          %v1985 = vunpack.c.h.b16 %v1221
          %v1986 = vunpack.c.l.b16 %v1222
          %v1987 = vunpack.c.h.b16 %v1222
          %v1988 = vunpack.c.l.b16 %v1223
          %v1989 = vunpack.c.h.b16 %v1223
          %v1990 = vunpack.c.l.b16 %v1224
          %v1991 = vunpack.c.h.b16 %v1224
          %v1992 = vunpack.c.l.b16 %v1225
          %v1993 = vunpack.c.h.b16 %v1225
          %v1994 = vunpack.c.l.b16 %v1226
          %v1995 = vunpack.c.h.b16 %v1226
          %v1996 = vunpack.c.l.b16 %v1227
          %v1997 = vunpack.c.h.b16 %v1227
          %v1998 = vpack.c.b16 %v1938, %v1934
          %v1999 = vpack.c.b16 %v1939, %v1935
          %v2000 = vpack.c.b16 %v1940, %v1936
          %v2001 = vpack.c.b16 %v1941, %v1937
          %v2002 = vpack.c.b16 %v1946, %v1942
          %v2003 = vpack.c.b16 %v1947, %v1943
          %v2004 = vpack.c.b16 %v1948, %v1944
          %v2005 = vpack.c.b16 %v1949, %v1945
          %v2006 = vpack.c.b16 %v1954, %v1950
          %v2007 = vpack.c.b16 %v1955, %v1951
          %v2008 = vpack.c.b16 %v1956, %v1952
          %v2009 = vpack.c.b16 %v1957, %v1953
          %v2010 = vpack.c.b16 %v1962, %v1958
          %v2011 = vpack.c.b16 %v1963, %v1959
          %v2012 = vpack.c.b16 %v1964, %v1960
          %v2013 = vpack.c.b16 %v1965, %v1961
          %v2014 = vpack.c.b16 %v1970, %v1966
          %v2015 = vpack.c.b16 %v1971, %v1967
          %v2016 = vpack.c.b16 %v1972, %v1968
          %v2017 = vpack.c.b16 %v1973, %v1969
          %v2018 = vpack.c.b16 %v1978, %v1974
          %v2019 = vpack.c.b16 %v1979, %v1975
          %v2020 = vpack.c.b16 %v1980, %v1976
          %v2021 = vpack.c.b16 %v1981, %v1977
          %v2022 = vpack.c.b16 %v1986, %v1982
          %v2023 = vpack.c.b16 %v1987, %v1983
          %v2024 = vpack.c.b16 %v1988, %v1984
          %v2025 = vpack.c.b16 %v1989, %v1985
          %v2026 = vpack.c.b16 %v1994, %v1990
          %v2027 = vpack.c.b16 %v1995, %v1991
          %v2028 = vpack.c.b16 %v1996, %v1992
          %v2029 = vpack.c.b16 %v1997, %v1993
          %2062 = vmatprep.subr.bf16.mxu0 %v1999
          %2063 = vmatpush1.bf16.msra.mxu0 %v1998
          %2064 = vmatprep.subr.bf16.mxu0 %v2003
          %2065 = vmatpush1.bf16.msra.mxu0 %v2002
          %2066 = vmatprep.subr.bf16.mxu0 %v2007
          %2067 = vmatpush1.bf16.msra.mxu0 %v2006
          %2068 = vmatprep.subr.bf16.mxu0 %v2011
          %2069 = vmatpush1.bf16.msra.mxu0 %v2010
          %2070 = vmatprep.subr.bf16.mxu0 %v2015
          %2071 = vmatpush1.bf16.msra.mxu0 %v2014
          %2072 = vmatprep.subr.bf16.mxu0 %v2019
          %2073 = vmatpush1.bf16.msra.mxu0 %v2018
          %2074 = vmatprep.subr.bf16.mxu0 %v2023
          %2075 = vmatpush1.bf16.msra.mxu0 %v2022
          %2076 = vmatprep.subr.bf16.mxu0 %v2027
          %2077 = vmatpush1.bf16.msra.mxu0 %v2026
          %2078 = vmatprep.subr.bf16.mxu0 0
          %2079 = vmatpush1.bf16.msra.mxu0 0
          %2080 = vmatprep.subr.bf16.mxu0 0
          %2081 = vmatpush1.bf16.msra.mxu0 0
          %2082 = vmatprep.subr.bf16.mxu0 0
          %2083 = vmatpush1.bf16.msra.mxu0 0
          %2084 = vmatprep.subr.bf16.mxu0 0
          %2085 = vmatpush1.bf16.msra.mxu0 0
          %2086 = vmatprep.subr.bf16.mxu0 0
          %2087 = vmatpush1.bf16.msra.mxu0 0
          %2088 = vmatprep.subr.bf16.mxu0 0
          %2089 = vmatpush1.bf16.msra.mxu0 0
          %2090 = vmatprep.subr.bf16.mxu0 0
          %2091 = vmatpush1.bf16.msra.mxu0 0
          %2092 = vmatprep.subr.bf16.mxu0 0
          %2093 = vmatpush1.bf16.msra.mxu0 0
          %2094 = vmatprep.mubr.bf16.mxu0 0
          %2095 = vmatmul.mubr.bf16.gmra.mrb[0].mxu0 0
          %v2096 = vpop.f32.mrb[0].mxu0
          %v2097 = vadd.f32 0.0, %v2096
          %v2098 = vpop.f32.mrb[0].mxu0
          %v2099 = vadd.f32 0.0, %v2098
          %v2100 = vpop.f32.mrb[0].mxu0
          %v2101 = vpop.f32.mrb[0].mxu0
          %2102 = vdwg.mxu0
          %2103 = vmatprep.subr.bf16.mxu0 %v2001
          %2104 = vmatpush1.bf16.msra.mxu0 %v2000
          %2105 = vmatprep.subr.bf16.mxu0 %v2005
          %2106 = vmatpush1.bf16.msra.mxu0 %v2004
          %2107 = vmatprep.subr.bf16.mxu0 %v2009
          %2108 = vmatpush1.bf16.msra.mxu0 %v2008
          %2109 = vmatprep.subr.bf16.mxu0 %v2013
          %2110 = vmatpush1.bf16.msra.mxu0 %v2012
          %2111 = vmatprep.subr.bf16.mxu0 %v2017
          %2112 = vmatpush1.bf16.msra.mxu0 %v2016
          %2113 = vmatprep.subr.bf16.mxu0 %v2021
          %2114 = vmatpush1.bf16.msra.mxu0 %v2020
          %2115 = vmatprep.subr.bf16.mxu0 %v2025
          %2116 = vmatpush1.bf16.msra.mxu0 %v2024
          %2117 = vmatprep.subr.bf16.mxu0 %v2029
          %2118 = vmatpush1.bf16.msra.mxu0 %v2028
          %2119 = vmatprep.subr.bf16.mxu0 0
          %2120 = vmatpush1.bf16.msra.mxu0 0
          %2121 = vmatprep.subr.bf16.mxu0 0
          %2122 = vmatpush1.bf16.msra.mxu0 0
          %2123 = vmatprep.subr.bf16.mxu0 0
          %2124 = vmatpush1.bf16.msra.mxu0 0
          %2125 = vmatprep.subr.bf16.mxu0 0
          %2126 = vmatpush1.bf16.msra.mxu0 0
          %2127 = vmatprep.subr.bf16.mxu0 0
          %2128 = vmatpush1.bf16.msra.mxu0 0
          %2129 = vmatprep.subr.bf16.mxu0 0
          %2130 = vmatpush1.bf16.msra.mxu0 0
          %2131 = vmatprep.subr.bf16.mxu0 0
          %2132 = vmatpush1.bf16.msra.mxu0 0
          %2133 = vmatprep.subr.bf16.mxu0 0
          %2134 = vmatpush1.bf16.msra.mxu0 0
          %2135 = vmatprep.mubr.bf16.mxu0 0
          %2136 = vmatmul.mubr.bf16.gmra.mrb[0].mxu0 0
          %v2137 = vpop.f32.mrb[0].mxu0
          %v2138 = vadd.f32 0.0, %v2137
          %v2139 = vpop.f32.mrb[0].mxu0
          %v2140 = vadd.f32 0.0, %v2139
          %v2141 = vpop.f32.mrb[0].mxu0
          %v2142 = vpop.f32.mrb[0].mxu0
          %2143 = vdwg.mxu0
          %v2144 = vadd.f32 %v1870, %v2097
          %v2145 = vadd.f32 %v1871, %v2099
          %v2146 = vadd.f32 %v1872, %v2138
          %v2147 = vadd.f32 %v1873, %v2140
          %v2148 = vxor.u32 %v2144, 2147483648
          %v2149 = vxor.u32 %v2145, 2147483648
          %v2150 = vxor.u32 %v2146, 2147483648
          %v2151 = vmul.f32 %v2148, 1.442695
          %v2152 = vpow.pop %v2151
          %v2153 = vmul.f32 %v2149, 1.442695
          %v2154 = vpow.pop %v2153
          %v2155 = vmul.f32 %v2150, 1.442695
          %v2156 = vpow.pop %v2155
          %v2157 = vadd.f32 %v2152, 1.0
          %v2158 = vadd.f32 %v2154, 1.0
          %v2159 = vadd.f32 %v2156, 1.0
          %v2160 = vrcp.pop %v2157
          %v2161 = vmul.f32 1.0, %v2160
          %v2162 = vrcp.pop %v2158
          %v2163 = vmul.f32 1.0, %v2162
          %v2164 = vrcp.pop %v2159
          %v2165 = vmul.f32 1.0, %v2164
          %v2166 = vtanh.pop %v2147
          %v2167 = vmul.f32 %v2163, 0.0
          %v2168 = vmul.f32 %v2161, %v2166
          %v2169 = vadd.f32 %v2167, %v2168
          %v2170 = vtanh.pop %v2169
          %v2171 = vmul.f32 %v2165, %v2170
          %v2172 = vpack.c.bf16 %v2171, %v2171
          %2173 = vmatprep.subr.bf16.mxu0 %v1999
          %2174 = vmatpush1.bf16.msra.mxu0 %v1998
          %2175 = vmatprep.subr.bf16.mxu0 %v2003
          %2176 = vmatpush1.bf16.msra.mxu0 %v2002
          %2177 = vmatprep.subr.bf16.mxu0 %v2007
          %2178 = vmatpush1.bf16.msra.mxu0 %v2006
          %2179 = vmatprep.subr.bf16.mxu0 %v2011
          %2180 = vmatpush1.bf16.msra.mxu0 %v2010
          %2181 = vmatprep.subr.bf16.mxu0 %v2015
          %2182 = vmatpush1.bf16.msra.mxu0 %v2014
          %2183 = vmatprep.subr.bf16.mxu0 %v2019
          %2184 = vmatpush1.bf16.msra.mxu0 %v2018
          %2185 = vmatprep.subr.bf16.mxu0 %v2023
          %2186 = vmatpush1.bf16.msra.mxu0 %v2022
          %2187 = vmatprep.subr.bf16.mxu0 %v2027
          %2188 = vmatpush1.bf16.msra.mxu0 %v2026
          %2189 = vmatprep.subr.bf16.mxu0 0
          %2190 = vmatpush1.bf16.msra.mxu0 0
          %2191 = vmatprep.subr.bf16.mxu0 0
          %2192 = vmatpush1.bf16.msra.mxu0 0
          %2193 = vmatprep.subr.bf16.mxu0 0
          %2194 = vmatpush1.bf16.msra.mxu0 0
          %2195 = vmatprep.subr.bf16.mxu0 0
          %2196 = vmatpush1.bf16.msra.mxu0 0
          %2197 = vmatprep.subr.bf16.mxu0 0
          %2198 = vmatpush1.bf16.msra.mxu0 0
          %2199 = vmatprep.subr.bf16.mxu0 0
          %2200 = vmatpush1.bf16.msra.mxu0 0
          %2201 = vmatprep.subr.bf16.mxu0 0
          %2202 = vmatpush1.bf16.msra.mxu0 0
          %2203 = vmatprep.subr.bf16.mxu0 0
          %2204 = vmatpush1.bf16.msra.mxu0 0
          %2205 = vmatprep.mubr.bf16.mxu0 0
          %2206 = vmatmul.mubr.bf16.gmra.mrb[0].mxu0 %v2172
          %v2207 = vpop.f32.mrb[0].mxu0
          %v2208 = vadd.f32 0.0, %v2207
          %v2209 = vpop.f32.mrb[0].mxu0
          %v2210 = vadd.f32 0.0, %v2209
          %v2211 = vpop.f32.mrb[0].mxu0
          %v2212 = vpop.f32.mrb[0].mxu0
          %2213 = vdwg.mxu0
          %2214 = vmatprep.subr.bf16.mxu0 %v2001
          %2215 = vmatpush1.bf16.msra.mxu0 %v2000
          %2216 = vmatprep.subr.bf16.mxu0 %v2005
          %2217 = vmatpush1.bf16.msra.mxu0 %v2004
          %2218 = vmatprep.subr.bf16.mxu0 %v2009
          %2219 = vmatpush1.bf16.msra.mxu0 %v2008
          %2220 = vmatprep.subr.bf16.mxu0 %v2013
          %2221 = vmatpush1.bf16.msra.mxu0 %v2012
          %2222 = vmatprep.subr.bf16.mxu0 %v2017
          %2223 = vmatpush1.bf16.msra.mxu0 %v2016
          %2224 = vmatprep.subr.bf16.mxu0 %v2021
          %2225 = vmatpush1.bf16.msra.mxu0 %v2020
          %2226 = vmatprep.subr.bf16.mxu0 %v2025
          %2227 = vmatpush1.bf16.msra.mxu0 %v2024
          %2228 = vmatprep.subr.bf16.mxu0 %v2029
          %2229 = vmatpush1.bf16.msra.mxu0 %v2028
          %2230 = vmatprep.subr.bf16.mxu0 0
          %2231 = vmatpush1.bf16.msra.mxu0 0
          %2232 = vmatprep.subr.bf16.mxu0 0
          %2233 = vmatpush1.bf16.msra.mxu0 0
          %2234 = vmatprep.subr.bf16.mxu0 0
          %2235 = vmatpush1.bf16.msra.mxu0 0
          %2236 = vmatprep.subr.bf16.mxu0 0
          %2237 = vmatpush1.bf16.msra.mxu0 0
          %2238 = vmatprep.subr.bf16.mxu0 0
          %2239 = vmatpush1.bf16.msra.mxu0 0
          %2240 = vmatprep.subr.bf16.mxu0 0
          %2241 = vmatpush1.bf16.msra.mxu0 0
          %2242 = vmatprep.subr.bf16.mxu0 0
          %2243 = vmatpush1.bf16.msra.mxu0 0
          %2244 = vmatprep.subr.bf16.mxu0 0
          %2245 = vmatpush1.bf16.msra.mxu0 0
          %2246 = vmatprep.mubr.bf16.mxu0 0
          %2247 = vmatmul.mubr.bf16.gmra.mrb[0].mxu0 %v2172
          %v2248 = vpop.f32.mrb[0].mxu0
          %v2249 = vadd.f32 0.0, %v2248
          %v2250 = vpop.f32.mrb[0].mxu0
          %v2251 = vadd.f32 0.0, %v2250
          %v2252 = vpop.f32.mrb[0].mxu0
          %v2253 = vpop.f32.mrb[0].mxu0
          %2254 = vdwg.mxu0
          %v2255 = vadd.f32 %v1874, %v2208
          %v2256 = vadd.f32 %v1875, %v2210
          %v2257 = vadd.f32 %v1876, %v2249
          %v2258 = vadd.f32 %v1877, %v2251
          %v2259 = vxor.u32 %v2255, 2147483648
          %v2260 = vxor.u32 %v2256, 2147483648
          %v2261 = vxor.u32 %v2257, 2147483648
          %v2262 = vmul.f32 %v2259, 1.442695
          %v2263 = vpow.pop %v2262
          %v2264 = vmul.f32 %v2260, 1.442695
          %v2265 = vpow.pop %v2264
          %v2266 = vmul.f32 %v2261, 1.442695
          %v2267 = vpow.pop %v2266
          %v2268 = vadd.f32 %v2263, 1.0
          %v2269 = vadd.f32 %v2265, 1.0
          %v2270 = vadd.f32 %v2267, 1.0
          %v2271 = vrcp.pop %v2268
          %v2272 = vmul.f32 1.0, %v2271
          %v2273 = vrcp.pop %v2269
          %v2274 = vmul.f32 1.0, %v2273
          %v2275 = vrcp.pop %v2270
          %v2276 = vmul.f32 1.0, %v2275
          %v2277 = vtanh.pop %v2258
          %v2278 = vmul.f32 %v2274, %v2169
          %v2279 = vmul.f32 %v2272, %v2277
          %v2280 = vadd.f32 %v2278, %v2279
          %v2281 = vtanh.pop %v2280
          %v2282 = vmul.f32 %v2276, %v2281
          %v2283 = vpack.c.bf16 %v2282, %v2282
          %2284 = vmatprep.subr.bf16.mxu0 %v1999
          %2285 = vmatpush1.bf16.msra.mxu0 %v1998
          %2286 = vmatprep.subr.bf16.mxu0 %v2003
          %2287 = vmatpush1.bf16.msra.mxu0 %v2002
          %2288 = vmatprep.subr.bf16.mxu0 %v2007
          %2289 = vmatpush1.bf16.msra.mxu0 %v2006
          %2290 = vmatprep.subr.bf16.mxu0 %v2011
          %2291 = vmatpush1.bf16.msra.mxu0 %v2010
          %2292 = vmatprep.subr.bf16.mxu0 %v2015
          %2293 = vmatpush1.bf16.msra.mxu0 %v2014
          %2294 = vmatprep.subr.bf16.mxu0 %v2019
          %2295 = vmatpush1.bf16.msra.mxu0 %v2018
          %2296 = vmatprep.subr.bf16.mxu0 %v2023
          %2297 = vmatpush1.bf16.msra.mxu0 %v2022
          %2298 = vmatprep.subr.bf16.mxu0 %v2027
          %2299 = vmatpush1.bf16.msra.mxu0 %v2026
          %2300 = vmatprep.subr.bf16.mxu0 0
          %2301 = vmatpush1.bf16.msra.mxu0 0
          %2302 = vmatprep.subr.bf16.mxu0 0
          %2303 = vmatpush1.bf16.msra.mxu0 0
          %2304 = vmatprep.subr.bf16.mxu0 0
          %2305 = vmatpush1.bf16.msra.mxu0 0
          %2306 = vmatprep.subr.bf16.mxu0 0
          %2307 = vmatpush1.bf16.msra.mxu0 0
          %2308 = vmatprep.subr.bf16.mxu0 0
          %2309 = vmatpush1.bf16.msra.mxu0 0
          %2310 = vmatprep.subr.bf16.mxu0 0
          %2311 = vmatpush1.bf16.msra.mxu0 0
          %2312 = vmatprep.subr.bf16.mxu0 0
          %2313 = vmatpush1.bf16.msra.mxu0 0
          %2314 = vmatprep.subr.bf16.mxu0 0
          %2315 = vmatpush1.bf16.msra.mxu0 0
          %2316 = vmatprep.mubr.bf16.mxu0 0
          %2317 = vmatmul.mubr.bf16.gmra.mrb[0].mxu0 %v2283
          %v2318 = vpop.f32.mrb[0].mxu0
          %v2319 = vadd.f32 0.0, %v2318
          %v2320 = vpop.f32.mrb[0].mxu0
          %v2321 = vadd.f32 0.0, %v2320
          %v2322 = vpop.f32.mrb[0].mxu0
          %v2323 = vpop.f32.mrb[0].mxu0
          %2324 = vdwg.mxu0
          %2325 = vmatprep.subr.bf16.mxu0 %v2001
          %2326 = vmatpush1.bf16.msra.mxu0 %v2000
          %2327 = vmatprep.subr.bf16.mxu0 %v2005
          %2328 = vmatpush1.bf16.msra.mxu0 %v2004
          %2329 = vmatprep.subr.bf16.mxu0 %v2009
          %2330 = vmatpush1.bf16.msra.mxu0 %v2008
          %2331 = vmatprep.subr.bf16.mxu0 %v2013
          %2332 = vmatpush1.bf16.msra.mxu0 %v2012
          %2333 = vmatprep.subr.bf16.mxu0 %v2017
          %2334 = vmatpush1.bf16.msra.mxu0 %v2016
          %2335 = vmatprep.subr.bf16.mxu0 %v2021
          %2336 = vmatpush1.bf16.msra.mxu0 %v2020
          %2337 = vmatprep.subr.bf16.mxu0 %v2025
          %2338 = vmatpush1.bf16.msra.mxu0 %v2024
          %2339 = vmatprep.subr.bf16.mxu0 %v2029
          %2340 = vmatpush1.bf16.msra.mxu0 %v2028
          %2341 = vmatprep.subr.bf16.mxu0 0
          %2342 = vmatpush1.bf16.msra.mxu0 0
          %2343 = vmatprep.subr.bf16.mxu0 0
          %2344 = vmatpush1.bf16.msra.mxu0 0
          %2345 = vmatprep.subr.bf16.mxu0 0
          %2346 = vmatpush1.bf16.msra.mxu0 0
          %2347 = vmatprep.subr.bf16.mxu0 0
          %2348 = vmatpush1.bf16.msra.mxu0 0
          %2349 = vmatprep.subr.bf16.mxu0 0
          %2350 = vmatpush1.bf16.msra.mxu0 0
          %2351 = vmatprep.subr.bf16.mxu0 0
          %2352 = vmatpush1.bf16.msra.mxu0 0
          %2353 = vmatprep.subr.bf16.mxu0 0
          %2354 = vmatpush1.bf16.msra.mxu0 0
          %2355 = vmatprep.subr.bf16.mxu0 0
          %2356 = vmatpush1.bf16.msra.mxu0 0
          %2357 = vmatprep.mubr.bf16.mxu0 0
          %2358 = vmatmul.mubr.bf16.gmra.mrb[0].mxu0 %v2283
          %v2359 = vpop.f32.mrb[0].mxu0
          %v2360 = vadd.f32 0.0, %v2359
          %v2361 = vpop.f32.mrb[0].mxu0
          %v2362 = vadd.f32 0.0, %v2361
          %v2363 = vpop.f32.mrb[0].mxu0
          %v2364 = vpop.f32.mrb[0].mxu0
          %2365 = vdwg.mxu0
          %v2366 = vadd.f32 %v1878, %v2319
          %v2367 = vadd.f32 %v1879, %v2321
          %v2368 = vadd.f32 %v1880, %v2360
          %v2369 = vadd.f32 %v1881, %v2362
          %v2370 = vxor.u32 %v2366, 2147483648
          %v2371 = vxor.u32 %v2367, 2147483648
          %v2372 = vxor.u32 %v2368, 2147483648
          %v2373 = vmul.f32 %v2370, 1.442695
          %v2374 = vpow.pop %v2373
          %v2375 = vmul.f32 %v2371, 1.442695
          %v2376 = vpow.pop %v2375
          %v2377 = vmul.f32 %v2372, 1.442695
          %v2378 = vpow.pop %v2377
          %v2379 = vadd.f32 %v2374, 1.0
          %v2380 = vadd.f32 %v2376, 1.0
          %v2381 = vadd.f32 %v2378, 1.0
          %v2382 = vrcp.pop %v2379
          %v2383 = vmul.f32 1.0, %v2382
          %v2384 = vrcp.pop %v2380
          %v2385 = vmul.f32 1.0, %v2384
          %v2386 = vrcp.pop %v2381
          %v2387 = vmul.f32 1.0, %v2386
          %v2388 = vtanh.pop %v2369
          %v2389 = vmul.f32 %v2385, %v2280
          %v2390 = vmul.f32 %v2383, %v2388
          %v2391 = vadd.f32 %v2389, %v2390
          %v2392 = vtanh.pop %v2391
          %v2393 = vmul.f32 %v2387, %v2392
          %v2394 = vpack.c.bf16 %v2393, %v2393
          %2395 = vmatprep.subr.bf16.mxu0 %v1999
          %2396 = vmatpush1.bf16.msra.mxu0 %v1998
          %2397 = vmatprep.subr.bf16.mxu0 %v2003
          %2398 = vmatpush1.bf16.msra.mxu0 %v2002
          %2399 = vmatprep.subr.bf16.mxu0 %v2007
          %2400 = vmatpush1.bf16.msra.mxu0 %v2006
          %2401 = vmatprep.subr.bf16.mxu0 %v2011
          %2402 = vmatpush1.bf16.msra.mxu0 %v2010
          %2403 = vmatprep.subr.bf16.mxu0 %v2015
          %2404 = vmatpush1.bf16.msra.mxu0 %v2014
          %2405 = vmatprep.subr.bf16.mxu0 %v2019
          %2406 = vmatpush1.bf16.msra.mxu0 %v2018
          %2407 = vmatprep.subr.bf16.mxu0 %v2023
          %2408 = vmatpush1.bf16.msra.mxu0 %v2022
          %2409 = vmatprep.subr.bf16.mxu0 %v2027
          %2410 = vmatpush1.bf16.msra.mxu0 %v2026
          %2411 = vmatprep.subr.bf16.mxu0 0
          %2412 = vmatpush1.bf16.msra.mxu0 0
          %2413 = vmatprep.subr.bf16.mxu0 0
          %2414 = vmatpush1.bf16.msra.mxu0 0
          %2415 = vmatprep.subr.bf16.mxu0 0
          %2416 = vmatpush1.bf16.msra.mxu0 0
          %2417 = vmatprep.subr.bf16.mxu0 0
          %2418 = vmatpush1.bf16.msra.mxu0 0
          %2419 = vmatprep.subr.bf16.mxu0 0
          %2420 = vmatpush1.bf16.msra.mxu0 0
          %2421 = vmatprep.subr.bf16.mxu0 0
          %2422 = vmatpush1.bf16.msra.mxu0 0
          %2423 = vmatprep.subr.bf16.mxu0 0
          %2424 = vmatpush1.bf16.msra.mxu0 0
          %2425 = vmatprep.subr.bf16.mxu0 0
          %2426 = vmatpush1.bf16.msra.mxu0 0
          %2427 = vmatprep.mubr.bf16.mxu0 0
          %2428 = vmatmul.mubr.bf16.gmra.mrb[0].mxu0 %v2394
          %v2429 = vpop.f32.mrb[0].mxu0
          %v2430 = vadd.f32 0.0, %v2429
          %v2431 = vpop.f32.mrb[0].mxu0
          %v2432 = vadd.f32 0.0, %v2431
          %v2433 = vpop.f32.mrb[0].mxu0
          %v2434 = vpop.f32.mrb[0].mxu0
          %2435 = vdwg.mxu0
          %2436 = vmatprep.subr.bf16.mxu0 %v2001
          %2437 = vmatpush1.bf16.msra.mxu0 %v2000
          %2438 = vmatprep.subr.bf16.mxu0 %v2005
          %2439 = vmatpush1.bf16.msra.mxu0 %v2004
          %2440 = vmatprep.subr.bf16.mxu0 %v2009
          %2441 = vmatpush1.bf16.msra.mxu0 %v2008
          %2442 = vmatprep.subr.bf16.mxu0 %v2013
          %2443 = vmatpush1.bf16.msra.mxu0 %v2012
          %2444 = vmatprep.subr.bf16.mxu0 %v2017
          %2445 = vmatpush1.bf16.msra.mxu0 %v2016
          %2446 = vmatprep.subr.bf16.mxu0 %v2021
          %2447 = vmatpush1.bf16.msra.mxu0 %v2020
          %2448 = vmatprep.subr.bf16.mxu0 %v2025
          %2449 = vmatpush1.bf16.msra.mxu0 %v2024
          %2450 = vmatprep.subr.bf16.mxu0 %v2029
          %2451 = vmatpush1.bf16.msra.mxu0 %v2028
          %2452 = vmatprep.subr.bf16.mxu0 0
          %2453 = vmatpush1.bf16.msra.mxu0 0
          %2454 = vmatprep.subr.bf16.mxu0 0
          %2455 = vmatpush1.bf16.msra.mxu0 0
          %2456 = vmatprep.subr.bf16.mxu0 0
          %2457 = vmatpush1.bf16.msra.mxu0 0
          %2458 = vmatprep.subr.bf16.mxu0 0
          %2459 = vmatpush1.bf16.msra.mxu0 0
          %2460 = vmatprep.subr.bf16.mxu0 0
          %2461 = vmatpush1.bf16.msra.mxu0 0
          %2462 = vmatprep.subr.bf16.mxu0 0
          %2463 = vmatpush1.bf16.msra.mxu0 0
          %2464 = vmatprep.subr.bf16.mxu0 0
          %2465 = vmatpush1.bf16.msra.mxu0 0
          %2466 = vmatprep.subr.bf16.mxu0 0
          %2467 = vmatpush1.bf16.msra.mxu0 0
          %2468 = vmatprep.mubr.bf16.mxu0 0
          %2469 = vmatmul.mubr.bf16.gmra.mrb[0].mxu0 %v2394
          %v2470 = vpop.f32.mrb[0].mxu0
          %v2471 = vadd.f32 0.0, %v2470
          %v2472 = vpop.f32.mrb[0].mxu0
          %v2473 = vadd.f32 0.0, %v2472
          %v2474 = vpop.f32.mrb[0].mxu0
          %v2475 = vpop.f32.mrb[0].mxu0
          %2476 = vdwg.mxu0
          %v2477 = vadd.f32 %v1882, %v2430
          %v2478 = vadd.f32 %v1883, %v2432
          %v2479 = vadd.f32 %v1884, %v2471
          %v2480 = vadd.f32 %v1885, %v2473
          %v2481 = vxor.u32 %v2477, 2147483648
          %v2482 = vxor.u32 %v2478, 2147483648
          %v2483 = vxor.u32 %v2479, 2147483648
          %v2484 = vmul.f32 %v2481, 1.442695
          %v2485 = vpow.pop %v2484
          %v2486 = vmul.f32 %v2482, 1.442695
          %v2487 = vpow.pop %v2486
          %v2488 = vmul.f32 %v2483, 1.442695
          %v2489 = vpow.pop %v2488
          %v2490 = vadd.f32 %v2485, 1.0
          %v2491 = vadd.f32 %v2487, 1.0
          %v2492 = vadd.f32 %v2489, 1.0
          %v2493 = vrcp.pop %v2490
          %v2494 = vmul.f32 1.0, %v2493
          %v2495 = vrcp.pop %v2491
          %v2496 = vmul.f32 1.0, %v2495
          %v2497 = vrcp.pop %v2492
          %v2498 = vmul.f32 1.0, %v2497
          %v2499 = vtanh.pop %v2480
          %v2500 = vmul.f32 %v2496, %v2391
          %v2501 = vmul.f32 %v2494, %v2499
          %v2502 = vadd.f32 %v2500, %v2501
          %v2503 = vtanh.pop %v2502
          %v2504 = vmul.f32 %v2498, %v2503
          %v2505 = vpack.c.bf16 %v2504, %v2504
          %2506 = vmatprep.subr.bf16.mxu0 %v1999
          %2507 = vmatpush1.bf16.msra.mxu0 %v1998
          %2508 = vmatprep.subr.bf16.mxu0 %v2003
          %2509 = vmatpush1.bf16.msra.mxu0 %v2002
          %2510 = vmatprep.subr.bf16.mxu0 %v2007
          %2511 = vmatpush1.bf16.msra.mxu0 %v2006
          %2512 = vmatprep.subr.bf16.mxu0 %v2011
          %2513 = vmatpush1.bf16.msra.mxu0 %v2010
          %2514 = vmatprep.subr.bf16.mxu0 %v2015
          %2515 = vmatpush1.bf16.msra.mxu0 %v2014
          %2516 = vmatprep.subr.bf16.mxu0 %v2019
          %2517 = vmatpush1.bf16.msra.mxu0 %v2018
          %2518 = vmatprep.subr.bf16.mxu0 %v2023
          %2519 = vmatpush1.bf16.msra.mxu0 %v2022
          %2520 = vmatprep.subr.bf16.mxu0 %v2027
          %2521 = vmatpush1.bf16.msra.mxu0 %v2026
          %2522 = vmatprep.subr.bf16.mxu0 0
          %2523 = vmatpush1.bf16.msra.mxu0 0
          %2524 = vmatprep.subr.bf16.mxu0 0
          %2525 = vmatpush1.bf16.msra.mxu0 0
          %2526 = vmatprep.subr.bf16.mxu0 0
          %2527 = vmatpush1.bf16.msra.mxu0 0
          %2528 = vmatprep.subr.bf16.mxu0 0
          %2529 = vmatpush1.bf16.msra.mxu0 0
          %2530 = vmatprep.subr.bf16.mxu0 0
          %2531 = vmatpush1.bf16.msra.mxu0 0
          %2532 = vmatprep.subr.bf16.mxu0 0
          %2533 = vmatpush1.bf16.msra.mxu0 0
          %2534 = vmatprep.subr.bf16.mxu0 0
          %2535 = vmatpush1.bf16.msra.mxu0 0
          %2536 = vmatprep.subr.bf16.mxu0 0
          %2537 = vmatpush1.bf16.msra.mxu0 0
          %2538 = vmatprep.mubr.bf16.mxu0 0
          %2539 = vmatmul.mubr.bf16.gmra.mrb[0].mxu0 %v2505
          %v2540 = vpop.f32.mrb[0].mxu0
          %v2541 = vadd.f32 0.0, %v2540
          %v2542 = vpop.f32.mrb[0].mxu0
          %v2543 = vadd.f32 0.0, %v2542
          %v2544 = vpop.f32.mrb[0].mxu0
          %v2545 = vpop.f32.mrb[0].mxu0
          %2546 = vdwg.mxu0
          %2547 = vmatprep.subr.bf16.mxu0 %v2001
          %2548 = vmatpush1.bf16.msra.mxu0 %v2000
          %2549 = vmatprep.subr.bf16.mxu0 %v2005
          %2550 = vmatpush1.bf16.msra.mxu0 %v2004
          %2551 = vmatprep.subr.bf16.mxu0 %v2009
          %2552 = vmatpush1.bf16.msra.mxu0 %v2008
          %2553 = vmatprep.subr.bf16.mxu0 %v2013
          %2554 = vmatpush1.bf16.msra.mxu0 %v2012
          %2555 = vmatprep.subr.bf16.mxu0 %v2017
          %2556 = vmatpush1.bf16.msra.mxu0 %v2016
          %2557 = vmatprep.subr.bf16.mxu0 %v2021
          %2558 = vmatpush1.bf16.msra.mxu0 %v2020
          %2559 = vmatprep.subr.bf16.mxu0 %v2025
          %2560 = vmatpush1.bf16.msra.mxu0 %v2024
          %2561 = vmatprep.subr.bf16.mxu0 %v2029
          %2562 = vmatpush1.bf16.msra.mxu0 %v2028
          %2563 = vmatprep.subr.bf16.mxu0 0
          %2564 = vmatpush1.bf16.msra.mxu0 0
          %2565 = vmatprep.subr.bf16.mxu0 0
          %2566 = vmatpush1.bf16.msra.mxu0 0
          %2567 = vmatprep.subr.bf16.mxu0 0
          %2568 = vmatpush1.bf16.msra.mxu0 0
          %2569 = vmatprep.subr.bf16.mxu0 0
          %2570 = vmatpush1.bf16.msra.mxu0 0
          %2571 = vmatprep.subr.bf16.mxu0 0
          %2572 = vmatpush1.bf16.msra.mxu0 0
          %2573 = vmatprep.subr.bf16.mxu0 0
          %2574 = vmatpush1.bf16.msra.mxu0 0
          %2575 = vmatprep.subr.bf16.mxu0 0
          %2576 = vmatpush1.bf16.msra.mxu0 0
          %2577 = vmatprep.subr.bf16.mxu0 0
          %2578 = vmatpush1.bf16.msra.mxu0 0
          %2579 = vmatprep.mubr.bf16.mxu0 0
          %2580 = vmatmul.mubr.bf16.gmra.mrb[0].mxu0 %v2505
          %v2581 = vpop.f32.mrb[0].mxu0
          %v2582 = vadd.f32 0.0, %v2581
          %v2583 = vpop.f32.mrb[0].mxu0
          %v2584 = vadd.f32 0.0, %v2583
          %v2585 = vpop.f32.mrb[0].mxu0
          %v2586 = vpop.f32.mrb[0].mxu0
          %2587 = vdwg.mxu0
          %v2588 = vadd.f32 %v1886, %v2541
          %v2589 = vadd.f32 %v1887, %v2543
          %v2590 = vadd.f32 %v1888, %v2582
          %v2591 = vadd.f32 %v1889, %v2584
          %v2592 = vxor.u32 %v2588, 2147483648
          %v2593 = vxor.u32 %v2589, 2147483648
          %v2594 = vxor.u32 %v2590, 2147483648
          %v2595 = vmul.f32 %v2592, 1.442695
          %v2596 = vpow.pop %v2595
          %v2597 = vmul.f32 %v2593, 1.442695
          %v2598 = vpow.pop %v2597
          %v2599 = vmul.f32 %v2594, 1.442695
          %v2600 = vpow.pop %v2599
          %v2601 = vadd.f32 %v2596, 1.0
          %v2602 = vadd.f32 %v2598, 1.0
          %v2603 = vadd.f32 %v2600, 1.0
          %v2604 = vrcp.pop %v2601
          %v2605 = vmul.f32 1.0, %v2604
          %v2606 = vrcp.pop %v2602
          %v2607 = vmul.f32 1.0, %v2606
          %v2608 = vrcp.pop %v2603
          %v2609 = vmul.f32 1.0, %v2608
          %v2610 = vtanh.pop %v2591
          %v2611 = vmul.f32 %v2607, %v2502
          %v2612 = vmul.f32 %v2605, %v2610
          %v2613 = vadd.f32 %v2611, %v2612
          %v2614 = vtanh.pop %v2613
          %v2615 = vmul.f32 %v2609, %v2614
          %v2616 = vpack.c.bf16 %v2615, %v2615
          %2617 = vmatprep.subr.bf16.mxu0 %v1999
          %2618 = vmatpush1.bf16.msra.mxu0 %v1998
          %2619 = vmatprep.subr.bf16.mxu0 %v2003
          %2620 = vmatpush1.bf16.msra.mxu0 %v2002
          %2621 = vmatprep.subr.bf16.mxu0 %v2007
          %2622 = vmatpush1.bf16.msra.mxu0 %v2006
          %2623 = vmatprep.subr.bf16.mxu0 %v2011
          %2624 = vmatpush1.bf16.msra.mxu0 %v2010
          %2625 = vmatprep.subr.bf16.mxu0 %v2015
          %2626 = vmatpush1.bf16.msra.mxu0 %v2014
          %2627 = vmatprep.subr.bf16.mxu0 %v2019
          %2628 = vmatpush1.bf16.msra.mxu0 %v2018
          %2629 = vmatprep.subr.bf16.mxu0 %v2023
          %2630 = vmatpush1.bf16.msra.mxu0 %v2022
          %2631 = vmatprep.subr.bf16.mxu0 %v2027
          %2632 = vmatpush1.bf16.msra.mxu0 %v2026
          %2633 = vmatprep.subr.bf16.mxu0 0
          %2634 = vmatpush1.bf16.msra.mxu0 0
          %2635 = vmatprep.subr.bf16.mxu0 0
          %2636 = vmatpush1.bf16.msra.mxu0 0
          %2637 = vmatprep.subr.bf16.mxu0 0
          %2638 = vmatpush1.bf16.msra.mxu0 0
          %2639 = vmatprep.subr.bf16.mxu0 0
          %2640 = vmatpush1.bf16.msra.mxu0 0
          %2641 = vmatprep.subr.bf16.mxu0 0
          %2642 = vmatpush1.bf16.msra.mxu0 0
          %2643 = vmatprep.subr.bf16.mxu0 0
          %2644 = vmatpush1.bf16.msra.mxu0 0
          %2645 = vmatprep.subr.bf16.mxu0 0
          %2646 = vmatpush1.bf16.msra.mxu0 0
          %2647 = vmatprep.subr.bf16.mxu0 0
          %2648 = vmatpush1.bf16.msra.mxu0 0
          %2649 = vmatprep.mubr.bf16.mxu0 0
          %2650 = vmatmul.mubr.bf16.gmra.mrb[0].mxu0 %v2616
          %v2651 = vpop.f32.mrb[0].mxu0
          %v2652 = vadd.f32 0.0, %v2651
          %v2653 = vpop.f32.mrb[0].mxu0
          %v2654 = vadd.f32 0.0, %v2653
          %v2655 = vpop.f32.mrb[0].mxu0
          %v2656 = vpop.f32.mrb[0].mxu0
          %2657 = vdwg.mxu0
          %2658 = vmatprep.subr.bf16.mxu0 %v2001
          %2659 = vmatpush1.bf16.msra.mxu0 %v2000
          %2660 = vmatprep.subr.bf16.mxu0 %v2005
          %2661 = vmatpush1.bf16.msra.mxu0 %v2004
          %2662 = vmatprep.subr.bf16.mxu0 %v2009
          %2663 = vmatpush1.bf16.msra.mxu0 %v2008
          %2664 = vmatprep.subr.bf16.mxu0 %v2013
          %2665 = vmatpush1.bf16.msra.mxu0 %v2012
          %2666 = vmatprep.subr.bf16.mxu0 %v2017
          %2667 = vmatpush1.bf16.msra.mxu0 %v2016
          %2668 = vmatprep.subr.bf16.mxu0 %v2021
          %2669 = vmatpush1.bf16.msra.mxu0 %v2020
          %2670 = vmatprep.subr.bf16.mxu0 %v2025
          %2671 = vmatpush1.bf16.msra.mxu0 %v2024
          %2672 = vmatprep.subr.bf16.mxu0 %v2029
          %2673 = vmatpush1.bf16.msra.mxu0 %v2028
          %2674 = vmatprep.subr.bf16.mxu0 0
          %2675 = vmatpush1.bf16.msra.mxu0 0
          %2676 = vmatprep.subr.bf16.mxu0 0
          %2677 = vmatpush1.bf16.msra.mxu0 0
          %2678 = vmatprep.subr.bf16.mxu0 0
          %2679 = vmatpush1.bf16.msra.mxu0 0
          %2680 = vmatprep.subr.bf16.mxu0 0
          %2681 = vmatpush1.bf16.msra.mxu0 0
          %2682 = vmatprep.subr.bf16.mxu0 0
          %2683 = vmatpush1.bf16.msra.mxu0 0
          %2684 = vmatprep.subr.bf16.mxu0 0
          %2685 = vmatpush1.bf16.msra.mxu0 0
          %2686 = vmatprep.subr.bf16.mxu0 0
          %2687 = vmatpush1.bf16.msra.mxu0 0
          %2688 = vmatprep.subr.bf16.mxu0 0
          %2689 = vmatpush1.bf16.msra.mxu0 0
          %2690 = vmatprep.mubr.bf16.mxu0 0
          %2691 = vmatmul.mubr.bf16.gmra.mrb[0].mxu0 %v2616
          %v2692 = vpop.f32.mrb[0].mxu0
          %v2693 = vadd.f32 0.0, %v2692
          %v2694 = vpop.f32.mrb[0].mxu0
          %v2695 = vadd.f32 0.0, %v2694
          %v2696 = vpop.f32.mrb[0].mxu0
          %v2697 = vpop.f32.mrb[0].mxu0
          %2698 = vdwg.mxu0
          %v2699 = vadd.f32 %v1890, %v2652
          %v2700 = vadd.f32 %v1891, %v2654
          %v2701 = vadd.f32 %v1892, %v2693
          %v2702 = vadd.f32 %v1893, %v2695
          %v2703 = vxor.u32 %v2699, 2147483648
          %v2704 = vxor.u32 %v2700, 2147483648
          %v2705 = vxor.u32 %v2701, 2147483648
          %v2706 = vmul.f32 %v2703, 1.442695
          %v2707 = vpow.pop %v2706
          %v2708 = vmul.f32 %v2704, 1.442695
          %v2709 = vpow.pop %v2708
          %v2710 = vmul.f32 %v2705, 1.442695
          %v2711 = vpow.pop %v2710
          %v2712 = vadd.f32 %v2707, 1.0
          %v2713 = vadd.f32 %v2709, 1.0
          %v2714 = vadd.f32 %v2711, 1.0
          %v2715 = vrcp.pop %v2712
          %v2716 = vmul.f32 1.0, %v2715
          %v2717 = vrcp.pop %v2713
          %v2718 = vmul.f32 1.0, %v2717
          %v2719 = vrcp.pop %v2714
          %v2720 = vmul.f32 1.0, %v2719
          %v2721 = vtanh.pop %v2702
          %v2722 = vmul.f32 %v2718, %v2613
          %v2723 = vmul.f32 %v2716, %v2721
          %v2724 = vadd.f32 %v2722, %v2723
          %v2725 = vtanh.pop %v2724
          %v2726 = vmul.f32 %v2720, %v2725
          %v2727 = vpack.c.bf16 %v2726, %v2726
          %2728 = vmatprep.subr.bf16.mxu0 %v1999
          %2729 = vmatpush1.bf16.msra.mxu0 %v1998
          %2730 = vmatprep.subr.bf16.mxu0 %v2003
          %2731 = vmatpush1.bf16.msra.mxu0 %v2002
          %2732 = vmatprep.subr.bf16.mxu0 %v2007
          %2733 = vmatpush1.bf16.msra.mxu0 %v2006
          %2734 = vmatprep.subr.bf16.mxu0 %v2011
          %2735 = vmatpush1.bf16.msra.mxu0 %v2010
          %2736 = vmatprep.subr.bf16.mxu0 %v2015
          %2737 = vmatpush1.bf16.msra.mxu0 %v2014
          %2738 = vmatprep.subr.bf16.mxu0 %v2019
          %2739 = vmatpush1.bf16.msra.mxu0 %v2018
          %2740 = vmatprep.subr.bf16.mxu0 %v2023
          %2741 = vmatpush1.bf16.msra.mxu0 %v2022
          %2742 = vmatprep.subr.bf16.mxu0 %v2027
          %2743 = vmatpush1.bf16.msra.mxu0 %v2026
          %2744 = vmatprep.subr.bf16.mxu0 0
          %2745 = vmatpush1.bf16.msra.mxu0 0
          %2746 = vmatprep.subr.bf16.mxu0 0
          %2747 = vmatpush1.bf16.msra.mxu0 0
          %2748 = vmatprep.subr.bf16.mxu0 0
          %2749 = vmatpush1.bf16.msra.mxu0 0
          %2750 = vmatprep.subr.bf16.mxu0 0
          %2751 = vmatpush1.bf16.msra.mxu0 0
          %2752 = vmatprep.subr.bf16.mxu0 0
          %2753 = vmatpush1.bf16.msra.mxu0 0
          %2754 = vmatprep.subr.bf16.mxu0 0
          %2755 = vmatpush1.bf16.msra.mxu0 0
          %2756 = vmatprep.subr.bf16.mxu0 0
          %2757 = vmatpush1.bf16.msra.mxu0 0
          %2758 = vmatprep.subr.bf16.mxu0 0
          %2759 = vmatpush1.bf16.msra.mxu0 0
          %2760 = vmatprep.mubr.bf16.mxu0 0
          %2761 = vmatmul.mubr.bf16.gmra.mrb[0].mxu0 %v2727
          %v2762 = vpop.f32.mrb[0].mxu0
          %v2763 = vadd.f32 0.0, %v2762
          %v2764 = vpop.f32.mrb[0].mxu0
          %v2765 = vadd.f32 0.0, %v2764
          %v2766 = vpop.f32.mrb[0].mxu0
          %v2767 = vpop.f32.mrb[0].mxu0
          %2768 = vdwg.mxu0
          %2769 = vmatprep.subr.bf16.mxu0 %v2001
          %2770 = vmatpush1.bf16.msra.mxu0 %v2000
          %2771 = vmatprep.subr.bf16.mxu0 %v2005
          %2772 = vmatpush1.bf16.msra.mxu0 %v2004
          %2773 = vmatprep.subr.bf16.mxu0 %v2009
          %2774 = vmatpush1.bf16.msra.mxu0 %v2008
          %2775 = vmatprep.subr.bf16.mxu0 %v2013
          %2776 = vmatpush1.bf16.msra.mxu0 %v2012
          %2777 = vmatprep.subr.bf16.mxu0 %v2017
          %2778 = vmatpush1.bf16.msra.mxu0 %v2016
          %2779 = vmatprep.subr.bf16.mxu0 %v2021
          %2780 = vmatpush1.bf16.msra.mxu0 %v2020
          %2781 = vmatprep.subr.bf16.mxu0 %v2025
          %2782 = vmatpush1.bf16.msra.mxu0 %v2024
          %2783 = vmatprep.subr.bf16.mxu0 %v2029
          %2784 = vmatpush1.bf16.msra.mxu0 %v2028
          %2785 = vmatprep.subr.bf16.mxu0 0
          %2786 = vmatpush1.bf16.msra.mxu0 0
          %2787 = vmatprep.subr.bf16.mxu0 0
          %2788 = vmatpush1.bf16.msra.mxu0 0
          %2789 = vmatprep.subr.bf16.mxu0 0
          %2790 = vmatpush1.bf16.msra.mxu0 0
          %2791 = vmatprep.subr.bf16.mxu0 0
          %2792 = vmatpush1.bf16.msra.mxu0 0
          %2793 = vmatprep.subr.bf16.mxu0 0
          %2794 = vmatpush1.bf16.msra.mxu0 0
          %2795 = vmatprep.subr.bf16.mxu0 0
          %2796 = vmatpush1.bf16.msra.mxu0 0
          %2797 = vmatprep.subr.bf16.mxu0 0
          %2798 = vmatpush1.bf16.msra.mxu0 0
          %2799 = vmatprep.subr.bf16.mxu0 0
          %2800 = vmatpush1.bf16.msra.mxu0 0
          %2801 = vmatprep.mubr.bf16.mxu0 0
          %2802 = vmatmul.mubr.bf16.gmra.mrb[0].mxu0 %v2727
          %v2803 = vpop.f32.mrb[0].mxu0
          %v2804 = vadd.f32 0.0, %v2803
          %v2805 = vpop.f32.mrb[0].mxu0
          %v2806 = vadd.f32 0.0, %v2805
          %v2807 = vpop.f32.mrb[0].mxu0
          %v2808 = vpop.f32.mrb[0].mxu0
          %2809 = vdwg.mxu0
          %v2810 = vadd.f32 %v1894, %v2763
          %v2811 = vadd.f32 %v1895, %v2765
          %v2812 = vadd.f32 %v1896, %v2804
          %v2813 = vadd.f32 %v1897, %v2806
          %v2814 = vxor.u32 %v2810, 2147483648
          %v2815 = vxor.u32 %v2811, 2147483648
          %v2816 = vxor.u32 %v2812, 2147483648
          %v2817 = vmul.f32 %v2814, 1.442695
          %v2818 = vpow.pop %v2817
          %v2819 = vmul.f32 %v2815, 1.442695
          %v2820 = vpow.pop %v2819
          %v2821 = vmul.f32 %v2816, 1.442695
          %v2822 = vpow.pop %v2821
          %v2823 = vadd.f32 %v2818, 1.0
          %v2824 = vadd.f32 %v2820, 1.0
          %v2825 = vadd.f32 %v2822, 1.0
          %v2826 = vrcp.pop %v2823
          %v2827 = vmul.f32 1.0, %v2826
          %v2828 = vrcp.pop %v2824
          %v2829 = vmul.f32 1.0, %v2828
          %v2830 = vrcp.pop %v2825
          %v2831 = vmul.f32 1.0, %v2830
          %v2832 = vtanh.pop %v2813
          %v2833 = vmul.f32 %v2829, %v2724
          %v2834 = vmul.f32 %v2827, %v2832
          %v2835 = vadd.f32 %v2833, %v2834
          %v2836 = vtanh.pop %v2835
          %v2837 = vmul.f32 %v2831, %v2836
          %v2838 = vpack.c.bf16 %v2837, %v2837
          %2839 = vmatprep.subr.bf16.mxu0 %v1999
          %2840 = vmatpush1.bf16.msra.mxu0 %v1998
          %2841 = vmatprep.subr.bf16.mxu0 %v2003
          %2842 = vmatpush1.bf16.msra.mxu0 %v2002
          %2843 = vmatprep.subr.bf16.mxu0 %v2007
          %2844 = vmatpush1.bf16.msra.mxu0 %v2006
          %2845 = vmatprep.subr.bf16.mxu0 %v2011
          %2846 = vmatpush1.bf16.msra.mxu0 %v2010
          %2847 = vmatprep.subr.bf16.mxu0 %v2015
          %2848 = vmatpush1.bf16.msra.mxu0 %v2014
          %2849 = vmatprep.subr.bf16.mxu0 %v2019
          %2850 = vmatpush1.bf16.msra.mxu0 %v2018
          %2851 = vmatprep.subr.bf16.mxu0 %v2023
          %2852 = vmatpush1.bf16.msra.mxu0 %v2022
          %2853 = vmatprep.subr.bf16.mxu0 %v2027
          %2854 = vmatpush1.bf16.msra.mxu0 %v2026
          %2855 = vmatprep.subr.bf16.mxu0 0
          %2856 = vmatpush1.bf16.msra.mxu0 0
          %2857 = vmatprep.subr.bf16.mxu0 0
          %2858 = vmatpush1.bf16.msra.mxu0 0
          %2859 = vmatprep.subr.bf16.mxu0 0
          %2860 = vmatpush1.bf16.msra.mxu0 0
          %2861 = vmatprep.subr.bf16.mxu0 0
          %2862 = vmatpush1.bf16.msra.mxu0 0
          %2863 = vmatprep.subr.bf16.mxu0 0
          %2864 = vmatpush1.bf16.msra.mxu0 0
          %2865 = vmatprep.subr.bf16.mxu0 0
          %2866 = vmatpush1.bf16.msra.mxu0 0
          %2867 = vmatprep.subr.bf16.mxu0 0
          %2868 = vmatpush1.bf16.msra.mxu0 0
          %2869 = vmatprep.subr.bf16.mxu0 0
          %2870 = vmatpush1.bf16.msra.mxu0 0
          %2871 = vmatprep.mubr.bf16.mxu0 0
          %2872 = vmatmul.mubr.bf16.gmra.mrb[0].mxu0 %v2838
          %v2873 = vpop.f32.mrb[0].mxu0
          %v2874 = vadd.f32 0.0, %v2873
          %v2875 = vpop.f32.mrb[0].mxu0
          %v2876 = vadd.f32 0.0, %v2875
          %v2877 = vpop.f32.mrb[0].mxu0
          %v2878 = vpop.f32.mrb[0].mxu0
          %2879 = vdwg.mxu0
          %2880 = vmatprep.subr.bf16.mxu0 %v2001
          %2881 = vmatpush1.bf16.msra.mxu0 %v2000
          %2882 = vmatprep.subr.bf16.mxu0 %v2005
          %2883 = vmatpush1.bf16.msra.mxu0 %v2004
          %2884 = vmatprep.subr.bf16.mxu0 %v2009
          %2885 = vmatpush1.bf16.msra.mxu0 %v2008
          %2886 = vmatprep.subr.bf16.mxu0 %v2013
          %2887 = vmatpush1.bf16.msra.mxu0 %v2012
          %2888 = vmatprep.subr.bf16.mxu0 %v2017
          %2889 = vmatpush1.bf16.msra.mxu0 %v2016
          %2890 = vmatprep.subr.bf16.mxu0 %v2021
          %2891 = vmatpush1.bf16.msra.mxu0 %v2020
          %2892 = vmatprep.subr.bf16.mxu0 %v2025
          %2893 = vmatpush1.bf16.msra.mxu0 %v2024
          %2894 = vmatprep.subr.bf16.mxu0 %v2029
          %2895 = vmatpush1.bf16.msra.mxu0 %v2028
          %2896 = vmatprep.subr.bf16.mxu0 0
          %2897 = vmatpush1.bf16.msra.mxu0 0
          %2898 = vmatprep.subr.bf16.mxu0 0
          %2899 = vmatpush1.bf16.msra.mxu0 0
          %2900 = vmatprep.subr.bf16.mxu0 0
          %2901 = vmatpush1.bf16.msra.mxu0 0
          %2902 = vmatprep.subr.bf16.mxu0 0
          %2903 = vmatpush1.bf16.msra.mxu0 0
          %2904 = vmatprep.subr.bf16.mxu0 0
          %2905 = vmatpush1.bf16.msra.mxu0 0
          %2906 = vmatprep.subr.bf16.mxu0 0
          %2907 = vmatpush1.bf16.msra.mxu0 0
          %2908 = vmatprep.subr.bf16.mxu0 0
          %2909 = vmatpush1.bf16.msra.mxu0 0
          %2910 = vmatprep.subr.bf16.mxu0 0
          %2911 = vmatpush1.bf16.msra.mxu0 0
          %2912 = vmatprep.mubr.bf16.mxu0 0
          %2913 = vmatmul.mubr.bf16.gmra.mrb[0].mxu0 %v2838
          %v2914 = vpop.f32.mrb[0].mxu0
          %v2915 = vadd.f32 0.0, %v2914
          %v2916 = vpop.f32.mrb[0].mxu0
          %v2917 = vadd.f32 0.0, %v2916
          %v2918 = vpop.f32.mrb[0].mxu0
          %v2919 = vpop.f32.mrb[0].mxu0
          %2920 = vdwg.mxu0
          %v2921 = vadd.f32 %v1898, %v2874
          %v2922 = vadd.f32 %v1899, %v2876
          %v2923 = vadd.f32 %v1900, %v2915
          %v2924 = vadd.f32 %v1901, %v2917
          %v2925 = vxor.u32 %v2921, 2147483648
          %v2926 = vxor.u32 %v2922, 2147483648
          %v2927 = vxor.u32 %v2923, 2147483648
          %v2928 = vmul.f32 %v2925, 1.442695
          %v2929 = vpow.pop %v2928
          %v2930 = vmul.f32 %v2926, 1.442695
          %v2931 = vpow.pop %v2930
          %v2932 = vmul.f32 %v2927, 1.442695
          %v2933 = vpow.pop %v2932
          %v2934 = vadd.f32 %v2929, 1.0
          %v2935 = vadd.f32 %v2931, 1.0
          %v2936 = vadd.f32 %v2933, 1.0
          %v2937 = vrcp.pop %v2934
          %v2938 = vmul.f32 1.0, %v2937
          %v2939 = vrcp.pop %v2935
          %v2940 = vmul.f32 1.0, %v2939
          %v2941 = vrcp.pop %v2936
          %v2942 = vmul.f32 1.0, %v2941
          %v2943 = vtanh.pop %v2924
          %v2944 = vmul.f32 %v2940, %v2835
          %v2945 = vmul.f32 %v2938, %v2943
          %v2946 = vadd.f32 %v2944, %v2945
          %v2947 = vtanh.pop %v2946
          %v2948 = vmul.f32 %v2942, %v2947
          %s2949 = scalar_lea.vmem [#allocation3], 256
          %v2950 = vld [vmem:[%s2949] sm:$0xff]
          %v2951 = vld [vmem:[%s2949 + $0x8] sm:$0xff]
          %v2952 = vld [vmem:[%s2949 + $0x10] sm:$0xff]
          %v2953 = vld [vmem:[%s2949 + $0x18] sm:$0xff]
          %v2954 = vld [vmem:[%s2949 + $0x20] sm:$0xff]
          %v2955 = vld [vmem:[%s2949 + $0x28] sm:$0xff]
          %v2956 = vld [vmem:[%s2949 + $0x30] sm:$0xff]
          %v2957 = vld [vmem:[%s2949 + $0x38] sm:$0xff]
          %v2958 = vld [vmem:[%s2949 + $0x40] sm:$0xff]
          %v2959 = vld [vmem:[%s2949 + $0x48] sm:$0xff]
          %v2960 = vld [vmem:[%s2949 + $0x50] sm:$0xff]
          %v2961 = vld [vmem:[%s2949 + $0x58] sm:$0xff]
          %v2962 = vld [vmem:[%s2949 + $0x60] sm:$0xff]
          %v2963 = vld [vmem:[%s2949 + $0x68] sm:$0xff]
          %v2964 = vld [vmem:[%s2949 + $0x70] sm:$0xff]
          %v2965 = vld [vmem:[%s2949 + $0x78] sm:$0xff]
          %v2966 = vld [vmem:[%s2949 + $0x80] sm:$0xff]
          %v2967 = vld [vmem:[%s2949 + $0x88] sm:$0xff]
          %v2968 = vld [vmem:[%s2949 + $0x90] sm:$0xff]
          %v2969 = vld [vmem:[%s2949 + $0x98] sm:$0xff]
          %v2970 = vld [vmem:[%s2949 + $0xa0] sm:$0xff]
          %v2971 = vld [vmem:[%s2949 + $0xa8] sm:$0xff]
          %v2972 = vld [vmem:[%s2949 + $0xb0] sm:$0xff]
          %v2973 = vld [vmem:[%s2949 + $0xb8] sm:$0xff]
          %v2974 = vld [vmem:[%s2949 + $0xc0] sm:$0xff]
          %v2975 = vld [vmem:[%s2949 + $0xc8] sm:$0xff]
          %v2976 = vld [vmem:[%s2949 + $0xd0] sm:$0xff]
          %v2977 = vld [vmem:[%s2949 + $0xd8] sm:$0xff]
          %v2978 = vld [vmem:[%s2949 + $0xe0] sm:$0xff]
          %v2979 = vld [vmem:[%s2949 + $0xe8] sm:$0xff]
          %v2980 = vld [vmem:[%s2949 + $0xf0] sm:$0xff]
          %v2981 = vld [vmem:[%s2949 + $0xf8] sm:$0xff]
          %s2982 = scalar_lea.vmem [#allocation6], 256
          %v2983 = vld [vmem:[%s2982] sm:$0xff]
          %v2984 = vld [vmem:[%s2982 + $0x8] sm:$0xff]
          %v2985 = vld [vmem:[%s2982 + $0x10] sm:$0xff]
          %v2986 = vld [vmem:[%s2982 + $0x18] sm:$0xff]
          %v2987 = vld [vmem:[%s2982 + $0x20] sm:$0xff]
          %v2988 = vld [vmem:[%s2982 + $0x28] sm:$0xff]
          %v2989 = vld [vmem:[%s2982 + $0x30] sm:$0xff]
          %v2990 = vld [vmem:[%s2982 + $0x38] sm:$0xff]
          %v2991 = vld [vmem:[%s2982 + $0x40] sm:$0xff]
          %v2992 = vld [vmem:[%s2982 + $0x48] sm:$0xff]
          %v2993 = vld [vmem:[%s2982 + $0x50] sm:$0xff]
          %v2994 = vld [vmem:[%s2982 + $0x58] sm:$0xff]
          %v2995 = vld [vmem:[%s2982 + $0x60] sm:$0xff]
          %v2996 = vld [vmem:[%s2982 + $0x68] sm:$0xff]
          %v2997 = vld [vmem:[%s2982 + $0x70] sm:$0xff]
          %v2998 = vld [vmem:[%s2982 + $0x78] sm:$0xff]
          %v2999 = vld [vmem:[%s2982 + $0x80] sm:$0xff]
          %v3000 = vld [vmem:[%s2982 + $0x88] sm:$0xff]
          %v3001 = vld [vmem:[%s2982 + $0x90] sm:$0xff]
          %v3002 = vld [vmem:[%s2982 + $0x98] sm:$0xff]
          %v3003 = vld [vmem:[%s2982 + $0xa0] sm:$0xff]
          %v3004 = vld [vmem:[%s2982 + $0xa8] sm:$0xff]
          %v3005 = vld [vmem:[%s2982 + $0xb0] sm:$0xff]
          %v3006 = vld [vmem:[%s2982 + $0xb8] sm:$0xff]
          %v3007 = vld [vmem:[%s2982 + $0xc0] sm:$0xff]
          %v3008 = vld [vmem:[%s2982 + $0xc8] sm:$0xff]
          %v3009 = vld [vmem:[%s2982 + $0xd0] sm:$0xff]
          %v3010 = vld [vmem:[%s2982 + $0xd8] sm:$0xff]
          %v3011 = vld [vmem:[%s2982 + $0xe0] sm:$0xff]
          %v3012 = vld [vmem:[%s2982 + $0xe8] sm:$0xff]
          %v3013 = vld [vmem:[%s2982 + $0xf0] sm:$0xff]
          %v3014 = vld [vmem:[%s2982 + $0xf8] sm:$0xff]
          %s3015 = scalar_lea.vmem [#allocation8], 256
          %v3016 = vld [vmem:[%s3015] sm:$0xff]
          %v3017 = vld [vmem:[%s3015 + $0x8] sm:$0xff]
          %v3018 = vld [vmem:[%s3015 + $0x10] sm:$0xff]
          %v3019 = vld [vmem:[%s3015 + $0x18] sm:$0xff]
          %v3020 = vld [vmem:[%s3015 + $0x20] sm:$0xff]
          %v3021 = vld [vmem:[%s3015 + $0x28] sm:$0xff]
          %v3022 = vld [vmem:[%s3015 + $0x30] sm:$0xff]
          %v3023 = vld [vmem:[%s3015 + $0x38] sm:$0xff]
          %v3024 = vld [vmem:[%s3015 + $0x40] sm:$0xff]
          %v3025 = vld [vmem:[%s3015 + $0x48] sm:$0xff]
          %v3026 = vld [vmem:[%s3015 + $0x50] sm:$0xff]
          %v3027 = vld [vmem:[%s3015 + $0x58] sm:$0xff]
          %v3028 = vld [vmem:[%s3015 + $0x60] sm:$0xff]
          %v3029 = vld [vmem:[%s3015 + $0x68] sm:$0xff]
          %v3030 = vld [vmem:[%s3015 + $0x70] sm:$0xff]
          %v3031 = vld [vmem:[%s3015 + $0x78] sm:$0xff]
          %v3032 = vld [vmem:[%s3015 + $0x80] sm:$0xff]
          %v3033 = vld [vmem:[%s3015 + $0x88] sm:$0xff]
          %v3034 = vld [vmem:[%s3015 + $0x90] sm:$0xff]
          %v3035 = vld [vmem:[%s3015 + $0x98] sm:$0xff]
          %v3036 = vld [vmem:[%s3015 + $0xa0] sm:$0xff]
          %v3037 = vld [vmem:[%s3015 + $0xa8] sm:$0xff]
          %v3038 = vld [vmem:[%s3015 + $0xb0] sm:$0xff]
          %v3039 = vld [vmem:[%s3015 + $0xb8] sm:$0xff]
          %v3040 = vld [vmem:[%s3015 + $0xc0] sm:$0xff]
          %v3041 = vld [vmem:[%s3015 + $0xc8] sm:$0xff]
          %v3042 = vld [vmem:[%s3015 + $0xd0] sm:$0xff]
          %v3043 = vld [vmem:[%s3015 + $0xd8] sm:$0xff]
          %v3044 = vld [vmem:[%s3015 + $0xe0] sm:$0xff]
          %v3045 = vld [vmem:[%s3015 + $0xe8] sm:$0xff]
          %v3046 = vld [vmem:[%s3015 + $0xf0] sm:$0xff]
          %v3047 = vld [vmem:[%s3015 + $0xf8] sm:$0xff]
          %s3048 = scalar_lea.vmem %s4, 4
          %v3049 = vld [vmem:[%s3048] sm:$0xf]
          %v3050 = vpack.c.bf16 %v2282, %v2171
          %v3051 = vpack.c.bf16 %v2504, %v2393
          %v3052 = vpack.c.bf16 %v2726, %v2615
          %v3053 = vpack.c.bf16 %v2948, %v2837
          %v3054 = vpack.c.bf16 %v2837, %v2948
          %v3055 = vpack.c.bf16 %v2615, %v2726
          %v3056 = vpack.c.bf16 %v2393, %v2504
          %v3057 = vpack.c.bf16 %v2171, %v2282
          %v3090 = vunpack.c.l.b16 %v2983
          %v3091 = vunpack.c.h.b16 %v2983
          %v3092 = vunpack.c.l.b16 %v2984
          %v3093 = vunpack.c.h.b16 %v2984
          %v3094 = vunpack.c.l.b16 %v2985
          %v3095 = vunpack.c.h.b16 %v2985
          %v3096 = vunpack.c.l.b16 %v2986
          %v3097 = vunpack.c.h.b16 %v2986
          %v3098 = vunpack.c.l.b16 %v2987
          %v3099 = vunpack.c.h.b16 %v2987
          %v3100 = vunpack.c.l.b16 %v2988
          %v3101 = vunpack.c.h.b16 %v2988
          %v3102 = vunpack.c.l.b16 %v2989
          %v3103 = vunpack.c.h.b16 %v2989
          %v3104 = vunpack.c.l.b16 %v2990
          %v3105 = vunpack.c.h.b16 %v2990
          %v3106 = vunpack.c.l.b16 %v2991
          %v3107 = vunpack.c.h.b16 %v2991
          %v3108 = vunpack.c.l.b16 %v2992
          %v3109 = vunpack.c.h.b16 %v2992
          %v3110 = vunpack.c.l.b16 %v2993
          %v3111 = vunpack.c.h.b16 %v2993
          %v3112 = vunpack.c.l.b16 %v2994
          %v3113 = vunpack.c.h.b16 %v2994
          %v3114 = vunpack.c.l.b16 %v2995
          %v3115 = vunpack.c.h.b16 %v2995
          %v3116 = vunpack.c.l.b16 %v2996
          %v3117 = vunpack.c.h.b16 %v2996
          %v3118 = vunpack.c.l.b16 %v2997
          %v3119 = vunpack.c.h.b16 %v2997
          %v3120 = vunpack.c.l.b16 %v2998
          %v3121 = vunpack.c.h.b16 %v2998
          %v3122 = vunpack.c.l.b16 %v2999
          %v3123 = vunpack.c.h.b16 %v2999
          %v3124 = vunpack.c.l.b16 %v3000
          %v3125 = vunpack.c.h.b16 %v3000
          %v3126 = vunpack.c.l.b16 %v3001
          %v3127 = vunpack.c.h.b16 %v3001
          %v3128 = vunpack.c.l.b16 %v3002
          %v3129 = vunpack.c.h.b16 %v3002
          %v3130 = vunpack.c.l.b16 %v3003
          %v3131 = vunpack.c.h.b16 %v3003
          %v3132 = vunpack.c.l.b16 %v3004
          %v3133 = vunpack.c.h.b16 %v3004
          %v3134 = vunpack.c.l.b16 %v3005
          %v3135 = vunpack.c.h.b16 %v3005
          %v3136 = vunpack.c.l.b16 %v3006
          %v3137 = vunpack.c.h.b16 %v3006
          %v3138 = vunpack.c.l.b16 %v3007
          %v3139 = vunpack.c.h.b16 %v3007
          %v3140 = vunpack.c.l.b16 %v3008
          %v3141 = vunpack.c.h.b16 %v3008
          %v3142 = vunpack.c.l.b16 %v3009
          %v3143 = vunpack.c.h.b16 %v3009
          %v3144 = vunpack.c.l.b16 %v3010
          %v3145 = vunpack.c.h.b16 %v3010
          %v3146 = vunpack.c.l.b16 %v3011
          %v3147 = vunpack.c.h.b16 %v3011
          %v3148 = vunpack.c.l.b16 %v3012
          %v3149 = vunpack.c.h.b16 %v3012
          %v3150 = vunpack.c.l.b16 %v3013
          %v3151 = vunpack.c.h.b16 %v3013
          %v3152 = vunpack.c.l.b16 %v3014
          %v3153 = vunpack.c.h.b16 %v3014
          %v3154 = vpack.c.b16 %v3094, %v3090
          %v3155 = vpack.c.b16 %v3095, %v3091
          %v3156 = vpack.c.b16 %v3096, %v3092
          %v3157 = vpack.c.b16 %v3097, %v3093
          %v3158 = vpack.c.b16 %v3102, %v3098
          %v3159 = vpack.c.b16 %v3103, %v3099
          %v3160 = vpack.c.b16 %v3104, %v3100
          %v3161 = vpack.c.b16 %v3105, %v3101
          %v3162 = vpack.c.b16 %v3110, %v3106
          %v3163 = vpack.c.b16 %v3111, %v3107
          %v3164 = vpack.c.b16 %v3112, %v3108
          %v3165 = vpack.c.b16 %v3113, %v3109
          %v3166 = vpack.c.b16 %v3118, %v3114
          %v3167 = vpack.c.b16 %v3119, %v3115
          %v3168 = vpack.c.b16 %v3120, %v3116
          %v3169 = vpack.c.b16 %v3121, %v3117
          %v3170 = vpack.c.b16 %v3126, %v3122
          %v3171 = vpack.c.b16 %v3127, %v3123
          %v3172 = vpack.c.b16 %v3128, %v3124
          %v3173 = vpack.c.b16 %v3129, %v3125
          %v3174 = vpack.c.b16 %v3134, %v3130
          %v3175 = vpack.c.b16 %v3135, %v3131
          %v3176 = vpack.c.b16 %v3136, %v3132
          %v3177 = vpack.c.b16 %v3137, %v3133
          %v3178 = vpack.c.b16 %v3142, %v3138
          %v3179 = vpack.c.b16 %v3143, %v3139
          %v3180 = vpack.c.b16 %v3144, %v3140
          %v3181 = vpack.c.b16 %v3145, %v3141
          %v3182 = vpack.c.b16 %v3150, %v3146
          %v3183 = vpack.c.b16 %v3151, %v3147
          %v3184 = vpack.c.b16 %v3152, %v3148
          %v3185 = vpack.c.b16 %v3153, %v3149
          %3218 = vmatprep.subr.bf16.mxu0 %v3155
          %3219 = vmatpush1.bf16.msra.mxu0 %v3154
          %3220 = vmatprep.subr.bf16.mxu0 %v3159
          %3221 = vmatpush1.bf16.msra.mxu0 %v3158
          %3222 = vmatprep.subr.bf16.mxu0 %v3163
          %3223 = vmatpush1.bf16.msra.mxu0 %v3162
          %3224 = vmatprep.subr.bf16.mxu0 %v3167
          %3225 = vmatpush1.bf16.msra.mxu0 %v3166
          %3226 = vmatprep.subr.bf16.mxu0 %v3171
          %3227 = vmatpush1.bf16.msra.mxu0 %v3170
          %3228 = vmatprep.subr.bf16.mxu0 %v3175
          %3229 = vmatpush1.bf16.msra.mxu0 %v3174
          %3230 = vmatprep.subr.bf16.mxu0 %v3179
          %3231 = vmatpush1.bf16.msra.mxu0 %v3178
          %3232 = vmatprep.subr.bf16.mxu0 %v3183
          %3233 = vmatpush1.bf16.msra.mxu0 %v3182
          %3234 = vmatprep.subr.bf16.mxu0 0
          %3235 = vmatpush1.bf16.msra.mxu0 0
          %3236 = vmatprep.subr.bf16.mxu0 0
          %3237 = vmatpush1.bf16.msra.mxu0 0
          %3238 = vmatprep.subr.bf16.mxu0 0
          %3239 = vmatpush1.bf16.msra.mxu0 0
          %3240 = vmatprep.subr.bf16.mxu0 0
          %3241 = vmatpush1.bf16.msra.mxu0 0
          %3242 = vmatprep.subr.bf16.mxu0 0
          %3243 = vmatpush1.bf16.msra.mxu0 0
          %3244 = vmatprep.subr.bf16.mxu0 0
          %3245 = vmatpush1.bf16.msra.mxu0 0
          %3246 = vmatprep.subr.bf16.mxu0 0
          %3247 = vmatpush1.bf16.msra.mxu0 0
          %3248 = vmatprep.subr.bf16.mxu0 0
          %3249 = vmatpush1.bf16.msra.mxu0 0
          %3250 = vmatprep.mubr.bf16.mxu0 0
          %3251 = vmatmul.mubr.bf16.gmra.mrb[0].mxu0 %v3054
          %v3252 = vpop.f32.mrb[0].mxu0
          %v3253 = vadd.f32 0.0, %v3252
          %v3254 = vpop.f32.mrb[0].mxu0
          %v3255 = vadd.f32 0.0, %v3254
          %v3256 = vpop.f32.mrb[0].mxu0
          %v3257 = vadd.f32 0.0, %v3256
          %v3258 = vpop.f32.mrb[0].mxu0
          %v3259 = vadd.f32 0.0, %v3258
          %3260 = vmatprep.mubr.bf16.mxu0 0
          %3261 = vmatmul.mubr.bf16.gmra.mrb[0].mxu0 %v3055
          %v3262 = vpop.f32.mrb[0].mxu0
          %v3263 = vadd.f32 0.0, %v3262
          %v3264 = vpop.f32.mrb[0].mxu0
          %v3265 = vadd.f32 0.0, %v3264
          %v3266 = vpop.f32.mrb[0].mxu0
          %v3267 = vadd.f32 0.0, %v3266
          %v3268 = vpop.f32.mrb[0].mxu0
          %v3269 = vadd.f32 0.0, %v3268
          %3270 = vmatprep.mubr.bf16.mxu0 0
          %3271 = vmatmul.mubr.bf16.gmra.mrb[0].mxu0 %v3056
          %v3272 = vpop.f32.mrb[0].mxu0
          %v3273 = vadd.f32 0.0, %v3272
          %v3274 = vpop.f32.mrb[0].mxu0
          %v3275 = vadd.f32 0.0, %v3274
          %v3276 = vpop.f32.mrb[0].mxu0
          %v3277 = vadd.f32 0.0, %v3276
          %v3278 = vpop.f32.mrb[0].mxu0
          %v3279 = vadd.f32 0.0, %v3278
          %3280 = vmatprep.mubr.bf16.mxu0 0
          %3281 = vmatmul.mubr.bf16.gmra.mrb[0].mxu0 %v3057
          %v3282 = vpop.f32.mrb[0].mxu0
          %v3283 = vadd.f32 0.0, %v3282
          %v3284 = vpop.f32.mrb[0].mxu0
          %v3285 = vadd.f32 0.0, %v3284
          %v3286 = vpop.f32.mrb[0].mxu0
          %v3287 = vadd.f32 0.0, %v3286
          %v3288 = vpop.f32.mrb[0].mxu0
          %v3289 = vadd.f32 0.0, %v3288
          %3290 = vdwg.mxu0
          %3291 = vmatprep.subr.bf16.mxu0 %v3157
          %3292 = vmatpush1.bf16.msra.mxu0 %v3156
          %3293 = vmatprep.subr.bf16.mxu0 %v3161
          %3294 = vmatpush1.bf16.msra.mxu0 %v3160
          %3295 = vmatprep.subr.bf16.mxu0 %v3165
          %3296 = vmatpush1.bf16.msra.mxu0 %v3164
          %3297 = vmatprep.subr.bf16.mxu0 %v3169
          %3298 = vmatpush1.bf16.msra.mxu0 %v3168
          %3299 = vmatprep.subr.bf16.mxu0 %v3173
          %3300 = vmatpush1.bf16.msra.mxu0 %v3172
          %3301 = vmatprep.subr.bf16.mxu0 %v3177
          %3302 = vmatpush1.bf16.msra.mxu0 %v3176
          %3303 = vmatprep.subr.bf16.mxu0 %v3181
          %3304 = vmatpush1.bf16.msra.mxu0 %v3180
          %3305 = vmatprep.subr.bf16.mxu0 %v3185
          %3306 = vmatpush1.bf16.msra.mxu0 %v3184
          %3307 = vmatprep.subr.bf16.mxu0 0
          %3308 = vmatpush1.bf16.msra.mxu0 0
          %3309 = vmatprep.subr.bf16.mxu0 0
          %3310 = vmatpush1.bf16.msra.mxu0 0
          %3311 = vmatprep.subr.bf16.mxu0 0
          %3312 = vmatpush1.bf16.msra.mxu0 0
          %3313 = vmatprep.subr.bf16.mxu0 0
          %3314 = vmatpush1.bf16.msra.mxu0 0
          %3315 = vmatprep.subr.bf16.mxu0 0
          %3316 = vmatpush1.bf16.msra.mxu0 0
          %3317 = vmatprep.subr.bf16.mxu0 0
          %3318 = vmatpush1.bf16.msra.mxu0 0
          %3319 = vmatprep.subr.bf16.mxu0 0
          %3320 = vmatpush1.bf16.msra.mxu0 0
          %3321 = vmatprep.subr.bf16.mxu0 0
          %3322 = vmatpush1.bf16.msra.mxu0 0
          %3323 = vmatprep.mubr.bf16.mxu0 0
          %3324 = vmatmul.mubr.bf16.gmra.mrb[0].mxu0 %v3054
          %v3325 = vpop.f32.mrb[0].mxu0
          %v3326 = vadd.f32 0.0, %v3325
          %v3327 = vpop.f32.mrb[0].mxu0
          %v3328 = vadd.f32 0.0, %v3327
          %v3329 = vpop.f32.mrb[0].mxu0
          %v3330 = vadd.f32 0.0, %v3329
          %v3331 = vpop.f32.mrb[0].mxu0
          %v3332 = vadd.f32 0.0, %v3331
          %3333 = vmatprep.mubr.bf16.mxu0 0
          %3334 = vmatmul.mubr.bf16.gmra.mrb[0].mxu0 %v3055
          %v3335 = vpop.f32.mrb[0].mxu0
          %v3336 = vadd.f32 0.0, %v3335
          %v3337 = vpop.f32.mrb[0].mxu0
          %v3338 = vadd.f32 0.0, %v3337
          %v3339 = vpop.f32.mrb[0].mxu0
          %v3340 = vadd.f32 0.0, %v3339
          %v3341 = vpop.f32.mrb[0].mxu0
          %v3342 = vadd.f32 0.0, %v3341
          %3343 = vmatprep.mubr.bf16.mxu0 0
          %3344 = vmatmul.mubr.bf16.gmra.mrb[0].mxu0 %v3056
          %v3345 = vpop.f32.mrb[0].mxu0
          %v3346 = vadd.f32 0.0, %v3345
          %v3347 = vpop.f32.mrb[0].mxu0
          %v3348 = vadd.f32 0.0, %v3347
          %v3349 = vpop.f32.mrb[0].mxu0
          %v3350 = vadd.f32 0.0, %v3349
          %v3351 = vpop.f32.mrb[0].mxu0
          %v3352 = vadd.f32 0.0, %v3351
          %3353 = vmatprep.mubr.bf16.mxu0 0
          %3354 = vmatmul.mubr.bf16.gmra.mrb[0].mxu0 %v3057
          %v3355 = vpop.f32.mrb[0].mxu0
          %v3356 = vadd.f32 0.0, %v3355
          %v3357 = vpop.f32.mrb[0].mxu0
          %v3358 = vadd.f32 0.0, %v3357
          %v3359 = vpop.f32.mrb[0].mxu0
          %v3360 = vadd.f32 0.0, %v3359
          %v3361 = vpop.f32.mrb[0].mxu0
          %v3362 = vadd.f32 0.0, %v3361
          %3363 = vdwg.mxu0
          %v3396 = vunpack.c.l.b16 %v2950
          %v3397 = vunpack.c.h.b16 %v2950
          %v3398 = vunpack.c.l.b16 %v2951
          %v3399 = vunpack.c.h.b16 %v2951
          %v3400 = vunpack.c.l.b16 %v2952
          %v3401 = vunpack.c.h.b16 %v2952
          %v3402 = vunpack.c.l.b16 %v2953
          %v3403 = vunpack.c.h.b16 %v2953
          %v3404 = vunpack.c.l.b16 %v2954
          %v3405 = vunpack.c.h.b16 %v2954
          %v3406 = vunpack.c.l.b16 %v2955
          %v3407 = vunpack.c.h.b16 %v2955
          %v3408 = vunpack.c.l.b16 %v2956
          %v3409 = vunpack.c.h.b16 %v2956
          %v3410 = vunpack.c.l.b16 %v2957
          %v3411 = vunpack.c.h.b16 %v2957
          %v3412 = vunpack.c.l.b16 %v2958
          %v3413 = vunpack.c.h.b16 %v2958
          %v3414 = vunpack.c.l.b16 %v2959
          %v3415 = vunpack.c.h.b16 %v2959
          %v3416 = vunpack.c.l.b16 %v2960
          %v3417 = vunpack.c.h.b16 %v2960
          %v3418 = vunpack.c.l.b16 %v2961
          %v3419 = vunpack.c.h.b16 %v2961
          %v3420 = vunpack.c.l.b16 %v2962
          %v3421 = vunpack.c.h.b16 %v2962
          %v3422 = vunpack.c.l.b16 %v2963
          %v3423 = vunpack.c.h.b16 %v2963
          %v3424 = vunpack.c.l.b16 %v2964
          %v3425 = vunpack.c.h.b16 %v2964
          %v3426 = vunpack.c.l.b16 %v2965
          %v3427 = vunpack.c.h.b16 %v2965
          %v3428 = vunpack.c.l.b16 %v2966
          %v3429 = vunpack.c.h.b16 %v2966
          %v3430 = vunpack.c.l.b16 %v2967
          %v3431 = vunpack.c.h.b16 %v2967
          %v3432 = vunpack.c.l.b16 %v2968
          %v3433 = vunpack.c.h.b16 %v2968
          %v3434 = vunpack.c.l.b16 %v2969
          %v3435 = vunpack.c.h.b16 %v2969
          %v3436 = vunpack.c.l.b16 %v2970
          %v3437 = vunpack.c.h.b16 %v2970
          %v3438 = vunpack.c.l.b16 %v2971
          %v3439 = vunpack.c.h.b16 %v2971
          %v3440 = vunpack.c.l.b16 %v2972
          %v3441 = vunpack.c.h.b16 %v2972
          %v3442 = vunpack.c.l.b16 %v2973
          %v3443 = vunpack.c.h.b16 %v2973
          %v3444 = vunpack.c.l.b16 %v2974
          %v3445 = vunpack.c.h.b16 %v2974
          %v3446 = vunpack.c.l.b16 %v2975
          %v3447 = vunpack.c.h.b16 %v2975
          %v3448 = vunpack.c.l.b16 %v2976
          %v3449 = vunpack.c.h.b16 %v2976
          %v3450 = vunpack.c.l.b16 %v2977
          %v3451 = vunpack.c.h.b16 %v2977
          %v3452 = vunpack.c.l.b16 %v2978
          %v3453 = vunpack.c.h.b16 %v2978
          %v3454 = vunpack.c.l.b16 %v2979
          %v3455 = vunpack.c.h.b16 %v2979
          %v3456 = vunpack.c.l.b16 %v2980
          %v3457 = vunpack.c.h.b16 %v2980
          %v3458 = vunpack.c.l.b16 %v2981
          %v3459 = vunpack.c.h.b16 %v2981
          %v3460 = vpack.c.b16 %v3400, %v3396
          %v3461 = vpack.c.b16 %v3401, %v3397
          %v3462 = vpack.c.b16 %v3402, %v3398
          %v3463 = vpack.c.b16 %v3403, %v3399
          %v3464 = vpack.c.b16 %v3408, %v3404
          %v3465 = vpack.c.b16 %v3409, %v3405
          %v3466 = vpack.c.b16 %v3410, %v3406
          %v3467 = vpack.c.b16 %v3411, %v3407
          %v3468 = vpack.c.b16 %v3416, %v3412
          %v3469 = vpack.c.b16 %v3417, %v3413
          %v3470 = vpack.c.b16 %v3418, %v3414
          %v3471 = vpack.c.b16 %v3419, %v3415
          %v3472 = vpack.c.b16 %v3424, %v3420
          %v3473 = vpack.c.b16 %v3425, %v3421
          %v3474 = vpack.c.b16 %v3426, %v3422
          %v3475 = vpack.c.b16 %v3427, %v3423
          %v3476 = vpack.c.b16 %v3432, %v3428
          %v3477 = vpack.c.b16 %v3433, %v3429
          %v3478 = vpack.c.b16 %v3434, %v3430
          %v3479 = vpack.c.b16 %v3435, %v3431
          %v3480 = vpack.c.b16 %v3440, %v3436
          %v3481 = vpack.c.b16 %v3441, %v3437
          %v3482 = vpack.c.b16 %v3442, %v3438
          %v3483 = vpack.c.b16 %v3443, %v3439
          %v3484 = vpack.c.b16 %v3448, %v3444
          %v3485 = vpack.c.b16 %v3449, %v3445
          %v3486 = vpack.c.b16 %v3450, %v3446
          %v3487 = vpack.c.b16 %v3451, %v3447
          %v3488 = vpack.c.b16 %v3456, %v3452
          %v3489 = vpack.c.b16 %v3457, %v3453
          %v3490 = vpack.c.b16 %v3458, %v3454
          %v3491 = vpack.c.b16 %v3459, %v3455
          %3524 = vmatprep.subr.bf16.mxu0 %v3461
          %3525 = vmatpush1.bf16.msra.mxu0 %v3460
          %3526 = vmatprep.subr.bf16.mxu0 %v3465
          %3527 = vmatpush1.bf16.msra.mxu0 %v3464
          %3528 = vmatprep.subr.bf16.mxu0 %v3469
          %3529 = vmatpush1.bf16.msra.mxu0 %v3468
          %3530 = vmatprep.subr.bf16.mxu0 %v3473
          %3531 = vmatpush1.bf16.msra.mxu0 %v3472
          %3532 = vmatprep.subr.bf16.mxu0 %v3477
          %3533 = vmatpush1.bf16.msra.mxu0 %v3476
          %3534 = vmatprep.subr.bf16.mxu0 %v3481
          %3535 = vmatpush1.bf16.msra.mxu0 %v3480
          %3536 = vmatprep.subr.bf16.mxu0 %v3485
          %3537 = vmatpush1.bf16.msra.mxu0 %v3484
          %3538 = vmatprep.subr.bf16.mxu0 %v3489
          %3539 = vmatpush1.bf16.msra.mxu0 %v3488
          %3540 = vmatprep.subr.bf16.mxu0 0
          %3541 = vmatpush1.bf16.msra.mxu0 0
          %3542 = vmatprep.subr.bf16.mxu0 0
          %3543 = vmatpush1.bf16.msra.mxu0 0
          %3544 = vmatprep.subr.bf16.mxu0 0
          %3545 = vmatpush1.bf16.msra.mxu0 0
          %3546 = vmatprep.subr.bf16.mxu0 0
          %3547 = vmatpush1.bf16.msra.mxu0 0
          %3548 = vmatprep.subr.bf16.mxu0 0
          %3549 = vmatpush1.bf16.msra.mxu0 0
          %3550 = vmatprep.subr.bf16.mxu0 0
          %3551 = vmatpush1.bf16.msra.mxu0 0
          %3552 = vmatprep.subr.bf16.mxu0 0
          %3553 = vmatpush1.bf16.msra.mxu0 0
          %3554 = vmatprep.subr.bf16.mxu0 0
          %3555 = vmatpush1.bf16.msra.mxu0 0
          %3556 = vmatprep.mubr.bf16.mxu0 0
          %3557 = vmatmul.mubr.bf16.gmra.mrb[0].mxu0 %v3050
          %v3558 = vpop.f32.mrb[0].mxu0
          %v3559 = vadd.f32 %v3253, %v3558
          %v3560 = vpop.f32.mrb[0].mxu0
          %v3561 = vadd.f32 %v3255, %v3560
          %v3562 = vpop.f32.mrb[0].mxu0
          %v3563 = vadd.f32 %v3257, %v3562
          %v3564 = vpop.f32.mrb[0].mxu0
          %v3565 = vadd.f32 %v3259, %v3564
          %3566 = vmatprep.mubr.bf16.mxu0 0
          %3567 = vmatmul.mubr.bf16.gmra.mrb[0].mxu0 %v3051
          %v3568 = vpop.f32.mrb[0].mxu0
          %v3569 = vadd.f32 %v3263, %v3568
          %v3570 = vpop.f32.mrb[0].mxu0
          %v3571 = vadd.f32 %v3265, %v3570
          %v3572 = vpop.f32.mrb[0].mxu0
          %v3573 = vadd.f32 %v3267, %v3572
          %v3574 = vpop.f32.mrb[0].mxu0
          %v3575 = vadd.f32 %v3269, %v3574
          %3576 = vmatprep.mubr.bf16.mxu0 0
          %3577 = vmatmul.mubr.bf16.gmra.mrb[0].mxu0 %v3052
          %v3578 = vpop.f32.mrb[0].mxu0
          %v3579 = vadd.f32 %v3273, %v3578
          %v3580 = vpop.f32.mrb[0].mxu0
          %v3581 = vadd.f32 %v3275, %v3580
          %v3582 = vpop.f32.mrb[0].mxu0
          %v3583 = vadd.f32 %v3277, %v3582
          %v3584 = vpop.f32.mrb[0].mxu0
          %v3585 = vadd.f32 %v3279, %v3584
          %3586 = vmatprep.mubr.bf16.mxu0 0
          %3587 = vmatmul.mubr.bf16.gmra.mrb[0].mxu0 %v3053
          %v3588 = vpop.f32.mrb[0].mxu0
          %v3589 = vadd.f32 %v3283, %v3588
          %v3590 = vpop.f32.mrb[0].mxu0
          %v3591 = vadd.f32 %v3285, %v3590
          %v3592 = vpop.f32.mrb[0].mxu0
          %v3593 = vadd.f32 %v3287, %v3592
          %v3594 = vpop.f32.mrb[0].mxu0
          %v3595 = vadd.f32 %v3289, %v3594
          %3596 = vdwg.mxu0
          %3597 = vmatprep.subr.bf16.mxu0 %v3463
          %3598 = vmatpush1.bf16.msra.mxu0 %v3462
          %3599 = vmatprep.subr.bf16.mxu0 %v3467
          %3600 = vmatpush1.bf16.msra.mxu0 %v3466
          %3601 = vmatprep.subr.bf16.mxu0 %v3471
          %3602 = vmatpush1.bf16.msra.mxu0 %v3470
          %3603 = vmatprep.subr.bf16.mxu0 %v3475
          %3604 = vmatpush1.bf16.msra.mxu0 %v3474
          %3605 = vmatprep.subr.bf16.mxu0 %v3479
          %3606 = vmatpush1.bf16.msra.mxu0 %v3478
          %3607 = vmatprep.subr.bf16.mxu0 %v3483
          %3608 = vmatpush1.bf16.msra.mxu0 %v3482
          %3609 = vmatprep.subr.bf16.mxu0 %v3487
          %3610 = vmatpush1.bf16.msra.mxu0 %v3486
          %3611 = vmatprep.subr.bf16.mxu0 %v3491
          %3612 = vmatpush1.bf16.msra.mxu0 %v3490
          %3613 = vmatprep.subr.bf16.mxu0 0
          %3614 = vmatpush1.bf16.msra.mxu0 0
          %3615 = vmatprep.subr.bf16.mxu0 0
          %3616 = vmatpush1.bf16.msra.mxu0 0
          %3617 = vmatprep.subr.bf16.mxu0 0
          %3618 = vmatpush1.bf16.msra.mxu0 0
          %3619 = vmatprep.subr.bf16.mxu0 0
          %3620 = vmatpush1.bf16.msra.mxu0 0
          %3621 = vmatprep.subr.bf16.mxu0 0
          %3622 = vmatpush1.bf16.msra.mxu0 0
          %3623 = vmatprep.subr.bf16.mxu0 0
          %3624 = vmatpush1.bf16.msra.mxu0 0
          %3625 = vmatprep.subr.bf16.mxu0 0
          %3626 = vmatpush1.bf16.msra.mxu0 0
          %3627 = vmatprep.subr.bf16.mxu0 0
          %3628 = vmatpush1.bf16.msra.mxu0 0
          %3629 = vmatprep.mubr.bf16.mxu0 0
          %3630 = vmatmul.mubr.bf16.gmra.mrb[0].mxu0 %v3050
          %v3631 = vpop.f32.mrb[0].mxu0
          %v3632 = vadd.f32 %v3326, %v3631
          %v3633 = vpop.f32.mrb[0].mxu0
          %v3634 = vadd.f32 %v3328, %v3633
          %v3635 = vpop.f32.mrb[0].mxu0
          %v3636 = vadd.f32 %v3330, %v3635
          %v3637 = vpop.f32.mrb[0].mxu0
          %v3638 = vadd.f32 %v3332, %v3637
          %3639 = vmatprep.mubr.bf16.mxu0 0
          %3640 = vmatmul.mubr.bf16.gmra.mrb[0].mxu0 %v3051
          %v3641 = vpop.f32.mrb[0].mxu0
          %v3642 = vadd.f32 %v3336, %v3641
          %v3643 = vpop.f32.mrb[0].mxu0
          %v3644 = vadd.f32 %v3338, %v3643
          %v3645 = vpop.f32.mrb[0].mxu0
          %v3646 = vadd.f32 %v3340, %v3645
          %v3647 = vpop.f32.mrb[0].mxu0
          %v3648 = vadd.f32 %v3342, %v3647
          %3649 = vmatprep.mubr.bf16.mxu0 0
          %3650 = vmatmul.mubr.bf16.gmra.mrb[0].mxu0 %v3052
          %v3651 = vpop.f32.mrb[0].mxu0
          %v3652 = vadd.f32 %v3346, %v3651
          %v3653 = vpop.f32.mrb[0].mxu0
          %v3654 = vadd.f32 %v3348, %v3653
          %v3655 = vpop.f32.mrb[0].mxu0
          %v3656 = vadd.f32 %v3350, %v3655
          %v3657 = vpop.f32.mrb[0].mxu0
          %v3658 = vadd.f32 %v3352, %v3657
          %3659 = vmatprep.mubr.bf16.mxu0 0
          %3660 = vmatmul.mubr.bf16.gmra.mrb[0].mxu0 %v3053
          %v3661 = vpop.f32.mrb[0].mxu0
          %v3662 = vadd.f32 %v3356, %v3661
          %v3663 = vpop.f32.mrb[0].mxu0
          %v3664 = vadd.f32 %v3358, %v3663
          %v3665 = vpop.f32.mrb[0].mxu0
          %v3666 = vadd.f32 %v3360, %v3665
          %v3667 = vpop.f32.mrb[0].mxu0
          %v3668 = vadd.f32 %v3362, %v3667
          %3669 = vdwg.mxu0
          %v3671 = vlaneseq
          %v3672 = vshrl.u32 %v3671, 7
          %v3673 = vsub.s32 0, %v3672
          %v3674 = vrot.slane %v3049, %v3673
          %v3675 = vlaneseq
          %v3676 = vshrl.u32 %v3675, 7
          %v3677 = vsub.s32 1, %v3676
          %v3678 = vrot.slane %v3049, %v3677
          %v3679 = vlaneseq
          %v3680 = vshrl.u32 %v3679, 7
          %v3681 = vsub.s32 2, %v3680
          %v3682 = vrot.slane %v3049, %v3681
          %v3683 = vlaneseq
          %v3684 = vshrl.u32 %v3683, 7
          %v3685 = vsub.s32 3, %v3684
          %v3686 = vrot.slane %v3049, %v3685
          %v3691 = vadd.f32 %v3559, %v3674
          %v3692 = vadd.f32 %v3561, %v3678
          %v3693 = vadd.f32 %v3632, %v3682
          %v3694 = vadd.f32 %v3634, %v3686
          %v3695 = vadd.f32 %v3563, %v3674
          %v3696 = vadd.f32 %v3565, %v3678
          %v3697 = vadd.f32 %v3636, %v3682
          %v3698 = vadd.f32 %v3638, %v3686
          %v3699 = vadd.f32 %v3569, %v3674
          %v3700 = vadd.f32 %v3571, %v3678
          %v3701 = vadd.f32 %v3642, %v3682
          %v3702 = vadd.f32 %v3644, %v3686
          %v3703 = vadd.f32 %v3573, %v3674
          %v3704 = vadd.f32 %v3575, %v3678
          %v3705 = vadd.f32 %v3646, %v3682
          %v3706 = vadd.f32 %v3648, %v3686
          %v3707 = vadd.f32 %v3579, %v3674
          %v3708 = vadd.f32 %v3581, %v3678
          %v3709 = vadd.f32 %v3652, %v3682
          %v3710 = vadd.f32 %v3654, %v3686
          %v3711 = vadd.f32 %v3583, %v3674
          %v3712 = vadd.f32 %v3585, %v3678
          %v3713 = vadd.f32 %v3656, %v3682
          %v3714 = vadd.f32 %v3658, %v3686
          %v3715 = vadd.f32 %v3589, %v3674
          %v3716 = vadd.f32 %v3591, %v3678
          %v3717 = vadd.f32 %v3662, %v3682
          %v3718 = vadd.f32 %v3664, %v3686
          %v3719 = vadd.f32 %v3593, %v3674
          %v3720 = vadd.f32 %v3595, %v3678
          %v3721 = vadd.f32 %v3666, %v3682
          %v3722 = vadd.f32 %v3668, %v3686
          %v3755 = vunpack.c.l.b16 %v3016
          %v3756 = vunpack.c.h.b16 %v3016
          %v3757 = vunpack.c.l.b16 %v3017
          %v3758 = vunpack.c.h.b16 %v3017
          %v3759 = vunpack.c.l.b16 %v3018
          %v3760 = vunpack.c.h.b16 %v3018
          %v3761 = vunpack.c.l.b16 %v3019
          %v3762 = vunpack.c.h.b16 %v3019
          %v3763 = vunpack.c.l.b16 %v3020
          %v3764 = vunpack.c.h.b16 %v3020
          %v3765 = vunpack.c.l.b16 %v3021
          %v3766 = vunpack.c.h.b16 %v3021
          %v3767 = vunpack.c.l.b16 %v3022
          %v3768 = vunpack.c.h.b16 %v3022
          %v3769 = vunpack.c.l.b16 %v3023
          %v3770 = vunpack.c.h.b16 %v3023
          %v3771 = vunpack.c.l.b16 %v3024
          %v3772 = vunpack.c.h.b16 %v3024
          %v3773 = vunpack.c.l.b16 %v3025
          %v3774 = vunpack.c.h.b16 %v3025
          %v3775 = vunpack.c.l.b16 %v3026
          %v3776 = vunpack.c.h.b16 %v3026
          %v3777 = vunpack.c.l.b16 %v3027
          %v3778 = vunpack.c.h.b16 %v3027
          %v3779 = vunpack.c.l.b16 %v3028
          %v3780 = vunpack.c.h.b16 %v3028
          %v3781 = vunpack.c.l.b16 %v3029
          %v3782 = vunpack.c.h.b16 %v3029
          %v3783 = vunpack.c.l.b16 %v3030
          %v3784 = vunpack.c.h.b16 %v3030
          %v3785 = vunpack.c.l.b16 %v3031
          %v3786 = vunpack.c.h.b16 %v3031
          %v3787 = vunpack.c.l.b16 %v3032
          %v3788 = vunpack.c.h.b16 %v3032
          %v3789 = vunpack.c.l.b16 %v3033
          %v3790 = vunpack.c.h.b16 %v3033
          %v3791 = vunpack.c.l.b16 %v3034
          %v3792 = vunpack.c.h.b16 %v3034
          %v3793 = vunpack.c.l.b16 %v3035
          %v3794 = vunpack.c.h.b16 %v3035
          %v3795 = vunpack.c.l.b16 %v3036
          %v3796 = vunpack.c.h.b16 %v3036
          %v3797 = vunpack.c.l.b16 %v3037
          %v3798 = vunpack.c.h.b16 %v3037
          %v3799 = vunpack.c.l.b16 %v3038
          %v3800 = vunpack.c.h.b16 %v3038
          %v3801 = vunpack.c.l.b16 %v3039
          %v3802 = vunpack.c.h.b16 %v3039
          %v3803 = vunpack.c.l.b16 %v3040
          %v3804 = vunpack.c.h.b16 %v3040
          %v3805 = vunpack.c.l.b16 %v3041
          %v3806 = vunpack.c.h.b16 %v3041
          %v3807 = vunpack.c.l.b16 %v3042
          %v3808 = vunpack.c.h.b16 %v3042
          %v3809 = vunpack.c.l.b16 %v3043
          %v3810 = vunpack.c.h.b16 %v3043
          %v3811 = vunpack.c.l.b16 %v3044
          %v3812 = vunpack.c.h.b16 %v3044
          %v3813 = vunpack.c.l.b16 %v3045
          %v3814 = vunpack.c.h.b16 %v3045
          %v3815 = vunpack.c.l.b16 %v3046
          %v3816 = vunpack.c.h.b16 %v3046
          %v3817 = vunpack.c.l.b16 %v3047
          %v3818 = vunpack.c.h.b16 %v3047
          %v3819 = vpack.c.b16 %v3759, %v3755
          %v3820 = vpack.c.b16 %v3760, %v3756
          %v3821 = vpack.c.b16 %v3761, %v3757
          %v3822 = vpack.c.b16 %v3762, %v3758
          %v3823 = vpack.c.b16 %v3767, %v3763
          %v3824 = vpack.c.b16 %v3768, %v3764
          %v3825 = vpack.c.b16 %v3769, %v3765
          %v3826 = vpack.c.b16 %v3770, %v3766
          %v3827 = vpack.c.b16 %v3775, %v3771
          %v3828 = vpack.c.b16 %v3776, %v3772
          %v3829 = vpack.c.b16 %v3777, %v3773
          %v3830 = vpack.c.b16 %v3778, %v3774
          %v3831 = vpack.c.b16 %v3783, %v3779
          %v3832 = vpack.c.b16 %v3784, %v3780
          %v3833 = vpack.c.b16 %v3785, %v3781
          %v3834 = vpack.c.b16 %v3786, %v3782
          %v3835 = vpack.c.b16 %v3791, %v3787
          %v3836 = vpack.c.b16 %v3792, %v3788
          %v3837 = vpack.c.b16 %v3793, %v3789
          %v3838 = vpack.c.b16 %v3794, %v3790
          %v3839 = vpack.c.b16 %v3799, %v3795
          %v3840 = vpack.c.b16 %v3800, %v3796
          %v3841 = vpack.c.b16 %v3801, %v3797
          %v3842 = vpack.c.b16 %v3802, %v3798
          %v3843 = vpack.c.b16 %v3807, %v3803
          %v3844 = vpack.c.b16 %v3808, %v3804
          %v3845 = vpack.c.b16 %v3809, %v3805
          %v3846 = vpack.c.b16 %v3810, %v3806
          %v3847 = vpack.c.b16 %v3815, %v3811
          %v3848 = vpack.c.b16 %v3816, %v3812
          %v3849 = vpack.c.b16 %v3817, %v3813
          %v3850 = vpack.c.b16 %v3818, %v3814
          %3883 = vmatprep.subr.bf16.mxu0 %v3820
          %3884 = vmatpush1.bf16.msra.mxu0 %v3819
          %3885 = vmatprep.subr.bf16.mxu0 %v3824
          %3886 = vmatpush1.bf16.msra.mxu0 %v3823
          %3887 = vmatprep.subr.bf16.mxu0 %v3828
          %3888 = vmatpush1.bf16.msra.mxu0 %v3827
          %3889 = vmatprep.subr.bf16.mxu0 %v3832
          %3890 = vmatpush1.bf16.msra.mxu0 %v3831
          %3891 = vmatprep.subr.bf16.mxu0 %v3836
          %3892 = vmatpush1.bf16.msra.mxu0 %v3835
          %3893 = vmatprep.subr.bf16.mxu0 %v3840
          %3894 = vmatpush1.bf16.msra.mxu0 %v3839
          %3895 = vmatprep.subr.bf16.mxu0 %v3844
          %3896 = vmatpush1.bf16.msra.mxu0 %v3843
          %3897 = vmatprep.subr.bf16.mxu0 %v3848
          %3898 = vmatpush1.bf16.msra.mxu0 %v3847
          %3899 = vmatprep.subr.bf16.mxu0 0
          %3900 = vmatpush1.bf16.msra.mxu0 0
          %3901 = vmatprep.subr.bf16.mxu0 0
          %3902 = vmatpush1.bf16.msra.mxu0 0
          %3903 = vmatprep.subr.bf16.mxu0 0
          %3904 = vmatpush1.bf16.msra.mxu0 0
          %3905 = vmatprep.subr.bf16.mxu0 0
          %3906 = vmatpush1.bf16.msra.mxu0 0
          %3907 = vmatprep.subr.bf16.mxu0 0
          %3908 = vmatpush1.bf16.msra.mxu0 0
          %3909 = vmatprep.subr.bf16.mxu0 0
          %3910 = vmatpush1.bf16.msra.mxu0 0
          %3911 = vmatprep.subr.bf16.mxu0 0
          %3912 = vmatpush1.bf16.msra.mxu0 0
          %3913 = vmatprep.subr.bf16.mxu0 0
          %3914 = vmatpush1.bf16.msra.mxu0 0
          %3915 = vmatprep.mubr.bf16.mxu0 0
          %3916 = vmatmul.mubr.bf16.gmra.mrb[0].mxu0 0
          %v3917 = vpop.f32.mrb[0].mxu0
          %v3918 = vadd.f32 0.0, %v3917
          %v3919 = vpop.f32.mrb[0].mxu0
          %v3920 = vadd.f32 0.0, %v3919
          %v3921 = vpop.f32.mrb[0].mxu0
          %v3922 = vpop.f32.mrb[0].mxu0
          %3923 = vdwg.mxu0
          %3924 = vmatprep.subr.bf16.mxu0 %v3822
          %3925 = vmatpush1.bf16.msra.mxu0 %v3821
          %3926 = vmatprep.subr.bf16.mxu0 %v3826
          %3927 = vmatpush1.bf16.msra.mxu0 %v3825
          %3928 = vmatprep.subr.bf16.mxu0 %v3830
          %3929 = vmatpush1.bf16.msra.mxu0 %v3829
          %3930 = vmatprep.subr.bf16.mxu0 %v3834
          %3931 = vmatpush1.bf16.msra.mxu0 %v3833
          %3932 = vmatprep.subr.bf16.mxu0 %v3838
          %3933 = vmatpush1.bf16.msra.mxu0 %v3837
          %3934 = vmatprep.subr.bf16.mxu0 %v3842
          %3935 = vmatpush1.bf16.msra.mxu0 %v3841
          %3936 = vmatprep.subr.bf16.mxu0 %v3846
          %3937 = vmatpush1.bf16.msra.mxu0 %v3845
          %3938 = vmatprep.subr.bf16.mxu0 %v3850
          %3939 = vmatpush1.bf16.msra.mxu0 %v3849
          %3940 = vmatprep.subr.bf16.mxu0 0
          %3941 = vmatpush1.bf16.msra.mxu0 0
          %3942 = vmatprep.subr.bf16.mxu0 0
          %3943 = vmatpush1.bf16.msra.mxu0 0
          %3944 = vmatprep.subr.bf16.mxu0 0
          %3945 = vmatpush1.bf16.msra.mxu0 0
          %3946 = vmatprep.subr.bf16.mxu0 0
          %3947 = vmatpush1.bf16.msra.mxu0 0
          %3948 = vmatprep.subr.bf16.mxu0 0
          %3949 = vmatpush1.bf16.msra.mxu0 0
          %3950 = vmatprep.subr.bf16.mxu0 0
          %3951 = vmatpush1.bf16.msra.mxu0 0
          %3952 = vmatprep.subr.bf16.mxu0 0
          %3953 = vmatpush1.bf16.msra.mxu0 0
          %3954 = vmatprep.subr.bf16.mxu0 0
          %3955 = vmatpush1.bf16.msra.mxu0 0
          %3956 = vmatprep.mubr.bf16.mxu0 0
          %3957 = vmatmul.mubr.bf16.gmra.mrb[0].mxu0 0
          %v3958 = vpop.f32.mrb[0].mxu0
          %v3959 = vadd.f32 0.0, %v3958
          %v3960 = vpop.f32.mrb[0].mxu0
          %v3961 = vadd.f32 0.0, %v3960
          %v3962 = vpop.f32.mrb[0].mxu0
          %v3963 = vpop.f32.mrb[0].mxu0
          %3964 = vdwg.mxu0
          %v3965 = vadd.f32 %v3691, %v3918
          %v3966 = vadd.f32 %v3692, %v3920
          %v3967 = vadd.f32 %v3693, %v3959
          %v3968 = vadd.f32 %v3694, %v3961
          %v3969 = vxor.u32 %v3965, 2147483648
          %v3970 = vxor.u32 %v3966, 2147483648
          %v3971 = vxor.u32 %v3967, 2147483648
          %v3972 = vmul.f32 %v3969, 1.442695
          %v3973 = vpow.pop %v3972
          %v3974 = vmul.f32 %v3970, 1.442695
          %v3975 = vpow.pop %v3974
          %v3976 = vmul.f32 %v3971, 1.442695
          %v3977 = vpow.pop %v3976
          %v3978 = vadd.f32 %v3973, 1.0
          %v3979 = vadd.f32 %v3975, 1.0
          %v3980 = vadd.f32 %v3977, 1.0
          %v3981 = vrcp.pop %v3978
          %v3982 = vmul.f32 1.0, %v3981
          %v3983 = vrcp.pop %v3979
          %v3984 = vmul.f32 1.0, %v3983
          %v3985 = vrcp.pop %v3980
          %v3986 = vmul.f32 1.0, %v3985
          %v3987 = vtanh.pop %v3968
          %v3988 = vmul.f32 %v3984, 0.0
          %v3989 = vmul.f32 %v3982, %v3987
          %v3990 = vadd.f32 %v3988, %v3989
          %v3991 = vtanh.pop %v3990
          %v3992 = vmul.f32 %v3986, %v3991
          %v3993 = vpack.c.bf16 %v3992, %v3992
          %3994 = vmatprep.subr.bf16.mxu0 %v3820
          %3995 = vmatpush1.bf16.msra.mxu0 %v3819
          %3996 = vmatprep.subr.bf16.mxu0 %v3824
          %3997 = vmatpush1.bf16.msra.mxu0 %v3823
          %3998 = vmatprep.subr.bf16.mxu0 %v3828
          %3999 = vmatpush1.bf16.msra.mxu0 %v3827
          %4000 = vmatprep.subr.bf16.mxu0 %v3832
          %4001 = vmatpush1.bf16.msra.mxu0 %v3831
          %4002 = vmatprep.subr.bf16.mxu0 %v3836
          %4003 = vmatpush1.bf16.msra.mxu0 %v3835
          %4004 = vmatprep.subr.bf16.mxu0 %v3840
          %4005 = vmatpush1.bf16.msra.mxu0 %v3839
          %4006 = vmatprep.subr.bf16.mxu0 %v3844
          %4007 = vmatpush1.bf16.msra.mxu0 %v3843
          %4008 = vmatprep.subr.bf16.mxu0 %v3848
          %4009 = vmatpush1.bf16.msra.mxu0 %v3847
          %4010 = vmatprep.subr.bf16.mxu0 0
          %4011 = vmatpush1.bf16.msra.mxu0 0
          %4012 = vmatprep.subr.bf16.mxu0 0
          %4013 = vmatpush1.bf16.msra.mxu0 0
          %4014 = vmatprep.subr.bf16.mxu0 0
          %4015 = vmatpush1.bf16.msra.mxu0 0
          %4016 = vmatprep.subr.bf16.mxu0 0
          %4017 = vmatpush1.bf16.msra.mxu0 0
          %4018 = vmatprep.subr.bf16.mxu0 0
          %4019 = vmatpush1.bf16.msra.mxu0 0
          %4020 = vmatprep.subr.bf16.mxu0 0
          %4021 = vmatpush1.bf16.msra.mxu0 0
          %4022 = vmatprep.subr.bf16.mxu0 0
          %4023 = vmatpush1.bf16.msra.mxu0 0
          %4024 = vmatprep.subr.bf16.mxu0 0
          %4025 = vmatpush1.bf16.msra.mxu0 0
          %4026 = vmatprep.mubr.bf16.mxu0 0
          %4027 = vmatmul.mubr.bf16.gmra.mrb[0].mxu0 %v3993
          %v4028 = vpop.f32.mrb[0].mxu0
          %v4029 = vadd.f32 0.0, %v4028
          %v4030 = vpop.f32.mrb[0].mxu0
          %v4031 = vadd.f32 0.0, %v4030
          %v4032 = vpop.f32.mrb[0].mxu0
          %v4033 = vpop.f32.mrb[0].mxu0
          %4034 = vdwg.mxu0
          %4035 = vmatprep.subr.bf16.mxu0 %v3822
          %4036 = vmatpush1.bf16.msra.mxu0 %v3821
          %4037 = vmatprep.subr.bf16.mxu0 %v3826
          %4038 = vmatpush1.bf16.msra.mxu0 %v3825
          %4039 = vmatprep.subr.bf16.mxu0 %v3830
          %4040 = vmatpush1.bf16.msra.mxu0 %v3829
          %4041 = vmatprep.subr.bf16.mxu0 %v3834
          %4042 = vmatpush1.bf16.msra.mxu0 %v3833
          %4043 = vmatprep.subr.bf16.mxu0 %v3838
          %4044 = vmatpush1.bf16.msra.mxu0 %v3837
          %4045 = vmatprep.subr.bf16.mxu0 %v3842
          %4046 = vmatpush1.bf16.msra.mxu0 %v3841
          %4047 = vmatprep.subr.bf16.mxu0 %v3846
          %4048 = vmatpush1.bf16.msra.mxu0 %v3845
          %4049 = vmatprep.subr.bf16.mxu0 %v3850
          %4050 = vmatpush1.bf16.msra.mxu0 %v3849
          %4051 = vmatprep.subr.bf16.mxu0 0
          %4052 = vmatpush1.bf16.msra.mxu0 0
          %4053 = vmatprep.subr.bf16.mxu0 0
          %4054 = vmatpush1.bf16.msra.mxu0 0
          %4055 = vmatprep.subr.bf16.mxu0 0
          %4056 = vmatpush1.bf16.msra.mxu0 0
          %4057 = vmatprep.subr.bf16.mxu0 0
          %4058 = vmatpush1.bf16.msra.mxu0 0
          %4059 = vmatprep.subr.bf16.mxu0 0
          %4060 = vmatpush1.bf16.msra.mxu0 0
          %4061 = vmatprep.subr.bf16.mxu0 0
          %4062 = vmatpush1.bf16.msra.mxu0 0
          %4063 = vmatprep.subr.bf16.mxu0 0
          %4064 = vmatpush1.bf16.msra.mxu0 0
          %4065 = vmatprep.subr.bf16.mxu0 0
          %4066 = vmatpush1.bf16.msra.mxu0 0
          %4067 = vmatprep.mubr.bf16.mxu0 0
          %4068 = vmatmul.mubr.bf16.gmra.mrb[0].mxu0 %v3993
          %v4069 = vpop.f32.mrb[0].mxu0
          %v4070 = vadd.f32 0.0, %v4069
          %v4071 = vpop.f32.mrb[0].mxu0
          %v4072 = vadd.f32 0.0, %v4071
          %v4073 = vpop.f32.mrb[0].mxu0
          %v4074 = vpop.f32.mrb[0].mxu0
          %4075 = vdwg.mxu0
          %v4076 = vadd.f32 %v3695, %v4029
          %v4077 = vadd.f32 %v3696, %v4031
          %v4078 = vadd.f32 %v3697, %v4070
          %v4079 = vadd.f32 %v3698, %v4072
          %v4080 = vxor.u32 %v4076, 2147483648
          %v4081 = vxor.u32 %v4077, 2147483648
          %v4082 = vxor.u32 %v4078, 2147483648
          %v4083 = vmul.f32 %v4080, 1.442695
          %v4084 = vpow.pop %v4083
          %v4085 = vmul.f32 %v4081, 1.442695
          %v4086 = vpow.pop %v4085
          %v4087 = vmul.f32 %v4082, 1.442695
          %v4088 = vpow.pop %v4087
          %v4089 = vadd.f32 %v4084, 1.0
          %v4090 = vadd.f32 %v4086, 1.0
          %v4091 = vadd.f32 %v4088, 1.0
          %v4092 = vrcp.pop %v4089
          %v4093 = vmul.f32 1.0, %v4092
          %v4094 = vrcp.pop %v4090
          %v4095 = vmul.f32 1.0, %v4094
          %v4096 = vrcp.pop %v4091
          %v4097 = vmul.f32 1.0, %v4096
          %v4098 = vtanh.pop %v4079
          %v4099 = vmul.f32 %v4095, %v3990
          %v4100 = vmul.f32 %v4093, %v4098
          %v4101 = vadd.f32 %v4099, %v4100
          %v4102 = vtanh.pop %v4101
          %v4103 = vmul.f32 %v4097, %v4102
          %v4104 = vpack.c.bf16 %v4103, %v4103
          %4105 = vmatprep.subr.bf16.mxu0 %v3820
          %4106 = vmatpush1.bf16.msra.mxu0 %v3819
          %4107 = vmatprep.subr.bf16.mxu0 %v3824
          %4108 = vmatpush1.bf16.msra.mxu0 %v3823
          %4109 = vmatprep.subr.bf16.mxu0 %v3828
          %4110 = vmatpush1.bf16.msra.mxu0 %v3827
          %4111 = vmatprep.subr.bf16.mxu0 %v3832
          %4112 = vmatpush1.bf16.msra.mxu0 %v3831
          %4113 = vmatprep.subr.bf16.mxu0 %v3836
          %4114 = vmatpush1.bf16.msra.mxu0 %v3835
          %4115 = vmatprep.subr.bf16.mxu0 %v3840
          %4116 = vmatpush1.bf16.msra.mxu0 %v3839
          %4117 = vmatprep.subr.bf16.mxu0 %v3844
          %4118 = vmatpush1.bf16.msra.mxu0 %v3843
          %4119 = vmatprep.subr.bf16.mxu0 %v3848
          %4120 = vmatpush1.bf16.msra.mxu0 %v3847
          %4121 = vmatprep.subr.bf16.mxu0 0
          %4122 = vmatpush1.bf16.msra.mxu0 0
          %4123 = vmatprep.subr.bf16.mxu0 0
          %4124 = vmatpush1.bf16.msra.mxu0 0
          %4125 = vmatprep.subr.bf16.mxu0 0
          %4126 = vmatpush1.bf16.msra.mxu0 0
          %4127 = vmatprep.subr.bf16.mxu0 0
          %4128 = vmatpush1.bf16.msra.mxu0 0
          %4129 = vmatprep.subr.bf16.mxu0 0
          %4130 = vmatpush1.bf16.msra.mxu0 0
          %4131 = vmatprep.subr.bf16.mxu0 0
          %4132 = vmatpush1.bf16.msra.mxu0 0
          %4133 = vmatprep.subr.bf16.mxu0 0
          %4134 = vmatpush1.bf16.msra.mxu0 0
          %4135 = vmatprep.subr.bf16.mxu0 0
          %4136 = vmatpush1.bf16.msra.mxu0 0
          %4137 = vmatprep.mubr.bf16.mxu0 0
          %4138 = vmatmul.mubr.bf16.gmra.mrb[0].mxu0 %v4104
          %v4139 = vpop.f32.mrb[0].mxu0
          %v4140 = vadd.f32 0.0, %v4139
          %v4141 = vpop.f32.mrb[0].mxu0
          %v4142 = vadd.f32 0.0, %v4141
          %v4143 = vpop.f32.mrb[0].mxu0
          %v4144 = vpop.f32.mrb[0].mxu0
          %4145 = vdwg.mxu0
          %4146 = vmatprep.subr.bf16.mxu0 %v3822
          %4147 = vmatpush1.bf16.msra.mxu0 %v3821
          %4148 = vmatprep.subr.bf16.mxu0 %v3826
          %4149 = vmatpush1.bf16.msra.mxu0 %v3825
          %4150 = vmatprep.subr.bf16.mxu0 %v3830
          %4151 = vmatpush1.bf16.msra.mxu0 %v3829
          %4152 = vmatprep.subr.bf16.mxu0 %v3834
          %4153 = vmatpush1.bf16.msra.mxu0 %v3833
          %4154 = vmatprep.subr.bf16.mxu0 %v3838
          %4155 = vmatpush1.bf16.msra.mxu0 %v3837
          %4156 = vmatprep.subr.bf16.mxu0 %v3842
          %4157 = vmatpush1.bf16.msra.mxu0 %v3841
          %4158 = vmatprep.subr.bf16.mxu0 %v3846
          %4159 = vmatpush1.bf16.msra.mxu0 %v3845
          %4160 = vmatprep.subr.bf16.mxu0 %v3850
          %4161 = vmatpush1.bf16.msra.mxu0 %v3849
          %4162 = vmatprep.subr.bf16.mxu0 0
          %4163 = vmatpush1.bf16.msra.mxu0 0
          %4164 = vmatprep.subr.bf16.mxu0 0
          %4165 = vmatpush1.bf16.msra.mxu0 0
          %4166 = vmatprep.subr.bf16.mxu0 0
          %4167 = vmatpush1.bf16.msra.mxu0 0
          %4168 = vmatprep.subr.bf16.mxu0 0
          %4169 = vmatpush1.bf16.msra.mxu0 0
          %4170 = vmatprep.subr.bf16.mxu0 0
          %4171 = vmatpush1.bf16.msra.mxu0 0
          %4172 = vmatprep.subr.bf16.mxu0 0
          %4173 = vmatpush1.bf16.msra.mxu0 0
          %4174 = vmatprep.subr.bf16.mxu0 0
          %4175 = vmatpush1.bf16.msra.mxu0 0
          %4176 = vmatprep.subr.bf16.mxu0 0
          %4177 = vmatpush1.bf16.msra.mxu0 0
          %4178 = vmatprep.mubr.bf16.mxu0 0
          %4179 = vmatmul.mubr.bf16.gmra.mrb[0].mxu0 %v4104
          %v4180 = vpop.f32.mrb[0].mxu0
          %v4181 = vadd.f32 0.0, %v4180
          %v4182 = vpop.f32.mrb[0].mxu0
          %v4183 = vadd.f32 0.0, %v4182
          %v4184 = vpop.f32.mrb[0].mxu0
          %v4185 = vpop.f32.mrb[0].mxu0
          %4186 = vdwg.mxu0
          %v4187 = vadd.f32 %v3699, %v4140
          %v4188 = vadd.f32 %v3700, %v4142
          %v4189 = vadd.f32 %v3701, %v4181
          %v4190 = vadd.f32 %v3702, %v4183
          %v4191 = vxor.u32 %v4187, 2147483648
          %v4192 = vxor.u32 %v4188, 2147483648
          %v4193 = vxor.u32 %v4189, 2147483648
          %v4194 = vmul.f32 %v4191, 1.442695
          %v4195 = vpow.pop %v4194
          %v4196 = vmul.f32 %v4192, 1.442695
          %v4197 = vpow.pop %v4196
          %v4198 = vmul.f32 %v4193, 1.442695
          %v4199 = vpow.pop %v4198
          %v4200 = vadd.f32 %v4195, 1.0
          %v4201 = vadd.f32 %v4197, 1.0
          %v4202 = vadd.f32 %v4199, 1.0
          %v4203 = vrcp.pop %v4200
          %v4204 = vmul.f32 1.0, %v4203
          %v4205 = vrcp.pop %v4201
          %v4206 = vmul.f32 1.0, %v4205
          %v4207 = vrcp.pop %v4202
          %v4208 = vmul.f32 1.0, %v4207
          %v4209 = vtanh.pop %v4190
          %v4210 = vmul.f32 %v4206, %v4101
          %v4211 = vmul.f32 %v4204, %v4209
          %v4212 = vadd.f32 %v4210, %v4211
          %v4213 = vtanh.pop %v4212
          %v4214 = vmul.f32 %v4208, %v4213
          %v4215 = vpack.c.bf16 %v4214, %v4214
          %4216 = vmatprep.subr.bf16.mxu0 %v3820
          %4217 = vmatpush1.bf16.msra.mxu0 %v3819
          %4218 = vmatprep.subr.bf16.mxu0 %v3824
          %4219 = vmatpush1.bf16.msra.mxu0 %v3823
          %4220 = vmatprep.subr.bf16.mxu0 %v3828
          %4221 = vmatpush1.bf16.msra.mxu0 %v3827
          %4222 = vmatprep.subr.bf16.mxu0 %v3832
          %4223 = vmatpush1.bf16.msra.mxu0 %v3831
          %4224 = vmatprep.subr.bf16.mxu0 %v3836
          %4225 = vmatpush1.bf16.msra.mxu0 %v3835
          %4226 = vmatprep.subr.bf16.mxu0 %v3840
          %4227 = vmatpush1.bf16.msra.mxu0 %v3839
          %4228 = vmatprep.subr.bf16.mxu0 %v3844
          %4229 = vmatpush1.bf16.msra.mxu0 %v3843
          %4230 = vmatprep.subr.bf16.mxu0 %v3848
          %4231 = vmatpush1.bf16.msra.mxu0 %v3847
          %4232 = vmatprep.subr.bf16.mxu0 0
          %4233 = vmatpush1.bf16.msra.mxu0 0
          %4234 = vmatprep.subr.bf16.mxu0 0
          %4235 = vmatpush1.bf16.msra.mxu0 0
          %4236 = vmatprep.subr.bf16.mxu0 0
          %4237 = vmatpush1.bf16.msra.mxu0 0
          %4238 = vmatprep.subr.bf16.mxu0 0
          %4239 = vmatpush1.bf16.msra.mxu0 0
          %4240 = vmatprep.subr.bf16.mxu0 0
          %4241 = vmatpush1.bf16.msra.mxu0 0
          %4242 = vmatprep.subr.bf16.mxu0 0
          %4243 = vmatpush1.bf16.msra.mxu0 0
          %4244 = vmatprep.subr.bf16.mxu0 0
          %4245 = vmatpush1.bf16.msra.mxu0 0
          %4246 = vmatprep.subr.bf16.mxu0 0
          %4247 = vmatpush1.bf16.msra.mxu0 0
          %4248 = vmatprep.mubr.bf16.mxu0 0
          %4249 = vmatmul.mubr.bf16.gmra.mrb[0].mxu0 %v4215
          %v4250 = vpop.f32.mrb[0].mxu0
          %v4251 = vadd.f32 0.0, %v4250
          %v4252 = vpop.f32.mrb[0].mxu0
          %v4253 = vadd.f32 0.0, %v4252
          %v4254 = vpop.f32.mrb[0].mxu0
          %v4255 = vpop.f32.mrb[0].mxu0
          %4256 = vdwg.mxu0
          %4257 = vmatprep.subr.bf16.mxu0 %v3822
          %4258 = vmatpush1.bf16.msra.mxu0 %v3821
          %4259 = vmatprep.subr.bf16.mxu0 %v3826
          %4260 = vmatpush1.bf16.msra.mxu0 %v3825
          %4261 = vmatprep.subr.bf16.mxu0 %v3830
          %4262 = vmatpush1.bf16.msra.mxu0 %v3829
          %4263 = vmatprep.subr.bf16.mxu0 %v3834
          %4264 = vmatpush1.bf16.msra.mxu0 %v3833
          %4265 = vmatprep.subr.bf16.mxu0 %v3838
          %4266 = vmatpush1.bf16.msra.mxu0 %v3837
          %4267 = vmatprep.subr.bf16.mxu0 %v3842
          %4268 = vmatpush1.bf16.msra.mxu0 %v3841
          %4269 = vmatprep.subr.bf16.mxu0 %v3846
          %4270 = vmatpush1.bf16.msra.mxu0 %v3845
          %4271 = vmatprep.subr.bf16.mxu0 %v3850
          %4272 = vmatpush1.bf16.msra.mxu0 %v3849
          %4273 = vmatprep.subr.bf16.mxu0 0
          %4274 = vmatpush1.bf16.msra.mxu0 0
          %4275 = vmatprep.subr.bf16.mxu0 0
          %4276 = vmatpush1.bf16.msra.mxu0 0
          %4277 = vmatprep.subr.bf16.mxu0 0
          %4278 = vmatpush1.bf16.msra.mxu0 0
          %4279 = vmatprep.subr.bf16.mxu0 0
          %4280 = vmatpush1.bf16.msra.mxu0 0
          %4281 = vmatprep.subr.bf16.mxu0 0
          %4282 = vmatpush1.bf16.msra.mxu0 0
          %4283 = vmatprep.subr.bf16.mxu0 0
          %4284 = vmatpush1.bf16.msra.mxu0 0
          %4285 = vmatprep.subr.bf16.mxu0 0
          %4286 = vmatpush1.bf16.msra.mxu0 0
          %4287 = vmatprep.subr.bf16.mxu0 0
          %4288 = vmatpush1.bf16.msra.mxu0 0
          %4289 = vmatprep.mubr.bf16.mxu0 0
          %4290 = vmatmul.mubr.bf16.gmra.mrb[0].mxu0 %v4215
          %v4291 = vpop.f32.mrb[0].mxu0
          %v4292 = vadd.f32 0.0, %v4291
          %v4293 = vpop.f32.mrb[0].mxu0
          %v4294 = vadd.f32 0.0, %v4293
          %v4295 = vpop.f32.mrb[0].mxu0
          %v4296 = vpop.f32.mrb[0].mxu0
          %4297 = vdwg.mxu0
          %v4298 = vadd.f32 %v3703, %v4251
          %v4299 = vadd.f32 %v3704, %v4253
          %v4300 = vadd.f32 %v3705, %v4292
          %v4301 = vadd.f32 %v3706, %v4294
          %v4302 = vxor.u32 %v4298, 2147483648
          %v4303 = vxor.u32 %v4299, 2147483648
          %v4304 = vxor.u32 %v4300, 2147483648
          %v4305 = vmul.f32 %v4302, 1.442695
          %v4306 = vpow.pop %v4305
          %v4307 = vmul.f32 %v4303, 1.442695
          %v4308 = vpow.pop %v4307
          %v4309 = vmul.f32 %v4304, 1.442695
          %v4310 = vpow.pop %v4309
          %v4311 = vadd.f32 %v4306, 1.0
          %v4312 = vadd.f32 %v4308, 1.0
          %v4313 = vadd.f32 %v4310, 1.0
          %v4314 = vrcp.pop %v4311
          %v4315 = vmul.f32 1.0, %v4314
          %v4316 = vrcp.pop %v4312
          %v4317 = vmul.f32 1.0, %v4316
          %v4318 = vrcp.pop %v4313
          %v4319 = vmul.f32 1.0, %v4318
          %v4320 = vtanh.pop %v4301
          %v4321 = vmul.f32 %v4317, %v4212
          %v4322 = vmul.f32 %v4315, %v4320
          %v4323 = vadd.f32 %v4321, %v4322
          %v4324 = vtanh.pop %v4323
          %v4325 = vmul.f32 %v4319, %v4324
          %v4326 = vpack.c.bf16 %v4325, %v4325
          %4327 = vmatprep.subr.bf16.mxu0 %v3820
          %4328 = vmatpush1.bf16.msra.mxu0 %v3819
          %4329 = vmatprep.subr.bf16.mxu0 %v3824
          %4330 = vmatpush1.bf16.msra.mxu0 %v3823
          %4331 = vmatprep.subr.bf16.mxu0 %v3828
          %4332 = vmatpush1.bf16.msra.mxu0 %v3827
          %4333 = vmatprep.subr.bf16.mxu0 %v3832
          %4334 = vmatpush1.bf16.msra.mxu0 %v3831
          %4335 = vmatprep.subr.bf16.mxu0 %v3836
          %4336 = vmatpush1.bf16.msra.mxu0 %v3835
          %4337 = vmatprep.subr.bf16.mxu0 %v3840
          %4338 = vmatpush1.bf16.msra.mxu0 %v3839
          %4339 = vmatprep.subr.bf16.mxu0 %v3844
          %4340 = vmatpush1.bf16.msra.mxu0 %v3843
          %4341 = vmatprep.subr.bf16.mxu0 %v3848
          %4342 = vmatpush1.bf16.msra.mxu0 %v3847
          %4343 = vmatprep.subr.bf16.mxu0 0
          %4344 = vmatpush1.bf16.msra.mxu0 0
          %4345 = vmatprep.subr.bf16.mxu0 0
          %4346 = vmatpush1.bf16.msra.mxu0 0
          %4347 = vmatprep.subr.bf16.mxu0 0
          %4348 = vmatpush1.bf16.msra.mxu0 0
          %4349 = vmatprep.subr.bf16.mxu0 0
          %4350 = vmatpush1.bf16.msra.mxu0 0
          %4351 = vmatprep.subr.bf16.mxu0 0
          %4352 = vmatpush1.bf16.msra.mxu0 0
          %4353 = vmatprep.subr.bf16.mxu0 0
          %4354 = vmatpush1.bf16.msra.mxu0 0
          %4355 = vmatprep.subr.bf16.mxu0 0
          %4356 = vmatpush1.bf16.msra.mxu0 0
          %4357 = vmatprep.subr.bf16.mxu0 0
          %4358 = vmatpush1.bf16.msra.mxu0 0
          %4359 = vmatprep.mubr.bf16.mxu0 0
          %4360 = vmatmul.mubr.bf16.gmra.mrb[0].mxu0 %v4326
          %v4361 = vpop.f32.mrb[0].mxu0
          %v4362 = vadd.f32 0.0, %v4361
          %v4363 = vpop.f32.mrb[0].mxu0
          %v4364 = vadd.f32 0.0, %v4363
          %v4365 = vpop.f32.mrb[0].mxu0
          %v4366 = vpop.f32.mrb[0].mxu0
          %4367 = vdwg.mxu0
          %4368 = vmatprep.subr.bf16.mxu0 %v3822
          %4369 = vmatpush1.bf16.msra.mxu0 %v3821
          %4370 = vmatprep.subr.bf16.mxu0 %v3826
          %4371 = vmatpush1.bf16.msra.mxu0 %v3825
          %4372 = vmatprep.subr.bf16.mxu0 %v3830
          %4373 = vmatpush1.bf16.msra.mxu0 %v3829
          %4374 = vmatprep.subr.bf16.mxu0 %v3834
          %4375 = vmatpush1.bf16.msra.mxu0 %v3833
          %4376 = vmatprep.subr.bf16.mxu0 %v3838
          %4377 = vmatpush1.bf16.msra.mxu0 %v3837
          %4378 = vmatprep.subr.bf16.mxu0 %v3842
          %4379 = vmatpush1.bf16.msra.mxu0 %v3841
          %4380 = vmatprep.subr.bf16.mxu0 %v3846
          %4381 = vmatpush1.bf16.msra.mxu0 %v3845
          %4382 = vmatprep.subr.bf16.mxu0 %v3850
          %4383 = vmatpush1.bf16.msra.mxu0 %v3849
          %4384 = vmatprep.subr.bf16.mxu0 0
          %4385 = vmatpush1.bf16.msra.mxu0 0
          %4386 = vmatprep.subr.bf16.mxu0 0
          %4387 = vmatpush1.bf16.msra.mxu0 0
          %4388 = vmatprep.subr.bf16.mxu0 0
          %4389 = vmatpush1.bf16.msra.mxu0 0
          %4390 = vmatprep.subr.bf16.mxu0 0
          %4391 = vmatpush1.bf16.msra.mxu0 0
          %4392 = vmatprep.subr.bf16.mxu0 0
          %4393 = vmatpush1.bf16.msra.mxu0 0
          %4394 = vmatprep.subr.bf16.mxu0 0
          %4395 = vmatpush1.bf16.msra.mxu0 0
          %4396 = vmatprep.subr.bf16.mxu0 0
          %4397 = vmatpush1.bf16.msra.mxu0 0
          %4398 = vmatprep.subr.bf16.mxu0 0
          %4399 = vmatpush1.bf16.msra.mxu0 0
          %4400 = vmatprep.mubr.bf16.mxu0 0
          %4401 = vmatmul.mubr.bf16.gmra.mrb[0].mxu0 %v4326
          %v4402 = vpop.f32.mrb[0].mxu0
          %v4403 = vadd.f32 0.0, %v4402
          %v4404 = vpop.f32.mrb[0].mxu0
          %v4405 = vadd.f32 0.0, %v4404
          %v4406 = vpop.f32.mrb[0].mxu0
          %v4407 = vpop.f32.mrb[0].mxu0
          %4408 = vdwg.mxu0
          %v4409 = vadd.f32 %v3707, %v4362
          %v4410 = vadd.f32 %v3708, %v4364
          %v4411 = vadd.f32 %v3709, %v4403
          %v4412 = vadd.f32 %v3710, %v4405
          %v4413 = vxor.u32 %v4409, 2147483648
          %v4414 = vxor.u32 %v4410, 2147483648
          %v4415 = vxor.u32 %v4411, 2147483648
          %v4416 = vmul.f32 %v4413, 1.442695
          %v4417 = vpow.pop %v4416
          %v4418 = vmul.f32 %v4414, 1.442695
          %v4419 = vpow.pop %v4418
          %v4420 = vmul.f32 %v4415, 1.442695
          %v4421 = vpow.pop %v4420
          %v4422 = vadd.f32 %v4417, 1.0
          %v4423 = vadd.f32 %v4419, 1.0
          %v4424 = vadd.f32 %v4421, 1.0
          %v4425 = vrcp.pop %v4422
          %v4426 = vmul.f32 1.0, %v4425
          %v4427 = vrcp.pop %v4423
          %v4428 = vmul.f32 1.0, %v4427
          %v4429 = vrcp.pop %v4424
          %v4430 = vmul.f32 1.0, %v4429
          %v4431 = vtanh.pop %v4412
          %v4432 = vmul.f32 %v4428, %v4323
          %v4433 = vmul.f32 %v4426, %v4431
          %v4434 = vadd.f32 %v4432, %v4433
          %v4435 = vtanh.pop %v4434
          %v4436 = vmul.f32 %v4430, %v4435
          %v4437 = vpack.c.bf16 %v4436, %v4436
          %4438 = vmatprep.subr.bf16.mxu0 %v3820
          %4439 = vmatpush1.bf16.msra.mxu0 %v3819
          %4440 = vmatprep.subr.bf16.mxu0 %v3824
          %4441 = vmatpush1.bf16.msra.mxu0 %v3823
          %4442 = vmatprep.subr.bf16.mxu0 %v3828
          %4443 = vmatpush1.bf16.msra.mxu0 %v3827
          %4444 = vmatprep.subr.bf16.mxu0 %v3832
          %4445 = vmatpush1.bf16.msra.mxu0 %v3831
          %4446 = vmatprep.subr.bf16.mxu0 %v3836
          %4447 = vmatpush1.bf16.msra.mxu0 %v3835
          %4448 = vmatprep.subr.bf16.mxu0 %v3840
          %4449 = vmatpush1.bf16.msra.mxu0 %v3839
          %4450 = vmatprep.subr.bf16.mxu0 %v3844
          %4451 = vmatpush1.bf16.msra.mxu0 %v3843
          %4452 = vmatprep.subr.bf16.mxu0 %v3848
          %4453 = vmatpush1.bf16.msra.mxu0 %v3847
          %4454 = vmatprep.subr.bf16.mxu0 0
          %4455 = vmatpush1.bf16.msra.mxu0 0
          %4456 = vmatprep.subr.bf16.mxu0 0
          %4457 = vmatpush1.bf16.msra.mxu0 0
          %4458 = vmatprep.subr.bf16.mxu0 0
          %4459 = vmatpush1.bf16.msra.mxu0 0
          %4460 = vmatprep.subr.bf16.mxu0 0
          %4461 = vmatpush1.bf16.msra.mxu0 0
          %4462 = vmatprep.subr.bf16.mxu0 0
          %4463 = vmatpush1.bf16.msra.mxu0 0
          %4464 = vmatprep.subr.bf16.mxu0 0
          %4465 = vmatpush1.bf16.msra.mxu0 0
          %4466 = vmatprep.subr.bf16.mxu0 0
          %4467 = vmatpush1.bf16.msra.mxu0 0
          %4468 = vmatprep.subr.bf16.mxu0 0
          %4469 = vmatpush1.bf16.msra.mxu0 0
          %4470 = vmatprep.mubr.bf16.mxu0 0
          %4471 = vmatmul.mubr.bf16.gmra.mrb[0].mxu0 %v4437
          %v4472 = vpop.f32.mrb[0].mxu0
          %v4473 = vadd.f32 0.0, %v4472
          %v4474 = vpop.f32.mrb[0].mxu0
          %v4475 = vadd.f32 0.0, %v4474
          %v4476 = vpop.f32.mrb[0].mxu0
          %v4477 = vpop.f32.mrb[0].mxu0
          %4478 = vdwg.mxu0
          %4479 = vmatprep.subr.bf16.mxu0 %v3822
          %4480 = vmatpush1.bf16.msra.mxu0 %v3821
          %4481 = vmatprep.subr.bf16.mxu0 %v3826
          %4482 = vmatpush1.bf16.msra.mxu0 %v3825
          %4483 = vmatprep.subr.bf16.mxu0 %v3830
          %4484 = vmatpush1.bf16.msra.mxu0 %v3829
          %4485 = vmatprep.subr.bf16.mxu0 %v3834
          %4486 = vmatpush1.bf16.msra.mxu0 %v3833
          %4487 = vmatprep.subr.bf16.mxu0 %v3838
          %4488 = vmatpush1.bf16.msra.mxu0 %v3837
          %4489 = vmatprep.subr.bf16.mxu0 %v3842
          %4490 = vmatpush1.bf16.msra.mxu0 %v3841
          %4491 = vmatprep.subr.bf16.mxu0 %v3846
          %4492 = vmatpush1.bf16.msra.mxu0 %v3845
          %4493 = vmatprep.subr.bf16.mxu0 %v3850
          %4494 = vmatpush1.bf16.msra.mxu0 %v3849
          %4495 = vmatprep.subr.bf16.mxu0 0
          %4496 = vmatpush1.bf16.msra.mxu0 0
          %4497 = vmatprep.subr.bf16.mxu0 0
          %4498 = vmatpush1.bf16.msra.mxu0 0
          %4499 = vmatprep.subr.bf16.mxu0 0
          %4500 = vmatpush1.bf16.msra.mxu0 0
          %4501 = vmatprep.subr.bf16.mxu0 0
          %4502 = vmatpush1.bf16.msra.mxu0 0
          %4503 = vmatprep.subr.bf16.mxu0 0
          %4504 = vmatpush1.bf16.msra.mxu0 0
          %4505 = vmatprep.subr.bf16.mxu0 0
          %4506 = vmatpush1.bf16.msra.mxu0 0
          %4507 = vmatprep.subr.bf16.mxu0 0
          %4508 = vmatpush1.bf16.msra.mxu0 0
          %4509 = vmatprep.subr.bf16.mxu0 0
          %4510 = vmatpush1.bf16.msra.mxu0 0
          %4511 = vmatprep.mubr.bf16.mxu0 0
          %4512 = vmatmul.mubr.bf16.gmra.mrb[0].mxu0 %v4437
          %v4513 = vpop.f32.mrb[0].mxu0
          %v4514 = vadd.f32 0.0, %v4513
          %v4515 = vpop.f32.mrb[0].mxu0
          %v4516 = vadd.f32 0.0, %v4515
          %v4517 = vpop.f32.mrb[0].mxu0
          %v4518 = vpop.f32.mrb[0].mxu0
          %4519 = vdwg.mxu0
          %v4520 = vadd.f32 %v3711, %v4473
          %v4521 = vadd.f32 %v3712, %v4475
          %v4522 = vadd.f32 %v3713, %v4514
          %v4523 = vadd.f32 %v3714, %v4516
          %v4524 = vxor.u32 %v4520, 2147483648
          %v4525 = vxor.u32 %v4521, 2147483648
          %v4526 = vxor.u32 %v4522, 2147483648
          %v4527 = vmul.f32 %v4524, 1.442695
          %v4528 = vpow.pop %v4527
          %v4529 = vmul.f32 %v4525, 1.442695
          %v4530 = vpow.pop %v4529
          %v4531 = vmul.f32 %v4526, 1.442695
          %v4532 = vpow.pop %v4531
          %v4533 = vadd.f32 %v4528, 1.0
          %v4534 = vadd.f32 %v4530, 1.0
          %v4535 = vadd.f32 %v4532, 1.0
          %v4536 = vrcp.pop %v4533
          %v4537 = vmul.f32 1.0, %v4536
          %v4538 = vrcp.pop %v4534
          %v4539 = vmul.f32 1.0, %v4538
          %v4540 = vrcp.pop %v4535
          %v4541 = vmul.f32 1.0, %v4540
          %v4542 = vtanh.pop %v4523
          %v4543 = vmul.f32 %v4539, %v4434
          %v4544 = vmul.f32 %v4537, %v4542
          %v4545 = vadd.f32 %v4543, %v4544
          %v4546 = vtanh.pop %v4545
          %v4547 = vmul.f32 %v4541, %v4546
          %v4548 = vpack.c.bf16 %v4547, %v4547
          %4549 = vmatprep.subr.bf16.mxu0 %v3820
          %4550 = vmatpush1.bf16.msra.mxu0 %v3819
          %4551 = vmatprep.subr.bf16.mxu0 %v3824
          %4552 = vmatpush1.bf16.msra.mxu0 %v3823
          %4553 = vmatprep.subr.bf16.mxu0 %v3828
          %4554 = vmatpush1.bf16.msra.mxu0 %v3827
          %4555 = vmatprep.subr.bf16.mxu0 %v3832
          %4556 = vmatpush1.bf16.msra.mxu0 %v3831
          %4557 = vmatprep.subr.bf16.mxu0 %v3836
          %4558 = vmatpush1.bf16.msra.mxu0 %v3835
          %4559 = vmatprep.subr.bf16.mxu0 %v3840
          %4560 = vmatpush1.bf16.msra.mxu0 %v3839
          %4561 = vmatprep.subr.bf16.mxu0 %v3844
          %4562 = vmatpush1.bf16.msra.mxu0 %v3843
          %4563 = vmatprep.subr.bf16.mxu0 %v3848
          %4564 = vmatpush1.bf16.msra.mxu0 %v3847
          %4565 = vmatprep.subr.bf16.mxu0 0
          %4566 = vmatpush1.bf16.msra.mxu0 0
          %4567 = vmatprep.subr.bf16.mxu0 0
          %4568 = vmatpush1.bf16.msra.mxu0 0
          %4569 = vmatprep.subr.bf16.mxu0 0
          %4570 = vmatpush1.bf16.msra.mxu0 0
          %4571 = vmatprep.subr.bf16.mxu0 0
          %4572 = vmatpush1.bf16.msra.mxu0 0
          %4573 = vmatprep.subr.bf16.mxu0 0
          %4574 = vmatpush1.bf16.msra.mxu0 0
          %4575 = vmatprep.subr.bf16.mxu0 0
          %4576 = vmatpush1.bf16.msra.mxu0 0
          %4577 = vmatprep.subr.bf16.mxu0 0
          %4578 = vmatpush1.bf16.msra.mxu0 0
          %4579 = vmatprep.subr.bf16.mxu0 0
          %4580 = vmatpush1.bf16.msra.mxu0 0
          %4581 = vmatprep.mubr.bf16.mxu0 0
          %4582 = vmatmul.mubr.bf16.gmra.mrb[0].mxu0 %v4548
          %v4583 = vpop.f32.mrb[0].mxu0
          %v4584 = vadd.f32 0.0, %v4583
          %v4585 = vpop.f32.mrb[0].mxu0
          %v4586 = vadd.f32 0.0, %v4585
          %v4587 = vpop.f32.mrb[0].mxu0
          %v4588 = vpop.f32.mrb[0].mxu0
          %4589 = vdwg.mxu0
          %4590 = vmatprep.subr.bf16.mxu0 %v3822
          %4591 = vmatpush1.bf16.msra.mxu0 %v3821
          %4592 = vmatprep.subr.bf16.mxu0 %v3826
          %4593 = vmatpush1.bf16.msra.mxu0 %v3825
          %4594 = vmatprep.subr.bf16.mxu0 %v3830
          %4595 = vmatpush1.bf16.msra.mxu0 %v3829
          %4596 = vmatprep.subr.bf16.mxu0 %v3834
          %4597 = vmatpush1.bf16.msra.mxu0 %v3833
          %4598 = vmatprep.subr.bf16.mxu0 %v3838
          %4599 = vmatpush1.bf16.msra.mxu0 %v3837
          %4600 = vmatprep.subr.bf16.mxu0 %v3842
          %4601 = vmatpush1.bf16.msra.mxu0 %v3841
          %4602 = vmatprep.subr.bf16.mxu0 %v3846
          %4603 = vmatpush1.bf16.msra.mxu0 %v3845
          %4604 = vmatprep.subr.bf16.mxu0 %v3850
          %4605 = vmatpush1.bf16.msra.mxu0 %v3849
          %4606 = vmatprep.subr.bf16.mxu0 0
          %4607 = vmatpush1.bf16.msra.mxu0 0
          %4608 = vmatprep.subr.bf16.mxu0 0
          %4609 = vmatpush1.bf16.msra.mxu0 0
          %4610 = vmatprep.subr.bf16.mxu0 0
          %4611 = vmatpush1.bf16.msra.mxu0 0
          %4612 = vmatprep.subr.bf16.mxu0 0
          %4613 = vmatpush1.bf16.msra.mxu0 0
          %4614 = vmatprep.subr.bf16.mxu0 0
          %4615 = vmatpush1.bf16.msra.mxu0 0
          %4616 = vmatprep.subr.bf16.mxu0 0
          %4617 = vmatpush1.bf16.msra.mxu0 0
          %4618 = vmatprep.subr.bf16.mxu0 0
          %4619 = vmatpush1.bf16.msra.mxu0 0
          %4620 = vmatprep.subr.bf16.mxu0 0
          %4621 = vmatpush1.bf16.msra.mxu0 0
          %4622 = vmatprep.mubr.bf16.mxu0 0
          %4623 = vmatmul.mubr.bf16.gmra.mrb[0].mxu0 %v4548
          %v4624 = vpop.f32.mrb[0].mxu0
          %v4625 = vadd.f32 0.0, %v4624
          %v4626 = vpop.f32.mrb[0].mxu0
          %v4627 = vadd.f32 0.0, %v4626
          %v4628 = vpop.f32.mrb[0].mxu0
          %v4629 = vpop.f32.mrb[0].mxu0
          %4630 = vdwg.mxu0
          %v4631 = vadd.f32 %v3715, %v4584
          %v4632 = vadd.f32 %v3716, %v4586
          %v4633 = vadd.f32 %v3717, %v4625
          %v4634 = vadd.f32 %v3718, %v4627
          %v4635 = vxor.u32 %v4631, 2147483648
          %v4636 = vxor.u32 %v4632, 2147483648
          %v4637 = vxor.u32 %v4633, 2147483648
          %v4638 = vmul.f32 %v4635, 1.442695
          %v4639 = vpow.pop %v4638
          %v4640 = vmul.f32 %v4636, 1.442695
          %v4641 = vpow.pop %v4640
          %v4642 = vmul.f32 %v4637, 1.442695
          %v4643 = vpow.pop %v4642
          %v4644 = vadd.f32 %v4639, 1.0
          %v4645 = vadd.f32 %v4641, 1.0
          %v4646 = vadd.f32 %v4643, 1.0
          %v4647 = vrcp.pop %v4644
          %v4648 = vmul.f32 1.0, %v4647
          %v4649 = vrcp.pop %v4645
          %v4650 = vmul.f32 1.0, %v4649
          %v4651 = vrcp.pop %v4646
          %v4652 = vmul.f32 1.0, %v4651
          %v4653 = vtanh.pop %v4634
          %v4654 = vmul.f32 %v4650, %v4545
          %v4655 = vmul.f32 %v4648, %v4653
          %v4656 = vadd.f32 %v4654, %v4655
          %v4657 = vtanh.pop %v4656
          %v4658 = vmul.f32 %v4652, %v4657
          %v4659 = vpack.c.bf16 %v4658, %v4658
          %4660 = vmatprep.subr.bf16.mxu0 %v3820
          %4661 = vmatpush1.bf16.msra.mxu0 %v3819
          %4662 = vmatprep.subr.bf16.mxu0 %v3824
          %4663 = vmatpush1.bf16.msra.mxu0 %v3823
          %4664 = vmatprep.subr.bf16.mxu0 %v3828
          %4665 = vmatpush1.bf16.msra.mxu0 %v3827
          %4666 = vmatprep.subr.bf16.mxu0 %v3832
          %4667 = vmatpush1.bf16.msra.mxu0 %v3831
          %4668 = vmatprep.subr.bf16.mxu0 %v3836
          %4669 = vmatpush1.bf16.msra.mxu0 %v3835
          %4670 = vmatprep.subr.bf16.mxu0 %v3840
          %4671 = vmatpush1.bf16.msra.mxu0 %v3839
          %4672 = vmatprep.subr.bf16.mxu0 %v3844
          %4673 = vmatpush1.bf16.msra.mxu0 %v3843
          %4674 = vmatprep.subr.bf16.mxu0 %v3848
          %4675 = vmatpush1.bf16.msra.mxu0 %v3847
          %4676 = vmatprep.subr.bf16.mxu0 0
          %4677 = vmatpush1.bf16.msra.mxu0 0
          %4678 = vmatprep.subr.bf16.mxu0 0
          %4679 = vmatpush1.bf16.msra.mxu0 0
          %4680 = vmatprep.subr.bf16.mxu0 0
          %4681 = vmatpush1.bf16.msra.mxu0 0
          %4682 = vmatprep.subr.bf16.mxu0 0
          %4683 = vmatpush1.bf16.msra.mxu0 0
          %4684 = vmatprep.subr.bf16.mxu0 0
          %4685 = vmatpush1.bf16.msra.mxu0 0
          %4686 = vmatprep.subr.bf16.mxu0 0
          %4687 = vmatpush1.bf16.msra.mxu0 0
          %4688 = vmatprep.subr.bf16.mxu0 0
          %4689 = vmatpush1.bf16.msra.mxu0 0
          %4690 = vmatprep.subr.bf16.mxu0 0
          %4691 = vmatpush1.bf16.msra.mxu0 0
          %4692 = vmatprep.mubr.bf16.mxu0 0
          %4693 = vmatmul.mubr.bf16.gmra.mrb[0].mxu0 %v4659
          %v4694 = vpop.f32.mrb[0].mxu0
          %v4695 = vadd.f32 0.0, %v4694
          %v4696 = vpop.f32.mrb[0].mxu0
          %v4697 = vadd.f32 0.0, %v4696
          %v4698 = vpop.f32.mrb[0].mxu0
          %v4699 = vpop.f32.mrb[0].mxu0
          %4700 = vdwg.mxu0
          %4701 = vmatprep.subr.bf16.mxu0 %v3822
          %4702 = vmatpush1.bf16.msra.mxu0 %v3821
          %4703 = vmatprep.subr.bf16.mxu0 %v3826
          %4704 = vmatpush1.bf16.msra.mxu0 %v3825
          %4705 = vmatprep.subr.bf16.mxu0 %v3830
          %4706 = vmatpush1.bf16.msra.mxu0 %v3829
          %4707 = vmatprep.subr.bf16.mxu0 %v3834
          %4708 = vmatpush1.bf16.msra.mxu0 %v3833
          %4709 = vmatprep.subr.bf16.mxu0 %v3838
          %4710 = vmatpush1.bf16.msra.mxu0 %v3837
          %4711 = vmatprep.subr.bf16.mxu0 %v3842
          %4712 = vmatpush1.bf16.msra.mxu0 %v3841
          %4713 = vmatprep.subr.bf16.mxu0 %v3846
          %4714 = vmatpush1.bf16.msra.mxu0 %v3845
          %4715 = vmatprep.subr.bf16.mxu0 %v3850
          %4716 = vmatpush1.bf16.msra.mxu0 %v3849
          %4717 = vmatprep.subr.bf16.mxu0 0
          %4718 = vmatpush1.bf16.msra.mxu0 0
          %4719 = vmatprep.subr.bf16.mxu0 0
          %4720 = vmatpush1.bf16.msra.mxu0 0
          %4721 = vmatprep.subr.bf16.mxu0 0
          %4722 = vmatpush1.bf16.msra.mxu0 0
          %4723 = vmatprep.subr.bf16.mxu0 0
          %4724 = vmatpush1.bf16.msra.mxu0 0
          %4725 = vmatprep.subr.bf16.mxu0 0
          %4726 = vmatpush1.bf16.msra.mxu0 0
          %4727 = vmatprep.subr.bf16.mxu0 0
          %4728 = vmatpush1.bf16.msra.mxu0 0
          %4729 = vmatprep.subr.bf16.mxu0 0
          %4730 = vmatpush1.bf16.msra.mxu0 0
          %4731 = vmatprep.subr.bf16.mxu0 0
          %4732 = vmatpush1.bf16.msra.mxu0 0
          %4733 = vmatprep.mubr.bf16.mxu0 0
          %4734 = vmatmul.mubr.bf16.gmra.mrb[0].mxu0 %v4659
          %v4735 = vpop.f32.mrb[0].mxu0
          %v4736 = vadd.f32 0.0, %v4735
          %v4737 = vpop.f32.mrb[0].mxu0
          %v4738 = vadd.f32 0.0, %v4737
          %v4739 = vpop.f32.mrb[0].mxu0
          %v4740 = vpop.f32.mrb[0].mxu0
          %4741 = vdwg.mxu0
          %v4742 = vadd.f32 %v3719, %v4695
          %v4743 = vadd.f32 %v3720, %v4697
          %v4744 = vadd.f32 %v3721, %v4736
          %v4745 = vadd.f32 %v3722, %v4738
          %v4746 = vxor.u32 %v4742, 2147483648
          %v4747 = vxor.u32 %v4743, 2147483648
          %v4748 = vxor.u32 %v4744, 2147483648
          %v4749 = vmul.f32 %v4746, 1.442695
          %v4750 = vpow.pop %v4749
          %v4751 = vmul.f32 %v4747, 1.442695
          %v4752 = vpow.pop %v4751
          %v4753 = vmul.f32 %v4748, 1.442695
          %v4754 = vpow.pop %v4753
          %v4755 = vadd.f32 %v4750, 1.0
          %v4756 = vadd.f32 %v4752, 1.0
          %v4757 = vadd.f32 %v4754, 1.0
          %v4758 = vrcp.pop %v4755
          %v4759 = vmul.f32 1.0, %v4758
          %v4760 = vrcp.pop %v4756
          %v4761 = vmul.f32 1.0, %v4760
          %v4762 = vrcp.pop %v4757
          %v4763 = vmul.f32 1.0, %v4762
          %v4764 = vtanh.pop %v4745
          %v4765 = vmul.f32 %v4761, %v4656
          %v4766 = vmul.f32 %v4759, %v4764
          %v4767 = vadd.f32 %v4765, %v4766
          %v4768 = vtanh.pop %v4767
          %v4769 = vmul.f32 %v4763, %v4768
          %v4770 = vlaneseq
          %v4771 = vand.u32 %v4770, 127
          %vm4772 = vcmp.lt.s32.totalorder %v4771, 64
          %v4773 = vsel %vm4772, %v4769, %v3992
          %v4774 = vpack.c.bf16 %v4773, %v4773
          %v4775 = vld [vmem:[%s5] sm:$0xf]
          %v4776 = vld [vmem:[%s5 + $0x4] sm:$0xf]
          %v4777 = vld [vmem:[%s5 + $0x8] sm:$0xf]
          %v4778 = vld [vmem:[%s5 + $0xc] sm:$0xf]
          %v4779 = vld [vmem:[%s5 + $0x10] sm:$0xf]
          %v4780 = vld [vmem:[%s5 + $0x14] sm:$0xf]
          %v4781 = vld [vmem:[%s5 + $0x18] sm:$0xf]
          %v4782 = vld [vmem:[%s5 + $0x1c] sm:$0xf]
          %v4783 = vld [vmem:[%s5 + $0x20] sm:$0xf]
          %v4784 = vld [vmem:[%s5 + $0x24] sm:$0xf]
          %v4785 = vld [vmem:[%s5 + $0x28] sm:$0xf]
          %v4786 = vld [vmem:[%s5 + $0x2c] sm:$0xf]
          %v4787 = vld [vmem:[%s5 + $0x30] sm:$0xf]
          %v4788 = vld [vmem:[%s5 + $0x34] sm:$0xf]
          %v4789 = vld [vmem:[%s5 + $0x38] sm:$0xf]
          %v4790 = vld [vmem:[%s5 + $0x3c] sm:$0xf]
          %v4791 = vld [vmem:[#allocation9] sm:$0x1]
          %v4793 = vlaneseq
          %v4794 = vshrl.u32 %v4793, 7
          %v4795 = vsub.s32 0, %v4794
          %v4796 = vrot.slane %v4791, %v4795
          %v4814 = vunpack.c.l.b16 %v4775
          %v4815 = vunpack.c.l.b16 %v4776
          %v4816 = vunpack.c.l.b16 %v4777
          %v4817 = vunpack.c.l.b16 %v4778
          %v4818 = vunpack.c.l.b16 %v4779
          %v4819 = vunpack.c.l.b16 %v4780
          %v4820 = vunpack.c.l.b16 %v4781
          %v4821 = vunpack.c.l.b16 %v4782
          %v4822 = vunpack.c.l.b16 %v4783
          %v4823 = vunpack.c.l.b16 %v4784
          %v4824 = vunpack.c.l.b16 %v4785
          %v4825 = vunpack.c.l.b16 %v4786
          %v4826 = vunpack.c.l.b16 %v4787
          %v4827 = vunpack.c.l.b16 %v4788
          %v4828 = vunpack.c.l.b16 %v4789
          %v4829 = vunpack.c.l.b16 %v4790
          %v4830 = vpack.c.b16 %v4815, %v4814
          %v4831 = vpack.c.b16 %v4817, %v4816
          %v4832 = vpack.c.b16 %v4819, %v4818
          %v4833 = vpack.c.b16 %v4821, %v4820
          %v4834 = vpack.c.b16 %v4823, %v4822
          %v4835 = vpack.c.b16 %v4825, %v4824
          %v4836 = vpack.c.b16 %v4827, %v4826
          %v4837 = vpack.c.b16 %v4829, %v4828
          %4846 = vmatprep.subr.bf16.mxu0 0
          %4847 = vmatpush1.bf16.msra.mxu0 %v4830
          %4848 = vmatprep.subr.bf16.mxu0 0
          %4849 = vmatpush1.bf16.msra.mxu0 %v4831
          %4850 = vmatprep.subr.bf16.mxu0 0
          %4851 = vmatpush1.bf16.msra.mxu0 %v4832
          %4852 = vmatprep.subr.bf16.mxu0 0
          %4853 = vmatpush1.bf16.msra.mxu0 %v4833
          %4854 = vmatprep.subr.bf16.mxu0 0
          %4855 = vmatpush1.bf16.msra.mxu0 %v4834
          %4856 = vmatprep.subr.bf16.mxu0 0
          %4857 = vmatpush1.bf16.msra.mxu0 %v4835
          %4858 = vmatprep.subr.bf16.mxu0 0
          %4859 = vmatpush1.bf16.msra.mxu0 %v4836
          %4860 = vmatprep.subr.bf16.mxu0 0
          %4861 = vmatpush1.bf16.msra.mxu0 %v4837
          %4862 = vmatprep.subr.bf16.mxu0 0
          %4863 = vmatpush1.bf16.msra.mxu0 0
          %4864 = vmatprep.subr.bf16.mxu0 0
          %4865 = vmatpush1.bf16.msra.mxu0 0
          %4866 = vmatprep.subr.bf16.mxu0 0
          %4867 = vmatpush1.bf16.msra.mxu0 0
          %4868 = vmatprep.subr.bf16.mxu0 0
          %4869 = vmatpush1.bf16.msra.mxu0 0
          %4870 = vmatprep.subr.bf16.mxu0 0
          %4871 = vmatpush1.bf16.msra.mxu0 0
          %4872 = vmatprep.subr.bf16.mxu0 0
          %4873 = vmatpush1.bf16.msra.mxu0 0
          %4874 = vmatprep.subr.bf16.mxu0 0
          %4875 = vmatpush1.bf16.msra.mxu0 0
          %4876 = vmatprep.subr.bf16.mxu0 0
          %4877 = vmatpush1.bf16.msra.mxu0 0
          %4878 = vmatprep.mubr.bf16.mxu0 0
          %4879 = vmatmul.mubr.bf16.gmra.mrb[0].mxu0 %v4774
          %v4880 = vpop.f32.mrb[0].mxu0
          %v4881 = vadd.f32 %v4796, %v4880
          %v4882 = vpop.f32.mrb[0].mxu0
          %v4883 = vpop.f32.mrb[0].mxu0
          %v4884 = vpop.f32.mrb[0].mxu0
          %4885 = vdwg.mxu0
          %4886 = vst [vmem:[#allocation2] sm:$0x3] %v4881
        $region172: #{bilstm_transformer_forward.1} parent=119 // pred_fallthru
          _
        %v4887 = vld [vmem:[#allocation2] sm:$0x3]
        %v4888 = vpack.c.bf16 %v4887, %v4887
        %v4889 = vld [vmem:[%s941] sm:$0xff]
        %v4890 = vld [vmem:[%s941 + $0x8] sm:$0xf]
        %v4891 = vld [vmem:[%s941 + $0xc] sm:$0xff]
        %v4892 = vld [vmem:[%s941 + $0x14] sm:$0xf]
        %v4893 = vld [vmem:[%s941 + $0x18] sm:$0xff]
        %v4894 = vld [vmem:[%s941 + $0x20] sm:$0xf]
        %v4895 = vld [vmem:[%s941 + $0x24] sm:$0xff]
        %v4896 = vld [vmem:[%s941 + $0x2c] sm:$0xf]
        %v4897 = vld [vmem:[%s941 + $0x30] sm:$0xff]
        %v4898 = vld [vmem:[%s941 + $0x38] sm:$0xf]
        %v4899 = vld [vmem:[%s941 + $0x3c] sm:$0xff]
        %v4900 = vld [vmem:[%s941 + $0x44] sm:$0xf]
        %v4901 = vld [vmem:[%s941 + $0x48] sm:$0xff]
        %v4902 = vld [vmem:[%s941 + $0x50] sm:$0xf]
        %v4903 = vld [vmem:[%s941 + $0x54] sm:$0xff]
        %v4904 = vld [vmem:[%s941 + $0x5c] sm:$0xf]
        %v4905 = vld [vmem:[%s941 + $0x60] sm:$0xff]
        %v4906 = vld [vmem:[%s941 + $0x68] sm:$0xf]
        %v4907 = vld [vmem:[%s941 + $0x6c] sm:$0xff]
        %v4908 = vld [vmem:[%s941 + $0x74] sm:$0xf]
        %v4909 = vld [vmem:[%s941 + $0x78] sm:$0xff]
        %v4910 = vld [vmem:[%s941 + $0x80] sm:$0xf]
        %v4911 = vld [vmem:[%s941 + $0x84] sm:$0xff]
        %v4912 = vld [vmem:[%s941 + $0x8c] sm:$0xf]
        %v4913 = vld [vmem:[%s941 + $0x90] sm:$0xff]
        %v4914 = vld [vmem:[%s941 + $0x98] sm:$0xf]
        %v4915 = vld [vmem:[%s941 + $0x9c] sm:$0xff]
        %v4916 = vld [vmem:[%s941 + $0xa4] sm:$0xf]
        %v4917 = vld [vmem:[%s941 + $0xa8] sm:$0xff]
        %v4918 = vld [vmem:[%s941 + $0xb0] sm:$0xf]
        %v4919 = vld [vmem:[%s941 + $0xb4] sm:$0xff]
        %v4920 = vld [vmem:[%s941 + $0xbc] sm:$0xf]
        %v4921 = vld [vmem:[%s1109] sm:$0x7]
        %v4923 = vlaneseq
        %v4924 = vshrl.u32 %v4923, 7
        %v4925 = vsub.s32 0, %v4924
        %v4926 = vrot.slane %v4921, %v4925
        %v4927 = vlaneseq
        %v4928 = vshrl.u32 %v4927, 7
        %v4929 = vsub.s32 1, %v4928
        %v4930 = vrot.slane %v4921, %v4929
        %v4931 = vlaneseq
        %v4932 = vshrl.u32 %v4931, 7
        %v4933 = vsub.s32 2, %v4932
        %v4934 = vrot.slane %v4921, %v4933
        %v4970 = vunpack.c.l.b16 %v4889
        %v4971 = vunpack.c.h.b16 %v4889
        %v4972 = vunpack.c.l.b16 %v4890
        %v4973 = vunpack.c.l.b16 %v4891
        %v4974 = vunpack.c.h.b16 %v4891
        %v4975 = vunpack.c.l.b16 %v4892
        %v4976 = vunpack.c.l.b16 %v4893
        %v4977 = vunpack.c.h.b16 %v4893
        %v4978 = vunpack.c.l.b16 %v4894
        %v4979 = vunpack.c.l.b16 %v4895
        %v4980 = vunpack.c.h.b16 %v4895
        %v4981 = vunpack.c.l.b16 %v4896
        %v4982 = vunpack.c.l.b16 %v4897
        %v4983 = vunpack.c.h.b16 %v4897
        %v4984 = vunpack.c.l.b16 %v4898
        %v4985 = vunpack.c.l.b16 %v4899
        %v4986 = vunpack.c.h.b16 %v4899
        %v4987 = vunpack.c.l.b16 %v4900
        %v4988 = vunpack.c.l.b16 %v4901
        %v4989 = vunpack.c.h.b16 %v4901
        %v4990 = vunpack.c.l.b16 %v4902
        %v4991 = vunpack.c.l.b16 %v4903
        %v4992 = vunpack.c.h.b16 %v4903
        %v4993 = vunpack.c.l.b16 %v4904
        %v4994 = vunpack.c.l.b16 %v4905
        %v4995 = vunpack.c.h.b16 %v4905
        %v4996 = vunpack.c.l.b16 %v4906
        %v4997 = vunpack.c.l.b16 %v4907
        %v4998 = vunpack.c.h.b16 %v4907
        %v4999 = vunpack.c.l.b16 %v4908
        %v5000 = vunpack.c.l.b16 %v4909
        %v5001 = vunpack.c.h.b16 %v4909
        %v5002 = vunpack.c.l.b16 %v4910
        %v5003 = vunpack.c.l.b16 %v4911
        %v5004 = vunpack.c.h.b16 %v4911
        %v5005 = vunpack.c.l.b16 %v4912
        %v5006 = vunpack.c.l.b16 %v4913
        %v5007 = vunpack.c.h.b16 %v4913
        %v5008 = vunpack.c.l.b16 %v4914
        %v5009 = vunpack.c.l.b16 %v4915
        %v5010 = vunpack.c.h.b16 %v4915
        %v5011 = vunpack.c.l.b16 %v4916
        %v5012 = vunpack.c.l.b16 %v4917
        %v5013 = vunpack.c.h.b16 %v4917
        %v5014 = vunpack.c.l.b16 %v4918
        %v5015 = vunpack.c.l.b16 %v4919
        %v5016 = vunpack.c.h.b16 %v4919
        %v5017 = vunpack.c.l.b16 %v4920
        %v5018 = vpack.c.b16 %v4973, %v4970
        %v5019 = vpack.c.b16 %v4974, %v4971
        %v5020 = vpack.c.b16 %v4975, %v4972
        %v5021 = vpack.c.b16 %v4979, %v4976
        %v5022 = vpack.c.b16 %v4980, %v4977
        %v5023 = vpack.c.b16 %v4981, %v4978
        %v5024 = vpack.c.b16 %v4985, %v4982
        %v5025 = vpack.c.b16 %v4986, %v4983
        %v5026 = vpack.c.b16 %v4987, %v4984
        %v5027 = vpack.c.b16 %v4991, %v4988
        %v5028 = vpack.c.b16 %v4992, %v4989
        %v5029 = vpack.c.b16 %v4993, %v4990
        %v5030 = vpack.c.b16 %v4997, %v4994
        %v5031 = vpack.c.b16 %v4998, %v4995
        %v5032 = vpack.c.b16 %v4999, %v4996
        %v5033 = vpack.c.b16 %v5003, %v5000
        %v5034 = vpack.c.b16 %v5004, %v5001
        %v5035 = vpack.c.b16 %v5005, %v5002
        %v5036 = vpack.c.b16 %v5009, %v5006
        %v5037 = vpack.c.b16 %v5010, %v5007
        %v5038 = vpack.c.b16 %v5011, %v5008
        %v5039 = vpack.c.b16 %v5015, %v5012
        %v5040 = vpack.c.b16 %v5016, %v5013
        %v5041 = vpack.c.b16 %v5017, %v5014
        %5066 = vmatprep.subr.bf16.mxu0 %v5019
        %5067 = vmatpush1.bf16.msra.mxu0 %v5018
        %5068 = vmatprep.subr.bf16.mxu0 %v5022
        %5069 = vmatpush1.bf16.msra.mxu0 %v5021
        %5070 = vmatprep.subr.bf16.mxu0 %v5025
        %5071 = vmatpush1.bf16.msra.mxu0 %v5024
        %5072 = vmatprep.subr.bf16.mxu0 %v5028
        %5073 = vmatpush1.bf16.msra.mxu0 %v5027
        %5074 = vmatprep.subr.bf16.mxu0 %v5031
        %5075 = vmatpush1.bf16.msra.mxu0 %v5030
        %5076 = vmatprep.subr.bf16.mxu0 %v5034
        %5077 = vmatpush1.bf16.msra.mxu0 %v5033
        %5078 = vmatprep.subr.bf16.mxu0 %v5037
        %5079 = vmatpush1.bf16.msra.mxu0 %v5036
        %5080 = vmatprep.subr.bf16.mxu0 %v5040
        %5081 = vmatpush1.bf16.msra.mxu0 %v5039
        %5082 = vmatprep.subr.bf16.mxu0 0
        %5083 = vmatpush1.bf16.msra.mxu0 0
        %5084 = vmatprep.subr.bf16.mxu0 0
        %5085 = vmatpush1.bf16.msra.mxu0 0
        %5086 = vmatprep.subr.bf16.mxu0 0
        %5087 = vmatpush1.bf16.msra.mxu0 0
        %5088 = vmatprep.subr.bf16.mxu0 0
        %5089 = vmatpush1.bf16.msra.mxu0 0
        %5090 = vmatprep.subr.bf16.mxu0 0
        %5091 = vmatpush1.bf16.msra.mxu0 0
        %5092 = vmatprep.subr.bf16.mxu0 0
        %5093 = vmatpush1.bf16.msra.mxu0 0
        %5094 = vmatprep.subr.bf16.mxu0 0
        %5095 = vmatpush1.bf16.msra.mxu0 0
        %5096 = vmatprep.subr.bf16.mxu0 0
        %5097 = vmatpush1.bf16.msra.mxu0 0
        %5098 = vmatprep.mubr.bf16.mxu0 0
        %5099 = vmatmul.mubr.bf16.gmra.mrb[0].mxu0 %v4888
        %v5100 = vpop.f32.mrb[0].mxu0
        %v5101 = vadd.f32 %v4926, %v5100
        %v5102 = vpop.f32.mrb[0].mxu0
        %v5103 = vadd.f32 %v4930, %v5102
        %v5104 = vpop.f32.mrb[0].mxu0
        %v5105 = vpop.f32.mrb[0].mxu0
        %5106 = vdwg.mxu0
        %5107 = vmatprep.subr.bf16.mxu0 0
        %5108 = vmatpush1.bf16.msra.mxu0 %v5020
        %5109 = vmatprep.subr.bf16.mxu0 0
        %5110 = vmatpush1.bf16.msra.mxu0 %v5023
        %5111 = vmatprep.subr.bf16.mxu0 0
        %5112 = vmatpush1.bf16.msra.mxu0 %v5026
        %5113 = vmatprep.subr.bf16.mxu0 0
        %5114 = vmatpush1.bf16.msra.mxu0 %v5029
        %5115 = vmatprep.subr.bf16.mxu0 0
        %5116 = vmatpush1.bf16.msra.mxu0 %v5032
        %5117 = vmatprep.subr.bf16.mxu0 0
        %5118 = vmatpush1.bf16.msra.mxu0 %v5035
        %5119 = vmatprep.subr.bf16.mxu0 0
        %5120 = vmatpush1.bf16.msra.mxu0 %v5038
        %5121 = vmatprep.subr.bf16.mxu0 0
        %5122 = vmatpush1.bf16.msra.mxu0 %v5041
        %5123 = vmatprep.subr.bf16.mxu0 0
        %5124 = vmatpush1.bf16.msra.mxu0 0
        %5125 = vmatprep.subr.bf16.mxu0 0
        %5126 = vmatpush1.bf16.msra.mxu0 0
        %5127 = vmatprep.subr.bf16.mxu0 0
        %5128 = vmatpush1.bf16.msra.mxu0 0
        %5129 = vmatprep.subr.bf16.mxu0 0
        %5130 = vmatpush1.bf16.msra.mxu0 0
        %5131 = vmatprep.subr.bf16.mxu0 0
        %5132 = vmatpush1.bf16.msra.mxu0 0
        %5133 = vmatprep.subr.bf16.mxu0 0
        %5134 = vmatpush1.bf16.msra.mxu0 0
        %5135 = vmatprep.subr.bf16.mxu0 0
        %5136 = vmatpush1.bf16.msra.mxu0 0
        %5137 = vmatprep.subr.bf16.mxu0 0
        %5138 = vmatpush1.bf16.msra.mxu0 0
        %5139 = vmatprep.mubr.bf16.mxu0 0
        %5140 = vmatmul.mubr.bf16.gmra.mrb[0].mxu0 %v4888
        %v5141 = vpop.f32.mrb[0].mxu0
        %v5142 = vadd.f32 %v4934, %v5141
        %v5143 = vpop.f32.mrb[0].mxu0
        %v5144 = vpop.f32.mrb[0].mxu0
        %v5145 = vpop.f32.mrb[0].mxu0
        %5146 = vdwg.mxu0
        %v5147 = vmul.f32 %v5101, 0.17677669
        %v5148 = vpack.c.bf16 %v5147, %v5147
        %v5149 = vpack.c.bf16 %v5103, %v5103
        %vm5150 = vcmask 261120
        %v5152 = vsel %vm5150, %v5148, 0
        %v5155 = vsel %vm5150, %v5149, 0
        %5157 = vmatprep.subr.bf16.mxu0 0
        %5158 = vmatpush1.bf16.xpose.msra.mxu0 %v5155
        %5159 = vmatprep.subr.bf16.mxu0 0
        %5160 = vmatpush1.bf16.xpose.msra.mxu0 0
        %5161 = vmatprep.subr.bf16.mxu0 0
        %5162 = vmatpush1.bf16.xpose.msra.mxu0 0
        %5163 = vmatprep.subr.bf16.mxu0 0
        %5164 = vmatpush1.bf16.xpose.msra.mxu0 0
        %5165 = vmatprep.subr.bf16.mxu0 0
        %5166 = vmatpush1.bf16.xpose.msra.mxu0 0
        %5167 = vmatprep.subr.bf16.mxu0 0
        %5168 = vmatpush1.bf16.xpose.msra.mxu0 0
        %5169 = vmatprep.subr.bf16.mxu0 0
        %5170 = vmatpush1.bf16.xpose.msra.mxu0 0
        %5171 = vmatprep.subr.bf16.mxu0 0
        %5172 = vmatpush1.bf16.xpose.msra.mxu0 0
        %5173 = vmatprep.subr.bf16.mxu0 0
        %5174 = vmatpush1.bf16.xpose.msra.mxu0 0
        %5175 = vmatprep.subr.bf16.mxu0 0
        %5176 = vmatpush1.bf16.xpose.msra.mxu0 0
        %5177 = vmatprep.subr.bf16.mxu0 0
        %5178 = vmatpush1.bf16.xpose.msra.mxu0 0
        %5179 = vmatprep.subr.bf16.mxu0 0
        %5180 = vmatpush1.bf16.xpose.msra.mxu0 0
        %5181 = vmatprep.subr.bf16.mxu0 0
        %5182 = vmatpush1.bf16.xpose.msra.mxu0 0
        %5183 = vmatprep.subr.bf16.mxu0 0
        %5184 = vmatpush1.bf16.xpose.msra.mxu0 0
        %5185 = vmatprep.subr.bf16.mxu0 0
        %5186 = vmatpush1.bf16.xpose.msra.mxu0 0
        %5187 = vmatprep.subr.bf16.mxu0 0
        %5188 = vmatpush1.bf16.xpose.msra.mxu0 0
        %5189 = vmatprep.mubr.bf16.mxu0 0
        %5190 = vmatmul.mubr.bf16.gmra.mrb[0].mxu0 %v5152
        %v5191 = vpop.f32.mrb[0].mxu0
        %v5192 = vadd.f32 0.0, %v5191
        %v5193 = vpop.f32.mrb[0].mxu0
        %v5194 = vpop.f32.mrb[0].mxu0
        %v5195 = vpop.f32.mrb[0].mxu0
        %5196 = vdwg.mxu0
        %vm5197 = vcmask 9216
        %v5198 = vsel %vm5197, %v5192, -inf
        %5199 = vmax.xlane.f32.xlu0 %v5198
        %v5200 = vpop.xlane.xlu0 %5199
        %v5201 = vsub.f32 %v5192, %v5200
        %v5202 = vmul.f32 %v5201, 1.442695
        %v5203 = vpow.pop %v5202
        %v5204 = vsel %vm5197, %v5203, 0.0
        %5205 = vadd.xlane.f32.xlu0 %v5204
        %v5206 = vpop.xlane.xlu0 %5205
        %v5207 = vrcp.pop %v5206
        %v5208 = vmul.f32 %v5203, %v5207
        %v5209 = vpack.c.bf16 %v5208, %v5208
        %v5210 = vpack.c.bf16 %v5142, %v5142
        %vm5211 = vcmask 15360
        %v5213 = vsel %vm5211, %v5209, 0
        %vm5215 = vcmask 1040384
        %v5217 = vsel %vm5215, %v5210, 0
        %5219 = vmatprep.subr.bf16.mxu0 0
        %5220 = vmatpush1.bf16.msra.mxu0 %v5217
        %5221 = vmatprep.subr.bf16.mxu0 0
        %5222 = vmatpush1.bf16.msra.mxu0 0
        %5223 = vmatprep.subr.bf16.mxu0 0
        %5224 = vmatpush1.bf16.msra.mxu0 0
        %5225 = vmatprep.subr.bf16.mxu0 0
        %5226 = vmatpush1.bf16.msra.mxu0 0
        %5227 = vmatprep.subr.bf16.mxu0 0
        %5228 = vmatpush1.bf16.msra.mxu0 0
        %5229 = vmatprep.subr.bf16.mxu0 0
        %5230 = vmatpush1.bf16.msra.mxu0 0
        %5231 = vmatprep.subr.bf16.mxu0 0
        %5232 = vmatpush1.bf16.msra.mxu0 0
        %5233 = vmatprep.subr.bf16.mxu0 0
        %5234 = vmatpush1.bf16.msra.mxu0 0
        %5235 = vmatprep.subr.bf16.mxu0 0
        %5236 = vmatpush1.bf16.msra.mxu0 0
        %5237 = vmatprep.subr.bf16.mxu0 0
        %5238 = vmatpush1.bf16.msra.mxu0 0
        %5239 = vmatprep.subr.bf16.mxu0 0
        %5240 = vmatpush1.bf16.msra.mxu0 0
        %5241 = vmatprep.subr.bf16.mxu0 0
        %5242 = vmatpush1.bf16.msra.mxu0 0
        %5243 = vmatprep.subr.bf16.mxu0 0
        %5244 = vmatpush1.bf16.msra.mxu0 0
        %5245 = vmatprep.subr.bf16.mxu0 0
        %5246 = vmatpush1.bf16.msra.mxu0 0
        %5247 = vmatprep.subr.bf16.mxu0 0
        %5248 = vmatpush1.bf16.msra.mxu0 0
        %5249 = vmatprep.subr.bf16.mxu0 0
        %5250 = vmatpush1.bf16.msra.mxu0 0
        %5251 = vmatprep.mubr.bf16.mxu0 0
        %5252 = vmatmul.mubr.bf16.gmra.mrb[0].mxu0 %v5213
        %v5253 = vpop.f32.mrb[0].mxu0
        %v5254 = vadd.f32 0.0, %v5253
        %v5255 = vpop.f32.mrb[0].mxu0
        %v5256 = vpop.f32.mrb[0].mxu0
        %v5257 = vpop.f32.mrb[0].mxu0
        %5258 = vdwg.mxu0
        %5260 = vrot.lane.b32.xlu0 %v5148, 96
        %v5261 = vpop.permute.xlu0 %5260
        %5263 = vrot.lane.b32.xlu0 %v5149, 96
        %v5264 = vpop.permute.xlu0 %5263
        %v5266 = vsel %vm5150, %v5261, 0
        %v5269 = vsel %vm5150, %v5264, 0
        %5271 = vmatprep.subr.bf16.mxu0 0
        %5272 = vmatpush1.bf16.xpose.msra.mxu0 %v5269
        %5273 = vmatprep.subr.bf16.mxu0 0
        %5274 = vmatpush1.bf16.xpose.msra.mxu0 0
        %5275 = vmatprep.subr.bf16.mxu0 0
        %5276 = vmatpush1.bf16.xpose.msra.mxu0 0
        %5277 = vmatprep.subr.bf16.mxu0 0
        %5278 = vmatpush1.bf16.xpose.msra.mxu0 0
        %5279 = vmatprep.subr.bf16.mxu0 0
        %5280 = vmatpush1.bf16.xpose.msra.mxu0 0
        %5281 = vmatprep.subr.bf16.mxu0 0
        %5282 = vmatpush1.bf16.xpose.msra.mxu0 0
        %5283 = vmatprep.subr.bf16.mxu0 0
        %5284 = vmatpush1.bf16.xpose.msra.mxu0 0
        %5285 = vmatprep.subr.bf16.mxu0 0
        %5286 = vmatpush1.bf16.xpose.msra.mxu0 0
        %5287 = vmatprep.subr.bf16.mxu0 0
        %5288 = vmatpush1.bf16.xpose.msra.mxu0 0
        %5289 = vmatprep.subr.bf16.mxu0 0
        %5290 = vmatpush1.bf16.xpose.msra.mxu0 0
        %5291 = vmatprep.subr.bf16.mxu0 0
        %5292 = vmatpush1.bf16.xpose.msra.mxu0 0
        %5293 = vmatprep.subr.bf16.mxu0 0
        %5294 = vmatpush1.bf16.xpose.msra.mxu0 0
        %5295 = vmatprep.subr.bf16.mxu0 0
        %5296 = vmatpush1.bf16.xpose.msra.mxu0 0
        %5297 = vmatprep.subr.bf16.mxu0 0
        %5298 = vmatpush1.bf16.xpose.msra.mxu0 0
        %5299 = vmatprep.subr.bf16.mxu0 0
        %5300 = vmatpush1.bf16.xpose.msra.mxu0 0
        %5301 = vmatprep.subr.bf16.mxu0 0
        %5302 = vmatpush1.bf16.xpose.msra.mxu0 0
        %5303 = vmatprep.mubr.bf16.mxu0 0
        %5304 = vmatmul.mubr.bf16.gmra.mrb[0].mxu0 %v5266
        %v5305 = vpop.f32.mrb[0].mxu0
        %v5306 = vadd.f32 0.0, %v5305
        %v5307 = vpop.f32.mrb[0].mxu0
        %v5308 = vpop.f32.mrb[0].mxu0
        %v5309 = vpop.f32.mrb[0].mxu0
        %5310 = vdwg.mxu0
        %v5311 = vsel %vm5197, %v5306, -inf
        %5312 = vmax.xlane.f32.xlu0 %v5311
        %v5313 = vpop.xlane.xlu0 %5312
        %v5314 = vsub.f32 %v5306, %v5313
        %v5315 = vmul.f32 %v5314, 1.442695
        %v5316 = vpow.pop %v5315
        %v5317 = vsel %vm5197, %v5316, 0.0
        %5318 = vadd.xlane.f32.xlu0 %v5317
        %v5319 = vpop.xlane.xlu0 %5318
        %v5320 = vrcp.pop %v5319
        %v5321 = vmul.f32 %v5316, %v5320
        %v5322 = vpack.c.bf16 %v5321, %v5321
        %5324 = vrot.lane.b32.xlu0 %v5210, 96
        %v5325 = vpop.permute.xlu0 %5324
        %v5327 = vsel %vm5211, %v5322, 0
        %v5330 = vsel %vm5215, %v5325, 0
        %5332 = vmatprep.subr.bf16.mxu0 0
        %5333 = vmatpush1.bf16.msra.mxu0 %v5330
        %5334 = vmatprep.subr.bf16.mxu0 0
        %5335 = vmatpush1.bf16.msra.mxu0 0
        %5336 = vmatprep.subr.bf16.mxu0 0
        %5337 = vmatpush1.bf16.msra.mxu0 0
        %5338 = vmatprep.subr.bf16.mxu0 0
        %5339 = vmatpush1.bf16.msra.mxu0 0
        %5340 = vmatprep.subr.bf16.mxu0 0
        %5341 = vmatpush1.bf16.msra.mxu0 0
        %5342 = vmatprep.subr.bf16.mxu0 0
        %5343 = vmatpush1.bf16.msra.mxu0 0
        %5344 = vmatprep.subr.bf16.mxu0 0
        %5345 = vmatpush1.bf16.msra.mxu0 0
        %5346 = vmatprep.subr.bf16.mxu0 0
        %5347 = vmatpush1.bf16.msra.mxu0 0
        %5348 = vmatprep.subr.bf16.mxu0 0
        %5349 = vmatpush1.bf16.msra.mxu0 0
        %5350 = vmatprep.subr.bf16.mxu0 0
        %5351 = vmatpush1.bf16.msra.mxu0 0
        %5352 = vmatprep.subr.bf16.mxu0 0
        %5353 = vmatpush1.bf16.msra.mxu0 0
        %5354 = vmatprep.subr.bf16.mxu0 0
        %5355 = vmatpush1.bf16.msra.mxu0 0
        %5356 = vmatprep.subr.bf16.mxu0 0
        %5357 = vmatpush1.bf16.msra.mxu0 0
        %5358 = vmatprep.subr.bf16.mxu0 0
        %5359 = vmatpush1.bf16.msra.mxu0 0
        %5360 = vmatprep.subr.bf16.mxu0 0
        %5361 = vmatpush1.bf16.msra.mxu0 0
        %5362 = vmatprep.subr.bf16.mxu0 0
        %5363 = vmatpush1.bf16.msra.mxu0 0
        %5364 = vmatprep.mubr.bf16.mxu0 0
        %5365 = vmatmul.mubr.bf16.gmra.mrb[0].mxu0 %v5327
        %v5366 = vpop.f32.mrb[0].mxu0
        %v5367 = vadd.f32 0.0, %v5366
        %v5368 = vpop.f32.mrb[0].mxu0
        %v5369 = vpop.f32.mrb[0].mxu0
        %v5370 = vpop.f32.mrb[0].mxu0
        %5371 = vdwg.mxu0
        %5372 = vrot.lane.b32.xlu0 %v5148, 64
        %v5373 = vpop.permute.xlu0 %5372
        %5374 = vrot.lane.b32.xlu0 %v5149, 64
        %v5375 = vpop.permute.xlu0 %5374
        %v5377 = vsel %vm5150, %v5373, 0
        %v5380 = vsel %vm5150, %v5375, 0
        %5382 = vmatprep.subr.bf16.mxu0 0
        %5383 = vmatpush1.bf16.xpose.msra.mxu0 %v5380
        %5384 = vmatprep.subr.bf16.mxu0 0
        %5385 = vmatpush1.bf16.xpose.msra.mxu0 0
        %5386 = vmatprep.subr.bf16.mxu0 0
        %5387 = vmatpush1.bf16.xpose.msra.mxu0 0
        %5388 = vmatprep.subr.bf16.mxu0 0
        %5389 = vmatpush1.bf16.xpose.msra.mxu0 0
        %5390 = vmatprep.subr.bf16.mxu0 0
        %5391 = vmatpush1.bf16.xpose.msra.mxu0 0
        %5392 = vmatprep.subr.bf16.mxu0 0
        %5393 = vmatpush1.bf16.xpose.msra.mxu0 0
        %5394 = vmatprep.subr.bf16.mxu0 0
        %5395 = vmatpush1.bf16.xpose.msra.mxu0 0
        %5396 = vmatprep.subr.bf16.mxu0 0
        %5397 = vmatpush1.bf16.xpose.msra.mxu0 0
        %5398 = vmatprep.subr.bf16.mxu0 0
        %5399 = vmatpush1.bf16.xpose.msra.mxu0 0
        %5400 = vmatprep.subr.bf16.mxu0 0
        %5401 = vmatpush1.bf16.xpose.msra.mxu0 0
        %5402 = vmatprep.subr.bf16.mxu0 0
        %5403 = vmatpush1.bf16.xpose.msra.mxu0 0
        %5404 = vmatprep.subr.bf16.mxu0 0
        %5405 = vmatpush1.bf16.xpose.msra.mxu0 0
        %5406 = vmatprep.subr.bf16.mxu0 0
        %5407 = vmatpush1.bf16.xpose.msra.mxu0 0
        %5408 = vmatprep.subr.bf16.mxu0 0
        %5409 = vmatpush1.bf16.xpose.msra.mxu0 0
        %5410 = vmatprep.subr.bf16.mxu0 0
        %5411 = vmatpush1.bf16.xpose.msra.mxu0 0
        %5412 = vmatprep.subr.bf16.mxu0 0
        %5413 = vmatpush1.bf16.xpose.msra.mxu0 0
        %5414 = vmatprep.mubr.bf16.mxu0 0
        %5415 = vmatmul.mubr.bf16.gmra.mrb[0].mxu0 %v5377
        %v5416 = vpop.f32.mrb[0].mxu0
        %v5417 = vadd.f32 0.0, %v5416
        %v5418 = vpop.f32.mrb[0].mxu0
        %v5419 = vpop.f32.mrb[0].mxu0
        %v5420 = vpop.f32.mrb[0].mxu0
        %5421 = vdwg.mxu0
        %v5422 = vsel %vm5197, %v5417, -inf
        %5423 = vmax.xlane.f32.xlu0 %v5422
        %v5424 = vpop.xlane.xlu0 %5423
        %v5425 = vsub.f32 %v5417, %v5424
        %v5426 = vmul.f32 %v5425, 1.442695
        %v5427 = vpow.pop %v5426
        %v5428 = vsel %vm5197, %v5427, 0.0
        %5429 = vadd.xlane.f32.xlu0 %v5428
        %v5430 = vpop.xlane.xlu0 %5429
        %v5431 = vrcp.pop %v5430
        %v5432 = vmul.f32 %v5427, %v5431
        %v5433 = vpack.c.bf16 %v5432, %v5432
        %5434 = vrot.lane.b32.xlu0 %v5210, 64
        %v5435 = vpop.permute.xlu0 %5434
        %v5437 = vsel %vm5211, %v5433, 0
        %v5440 = vsel %vm5215, %v5435, 0
        %5442 = vmatprep.subr.bf16.mxu0 0
        %5443 = vmatpush1.bf16.msra.mxu0 %v5440
        %5444 = vmatprep.subr.bf16.mxu0 0
        %5445 = vmatpush1.bf16.msra.mxu0 0
        %5446 = vmatprep.subr.bf16.mxu0 0
        %5447 = vmatpush1.bf16.msra.mxu0 0
        %5448 = vmatprep.subr.bf16.mxu0 0
        %5449 = vmatpush1.bf16.msra.mxu0 0
        %5450 = vmatprep.subr.bf16.mxu0 0
        %5451 = vmatpush1.bf16.msra.mxu0 0
        %5452 = vmatprep.subr.bf16.mxu0 0
        %5453 = vmatpush1.bf16.msra.mxu0 0
        %5454 = vmatprep.subr.bf16.mxu0 0
        %5455 = vmatpush1.bf16.msra.mxu0 0
        %5456 = vmatprep.subr.bf16.mxu0 0
        %5457 = vmatpush1.bf16.msra.mxu0 0
        %5458 = vmatprep.subr.bf16.mxu0 0
        %5459 = vmatpush1.bf16.msra.mxu0 0
        %5460 = vmatprep.subr.bf16.mxu0 0
        %5461 = vmatpush1.bf16.msra.mxu0 0
        %5462 = vmatprep.subr.bf16.mxu0 0
        %5463 = vmatpush1.bf16.msra.mxu0 0
        %5464 = vmatprep.subr.bf16.mxu0 0
        %5465 = vmatpush1.bf16.msra.mxu0 0
        %5466 = vmatprep.subr.bf16.mxu0 0
        %5467 = vmatpush1.bf16.msra.mxu0 0
        %5468 = vmatprep.subr.bf16.mxu0 0
        %5469 = vmatpush1.bf16.msra.mxu0 0
        %5470 = vmatprep.subr.bf16.mxu0 0
        %5471 = vmatpush1.bf16.msra.mxu0 0
        %5472 = vmatprep.subr.bf16.mxu0 0
        %5473 = vmatpush1.bf16.msra.mxu0 0
        %5474 = vmatprep.mubr.bf16.mxu0 0
        %5475 = vmatmul.mubr.bf16.gmra.mrb[0].mxu0 %v5437
        %v5476 = vpop.f32.mrb[0].mxu0
        %v5477 = vadd.f32 0.0, %v5476
        %v5478 = vpop.f32.mrb[0].mxu0
        %v5479 = vpop.f32.mrb[0].mxu0
        %v5480 = vpop.f32.mrb[0].mxu0
        %5481 = vdwg.mxu0
        %5482 = vrot.lane.b32.xlu0 %v5148, 32
        %v5483 = vpop.permute.xlu0 %5482
        %5484 = vrot.lane.b32.xlu0 %v5149, 32
        %v5485 = vpop.permute.xlu0 %5484
        %v5487 = vsel %vm5150, %v5483, 0
        %v5490 = vsel %vm5150, %v5485, 0
        %5492 = vmatprep.subr.bf16.mxu0 0
        %5493 = vmatpush1.bf16.xpose.msra.mxu0 %v5490
        %5494 = vmatprep.subr.bf16.mxu0 0
        %5495 = vmatpush1.bf16.xpose.msra.mxu0 0
        %5496 = vmatprep.subr.bf16.mxu0 0
        %5497 = vmatpush1.bf16.xpose.msra.mxu0 0
        %5498 = vmatprep.subr.bf16.mxu0 0
        %5499 = vmatpush1.bf16.xpose.msra.mxu0 0
        %5500 = vmatprep.subr.bf16.mxu0 0
        %5501 = vmatpush1.bf16.xpose.msra.mxu0 0
        %5502 = vmatprep.subr.bf16.mxu0 0
        %5503 = vmatpush1.bf16.xpose.msra.mxu0 0
        %5504 = vmatprep.subr.bf16.mxu0 0
        %5505 = vmatpush1.bf16.xpose.msra.mxu0 0
        %5506 = vmatprep.subr.bf16.mxu0 0
        %5507 = vmatpush1.bf16.xpose.msra.mxu0 0
        %5508 = vmatprep.subr.bf16.mxu0 0
        %5509 = vmatpush1.bf16.xpose.msra.mxu0 0
        %5510 = vmatprep.subr.bf16.mxu0 0
        %5511 = vmatpush1.bf16.xpose.msra.mxu0 0
        %5512 = vmatprep.subr.bf16.mxu0 0
        %5513 = vmatpush1.bf16.xpose.msra.mxu0 0
        %5514 = vmatprep.subr.bf16.mxu0 0
        %5515 = vmatpush1.bf16.xpose.msra.mxu0 0
        %5516 = vmatprep.subr.bf16.mxu0 0
        %5517 = vmatpush1.bf16.xpose.msra.mxu0 0
        %5518 = vmatprep.subr.bf16.mxu0 0
        %5519 = vmatpush1.bf16.xpose.msra.mxu0 0
        %5520 = vmatprep.subr.bf16.mxu0 0
        %5521 = vmatpush1.bf16.xpose.msra.mxu0 0
        %5522 = vmatprep.subr.bf16.mxu0 0
        %5523 = vmatpush1.bf16.xpose.msra.mxu0 0
        %5524 = vmatprep.mubr.bf16.mxu0 0
        %5525 = vmatmul.mubr.bf16.gmra.mrb[0].mxu0 %v5487
        %v5526 = vpop.f32.mrb[0].mxu0
        %v5527 = vadd.f32 0.0, %v5526
        %v5528 = vpop.f32.mrb[0].mxu0
        %v5529 = vpop.f32.mrb[0].mxu0
        %v5530 = vpop.f32.mrb[0].mxu0
        %5531 = vdwg.mxu0
        %v5532 = vsel %vm5197, %v5527, -inf
        %5533 = vmax.xlane.f32.xlu0 %v5532
        %v5534 = vpop.xlane.xlu0 %5533
        %v5535 = vsub.f32 %v5527, %v5534
        %v5536 = vmul.f32 %v5535, 1.442695
        %v5537 = vpow.pop %v5536
        %v5538 = vsel %vm5197, %v5537, 0.0
        %5539 = vadd.xlane.f32.xlu0 %v5538
        %v5540 = vpop.xlane.xlu0 %5539
        %v5541 = vrcp.pop %v5540
        %v5542 = vmul.f32 %v5537, %v5541
        %v5543 = vpack.c.bf16 %v5542, %v5542
        %5544 = vrot.lane.b32.xlu0 %v5210, 32
        %v5545 = vpop.permute.xlu0 %5544
        %v5547 = vsel %vm5211, %v5543, 0
        %v5550 = vsel %vm5215, %v5545, 0
        %5552 = vmatprep.subr.bf16.mxu0 0
        %5553 = vmatpush1.bf16.msra.mxu0 %v5550
        %5554 = vmatprep.subr.bf16.mxu0 0
        %5555 = vmatpush1.bf16.msra.mxu0 0
        %5556 = vmatprep.subr.bf16.mxu0 0
        %5557 = vmatpush1.bf16.msra.mxu0 0
        %5558 = vmatprep.subr.bf16.mxu0 0
        %5559 = vmatpush1.bf16.msra.mxu0 0
        %5560 = vmatprep.subr.bf16.mxu0 0
        %5561 = vmatpush1.bf16.msra.mxu0 0
        %5562 = vmatprep.subr.bf16.mxu0 0
        %5563 = vmatpush1.bf16.msra.mxu0 0
        %5564 = vmatprep.subr.bf16.mxu0 0
        %5565 = vmatpush1.bf16.msra.mxu0 0
        %5566 = vmatprep.subr.bf16.mxu0 0
        %5567 = vmatpush1.bf16.msra.mxu0 0
        %5568 = vmatprep.subr.bf16.mxu0 0
        %5569 = vmatpush1.bf16.msra.mxu0 0
        %5570 = vmatprep.subr.bf16.mxu0 0
        %5571 = vmatpush1.bf16.msra.mxu0 0
        %5572 = vmatprep.subr.bf16.mxu0 0
        %5573 = vmatpush1.bf16.msra.mxu0 0
        %5574 = vmatprep.subr.bf16.mxu0 0
        %5575 = vmatpush1.bf16.msra.mxu0 0
        %5576 = vmatprep.subr.bf16.mxu0 0
        %5577 = vmatpush1.bf16.msra.mxu0 0
        %5578 = vmatprep.subr.bf16.mxu0 0
        %5579 = vmatpush1.bf16.msra.mxu0 0
        %5580 = vmatprep.subr.bf16.mxu0 0
        %5581 = vmatpush1.bf16.msra.mxu0 0
        %5582 = vmatprep.subr.bf16.mxu0 0
        %5583 = vmatpush1.bf16.msra.mxu0 0
        %5584 = vmatprep.mubr.bf16.mxu0 0
        %5585 = vmatmul.mubr.bf16.gmra.mrb[0].mxu0 %v5547
        %v5586 = vpop.f32.mrb[0].mxu0
        %v5587 = vadd.f32 0.0, %v5586
        %v5588 = vpop.f32.mrb[0].mxu0
        %v5589 = vpop.f32.mrb[0].mxu0
        %v5590 = vpop.f32.mrb[0].mxu0
        %5591 = vdwg.mxu0
        %5593 = vrot.lane.b32.xlu0 %v5367, 32
        %v5594 = vpop.permute.xlu0 %5593
        %5597 = vrot.lane.b32.xlu0 %v5477, 64
        %v5598 = vpop.permute.xlu0 %5597
        %5601 = vrot.lane.b32.xlu0 %v5587, 96
        %v5602 = vpop.permute.xlu0 %5601
        %v5604 = vsel %vm5150, %v5254, %v5594
        %vm5605 = vcmask 523264
        %v5606 = vsel %vm5605, %v5604, %v5598
        %vm5607 = vcmask 785408
        %v5608 = vsel %vm5607, %v5606, %v5602
        %v5609 = vpack.c.bf16 %v5608, %v5608
        %v5610 = vld [vmem:[%s950] sm:$0xf]
        %v5611 = vld [vmem:[%s950 + $0x4] sm:$0xf]
        %v5612 = vld [vmem:[%s950 + $0x8] sm:$0xf]
        %v5613 = vld [vmem:[%s950 + $0xc] sm:$0xf]
        %v5614 = vld [vmem:[%s950 + $0x10] sm:$0xf]
        %v5615 = vld [vmem:[%s950 + $0x14] sm:$0xf]
        %v5616 = vld [vmem:[%s950 + $0x18] sm:$0xf]
        %v5617 = vld [vmem:[%s950 + $0x1c] sm:$0xf]
        %v5618 = vld [vmem:[%s950 + $0x20] sm:$0xf]
        %v5619 = vld [vmem:[%s950 + $0x24] sm:$0xf]
        %v5620 = vld [vmem:[%s950 + $0x28] sm:$0xf]
        %v5621 = vld [vmem:[%s950 + $0x2c] sm:$0xf]
        %v5622 = vld [vmem:[%s950 + $0x30] sm:$0xf]
        %v5623 = vld [vmem:[%s950 + $0x34] sm:$0xf]
        %v5624 = vld [vmem:[%s950 + $0x38] sm:$0xf]
        %v5625 = vld [vmem:[%s950 + $0x3c] sm:$0xf]
        %v5626 = vld [vmem:[%s1112] sm:$0x1]
        %v5628 = vlaneseq
        %v5629 = vshrl.u32 %v5628, 7
        %v5630 = vsub.s32 0, %v5629
        %v5631 = vrot.slane %v5626, %v5630
        %v5649 = vunpack.c.l.b16 %v5610
        %v5650 = vunpack.c.l.b16 %v5611
        %v5651 = vunpack.c.l.b16 %v5612
        %v5652 = vunpack.c.l.b16 %v5613
        %v5653 = vunpack.c.l.b16 %v5614
        %v5654 = vunpack.c.l.b16 %v5615
        %v5655 = vunpack.c.l.b16 %v5616
        %v5656 = vunpack.c.l.b16 %v5617
        %v5657 = vunpack.c.l.b16 %v5618
        %v5658 = vunpack.c.l.b16 %v5619
        %v5659 = vunpack.c.l.b16 %v5620
        %v5660 = vunpack.c.l.b16 %v5621
        %v5661 = vunpack.c.l.b16 %v5622
        %v5662 = vunpack.c.l.b16 %v5623
        %v5663 = vunpack.c.l.b16 %v5624
        %v5664 = vunpack.c.l.b16 %v5625
        %v5665 = vpack.c.b16 %v5650, %v5649
        %v5666 = vpack.c.b16 %v5652, %v5651
        %v5667 = vpack.c.b16 %v5654, %v5653
        %v5668 = vpack.c.b16 %v5656, %v5655
        %v5669 = vpack.c.b16 %v5658, %v5657
        %v5670 = vpack.c.b16 %v5660, %v5659
        %v5671 = vpack.c.b16 %v5662, %v5661
        %v5672 = vpack.c.b16 %v5664, %v5663
        %5681 = vmatprep.subr.bf16.mxu0 0
        %5682 = vmatpush1.bf16.msra.mxu0 %v5665
        %5683 = vmatprep.subr.bf16.mxu0 0
        %5684 = vmatpush1.bf16.msra.mxu0 %v5666
        %5685 = vmatprep.subr.bf16.mxu0 0
        %5686 = vmatpush1.bf16.msra.mxu0 %v5667
        %5687 = vmatprep.subr.bf16.mxu0 0
        %5688 = vmatpush1.bf16.msra.mxu0 %v5668
        %5689 = vmatprep.subr.bf16.mxu0 0
        %5690 = vmatpush1.bf16.msra.mxu0 %v5669
        %5691 = vmatprep.subr.bf16.mxu0 0
        %5692 = vmatpush1.bf16.msra.mxu0 %v5670
        %5693 = vmatprep.subr.bf16.mxu0 0
        %5694 = vmatpush1.bf16.msra.mxu0 %v5671
        %5695 = vmatprep.subr.bf16.mxu0 0
        %5696 = vmatpush1.bf16.msra.mxu0 %v5672
        %5697 = vmatprep.subr.bf16.mxu0 0
        %5698 = vmatpush1.bf16.msra.mxu0 0
        %5699 = vmatprep.subr.bf16.mxu0 0
        %5700 = vmatpush1.bf16.msra.mxu0 0
        %5701 = vmatprep.subr.bf16.mxu0 0
        %5702 = vmatpush1.bf16.msra.mxu0 0
        %5703 = vmatprep.subr.bf16.mxu0 0
        %5704 = vmatpush1.bf16.msra.mxu0 0
        %5705 = vmatprep.subr.bf16.mxu0 0
        %5706 = vmatpush1.bf16.msra.mxu0 0
        %5707 = vmatprep.subr.bf16.mxu0 0
        %5708 = vmatpush1.bf16.msra.mxu0 0
        %5709 = vmatprep.subr.bf16.mxu0 0
        %5710 = vmatpush1.bf16.msra.mxu0 0
        %5711 = vmatprep.subr.bf16.mxu0 0
        %5712 = vmatpush1.bf16.msra.mxu0 0
        %5713 = vmatprep.mubr.bf16.mxu0 0
        %5714 = vmatmul.mubr.bf16.gmra.mrb[0].mxu0 %v5609
        %v5715 = vpop.f32.mrb[0].mxu0
        %v5716 = vadd.f32 %v5631, %v5715
        %v5717 = vpop.f32.mrb[0].mxu0
        %v5718 = vpop.f32.mrb[0].mxu0
        %v5719 = vpop.f32.mrb[0].mxu0
        %5720 = vdwg.mxu0
        %v5721 = vadd.f32 %v4887, %v5716
        %v5722 = vld [vmem:[%s1115] sm:$0x1]
        %v5723 = vld [vmem:[%s992] sm:$0x1]
        %vm5724 = vcmask 1041408
        %v5725 = vsel %vm5724, %v5721, 0.0
        %5726 = vadd.xlane.f32.xlu0 %v5725
        %v5727 = vpop.xlane.xlu0 %5726
        %v5728 = vrcp.pop 128.0
        %v5729 = vmul.f32 %v5727, %v5728
        %v5730 = vsub.f32 %v5721, %v5729
        %v5731 = vmul.f32 %v5730, %v5730
        %v5732 = vsel %vm5724, %v5731, 0.0
        %5733 = vadd.xlane.f32.xlu0 %v5732
        %v5734 = vpop.xlane.xlu0 %5733
        %v5735 = vmul.f32 %v5734, %v5728
        %v5736 = vadd.f32 %v5735, 1e-05
        %v5737 = vrsqrt.pop %v5736
        %v5738 = vmul.f32 %v5730, %v5737
        %v5740 = vlaneseq
        %v5741 = vshrl.u32 %v5740, 7
        %v5742 = vsub.s32 0, %v5741
        %v5743 = vrot.slane %v5722, %v5742
        %v5745 = vmul.f32 %v5738, %v5743
        %v5747 = vlaneseq
        %v5748 = vshrl.u32 %v5747, 7
        %v5749 = vsub.s32 0, %v5748
        %v5750 = vrot.slane %v5723, %v5749
        %v5752 = vadd.f32 %v5745, %v5750
        %v5753 = vpack.c.bf16 %v5752, %v5752
        %v5754 = vld [vmem:[%s959] sm:$0xf]
        %v5755 = vld [vmem:[%s959 + $0x4] sm:$0xf]
        %v5756 = vld [vmem:[%s959 + $0x8] sm:$0xf]
        %v5757 = vld [vmem:[%s959 + $0xc] sm:$0xf]
        %v5758 = vld [vmem:[%s959 + $0x10] sm:$0xf]
        %v5759 = vld [vmem:[%s959 + $0x14] sm:$0xf]
        %v5760 = vld [vmem:[%s959 + $0x18] sm:$0xf]
        %v5761 = vld [vmem:[%s959 + $0x1c] sm:$0xf]
        %v5762 = vld [vmem:[%s959 + $0x20] sm:$0xf]
        %v5763 = vld [vmem:[%s959 + $0x24] sm:$0xf]
        %v5764 = vld [vmem:[%s959 + $0x28] sm:$0xf]
        %v5765 = vld [vmem:[%s959 + $0x2c] sm:$0xf]
        %v5766 = vld [vmem:[%s959 + $0x30] sm:$0xf]
        %v5767 = vld [vmem:[%s959 + $0x34] sm:$0xf]
        %v5768 = vld [vmem:[%s959 + $0x38] sm:$0xf]
        %v5769 = vld [vmem:[%s959 + $0x3c] sm:$0xf]
        %v5770 = vld [vmem:[%s967] sm:$0x1]
        %v5772 = vlaneseq
        %v5773 = vshrl.u32 %v5772, 7
        %v5774 = vsub.s32 0, %v5773
        %v5775 = vrot.slane %v5770, %v5774
        %v5793 = vunpack.c.l.b16 %v5754
        %v5794 = vunpack.c.l.b16 %v5755
        %v5795 = vunpack.c.l.b16 %v5756
        %v5796 = vunpack.c.l.b16 %v5757
        %v5797 = vunpack.c.l.b16 %v5758
        %v5798 = vunpack.c.l.b16 %v5759
        %v5799 = vunpack.c.l.b16 %v5760
        %v5800 = vunpack.c.l.b16 %v5761
        %v5801 = vunpack.c.l.b16 %v5762
        %v5802 = vunpack.c.l.b16 %v5763
        %v5803 = vunpack.c.l.b16 %v5764
        %v5804 = vunpack.c.l.b16 %v5765
        %v5805 = vunpack.c.l.b16 %v5766
        %v5806 = vunpack.c.l.b16 %v5767
        %v5807 = vunpack.c.l.b16 %v5768
        %v5808 = vunpack.c.l.b16 %v5769
        %v5809 = vpack.c.b16 %v5794, %v5793
        %v5810 = vpack.c.b16 %v5796, %v5795
        %v5811 = vpack.c.b16 %v5798, %v5797
        %v5812 = vpack.c.b16 %v5800, %v5799
        %v5813 = vpack.c.b16 %v5802, %v5801
        %v5814 = vpack.c.b16 %v5804, %v5803
        %v5815 = vpack.c.b16 %v5806, %v5805
        %v5816 = vpack.c.b16 %v5808, %v5807
        %5825 = vmatprep.subr.bf16.mxu0 0
        %5826 = vmatpush1.bf16.msra.mxu0 %v5809
        %5827 = vmatprep.subr.bf16.mxu0 0
        %5828 = vmatpush1.bf16.msra.mxu0 %v5810
        %5829 = vmatprep.subr.bf16.mxu0 0
        %5830 = vmatpush1.bf16.msra.mxu0 %v5811
        %5831 = vmatprep.subr.bf16.mxu0 0
        %5832 = vmatpush1.bf16.msra.mxu0 %v5812
        %5833 = vmatprep.subr.bf16.mxu0 0
        %5834 = vmatpush1.bf16.msra.mxu0 %v5813
        %5835 = vmatprep.subr.bf16.mxu0 0
        %5836 = vmatpush1.bf16.msra.mxu0 %v5814
        %5837 = vmatprep.subr.bf16.mxu0 0
        %5838 = vmatpush1.bf16.msra.mxu0 %v5815
        %5839 = vmatprep.subr.bf16.mxu0 0
        %5840 = vmatpush1.bf16.msra.mxu0 %v5816
        %5841 = vmatprep.subr.bf16.mxu0 0
        %5842 = vmatpush1.bf16.msra.mxu0 0
        %5843 = vmatprep.subr.bf16.mxu0 0
        %5844 = vmatpush1.bf16.msra.mxu0 0
        %5845 = vmatprep.subr.bf16.mxu0 0
        %5846 = vmatpush1.bf16.msra.mxu0 0
        %5847 = vmatprep.subr.bf16.mxu0 0
        %5848 = vmatpush1.bf16.msra.mxu0 0
        %5849 = vmatprep.subr.bf16.mxu0 0
        %5850 = vmatpush1.bf16.msra.mxu0 0
        %5851 = vmatprep.subr.bf16.mxu0 0
        %5852 = vmatpush1.bf16.msra.mxu0 0
        %5853 = vmatprep.subr.bf16.mxu0 0
        %5854 = vmatpush1.bf16.msra.mxu0 0
        %5855 = vmatprep.subr.bf16.mxu0 0
        %5856 = vmatpush1.bf16.msra.mxu0 0
        %5857 = vmatprep.mubr.bf16.mxu0 0
        %5858 = vmatmul.mubr.bf16.gmra.mrb[0].mxu0 %v5753
        %v5859 = vpop.f32.mrb[0].mxu0
        %v5860 = vadd.f32 %v5775, %v5859
        %v5861 = vpop.f32.mrb[0].mxu0
        %v5862 = vpop.f32.mrb[0].mxu0
        %v5863 = vpop.f32.mrb[0].mxu0
        %5864 = vdwg.mxu0
        %v5865 = vmax.f32 %v5860, 0.0
        %v5866 = vpack.c.bf16 %v5865, %v5865
        %v5867 = vld [vmem:[%s976] sm:$0xf]
        %v5868 = vld [vmem:[%s976 + $0x4] sm:$0xf]
        %v5869 = vld [vmem:[%s976 + $0x8] sm:$0xf]
        %v5870 = vld [vmem:[%s976 + $0xc] sm:$0xf]
        %v5871 = vld [vmem:[%s976 + $0x10] sm:$0xf]
        %v5872 = vld [vmem:[%s976 + $0x14] sm:$0xf]
        %v5873 = vld [vmem:[%s976 + $0x18] sm:$0xf]
        %v5874 = vld [vmem:[%s976 + $0x1c] sm:$0xf]
        %v5875 = vld [vmem:[%s976 + $0x20] sm:$0xf]
        %v5876 = vld [vmem:[%s976 + $0x24] sm:$0xf]
        %v5877 = vld [vmem:[%s976 + $0x28] sm:$0xf]
        %v5878 = vld [vmem:[%s976 + $0x2c] sm:$0xf]
        %v5879 = vld [vmem:[%s976 + $0x30] sm:$0xf]
        %v5880 = vld [vmem:[%s976 + $0x34] sm:$0xf]
        %v5881 = vld [vmem:[%s976 + $0x38] sm:$0xf]
        %v5882 = vld [vmem:[%s976 + $0x3c] sm:$0xf]
        %v5883 = vld [vmem:[%s984] sm:$0x1]
        %v5885 = vlaneseq
        %v5886 = vshrl.u32 %v5885, 7
        %v5887 = vsub.s32 0, %v5886
        %v5888 = vrot.slane %v5883, %v5887
        %v5906 = vunpack.c.l.b16 %v5867
        %v5907 = vunpack.c.l.b16 %v5868
        %v5908 = vunpack.c.l.b16 %v5869
        %v5909 = vunpack.c.l.b16 %v5870
        %v5910 = vunpack.c.l.b16 %v5871
        %v5911 = vunpack.c.l.b16 %v5872
        %v5912 = vunpack.c.l.b16 %v5873
        %v5913 = vunpack.c.l.b16 %v5874
        %v5914 = vunpack.c.l.b16 %v5875
        %v5915 = vunpack.c.l.b16 %v5876
        %v5916 = vunpack.c.l.b16 %v5877
        %v5917 = vunpack.c.l.b16 %v5878
        %v5918 = vunpack.c.l.b16 %v5879
        %v5919 = vunpack.c.l.b16 %v5880
        %v5920 = vunpack.c.l.b16 %v5881
        %v5921 = vunpack.c.l.b16 %v5882
        %v5922 = vpack.c.b16 %v5907, %v5906
        %v5923 = vpack.c.b16 %v5909, %v5908
        %v5924 = vpack.c.b16 %v5911, %v5910
        %v5925 = vpack.c.b16 %v5913, %v5912
        %v5926 = vpack.c.b16 %v5915, %v5914
        %v5927 = vpack.c.b16 %v5917, %v5916
        %v5928 = vpack.c.b16 %v5919, %v5918
        %v5929 = vpack.c.b16 %v5921, %v5920
        %5938 = vmatprep.subr.bf16.mxu0 0
        %5939 = vmatpush1.bf16.msra.mxu0 %v5922
        %5940 = vmatprep.subr.bf16.mxu0 0
        %5941 = vmatpush1.bf16.msra.mxu0 %v5923
        %5942 = vmatprep.subr.bf16.mxu0 0
        %5943 = vmatpush1.bf16.msra.mxu0 %v5924
        %5944 = vmatprep.subr.bf16.mxu0 0
        %5945 = vmatpush1.bf16.msra.mxu0 %v5925
        %5946 = vmatprep.subr.bf16.mxu0 0
        %5947 = vmatpush1.bf16.msra.mxu0 %v5926
        %5948 = vmatprep.subr.bf16.mxu0 0
        %5949 = vmatpush1.bf16.msra.mxu0 %v5927
        %5950 = vmatprep.subr.bf16.mxu0 0
        %5951 = vmatpush1.bf16.msra.mxu0 %v5928
        %5952 = vmatprep.subr.bf16.mxu0 0
        %5953 = vmatpush1.bf16.msra.mxu0 %v5929
        %5954 = vmatprep.subr.bf16.mxu0 0
        %5955 = vmatpush1.bf16.msra.mxu0 0
        %5956 = vmatprep.subr.bf16.mxu0 0
        %5957 = vmatpush1.bf16.msra.mxu0 0
        %5958 = vmatprep.subr.bf16.mxu0 0
        %5959 = vmatpush1.bf16.msra.mxu0 0
        %5960 = vmatprep.subr.bf16.mxu0 0
        %5961 = vmatpush1.bf16.msra.mxu0 0
        %5962 = vmatprep.subr.bf16.mxu0 0
        %5963 = vmatpush1.bf16.msra.mxu0 0
        %5964 = vmatprep.subr.bf16.mxu0 0
        %5965 = vmatpush1.bf16.msra.mxu0 0
        %5966 = vmatprep.subr.bf16.mxu0 0
        %5967 = vmatpush1.bf16.msra.mxu0 0
        %5968 = vmatprep.subr.bf16.mxu0 0
        %5969 = vmatpush1.bf16.msra.mxu0 0
        %5970 = vmatprep.mubr.bf16.mxu0 0
        %5971 = vmatmul.mubr.bf16.gmra.mrb[0].mxu0 %v5866
        %v5972 = vpop.f32.mrb[0].mxu0
        %v5973 = vadd.f32 %v5888, %v5972
        %v5974 = vpop.f32.mrb[0].mxu0
        %v5975 = vpop.f32.mrb[0].mxu0
        %v5976 = vpop.f32.mrb[0].mxu0
        %5977 = vdwg.mxu0
        %v5978 = vadd.f32 %v5752, %v5973
        %v5979 = vld [vmem:[%s1118] sm:$0x1]
        %v5980 = vld [vmem:[%s1000] sm:$0x1]
        %v5981 = vsel %vm5724, %v5978, 0.0
        %5982 = vadd.xlane.f32.xlu0 %v5981
        %v5983 = vpop.xlane.xlu0 %5982
        %v5984 = vmul.f32 %v5983, %v5728
        %v5985 = vsub.f32 %v5978, %v5984
        %v5986 = vmul.f32 %v5985, %v5985
        %v5987 = vsel %vm5724, %v5986, 0.0
        %5988 = vadd.xlane.f32.xlu0 %v5987
        %v5989 = vpop.xlane.xlu0 %5988
        %v5990 = vmul.f32 %v5989, %v5728
        %v5991 = vadd.f32 %v5990, 1e-05
        %v5992 = vrsqrt.pop %v5991
        %v5993 = vmul.f32 %v5985, %v5992
        %v5995 = vlaneseq
        %v5996 = vshrl.u32 %v5995, 7
        %v5997 = vsub.s32 0, %v5996
        %v5998 = vrot.slane %v5979, %v5997
        %v6000 = vmul.f32 %v5993, %v5998
        %v6002 = vlaneseq
        %v6003 = vshrl.u32 %v6002, 7
        %v6004 = vsub.s32 0, %v6003
        %v6005 = vrot.slane %v5980, %v6004
        %v6007 = vadd.f32 %v6000, %v6005
        %6008 = vst [vmem:[#allocation2] sm:$0x3] %v6007
        %p6009 = scmp.eq.s32.totalorder %s40, 5
        // Predicated region
        $region173: #{bilstm_transformer_forward.1} parent=119 // pred_check
          %p6010 = pneg %p6009
        $region174: #{bilstm_transformer_forward.1} parent=119 // pred_check_branch
          %6012 = sbr.rel (%p6010) target = $region176
        $region175: #{bilstm_transformer_forward.1} parent=119 // pred_region
          %v6013 = vld [vmem:[%s19] sm:$0x1]
          %v6014 = vld [vmem:[%s20] sm:$0x1]
          %v6015 = vsel %vm5724, %v6007, 0.0
          %6016 = vadd.xlane.f32.xlu0 %v6015
          %v6017 = vpop.xlane.xlu0 %6016
          %v6018 = vmul.f32 %v6017, %v5728
          %v6019 = vsub.f32 %v6007, %v6018
          %v6020 = vmul.f32 %v6019, %v6019
          %v6021 = vsel %vm5724, %v6020, 0.0
          %6022 = vadd.xlane.f32.xlu0 %v6021
          %v6023 = vpop.xlane.xlu0 %6022
          %v6024 = vmul.f32 %v6023, %v5728
          %v6025 = vadd.f32 %v6024, 1e-05
          %v6026 = vrsqrt.pop %v6025
          %v6027 = vmul.f32 %v6019, %v6026
          %v6029 = vlaneseq
          %v6030 = vshrl.u32 %v6029, 7
          %v6031 = vsub.s32 0, %v6030
          %v6032 = vrot.slane %v6013, %v6031
          %v6034 = vmul.f32 %v6027, %v6032
          %v6036 = vlaneseq
          %v6037 = vshrl.u32 %v6036, 7
          %v6038 = vsub.s32 0, %v6037
          %v6039 = vrot.slane %v6014, %v6038
          %v6041 = vadd.f32 %v6034, %v6039
          %v6042 = vpack.c.bf16 %v6041, %v6041
          %v6043 = vld [vmem:[%s21] sm:$0xf]
          %v6044 = vld [vmem:[%s21 + $0x4] sm:$0xf]
          %v6045 = vld [vmem:[%s21 + $0x8] sm:$0xf]
          %v6046 = vld [vmem:[%s21 + $0xc] sm:$0xf]
          %v6047 = vld [vmem:[%s21 + $0x10] sm:$0xf]
          %v6048 = vld [vmem:[%s21 + $0x14] sm:$0xf]
          %v6049 = vld [vmem:[%s21 + $0x18] sm:$0xf]
          %v6050 = vld [vmem:[%s21 + $0x1c] sm:$0xf]
          %v6051 = vld [vmem:[%s21 + $0x20] sm:$0xf]
          %v6052 = vld [vmem:[%s21 + $0x24] sm:$0xf]
          %v6053 = vld [vmem:[%s21 + $0x28] sm:$0xf]
          %v6054 = vld [vmem:[%s21 + $0x2c] sm:$0xf]
          %v6055 = vld [vmem:[%s21 + $0x30] sm:$0xf]
          %v6056 = vld [vmem:[%s21 + $0x34] sm:$0xf]
          %v6057 = vld [vmem:[%s21 + $0x38] sm:$0xf]
          %v6058 = vld [vmem:[%s21 + $0x3c] sm:$0xf]
          %v6059 = vld [vmem:[%s22] sm:$0x1]
          %v6061 = vlaneseq
          %v6062 = vshrl.u32 %v6061, 7
          %v6063 = vsub.s32 0, %v6062
          %v6064 = vrot.slane %v6059, %v6063
          %v6082 = vunpack.c.l.b16 %v6043
          %v6083 = vunpack.c.l.b16 %v6044
          %v6084 = vunpack.c.l.b16 %v6045
          %v6085 = vunpack.c.l.b16 %v6046
          %v6086 = vunpack.c.l.b16 %v6047
          %v6087 = vunpack.c.l.b16 %v6048
          %v6088 = vunpack.c.l.b16 %v6049
          %v6089 = vunpack.c.l.b16 %v6050
          %v6090 = vunpack.c.l.b16 %v6051
          %v6091 = vunpack.c.l.b16 %v6052
          %v6092 = vunpack.c.l.b16 %v6053
          %v6093 = vunpack.c.l.b16 %v6054
          %v6094 = vunpack.c.l.b16 %v6055
          %v6095 = vunpack.c.l.b16 %v6056
          %v6096 = vunpack.c.l.b16 %v6057
          %v6097 = vunpack.c.l.b16 %v6058
          %v6098 = vpack.c.b16 %v6083, %v6082
          %v6099 = vpack.c.b16 %v6085, %v6084
          %v6100 = vpack.c.b16 %v6087, %v6086
          %v6101 = vpack.c.b16 %v6089, %v6088
          %v6102 = vpack.c.b16 %v6091, %v6090
          %v6103 = vpack.c.b16 %v6093, %v6092
          %v6104 = vpack.c.b16 %v6095, %v6094
          %v6105 = vpack.c.b16 %v6097, %v6096
          %6114 = vmatprep.subr.bf16.mxu0 0
          %6115 = vmatpush1.bf16.msra.mxu0 %v6098
          %6116 = vmatprep.subr.bf16.mxu0 0
          %6117 = vmatpush1.bf16.msra.mxu0 %v6099
          %6118 = vmatprep.subr.bf16.mxu0 0
          %6119 = vmatpush1.bf16.msra.mxu0 %v6100
          %6120 = vmatprep.subr.bf16.mxu0 0
          %6121 = vmatpush1.bf16.msra.mxu0 %v6101
          %6122 = vmatprep.subr.bf16.mxu0 0
          %6123 = vmatpush1.bf16.msra.mxu0 %v6102
          %6124 = vmatprep.subr.bf16.mxu0 0
          %6125 = vmatpush1.bf16.msra.mxu0 %v6103
          %6126 = vmatprep.subr.bf16.mxu0 0
          %6127 = vmatpush1.bf16.msra.mxu0 %v6104
          %6128 = vmatprep.subr.bf16.mxu0 0
          %6129 = vmatpush1.bf16.msra.mxu0 %v6105
          %6130 = vmatprep.subr.bf16.mxu0 0
          %6131 = vmatpush1.bf16.msra.mxu0 0
          %6132 = vmatprep.subr.bf16.mxu0 0
          %6133 = vmatpush1.bf16.msra.mxu0 0
          %6134 = vmatprep.subr.bf16.mxu0 0
          %6135 = vmatpush1.bf16.msra.mxu0 0
          %6136 = vmatprep.subr.bf16.mxu0 0
          %6137 = vmatpush1.bf16.msra.mxu0 0
          %6138 = vmatprep.subr.bf16.mxu0 0
          %6139 = vmatpush1.bf16.msra.mxu0 0
          %6140 = vmatprep.subr.bf16.mxu0 0
          %6141 = vmatpush1.bf16.msra.mxu0 0
          %6142 = vmatprep.subr.bf16.mxu0 0
          %6143 = vmatpush1.bf16.msra.mxu0 0
          %6144 = vmatprep.subr.bf16.mxu0 0
          %6145 = vmatpush1.bf16.msra.mxu0 0
          %6146 = vmatprep.mubr.bf16.mxu0 0
          %6147 = vmatmul.mubr.bf16.gmra.mrb[0].mxu0 %v6042
          %v6148 = vpop.f32.mrb[0].mxu0
          %v6149 = vadd.f32 %v6064, %v6148
          %v6150 = vpop.f32.mrb[0].mxu0
          %v6151 = vpop.f32.mrb[0].mxu0
          %v6152 = vpop.f32.mrb[0].mxu0
          %6153 = vdwg.mxu0
          %v6154 = vpack.c.bf16 %v6149, %v6149
          %v6155 = vld [vmem:[%s23] sm:$0xf]
          %v6156 = vld [vmem:[%s23 + $0x4] sm:$0xf]
          %v6157 = vld [vmem:[%s23 + $0x8] sm:$0xf]
          %v6158 = vld [vmem:[%s23 + $0xc] sm:$0xf]
          %v6159 = vld [vmem:[%s23 + $0x10] sm:$0xf]
          %v6160 = vld [vmem:[%s23 + $0x14] sm:$0xf]
          %v6161 = vld [vmem:[%s23 + $0x18] sm:$0xf]
          %v6162 = vld [vmem:[%s23 + $0x1c] sm:$0xf]
          %v6163 = vld [vmem:[%s23 + $0x20] sm:$0xf]
          %v6164 = vld [vmem:[%s23 + $0x24] sm:$0xf]
          %v6165 = vld [vmem:[%s23 + $0x28] sm:$0xf]
          %v6166 = vld [vmem:[%s23 + $0x2c] sm:$0xf]
          %v6167 = vld [vmem:[%s23 + $0x30] sm:$0xf]
          %v6168 = vld [vmem:[%s23 + $0x34] sm:$0xf]
          %v6169 = vld [vmem:[%s23 + $0x38] sm:$0xf]
          %v6170 = vld [vmem:[%s23 + $0x3c] sm:$0xf]
          %v6171 = vld [vmem:[%s24] sm:$0x1]
          %v6173 = vlaneseq
          %v6174 = vshrl.u32 %v6173, 7
          %v6175 = vsub.s32 0, %v6174
          %v6176 = vrot.slane %v6171, %v6175
          %v6194 = vunpack.c.l.b16 %v6155
          %v6195 = vunpack.c.l.b16 %v6156
          %v6196 = vunpack.c.l.b16 %v6157
          %v6197 = vunpack.c.l.b16 %v6158
          %v6198 = vunpack.c.l.b16 %v6159
          %v6199 = vunpack.c.l.b16 %v6160
          %v6200 = vunpack.c.l.b16 %v6161
          %v6201 = vunpack.c.l.b16 %v6162
          %v6202 = vunpack.c.l.b16 %v6163
          %v6203 = vunpack.c.l.b16 %v6164
          %v6204 = vunpack.c.l.b16 %v6165
          %v6205 = vunpack.c.l.b16 %v6166
          %v6206 = vunpack.c.l.b16 %v6167
          %v6207 = vunpack.c.l.b16 %v6168
          %v6208 = vunpack.c.l.b16 %v6169
          %v6209 = vunpack.c.l.b16 %v6170
          %v6210 = vpack.c.b16 %v6195, %v6194
          %v6211 = vpack.c.b16 %v6197, %v6196
          %v6212 = vpack.c.b16 %v6199, %v6198
          %v6213 = vpack.c.b16 %v6201, %v6200
          %v6214 = vpack.c.b16 %v6203, %v6202
          %v6215 = vpack.c.b16 %v6205, %v6204
          %v6216 = vpack.c.b16 %v6207, %v6206
          %v6217 = vpack.c.b16 %v6209, %v6208
          %6226 = vmatprep.subr.bf16.mxu0 0
          %6227 = vmatpush1.bf16.msra.mxu0 %v6210
          %6228 = vmatprep.subr.bf16.mxu0 0
          %6229 = vmatpush1.bf16.msra.mxu0 %v6211
          %6230 = vmatprep.subr.bf16.mxu0 0
          %6231 = vmatpush1.bf16.msra.mxu0 %v6212
          %6232 = vmatprep.subr.bf16.mxu0 0
          %6233 = vmatpush1.bf16.msra.mxu0 %v6213
          %6234 = vmatprep.subr.bf16.mxu0 0
          %6235 = vmatpush1.bf16.msra.mxu0 %v6214
          %6236 = vmatprep.subr.bf16.mxu0 0
          %6237 = vmatpush1.bf16.msra.mxu0 %v6215
          %6238 = vmatprep.subr.bf16.mxu0 0
          %6239 = vmatpush1.bf16.msra.mxu0 %v6216
          %6240 = vmatprep.subr.bf16.mxu0 0
          %6241 = vmatpush1.bf16.msra.mxu0 %v6217
          %6242 = vmatprep.subr.bf16.mxu0 0
          %6243 = vmatpush1.bf16.msra.mxu0 0
          %6244 = vmatprep.subr.bf16.mxu0 0
          %6245 = vmatpush1.bf16.msra.mxu0 0
          %6246 = vmatprep.subr.bf16.mxu0 0
          %6247 = vmatpush1.bf16.msra.mxu0 0
          %6248 = vmatprep.subr.bf16.mxu0 0
          %6249 = vmatpush1.bf16.msra.mxu0 0
          %6250 = vmatprep.subr.bf16.mxu0 0
          %6251 = vmatpush1.bf16.msra.mxu0 0
          %6252 = vmatprep.subr.bf16.mxu0 0
          %6253 = vmatpush1.bf16.msra.mxu0 0
          %6254 = vmatprep.subr.bf16.mxu0 0
          %6255 = vmatpush1.bf16.msra.mxu0 0
          %6256 = vmatprep.subr.bf16.mxu0 0
          %6257 = vmatpush1.bf16.msra.mxu0 0
          %6258 = vmatprep.mubr.bf16.mxu0 0
          %6259 = vmatmul.mubr.bf16.gmra.mrb[0].mxu0 %v6154
          %v6260 = vpop.f32.mrb[0].mxu0
          %v6261 = vadd.f32 %v6176, %v6260
          %v6262 = vpop.f32.mrb[0].mxu0
          %v6263 = vpop.f32.mrb[0].mxu0
          %v6264 = vpop.f32.mrb[0].mxu0
          %6265 = vdwg.mxu0
          %v6266 = vmax.f32 %v6261, 0.0
          %6267 = vst [vmem:[#allocation19] sm:$0x3] %v6266
        $region176: #{bilstm_transformer_forward.1} parent=119 // pred_fallthru
          _
        // Predicated region
        $region177: #{bilstm_transformer_forward.1} parent=119 // pred_check
          %p6268 = pneg %p638
        $region178: #{bilstm_transformer_forward.1} parent=119 // pred_check_branch
          %6270 = sbr.rel (%p6268) target = $region180
        $region179: #{bilstm_transformer_forward.1} parent=119 // pred_region
          %s6272 = ssub.s32 32, 32
          %6273 = vsyncadd [#allocation5], %s6272
          %s6275 = sshll.u32 [#allocation19], 4
          %s6276 = int_to_ptr.vmem [resolvable:$true] %s6275
          %6278 = dma.vmem_to_hbm [thread:$0]  %s6276, 32, %s25, [#allocation5]
        $region180: #{bilstm_transformer_forward.1} parent=119 // pred_fallthru
          _
        // Predicated region
        $region181: #{bilstm_transformer_forward.1} parent=119 // pred_check
          %p6279 = pneg %p638
        $region182: #{bilstm_transformer_forward.1} parent=119 // pred_check_branch
          %6281 = sbr.rel (%p6279) target = $region184
        $region183: #{bilstm_transformer_forward.1} parent=119 // pred_region
          %6282 = dma.done [#allocation5], 32
        $region184: #{bilstm_transformer_forward.1} parent=119 // pred_fallthru
          _
      $region120: #{bilstm_transformer_forward.1} parent=5 // pred_fallthru
        _
      %p6283 = scmp.le.s32.totalorder 2, %s35
      // Predicated region
      $region185: #{bilstm_transformer_forward.1} parent=5 // pred_check
        %p6284 = pneg %p6283
      $region186: #{bilstm_transformer_forward.1} parent=5 // pred_check_branch
        %6286 = sbr.rel (%p6284) target = $region188
      $region187: #{bilstm_transformer_forward.1} parent=5 // pred_region
        %s6287 = ssub.s32 %s35, 2
      $region188: #{bilstm_transformer_forward.1} parent=5 // pred_fallthru
        _
    $region6: #{bilstm_transformer_forward.1} parent=1 // loop_footer
      %s39 = sadd.s32 1, %s35
    $region7: #{bilstm_transformer_forward.1} parent=1 // loop_footer_branch
      %34 = sbr.rel target = $region3
    $region8: #{bilstm_transformer_forward.1} parent=1 // loop_exit
      _
    %6288 = vsyncpa [#allocation4], 1
    %s6289 = scalar_lea.sflag [#allocation4], 1
    %6290 = vsyncpa %s6289, 1
    %6291 = vsyncpa [#allocation7], 1
    %6292 = vsyncpa [#allocation10], 1
    %6293 = vsyncpa [#allocation5], 1
    %s6294 = scalar_lea.sflag [#allocation5], 1
    %6295 = vsyncpa %s6294, 1

</llo_original>
